<compile_context>
chip_gen: v5e
topology: v5e:2x2
jax: 0.10.0
libtpu: 0.0.40
codegen_flags: <defaults>
</compile_context>

<pallas_src>
import functools

import numpy as np
import jax
import jax.numpy as jnp
from jax import lax
from jax.experimental import pallas as pl
from jax.experimental.pallas import tpu as pltpu

_F32 = jnp.float32
_BF16 = jnp.bfloat16


# ---------------------------------------------------------------------------
# Host-side (one-time) weight packing helpers
# ---------------------------------------------------------------------------
def _banded_stack(w_hwio, w_in):
    """Per-kernel-row banded matrices for a VALID conv on a channel-blocked
    columns layout (column index = ci*w_in + x).

    Returns (kh, cin*w_in, cout*w_out) with
      out[ki, ci*w_in + j + kj, co*w_out + j] = w[ki, kj, ci, co]
    so that  sum_ki  act[ki:ki+h_out, :] @ out[ki]  == cross-correlation(act).
    """
    w = np.asarray(w_hwio, np.float32)
    kh, kw, cin, cout = w.shape
    w_out = w_in - kw + 1
    ci = np.arange(cin)[:, None]
    co = np.arange(cout)[None, :]
    banded = np.zeros((kh, cin * w_in, cout * w_out), np.float32)
    for ki in range(kh):
        for kj in range(kw):
            for j in range(w_out):
                banded[ki, ci * w_in + j + kj, co * w_out + j] = w[ki, kj]
    return banded


def _pool_col_select(ch, w_in, w_out, stride, rows):
    """0/1 matrix mapping column c*w_in + stride*j  ->  c*w_out + j."""
    s = np.zeros((rows, ch * w_out), np.float32)
    for c in range(ch):
        for j in range(w_out):
            s[c * w_in + stride * j, c * w_out + j] = 1.0
    return s


def pack_params(p):
    """One-time host-side repack of the conv/fc weights into the banded /
    selection operands consumed by the kernels.  MXU operands are bf16."""
    f32 = lambda a: jnp.asarray(a, jnp.float32)
    bf16 = lambda a: jnp.asarray(a, jnp.bfloat16)
    rep = lambda a, r: np.repeat(np.asarray(a, np.float32), r)[None, :]
    pk = {}
    # ----- head: Conv(1->8,k5)+ReLU+Pool3 ; Conv(8->16,k3)+ReLU+Pool2 -------
    pk["h_conv1"] = bf16(_banded_stack(p["l1_w"], 70))          # (5, 70, 528)
    pk["h_bias1"] = f32(rep(p["l1_b"], 66))                     # (1, 528)
    pk["h_sc1"] = bf16(_pool_col_select(8, 66, 22, 3, 526))     # (526, 176)
    pk["h_conv2"] = bf16(_banded_stack(p["l2_w"], 22))          # (3, 176, 320)
    pk["h_bias2"] = f32(rep(p["l2_b"], 20))                     # (1, 320)
    pk["h_sc2"] = bf16(_pool_col_select(16, 20, 10, 2, 319))    # (319, 160)
    # ----- tail convs (pitch-10 / pitch-6 / pitch-4 channel-blocked cols) ---
    pk["t_conv1"] = bf16(_banded_stack(p["c1_w"], 10))          # (5, 170, 192)
    pk["t_bias1"] = f32(rep(p["c1_b"], 6))                      # (1, 192)
    pk["bn1_g"] = f32(p["bn1_g"])
    pk["bn1_b"] = f32(p["bn1_b"])
    pk["t_conv2"] = bf16(_banded_stack(p["c2_w"], 6))           # (3, 192, 256)
    pk["t_bias2"] = f32(rep(p["c2_b"], 4))                      # (1, 256)
    pk["bn2_g"] = f32(p["bn2_g"])
    pk["bn2_b"] = f32(p["bn2_b"])
    pk["t_conv3"] = bf16(_banded_stack(p["c3_w"], 4)[0])        # (256, 256)
    pk["t_bias3"] = f32(rep(p["c3_b"], 4))                      # (1, 256)
    pk["bn3_g"] = f32(p["bn3_g"])
    pk["bn3_b"] = f32(p["bn3_b"])
    # fc1 re-sliced so the NCHW flatten needs no runtime transpose; fc GEMMs
    # are <1% of the FLOPs so they stay f32 for accuracy.
    fc1 = np.asarray(p["fc1_w"], np.float32).reshape(64, 4, 4, 128)
    pk["t_fc1"] = f32(np.stack([fc1[:, i, :, :].reshape(256, 128)
                                for i in range(4)]))            # (4, 256, 128)
    pk["t_fc1b"] = f32(np.asarray(p["fc1_b"], np.float32)[None, :])
    pk["t_fc2"] = f32(p["fc2_w"])
    pk["t_fc2b"] = f32(np.asarray(p["fc2_b"], np.float32)[None, :])
    pk["t_fc3"] = f32(p["fc3_w"])
    pk["t_fc3b"] = f32(np.asarray(p["fc3_b"], np.float32)[None, :])
    return pk


# ---------------------------------------------------------------------------
# Per-batch-tile (O(bt^2), bt <= 8) selection / compaction constants
# ---------------------------------------------------------------------------
def _head_row_selects(bt):
    sr1 = np.zeros((bt * 22, bt * 70 - 6), np.float32)   # pool3 row select
    sr2 = np.zeros((bt * 10, bt * 22 - 3), np.float32)   # pool2 row select
    for b in range(bt):
        for j in range(22):
            sr1[b * 22 + j, b * 70 + 3 * j] = 1.0
        for j in range(10):
            sr2[b * 10 + j, b * 22 + 2 * j] = 1.0
    return sr1, sr2


def _compaction(bt, in_pitch, valid, conv_shrink):
    """0/1 matrix dropping the cross-image garbage rows of a row-stacked conv
    output: row b*in_pitch + i -> b*valid + i, i < valid."""
    m = np.zeros((bt * valid, bt * in_pitch - conv_shrink), np.float32)
    for b in range(bt):
        for i in range(valid):
            m[b * valid + i, b * in_pitch + i] = 1.0
    return m


def _fc_row_select(bt):
    """rsel[i, t, t*4 + i] = 1 : picks spatial row i of image t (per tile)."""
    r = np.zeros((4, bt, bt * 4), np.float32)
    for i in range(4):
        for t in range(bt):
            r[i, t, t * 4 + i] = 1.0
    return r


# ---------------------------------------------------------------------------
# Kernel 1: neighborhood head (bt row-stacked images per grid step)
# ---------------------------------------------------------------------------
def _head_kernel(x_ref, c1_ref, b1_ref, sc1_ref, sr1_ref,
                 c2_ref, b2_ref, sc2_ref, sr2_ref, o_ref, *, bt):
    """Conv5x5(1->8)+ReLU+MaxPool3 ; Conv3x3(8->16)+ReLU+MaxPool2 on `bt`
    images row-stacked at pitch 70.  Rows that straddle an image boundary are
    garbage but are never picked by the block-diagonal sr1/sr2 selections."""
    x = x_ref[...].astype(_F32)                                  # (bt*70, 70)
    r1 = bt * 70 - 4
    # Conv2d(1->8, k=5): 5 banded matmuls on the stacked rows (bf16 operands).
    y = jnp.dot(x[0:r1, :].astype(_BF16), c1_ref[0], preferred_element_type=_F32)
    for ki in range(1, 5):
        y = y + jnp.dot(x[ki:ki + r1, :].astype(_BF16), c1_ref[ki],
                        preferred_element_type=_F32)
    y = jnp.maximum(y + b1_ref[...], 0.0)                        # (r1, 528)
    # MaxPool2d(3,3): lane-shifted max + 0/1 column select, sublane-shifted
    # max + block-diagonal row select.  (Shifted slices could use pltpu.roll
    # to stay on the XLU; kept as slices for simplicity.)
    m = jnp.maximum(jnp.maximum(y[:, 0:526], y[:, 1:527]), y[:, 2:528])
    m = jnp.dot(m.astype(_BF16), sc1_ref[...], preferred_element_type=_F32)
    m = jnp.maximum(jnp.maximum(m[0:r1 - 2, :], m[1:r1 - 1, :]), m[2:r1, :])
    p = jnp.dot(sr1_ref[...], m.astype(_BF16),
                preferred_element_type=_F32)                     # (bt*22, 176)
    # Conv2d(8->16, k=3)
    r2 = bt * 22 - 2
    y2 = jnp.dot(p[0:r2, :].astype(_BF16), c2_ref[0], preferred_element_type=_F32)
    for ki in range(1, 3):
        y2 = y2 + jnp.dot(p[ki:ki + r2, :].astype(_BF16), c2_ref[ki],
                          preferred_element_type=_F32)
    y2 = jnp.maximum(y2 + b2_ref[...], 0.0)                      # (r2, 320)
    # MaxPool2d(2,2)
    m2 = jnp.maximum(y2[:, 0:319], y2[:, 1:320])
    m2 = jnp.dot(m2.astype(_BF16), sc2_ref[...], preferred_element_type=_F32)
    m2 = jnp.maximum(m2[0:r2 - 1, :], m2[1:r2, :])
    o_ref[...] = jnp.dot(sr2_ref[...], m2.astype(_BF16),
                         preferred_element_type=_F32).astype(o_ref.dtype)


# ---------------------------------------------------------------------------
# BatchNorm helpers: masked in-kernel partial sums + O(C) XLA finalize
# ---------------------------------------------------------------------------
def _masked_batch_sums(a, bt, rows_per_img, batch):
    """Per-tile sum(x) / sum(x^2) over rows of real (non batch-padding)
    images, via VPU masked multiply + sublane reduce (no M=1 matmuls)."""
    lim = (batch - pl.program_id(0) * bt) * rows_per_img
    ridx = lax.broadcasted_iota(jnp.int32, (a.shape[0], 1), 0)
    msk = (ridx < lim).astype(_F32)
    s1 = jnp.sum(a * msk, axis=0, keepdims=True)
    s2 = jnp.sum(a * a * msk, axis=0, keepdims=True)
    return s1, s2


def _bn_finalize(s1_tiles, s2_tiles, gamma, beta, count, ch, spatial, eps=1e-5):
    """O(C) XLA glue: fold per-tile partial sums and spatial columns, form
    training-mode mean/var, return per-column scale/shift for the next kernel."""
    s1 = jnp.sum(s1_tiles, axis=(0, 1)).reshape(ch, spatial).sum(axis=1)
    s2 = jnp.sum(s2_tiles, axis=(0, 1)).reshape(ch, spatial).sum(axis=1)
    mean = s1 / count
    var = s2 / count - mean * mean                       # biased (training) var
    scale = gamma * jax.lax.rsqrt(var + eps)
    shift = beta - mean * scale
    return (jnp.repeat(scale, spatial)[None, :],
            jnp.repeat(shift, spatial)[None, :])


# ---------------------------------------------------------------------------
# Tail kernels (each gridded over batch tiles, "parallel")
# ---------------------------------------------------------------------------
def _tail1_kernel(x_ref, w_ref, b_ref, cmp_ref, o_ref, s1_ref, s2_ref,
                  *, bt, batch):
    """Conv2d(17->32, k=5) + bias + ReLU on pitch-10 rows (district channel
    already concatenated in the lane dim); compact to 6 valid rows/image and
    emit masked BN1 partial sums."""
    x = x_ref[...].astype(_F32)                                  # (bt*10, 170)
    r = bt * 10 - 4
    y = jnp.dot(x[0:r, :].astype(_BF16), w_ref[0], preferred_element_type=_F32)
    for ki in range(1, 5):
        y = y + jnp.dot(x[ki:ki + r, :].astype(_BF16), w_ref[ki],
                        preferred_element_type=_F32)
    y = jnp.maximum(y + b_ref[...], 0.0)                         # (r, 192)
    a = jnp.dot(cmp_ref[...], y.astype(_BF16),
                preferred_element_type=_F32)                     # (bt*6, 192)
    o_ref[...] = a.astype(o_ref.dtype)
    s1, s2 = _masked_batch_sums(a, bt, 6, batch)
    s1_ref[0] = s1
    s2_ref[0] = s2


def _tail2_kernel(a_ref, sc_ref, sh_ref, w_ref, b_ref, cmp_ref,
                  o_ref, s1_ref, s2_ref, *, bt, batch):
    """Apply BN1, Conv2d(32->64, k=3) + bias + ReLU on pitch-6 rows, compact
    to 4 valid rows/image, emit masked BN2 partial sums."""
    x = a_ref[...].astype(_F32) * sc_ref[...] + sh_ref[...]      # BN1 (f32)
    r = bt * 6 - 2
    z = jnp.dot(x[0:r, :].astype(_BF16), w_ref[0], preferred_element_type=_F32)
    for ki in range(1, 3):
        z = z + jnp.dot(x[ki:ki + r, :].astype(_BF16), w_ref[ki],
                        preferred_element_type=_F32)
    z = jnp.maximum(z + b_ref[...], 0.0)                         # (r, 256)
    a = jnp.dot(cmp_ref[...], z.astype(_BF16),
                preferred_element_type=_F32)                     # (bt*4, 256)
    o_ref[...] = a.astype(o_ref.dtype)
    s1, s2 = _masked_batch_sums(a, bt, 4, batch)
    s1_ref[0] = s1
    s2_ref[0] = s2


def _tail3_kernel(a_ref, sc_ref, sh_ref, w_ref, b_ref,
                  o_ref, s1_ref, s2_ref, *, bt, batch):
    """Apply BN2, Conv2d(64->64, k=1) + bias + ReLU (single K=256 matmul, no
    invalid rows), emit masked BN3 partial sums."""
    x = a_ref[...].astype(_F32) * sc_ref[...] + sh_ref[...]
    v = jnp.dot(x.astype(_BF16), w_ref[...], preferred_element_type=_F32)
    v = jnp.maximum(v + b_ref[...], 0.0)                         # (bt*4, 256)
    o_ref[...] = v.astype(o_ref.dtype)
    s1, s2 = _masked_batch_sums(v, bt, 4, batch)
    s1_ref[0] = s1
    s2_ref[0] = s2


def _tail4_kernel(a_ref, sc_ref, sh_ref, rsel_ref,
                  f1_ref, f1b_ref, f2_ref, f2b_ref, f3_ref, f3b_ref,
                  o_ref, *, bt):
    """Apply BN3, NCHW flatten (absorbed into the pre-sliced fc1 weight plus
    tiny per-tile row selections) and the fc1->fc2->fc3 stack (f32 GEMMs)."""
    v = a_ref[...].astype(_F32) * sc_ref[...] + sh_ref[...]      # (bt*4, 256)
    h = jnp.dot(jnp.dot(rsel_ref[0], v, preferred_element_type=_F32),
                f1_ref[0], preferred_element_type=_F32)
    for i in range(1, 4):
        h = h + jnp.dot(jnp.dot(rsel_ref[i], v, preferred_element_type=_F32),
                        f1_ref[i], preferred_element_type=_F32)
    h = jnp.maximum(h + f1b_ref[...], 0.0)                       # (bt, 128)
    h = jnp.maximum(jnp.dot(h, f2_ref[...], preferred_element_type=_F32)
                    + f2b_ref[...], 0.0)                         # (bt, 64)
    o_ref[...] = jnp.dot(h, f3_ref[...], preferred_element_type=_F32) + f3b_ref[...]


# ---------------------------------------------------------------------------
# Full forward pass (5 batch-tiled, "parallel" pallas_calls + O(C) glue)
# ---------------------------------------------------------------------------
def _bcast_spec(arr):
    nd = np.ndim(arr)
    return pl.BlockSpec(tuple(np.shape(arr)), lambda i, _nd=nd: (0,) * _nd)


def topological_nn_forward(packed, district_map, neighborhood_map):
    b = neighborhood_map.shape[0]
    # Batch tile: bt*66 >= 256 fills the v6e/v7x MXU rows; bt=8 keeps every
    # 2-D block sublane(8)-aligned and per-step VMEM at a few MiB (fits the
    # scoped defaults on v5e/v6e/v7x).  Small batches run as a single tile.
    bt = b if b <= 8 else 8
    num_tiles = -(-b // bt)
    bp = num_tiles * bt

    xn = neighborhood_map.reshape(b, 70, 70).astype(_BF16)
    xd = district_map.reshape(b, 10, 10).astype(_BF16)
    if bp != b:                       # pad batch to a tile multiple; padded
        pad = ((0, bp - b), (0, 0), (0, 0))   # images are masked out of the
        xn = jnp.pad(xn, pad)                 # BN stats and sliced off at the
        xd = jnp.pad(xd, pad)                 # end.
    xn = xn.reshape(bp * 70, 70)
    xd = xd.reshape(bp * 10, 10)

    sr1_np, sr2_np = _head_row_selects(bt)
    sr1 = jnp.asarray(sr1_np, _BF16)
    sr2 = jnp.asarray(sr2_np, _BF16)
    cmp1 = jnp.asarray(_compaction(bt, 10, 6, 4), _BF16)
    cmp2 = jnp.asarray(_compaction(bt, 6, 4, 2), _BF16)
    rsel = jnp.asarray(_fc_row_select(bt), _F32)

    cparams = pltpu.CompilerParams(dimension_semantics=("parallel",),
                                   vmem_limit_bytes=32 * 1024 * 1024)

    # ---- kernel 1: neighborhood head ---------------------------------------
    head_consts = (packed["h_conv1"], packed["h_bias1"], packed["h_sc1"], sr1,
                   packed["h_conv2"], packed["h_bias2"], packed["h_sc2"], sr2)
    xh = pl.pallas_call(
        functools.partial(_head_kernel, bt=bt),
        out_shape=jax.ShapeDtypeStruct((bp * 10, 160), _BF16),
        grid=(num_tiles,),
        in_specs=[pl.BlockSpec((bt * 70, 70), lambda i: (i, 0))]
                 + [_bcast_spec(c) for c in head_consts],
        out_specs=pl.BlockSpec((bt * 10, 160), lambda i: (i, 0)),
        compiler_params=cparams,
    )(xn, *head_consts)

    # Channel concat (head channels 0..15, district channel 16) in the lane dim
    xcat = jnp.concatenate([xh, xd], axis=1)                     # (bp*10, 170)

    # ---- kernel 2: conv1(17->32,k5)+ReLU + BN1 partial sums ----------------
    t1_consts = (packed["t_conv1"], packed["t_bias1"], cmp1)
    out1, st1a, st1b = pl.pallas_call(
        functools.partial(_tail1_kernel, bt=bt, batch=b),
        out_shape=(jax.ShapeDtypeStruct((bp * 6, 192), _BF16),
                   jax.ShapeDtypeStruct((num_tiles, 1, 192), _F32),
                   jax.ShapeDtypeStruct((num_tiles, 1, 192), _F32)),
        grid=(num_tiles,),
        in_specs=[pl.BlockSpec((bt * 10, 170), lambda i: (i, 0))]
                 + [_bcast_spec(c) for c in t1_consts],
        out_specs=(pl.BlockSpec((bt * 6, 192), lambda i: (i, 0)),
                   pl.BlockSpec((1, 1, 192), lambda i: (i, 0, 0)),
                   pl.BlockSpec((1, 1, 192), lambda i: (i, 0, 0))),
        compiler_params=cparams,
    )(xcat, *t1_consts)
    sc1, sh1 = _bn_finalize(st1a, st1b, packed["bn1_g"], packed["bn1_b"],
                            count=b * 36, ch=32, spatial=6)

    # ---- kernel 3: BN1-apply + conv2(32->64,k3)+ReLU + BN2 partial sums ----
    t2_consts = (packed["t_conv2"], packed["t_bias2"], cmp2)
    out2, st2a, st2b = pl.pallas_call(
        functools.partial(_tail2_kernel, bt=bt, batch=b),
        out_shape=(jax.ShapeDtypeStruct((bp * 4, 256), _BF16),
                   jax.ShapeDtypeStruct((num_tiles, 1, 256), _F32),
                   jax.ShapeDtypeStruct((num_tiles, 1, 256), _F32)),
        grid=(num_tiles,),
        in_specs=[pl.BlockSpec((bt * 6, 192), lambda i: (i, 0)),
                  _bcast_spec(sc1), _bcast_spec(sh1)]
                 + [_bcast_spec(c) for c in t2_consts],
        out_specs=(pl.BlockSpec((bt * 4, 256), lambda i: (i, 0)),
                   pl.BlockSpec((1, 1, 256), lambda i: (i, 0, 0)),
                   pl.BlockSpec((1, 1, 256), lambda i: (i, 0, 0))),
        compiler_params=cparams,
    )(out1, sc1, sh1, *t2_consts)
    sc2, sh2 = _bn_finalize(st2a, st2b, packed["bn2_g"], packed["bn2_b"],
                            count=b * 16, ch=64, spatial=4)

    # ---- kernel 4: BN2-apply + conv3(64->64,k1)+ReLU + BN3 partial sums ----
    t3_consts = (packed["t_conv3"], packed["t_bias3"])
    out3, st3a, st3b = pl.pallas_call(
        functools.partial(_tail3_kernel, bt=bt, batch=b),
        out_shape=(jax.ShapeDtypeStruct((bp * 4, 256), _BF16),
                   jax.ShapeDtypeStruct((num_tiles, 1, 256), _F32),
                   jax.ShapeDtypeStruct((num_tiles, 1, 256), _F32)),
        grid=(num_tiles,),
        in_specs=[pl.BlockSpec((bt * 4, 256), lambda i: (i, 0)),
                  _bcast_spec(sc2), _bcast_spec(sh2)]
                 + [_bcast_spec(c) for c in t3_consts],
        out_specs=(pl.BlockSpec((bt * 4, 256), lambda i: (i, 0)),
                   pl.BlockSpec((1, 1, 256), lambda i: (i, 0, 0)),
                   pl.BlockSpec((1, 1, 256), lambda i: (i, 0, 0))),
        compiler_params=cparams,
    )(out2, sc2, sh2, *t3_consts)
    sc3, sh3 = _bn_finalize(st3a, st3b, packed["bn3_g"], packed["bn3_b"],
                            count=b * 16, ch=64, spatial=4)

    # ---- kernel 5: BN3-apply + NCHW flatten + fc1/fc2/fc3 ------------------
    t4_consts = (rsel, packed["t_fc1"], packed["t_fc1b"], packed["t_fc2"],
                 packed["t_fc2b"], packed["t_fc3"], packed["t_fc3b"])
    pred = pl.pallas_call(
        functools.partial(_tail4_kernel, bt=bt),
        out_shape=jax.ShapeDtypeStruct((bp, 1), _F32),
        grid=(num_tiles,),
        in_specs=[pl.BlockSpec((bt * 4, 256), lambda i: (i, 0)),
                  _bcast_spec(sc3), _bcast_spec(sh3)]
                 + [_bcast_spec(c) for c in t4_consts],
        out_specs=pl.BlockSpec((bt, 1), lambda i: (i, 0)),
        compiler_params=cparams,
    )(out3, sc3, sh3, *t4_consts)
    return pred[:b]


# ---------------------------------------------------------------------------
# Pure-JAX reference (mirrors the PyTorch module; training-mode BatchNorm)
# ---------------------------------------------------------------------------
def _reference_forward(params, district_map, neighborhood_map):
    # TODO(synk): BatchNorm running-stat (momentum) buffer updates are stateful
    # training bookkeeping, not part of the forward output, so they are omitted.
    def conv(x, w_hwio, bias):
        out = jax.lax.conv_general_dilated(
            x, w_hwio, window_strides=(1, 1), padding="VALID",
            dimension_numbers=("NCHW", "HWIO", "NCHW"))
        return out + bias[None, :, None, None]

    def maxpool(x, k):
        return jax.lax.reduce_window(x, -jnp.inf, jax.lax.max,
                                     (1, 1, k, k), (1, 1, k, k), "VALID")

    def bn(x, g, be, eps=1e-5):
        m = jnp.mean(x, axis=(0, 2, 3), keepdims=True)
        v = jnp.mean((x - m) ** 2, axis=(0, 2, 3), keepdims=True)
        return g[None, :, None, None] * (x - m) * jax.lax.rsqrt(v + eps) \
            + be[None, :, None, None]

    y = maxpool(jax.nn.relu(conv(neighborhood_map, params["l1_w"], params["l1_b"])), 3)
    y = maxpool(jax.nn.relu(conv(y, params["l2_w"], params["l2_b"])), 2)
    y = jnp.concatenate([y, district_map], axis=1)
    y = bn(jax.nn.relu(conv(y, params["c1_w"], params["c1_b"])),
           params["bn1_g"], params["bn1_b"])
    y = bn(jax.nn.relu(conv(y, params["c2_w"], params["c2_b"])),
           params["bn2_g"], params["bn2_b"])
    y = bn(jax.nn.relu(conv(y, params["c3_w"], params["c3_b"])),
           params["bn3_g"], params["bn3_b"])
    f = y.reshape(y.shape[0], -1)
    h = jax.nn.relu(f @ params["fc1_w"] + params["fc1_b"])
    h = jax.nn.relu(h @ params["fc2_w"] + params["fc2_b"])
    return h @ params["fc3_w"] + params["fc3_b"]


# ---------------------------------------------------------------------------
# Deterministic parameter init + smoke test
# ---------------------------------------------------------------------------
def init_params(key):
    ks = jax.random.split(key, 16)

    def rnd(k, shape, scale=0.1):
        return scale * jax.random.normal(k, shape, dtype=jnp.float32)

    return {
        "l1_w": rnd(ks[0], (5, 5, 1, 8)),     "l1_b": rnd(ks[1], (8,)),
        "l2_w": rnd(ks[2], (3, 3, 8, 16)),    "l2_b": rnd(ks[3], (16,)),
        "c1_w": rnd(ks[4], (5, 5, 17, 32)),   "c1_b": rnd(ks[5], (32,)),
        "bn1_g": jnp.ones((32,), jnp.float32), "bn1_b": jnp.zeros((32,), jnp.float32),
        "c2_w": rnd(ks[6], (3, 3, 32, 64)),   "c2_b": rnd(ks[7], (64,)),
        "bn2_g": jnp.ones((64,), jnp.float32), "bn2_b": jnp.zeros((64,), jnp.float32),
        "c3_w": rnd(ks[8], (1, 1, 64, 64)),   "c3_b": rnd(ks[9], (64,)),
        "bn3_g": jnp.ones((64,), jnp.float32), "bn3_b": jnp.zeros((64,), jnp.float32),
        "fc1_w": rnd(ks[10], (1024, 128)),    "fc1_b": rnd(ks[11], (128,)),
        "fc2_w": rnd(ks[12], (128, 64)),      "fc2_b": rnd(ks[13], (64,)),
        "fc3_w": rnd(ks[14], (64, 1)),        "fc3_b": rnd(ks[15], (1,)),
    }


if __name__ == "__main__":
    root = jax.random.PRNGKey(0)
    k_params, k_dst, k_nbh = jax.random.split(root, 3)

    params = init_params(k_params)
    packed = pack_params(params)            # one-time host-side weight packing

    B = 2
    district_map = jax.random.normal(k_dst, (B, 1, 10, 10), dtype=jnp.float32)
    neighborhood_map = jax.random.normal(k_nbh, (B, 1, 70, 70), dtype=jnp.float32)

    fwd = jax.jit(topological_nn_forward)
    pred = jax.block_until_ready(fwd(packed, district_map, neighborhood_map))
    assert pred.shape == (B, 1) and pred.dtype == jnp.float32

    ref = jax.block_until_ready(
        jax.jit(_reference_forward)(params, district_map, neighborhood_map))
    # Tolerance is loose because all conv MXU operands are bf16 (f32 reference).
    np.testing.assert_allclose(np.asarray(pred), np.asarray(ref),
                               rtol=5e-2, atol=5e-2)

    print("KERNEL_OK")
</pallas_src>

<mosaic_0001>
module attributes {stable_mosaic.version = 11 : i64} {
  func.func @_head_kernel(%arg0: i32, %arg1: memref<140x70xbf16, #tpu.memory_space<vmem>>, %arg2: memref<5x70x528xbf16, #tpu.memory_space<vmem>>, %arg3: memref<1x528xf32, #tpu.memory_space<vmem>>, %arg4: memref<526x176xbf16, #tpu.memory_space<vmem>>, %arg5: memref<44x134xbf16, #tpu.memory_space<vmem>>, %arg6: memref<3x176x320xbf16, #tpu.memory_space<vmem>>, %arg7: memref<1x320xf32, #tpu.memory_space<vmem>>, %arg8: memref<319x160xbf16, #tpu.memory_space<vmem>>, %arg9: memref<20x41xbf16, #tpu.memory_space<vmem>>, %arg10: memref<20x160xbf16, #tpu.memory_space<vmem>>) attributes {dimension_semantics = [#tpu.dimension_semantics<parallel>], iteration_bounds = array<i64: 1>, scalar_prefetch = 0 : i64, scratch_operands = 0 : i64, tpu.core_type = #tpu.core_type<tc>, window_params = [{transform_indices = @transform_0, window_bounds = array<i64: 140, 70>}, {pipeline_mode = #tpu.pipeline_mode<synchronous>, transform_indices = @transform_1, window_bounds = array<i64: 5, 70, 528>}, {pipeline_mode = #tpu.pipeline_mode<synchronous>, transform_indices = @transform_2, window_bounds = array<i64: 1, 528>}, {pipeline_mode = #tpu.pipeline_mode<synchronous>, transform_indices = @transform_3, window_bounds = array<i64: 526, 176>}, {pipeline_mode = #tpu.pipeline_mode<synchronous>, transform_indices = @transform_4, window_bounds = array<i64: 44, 134>}, {pipeline_mode = #tpu.pipeline_mode<synchronous>, transform_indices = @transform_5, window_bounds = array<i64: 3, 176, 320>}, {pipeline_mode = #tpu.pipeline_mode<synchronous>, transform_indices = @transform_6, window_bounds = array<i64: 1, 320>}, {pipeline_mode = #tpu.pipeline_mode<synchronous>, transform_indices = @transform_7, window_bounds = array<i64: 319, 160>}, {pipeline_mode = #tpu.pipeline_mode<synchronous>, transform_indices = @transform_8, window_bounds = array<i64: 20, 41>}, {transform_indices = @transform_9, window_bounds = array<i64: 20, 160>}]} {
    %c0 = arith.constant 0 : index
    %c0_0 = arith.constant 0 : index
    %0 = vector.load %arg1[%c0, %c0_0] : memref<140x70xbf16, #tpu.memory_space<vmem>>, vector<140x70xbf16>
    %1 = arith.extf %0 : vector<140x70xbf16> to vector<140x70xf32>
    %2 = vector.extract_strided_slice %1 {offsets = [0, 0], sizes = [136, 70], strides = [1, 1]} : vector<140x70xf32> to vector<136x70xf32>
    %3 = arith.truncf %2 : vector<136x70xf32> to vector<136x70xbf16>
    %c0_1 = arith.constant 0 : index
    %c0_2 = arith.constant 0 : index
    %c0_3 = arith.constant 0 : index
    %4 = vector.load %arg2[%c0_1, %c0_2, %c0_3] : memref<5x70x528xbf16, #tpu.memory_space<vmem>>, vector<1x70x528xbf16>
    %5 = vector.shape_cast %4 : vector<1x70x528xbf16> to vector<70x528xbf16>
    %cst = arith.constant dense<0.000000e+00> : vector<136x528xf32>
    %6 = tpu.matmul %3, %5, %cst {dimension_numbers = #tpu.dot_dimension_numbers<[1], [0], [0], [1], [0, 0, 1, 1], [], []>} : vector<136x70xbf16>, vector<70x528xbf16>, vector<136x528xf32> -> vector<136x528xf32>
    %7 = vector.extract_strided_slice %1 {offsets = [1, 0], sizes = [136, 70], strides = [1, 1]} : vector<140x70xf32> to vector<136x70xf32>
    %8 = arith.truncf %7 : vector<136x70xf32> to vector<136x70xbf16>
    %c1 = arith.constant 1 : index
    %c0_4 = arith.constant 0 : index
    %c0_5 = arith.constant 0 : index
    %9 = vector.load %arg2[%c1, %c0_4, %c0_5] : memref<5x70x528xbf16, #tpu.memory_space<vmem>>, vector<1x70x528xbf16>
    %10 = vector.shape_cast %9 : vector<1x70x528xbf16> to vector<70x528xbf16>
    %cst_6 = arith.constant dense<0.000000e+00> : vector<136x528xf32>
    %11 = tpu.matmul %8, %10, %cst_6 {dimension_numbers = #tpu.dot_dimension_numbers<[1], [0], [0], [1], [0, 0, 1, 1], [], []>} : vector<136x70xbf16>, vector<70x528xbf16>, vector<136x528xf32> -> vector<136x528xf32>
    %12 = arith.addf %6, %11 : vector<136x528xf32>
    %13 = vector.extract_strided_slice %1 {offsets = [2, 0], sizes = [136, 70], strides = [1, 1]} : vector<140x70xf32> to vector<136x70xf32>
    %14 = arith.truncf %13 : vector<136x70xf32> to vector<136x70xbf16>
    %c2 = arith.constant 2 : index
    %c0_7 = arith.constant 0 : index
    %c0_8 = arith.constant 0 : index
    %15 = vector.load %arg2[%c2, %c0_7, %c0_8] : memref<5x70x528xbf16, #tpu.memory_space<vmem>>, vector<1x70x528xbf16>
    %16 = vector.shape_cast %15 : vector<1x70x528xbf16> to vector<70x528xbf16>
    %cst_9 = arith.constant dense<0.000000e+00> : vector<136x528xf32>
    %17 = tpu.matmul %14, %16, %cst_9 {dimension_numbers = #tpu.dot_dimension_numbers<[1], [0], [0], [1], [0, 0, 1, 1], [], []>} : vector<136x70xbf16>, vector<70x528xbf16>, vector<136x528xf32> -> vector<136x528xf32>
    %18 = arith.addf %12, %17 : vector<136x528xf32>
    %19 = vector.extract_strided_slice %1 {offsets = [3, 0], sizes = [136, 70], strides = [1, 1]} : vector<140x70xf32> to vector<136x70xf32>
    %20 = arith.truncf %19 : vector<136x70xf32> to vector<136x70xbf16>
    %c3 = arith.constant 3 : index
    %c0_10 = arith.constant 0 : index
    %c0_11 = arith.constant 0 : index
    %21 = vector.load %arg2[%c3, %c0_10, %c0_11] : memref<5x70x528xbf16, #tpu.memory_space<vmem>>, vector<1x70x528xbf16>
    %22 = vector.shape_cast %21 : vector<1x70x528xbf16> to vector<70x528xbf16>
    %cst_12 = arith.constant dense<0.000000e+00> : vector<136x528xf32>
    %23 = tpu.matmul %20, %22, %cst_12 {dimension_numbers = #tpu.dot_dimension_numbers<[1], [0], [0], [1], [0, 0, 1, 1], [], []>} : vector<136x70xbf16>, vector<70x528xbf16>, vector<136x528xf32> -> vector<136x528xf32>
    %24 = arith.addf %18, %23 : vector<136x528xf32>
    %25 = vector.extract_strided_slice %1 {offsets = [4, 0], sizes = [136, 70], strides = [1, 1]} : vector<140x70xf32> to vector<136x70xf32>
    %26 = arith.truncf %25 : vector<136x70xf32> to vector<136x70xbf16>
    %c4 = arith.constant 4 : index
    %c0_13 = arith.constant 0 : index
    %c0_14 = arith.constant 0 : index
    %27 = vector.load %arg2[%c4, %c0_13, %c0_14] : memref<5x70x528xbf16, #tpu.memory_space<vmem>>, vector<1x70x528xbf16>
    %28 = vector.shape_cast %27 : vector<1x70x528xbf16> to vector<70x528xbf16>
    %cst_15 = arith.constant dense<0.000000e+00> : vector<136x528xf32>
    %29 = tpu.matmul %26, %28, %cst_15 {dimension_numbers = #tpu.dot_dimension_numbers<[1], [0], [0], [1], [0, 0, 1, 1], [], []>} : vector<136x70xbf16>, vector<70x528xbf16>, vector<136x528xf32> -> vector<136x528xf32>
    %30 = arith.addf %24, %29 : vector<136x528xf32>
    %c0_16 = arith.constant 0 : index
    %c0_17 = arith.constant 0 : index
    %31 = vector.load %arg3[%c0_16, %c0_17] : memref<1x528xf32, #tpu.memory_space<vmem>>, vector<1x528xf32>
    %32 = vector.broadcast %31 : vector<1x528xf32> to vector<136x528xf32>
    %33 = arith.addf %30, %32 : vector<136x528xf32>
    %cst_18 = arith.constant 0.000000e+00 : f32
    %34 = vector.broadcast %cst_18 : f32 to vector<136x528xf32>
    %35 = arith.maximumf %33, %34 : vector<136x528xf32>
    %36 = vector.extract_strided_slice %35 {offsets = [0, 0], sizes = [136, 526], strides = [1, 1]} : vector<136x528xf32> to vector<136x526xf32>
    %37 = vector.extract_strided_slice %35 {offsets = [0, 1], sizes = [136, 526], strides = [1, 1]} : vector<136x528xf32> to vector<136x526xf32>
    %38 = arith.maximumf %36, %37 : vector<136x526xf32>
    %39 = vector.extract_strided_slice %35 {offsets = [0, 2], sizes = [136, 526], strides = [1, 1]} : vector<136x528xf32> to vector<136x526xf32>
    %40 = arith.maximumf %38, %39 : vector<136x526xf32>
    %41 = arith.truncf %40 : vector<136x526xf32> to vector<136x526xbf16>
    %c0_19 = arith.constant 0 : index
    %c0_20 = arith.constant 0 : index
    %42 = vector.load %arg4[%c0_19, %c0_20] : memref<526x176xbf16, #tpu.memory_space<vmem>>, vector<526x176xbf16>
    %cst_21 = arith.constant dense<0.000000e+00> : vector<136x176xf32>
    %43 = tpu.matmul %41, %42, %cst_21 {dimension_numbers = #tpu.dot_dimension_numbers<[1], [0], [0], [1], [0, 0, 1, 1], [], []>} : vector<136x526xbf16>, vector<526x176xbf16>, vector<136x176xf32> -> vector<136x176xf32>
    %44 = vector.extract_strided_slice %43 {offsets = [0, 0], sizes = [134, 176], strides = [1, 1]} : vector<136x176xf32> to vector<134x176xf32>
    %45 = vector.extract_strided_slice %43 {offsets = [1, 0], sizes = [134, 176], strides = [1, 1]} : vector<136x176xf32> to vector<134x176xf32>
    %46 = arith.maximumf %44, %45 : vector<134x176xf32>
    %47 = vector.extract_strided_slice %43 {offsets = [2, 0], sizes = [134, 176], strides = [1, 1]} : vector<136x176xf32> to vector<134x176xf32>
    %48 = arith.maximumf %46, %47 : vector<134x176xf32>
    %c0_22 = arith.constant 0 : index
    %c0_23 = arith.constant 0 : index
    %49 = vector.load %arg5[%c0_22, %c0_23] : memref<44x134xbf16, #tpu.memory_space<vmem>>, vector<44x134xbf16>
    %50 = arith.truncf %48 : vector<134x176xf32> to vector<134x176xbf16>
    %cst_24 = arith.constant dense<0.000000e+00> : vector<44x176xf32>
    %51 = tpu.matmul %49, %50, %cst_24 {dimension_numbers = #tpu.dot_dimension_numbers<[1], [0], [0], [1], [0, 0, 1, 1], [], []>} : vector<44x134xbf16>, vector<134x176xbf16>, vector<44x176xf32> -> vector<44x176xf32>
    %52 = vector.extract_strided_slice %51 {offsets = [0, 0], sizes = [42, 176], strides = [1, 1]} : vector<44x176xf32> to vector<42x176xf32>
    %53 = arith.truncf %52 : vector<42x176xf32> to vector<42x176xbf16>
    %c0_25 = arith.constant 0 : index
    %c0_26 = arith.constant 0 : index
    %c0_27 = arith.constant 0 : index
    %54 = vector.load %arg6[%c0_25, %c0_26, %c0_27] : memref<3x176x320xbf16, #tpu.memory_space<vmem>>, vector<1x176x320xbf16>
    %55 = vector.shape_cast %54 : vector<1x176x320xbf16> to vector<176x320xbf16>
    %cst_28 = arith.constant dense<0.000000e+00> : vector<42x320xf32>
    %56 = tpu.matmul %53, %55, %cst_28 {dimension_numbers = #tpu.dot_dimension_numbers<[1], [0], [0], [1], [0, 0, 1, 1], [], []>} : vector<42x176xbf16>, vector<176x320xbf16>, vector<42x320xf32> -> vector<42x320xf32>
    %57 = vector.extract_strided_slice %51 {offsets = [1, 0], sizes = [42, 176], strides = [1, 1]} : vector<44x176xf32> to vector<42x176xf32>
    %58 = arith.truncf %57 : vector<42x176xf32> to vector<42x176xbf16>
    %c1_29 = arith.constant 1 : index
    %c0_30 = arith.constant 0 : index
    %c0_31 = arith.constant 0 : index
    %59 = vector.load %arg6[%c1_29, %c0_30, %c0_31] : memref<3x176x320xbf16, #tpu.memory_space<vmem>>, vector<1x176x320xbf16>
    %60 = vector.shape_cast %59 : vector<1x176x320xbf16> to vector<176x320xbf16>
    %cst_32 = arith.constant dense<0.000000e+00> : vector<42x320xf32>
    %61 = tpu.matmul %58, %60, %cst_32 {dimension_numbers = #tpu.dot_dimension_numbers<[1], [0], [0], [1], [0, 0, 1, 1], [], []>} : vector<42x176xbf16>, vector<176x320xbf16>, vector<42x320xf32> -> vector<42x320xf32>
    %62 = arith.addf %56, %61 : vector<42x320xf32>
    %63 = vector.extract_strided_slice %51 {offsets = [2, 0], sizes = [42, 176], strides = [1, 1]} : vector<44x176xf32> to vector<42x176xf32>
    %64 = arith.truncf %63 : vector<42x176xf32> to vector<42x176xbf16>
    %c2_33 = arith.constant 2 : index
    %c0_34 = arith.constant 0 : index
    %c0_35 = arith.constant 0 : index
    %65 = vector.load %arg6[%c2_33, %c0_34, %c0_35] : memref<3x176x320xbf16, #tpu.memory_space<vmem>>, vector<1x176x320xbf16>
    %66 = vector.shape_cast %65 : vector<1x176x320xbf16> to vector<176x320xbf16>
    %cst_36 = arith.constant dense<0.000000e+00> : vector<42x320xf32>
    %67 = tpu.matmul %64, %66, %cst_36 {dimension_numbers = #tpu.dot_dimension_numbers<[1], [0], [0], [1], [0, 0, 1, 1], [], []>} : vector<42x176xbf16>, vector<176x320xbf16>, vector<42x320xf32> -> vector<42x320xf32>
    %68 = arith.addf %62, %67 : vector<42x320xf32>
    %c0_37 = arith.constant 0 : index
    %c0_38 = arith.constant 0 : index
    %69 = vector.load %arg7[%c0_37, %c0_38] : memref<1x320xf32, #tpu.memory_space<vmem>>, vector<1x320xf32>
    %70 = vector.broadcast %69 : vector<1x320xf32> to vector<42x320xf32>
    %71 = arith.addf %68, %70 : vector<42x320xf32>
    %cst_39 = arith.constant 0.000000e+00 : f32
    %72 = vector.broadcast %cst_39 : f32 to vector<42x320xf32>
    %73 = arith.maximumf %71, %72 : vector<42x320xf32>
    %74 = vector.extract_strided_slice %73 {offsets = [0, 0], sizes = [42, 319], strides = [1, 1]} : vector<42x320xf32> to vector<42x319xf32>
    %75 = vector.extract_strided_slice %73 {offsets = [0, 1], sizes = [42, 319], strides = [1, 1]} : vector<42x320xf32> to vector<42x319xf32>
    %76 = arith.maximumf %74, %75 : vector<42x319xf32>
    %77 = arith.truncf %76 : vector<42x319xf32> to vector<42x319xbf16>
    %c0_40 = arith.constant 0 : index
    %c0_41 = arith.constant 0 : index
    %78 = vector.load %arg8[%c0_40, %c0_41] : memref<319x160xbf16, #tpu.memory_space<vmem>>, vector<319x160xbf16>
    %cst_42 = arith.constant dense<0.000000e+00> : vector<42x160xf32>
    %79 = tpu.matmul %77, %78, %cst_42 {dimension_numbers = #tpu.dot_dimension_numbers<[1], [0], [0], [1], [0, 0, 1, 1], [], []>} : vector<42x319xbf16>, vector<319x160xbf16>, vector<42x160xf32> -> vector<42x160xf32>
    %80 = vector.extract_strided_slice %79 {offsets = [0, 0], sizes = [41, 160], strides = [1, 1]} : vector<42x160xf32> to vector<41x160xf32>
    %81 = vector.extract_strided_slice %79 {offsets = [1, 0], sizes = [41, 160], strides = [1, 1]} : vector<42x160xf32> to vector<41x160xf32>
    %82 = arith.maximumf %80, %81 : vector<41x160xf32>
    %c0_43 = arith.constant 0 : index
    %c0_44 = arith.constant 0 : index
    %83 = vector.load %arg9[%c0_43, %c0_44] : memref<20x41xbf16, #tpu.memory_space<vmem>>, vector<20x41xbf16>
    %84 = arith.truncf %82 : vector<41x160xf32> to vector<41x160xbf16>
    %cst_45 = arith.constant dense<0.000000e+00> : vector<20x160xf32>
    %85 = tpu.matmul %83, %84, %cst_45 {dimension_numbers = #tpu.dot_dimension_numbers<[1], [0], [0], [1], [0, 0, 1, 1], [], []>} : vector<20x41xbf16>, vector<41x160xbf16>, vector<20x160xf32> -> vector<20x160xf32>
    %86 = arith.truncf %85 : vector<20x160xf32> to vector<20x160xbf16>
    %c0_46 = arith.constant 0 : index
    %c0_47 = arith.constant 0 : index
    %87 = vector.load %arg10[%c0_46, %c0_47] : memref<20x160xbf16, #tpu.memory_space<vmem>>, vector<20x160xbf16>
    tpu.vector_store %arg10[%c0_46, %c0_47], %86 {strides = array<i32>} : memref<20x160xbf16, #tpu.memory_space<vmem>>, vector<20x160xbf16>,
    return
  }
  func.func @transform_0(%arg0: i32) -> (i32, i32) {
    %c0_i32 = arith.constant 0 : i32
    %c0_i32_0 = arith.constant 0 : i32
    return %arg0, %c0_i32 : i32, i32
  }
  func.func @transform_1(%arg0: i32) -> (i32, i32, i32) {
    %c0_i32 = arith.constant 0 : i32
    %c0_i32_0 = arith.constant 0 : i32
    %c0_i32_1 = arith.constant 0 : i32
    %c0_i32_2 = arith.constant 0 : i32
    return %c0_i32, %c0_i32_0, %c0_i32_1 : i32, i32, i32
  }
  func.func @transform_2(%arg0: i32) -> (i32, i32) {
    %c0_i32 = arith.constant 0 : i32
    %c0_i32_0 = arith.constant 0 : i32
    %c0_i32_1 = arith.constant 0 : i32
    return %c0_i32, %c0_i32_0 : i32, i32
  }
  func.func @transform_3(%arg0: i32) -> (i32, i32) {
    %c0_i32 = arith.constant 0 : i32
    %c0_i32_0 = arith.constant 0 : i32
    %c0_i32_1 = arith.constant 0 : i32
    return %c0_i32, %c0_i32_0 : i32, i32
  }
  func.func @transform_4(%arg0: i32) -> (i32, i32) {
    %c0_i32 = arith.constant 0 : i32
    %c0_i32_0 = arith.constant 0 : i32
    %c0_i32_1 = arith.constant 0 : i32
    return %c0_i32, %c0_i32_0 : i32, i32
  }
  func.func @transform_5(%arg0: i32) -> (i32, i32, i32) {
    %c0_i32 = arith.constant 0 : i32
    %c0_i32_0 = arith.constant 0 : i32
    %c0_i32_1 = arith.constant 0 : i32
    %c0_i32_2 = arith.constant 0 : i32
    return %c0_i32, %c0_i32_0, %c0_i32_1 : i32, i32, i32
  }
  func.func @transform_6(%arg0: i32) -> (i32, i32) {
    %c0_i32 = arith.constant 0 : i32
    %c0_i32_0 = arith.constant 0 : i32
    %c0_i32_1 = arith.constant 0 : i32
    return %c0_i32, %c0_i32_0 : i32, i32
  }
  func.func @transform_7(%arg0: i32) -> (i32, i32) {
    %c0_i32 = arith.constant 0 : i32
    %c0_i32_0 = arith.constant 0 : i32
    %c0_i32_1 = arith.constant 0 : i32
    return %c0_i32, %c0_i32_0 : i32, i32
  }
  func.func @transform_8(%arg0: i32) -> (i32, i32) {
    %c0_i32 = arith.constant 0 : i32
    %c0_i32_0 = arith.constant 0 : i32
    %c0_i32_1 = arith.constant 0 : i32
    return %c0_i32, %c0_i32_0 : i32, i32
  }
  func.func @transform_9(%arg0: i32) -> (i32, i32) {
    %c0_i32 = arith.constant 0 : i32
    %c0_i32_0 = arith.constant 0 : i32
    return %arg0, %c0_i32 : i32, i32
  }
}

module attributes {stable_mosaic.version = 11 : i64} {
  func.func @_tail1_kernel(%arg0: i32, %arg1: memref<20x170xbf16, #tpu.memory_space<vmem>>, %arg2: memref<5x170x192xbf16, #tpu.memory_space<vmem>>, %arg3: memref<1x192xf32, #tpu.memory_space<vmem>>, %arg4: memref<12x16xbf16, #tpu.memory_space<vmem>>, %arg5: memref<12x192xbf16, #tpu.memory_space<vmem>>, %arg6: memref<1x1x192xf32, #tpu.memory_space<vmem>>, %arg7: memref<1x1x192xf32, #tpu.memory_space<vmem>>) attributes {dimension_semantics = [#tpu.dimension_semantics<parallel>], iteration_bounds = array<i64: 1>, scalar_prefetch = 0 : i64, scratch_operands = 0 : i64, tpu.core_type = #tpu.core_type<tc>, window_params = [{transform_indices = @transform_0, window_bounds = array<i64: 20, 170>}, {pipeline_mode = #tpu.pipeline_mode<synchronous>, transform_indices = @transform_1, window_bounds = array<i64: 5, 170, 192>}, {pipeline_mode = #tpu.pipeline_mode<synchronous>, transform_indices = @transform_2, window_bounds = array<i64: 1, 192>}, {pipeline_mode = #tpu.pipeline_mode<synchronous>, transform_indices = @transform_3, window_bounds = array<i64: 12, 16>}, {transform_indices = @transform_4, window_bounds = array<i64: 12, 192>}, {transform_indices = @transform_5, window_bounds = array<i64: 1, 1, 192>}, {transform_indices = @transform_6, window_bounds = array<i64: 1, 1, 192>}]} {
    %c0 = arith.constant 0 : index
    %c0_0 = arith.constant 0 : index
    %0 = vector.load %arg1[%c0, %c0_0] : memref<20x170xbf16, #tpu.memory_space<vmem>>, vector<20x170xbf16>
    %1 = arith.extf %0 : vector<20x170xbf16> to vector<20x170xf32>
    %2 = vector.extract_strided_slice %1 {offsets = [0, 0], sizes = [16, 170], strides = [1, 1]} : vector<20x170xf32> to vector<16x170xf32>
    %3 = arith.truncf %2 : vector<16x170xf32> to vector<16x170xbf16>
    %c0_1 = arith.constant 0 : index
    %c0_2 = arith.constant 0 : index
    %c0_3 = arith.constant 0 : index
    %4 = vector.load %arg2[%c0_1, %c0_2, %c0_3] : memref<5x170x192xbf16, #tpu.memory_space<vmem>>, vector<1x170x192xbf16>
    %5 = vector.shape_cast %4 : vector<1x170x192xbf16> to vector<170x192xbf16>
    %cst = arith.constant dense<0.000000e+00> : vector<16x192xf32>
    %6 = tpu.matmul %3, %5, %cst {dimension_numbers = #tpu.dot_dimension_numbers<[1], [0], [0], [1], [0, 0, 1, 1], [], []>} : vector<16x170xbf16>, vector<170x192xbf16>, vector<16x192xf32> -> vector<16x192xf32>
    %7 = vector.extract_strided_slice %1 {offsets = [1, 0], sizes = [16, 170], strides = [1, 1]} : vector<20x170xf32> to vector<16x170xf32>
    %8 = arith.truncf %7 : vector<16x170xf32> to vector<16x170xbf16>
    %c1 = arith.constant 1 : index
    %c0_4 = arith.constant 0 : index
    %c0_5 = arith.constant 0 : index
    %9 = vector.load %arg2[%c1, %c0_4, %c0_5] : memref<5x170x192xbf16, #tpu.memory_space<vmem>>, vector<1x170x192xbf16>
    %10 = vector.shape_cast %9 : vector<1x170x192xbf16> to vector<170x192xbf16>
    %cst_6 = arith.constant dense<0.000000e+00> : vector<16x192xf32>
    %11 = tpu.matmul %8, %10, %cst_6 {dimension_numbers = #tpu.dot_dimension_numbers<[1], [0], [0], [1], [0, 0, 1, 1], [], []>} : vector<16x170xbf16>, vector<170x192xbf16>, vector<16x192xf32> -> vector<16x192xf32>
    %12 = arith.addf %6, %11 : vector<16x192xf32>
    %13 = vector.extract_strided_slice %1 {offsets = [2, 0], sizes = [16, 170], strides = [1, 1]} : vector<20x170xf32> to vector<16x170xf32>
    %14 = arith.truncf %13 : vector<16x170xf32> to vector<16x170xbf16>
    %c2 = arith.constant 2 : index
    %c0_7 = arith.constant 0 : index
    %c0_8 = arith.constant 0 : index
    %15 = vector.load %arg2[%c2, %c0_7, %c0_8] : memref<5x170x192xbf16, #tpu.memory_space<vmem>>, vector<1x170x192xbf16>
    %16 = vector.shape_cast %15 : vector<1x170x192xbf16> to vector<170x192xbf16>
    %cst_9 = arith.constant dense<0.000000e+00> : vector<16x192xf32>
    %17 = tpu.matmul %14, %16, %cst_9 {dimension_numbers = #tpu.dot_dimension_numbers<[1], [0], [0], [1], [0, 0, 1, 1], [], []>} : vector<16x170xbf16>, vector<170x192xbf16>, vector<16x192xf32> -> vector<16x192xf32>
    %18 = arith.addf %12, %17 : vector<16x192xf32>
    %19 = vector.extract_strided_slice %1 {offsets = [3, 0], sizes = [16, 170], strides = [1, 1]} : vector<20x170xf32> to vector<16x170xf32>
    %20 = arith.truncf %19 : vector<16x170xf32> to vector<16x170xbf16>
    %c3 = arith.constant 3 : index
    %c0_10 = arith.constant 0 : index
    %c0_11 = arith.constant 0 : index
    %21 = vector.load %arg2[%c3, %c0_10, %c0_11] : memref<5x170x192xbf16, #tpu.memory_space<vmem>>, vector<1x170x192xbf16>
    %22 = vector.shape_cast %21 : vector<1x170x192xbf16> to vector<170x192xbf16>
    %cst_12 = arith.constant dense<0.000000e+00> : vector<16x192xf32>
    %23 = tpu.matmul %20, %22, %cst_12 {dimension_numbers = #tpu.dot_dimension_numbers<[1], [0], [0], [1], [0, 0, 1, 1], [], []>} : vector<16x170xbf16>, vector<170x192xbf16>, vector<16x192xf32> -> vector<16x192xf32>
    %24 = arith.addf %18, %23 : vector<16x192xf32>
    %25 = vector.extract_strided_slice %1 {offsets = [4, 0], sizes = [16, 170], strides = [1, 1]} : vector<20x170xf32> to vector<16x170xf32>
    %26 = arith.truncf %25 : vector<16x170xf32> to vector<16x170xbf16>
    %c4 = arith.constant 4 : index
    %c0_13 = arith.constant 0 : index
    %c0_14 = arith.constant 0 : index
    %27 = vector.load %arg2[%c4, %c0_13, %c0_14] : memref<5x170x192xbf16, #tpu.memory_space<vmem>>, vector<1x170x192xbf16>
    %28 = vector.shape_cast %27 : vector<1x170x192xbf16> to vector<170x192xbf16>
    %cst_15 = arith.constant dense<0.000000e+00> : vector<16x192xf32>
    %29 = tpu.matmul %26, %28, %cst_15 {dimension_numbers = #tpu.dot_dimension_numbers<[1], [0], [0], [1], [0, 0, 1, 1], [], []>} : vector<16x170xbf16>, vector<170x192xbf16>, vector<16x192xf32> -> vector<16x192xf32>
    %30 = arith.addf %24, %29 : vector<16x192xf32>
    %c0_16 = arith.constant 0 : index
    %c0_17 = arith.constant 0 : index
    %31 = vector.load %arg3[%c0_16, %c0_17] : memref<1x192xf32, #tpu.memory_space<vmem>>, vector<1x192xf32>
    %32 = vector.broadcast %31 : vector<1x192xf32> to vector<16x192xf32>
    %33 = arith.addf %30, %32 : vector<16x192xf32>
    %cst_18 = arith.constant 0.000000e+00 : f32
    %34 = vector.broadcast %cst_18 : f32 to vector<16x192xf32>
    %35 = arith.maximumf %33, %34 : vector<16x192xf32>
    %c0_19 = arith.constant 0 : index
    %c0_20 = arith.constant 0 : index
    %36 = vector.load %arg4[%c0_19, %c0_20] : memref<12x16xbf16, #tpu.memory_space<vmem>>, vector<12x16xbf16>
    %37 = arith.truncf %35 : vector<16x192xf32> to vector<16x192xbf16>
    %cst_21 = arith.constant dense<0.000000e+00> : vector<12x192xf32>
    %38 = tpu.matmul %36, %37, %cst_21 {dimension_numbers = #tpu.dot_dimension_numbers<[1], [0], [0], [1], [0, 0, 1, 1], [], []>} : vector<12x16xbf16>, vector<16x192xbf16>, vector<12x192xf32> -> vector<12x192xf32>
    %39 = arith.truncf %38 : vector<12x192xf32> to vector<12x192xbf16>
    %c0_22 = arith.constant 0 : index
    %c0_23 = arith.constant 0 : index
    %40 = vector.load %arg5[%c0_22, %c0_23] : memref<12x192xbf16, #tpu.memory_space<vmem>>, vector<12x192xbf16>
    tpu.vector_store %arg5[%c0_22, %c0_23], %39 {strides = array<i32>} : memref<12x192xbf16, #tpu.memory_space<vmem>>, vector<12x192xbf16>,
    %c2_i32 = arith.constant 2 : i32
    %41 = arith.muli %arg0, %c2_i32 : i32
    %c2_i32_24 = arith.constant 2 : i32
    %42 = arith.subi %c2_i32_24, %41 : i32
    %c6_i32 = arith.constant 6 : i32
    %43 = arith.muli %42, %c6_i32 : i32
    %44 = tpu.iota {dimensions = array<i32: 0>} : vector<12x1xi32>
    %45 = vector.broadcast %43 : i32 to vector<12x1xi32>
    %46 = arith.cmpi slt, %44, %45 : vector<12x1xi32>
    %47 = arith.extui %46 : vector<12x1xi1> to vector<12x1xi32>
    %48 = arith.sitofp %47 : vector<12x1xi32> to vector<12x1xf32>
    %49 = vector.broadcast %48 : vector<12x1xf32> to vector<12x192xf32>
    %50 = arith.mulf %38, %49 : vector<12x192xf32>
    %cst_25 = arith.constant dense<0.000000e+00> : vector<192xf32>
    %51 = vector.multi_reduction <add>, %50, %cst_25 [0] : vector<12x192xf32> to vector<192xf32>
    %52 = vector.shape_cast %51 : vector<192xf32> to vector<1x192xf32>
    %53 = arith.mulf %38, %38 : vector<12x192xf32>
    %54 = vector.broadcast %48 : vector<12x1xf32> to vector<12x192xf32>
    %55 = arith.mulf %53, %54 : vector<12x192xf32>
    %cst_26 = arith.constant dense<0.000000e+00> : vector<192xf32>
    %56 = vector.multi_reduction <add>, %55, %cst_26 [0] : vector<12x192xf32> to vector<192xf32>
    %57 = vector.shape_cast %56 : vector<192xf32> to vector<1x192xf32>
    %c0_27 = arith.constant 0 : index
    %c0_28 = arith.constant 0 : index
    %c0_29 = arith.constant 0 : index
    %58 = vector.load %arg6[%c0_27, %c0_28, %c0_29] : memref<1x1x192xf32, #tpu.memory_space<vmem>>, vector<1x1x192xf32>
    %59 = vector.shape_cast %58 : vector<1x1x192xf32> to vector<1x192xf32>
    %60 = vector.shape_cast %52 : vector<1x192xf32> to vector<1x1x192xf32>
    tpu.vector_store %arg6[%c0_27, %c0_28, %c0_29], %60 {strides = array<i32>} : memref<1x1x192xf32, #tpu.memory_space<vmem>>, vector<1x1x192xf32>,
    %c0_30 = arith.constant 0 : index
    %c0_31 = arith.constant 0 : index
    %c0_32 = arith.constant 0 : index
    %61 = vector.load %arg7[%c0_30, %c0_31, %c0_32] : memref<1x1x192xf32, #tpu.memory_space<vmem>>, vector<1x1x192xf32>
    %62 = vector.shape_cast %61 : vector<1x1x192xf32> to vector<1x192xf32>
    %63 = vector.shape_cast %57 : vector<1x192xf32> to vector<1x1x192xf32>
    tpu.vector_store %arg7[%c0_30, %c0_31, %c0_32], %63 {strides = array<i32>} : memref<1x1x192xf32, #tpu.memory_space<vmem>>, vector<1x1x192xf32>,
    return
  }
  func.func @transform_0(%arg0: i32) -> (i32, i32) {
    %c0_i32 = arith.constant 0 : i32
    %c0_i32_0 = arith.constant 0 : i32
    return %arg0, %c0_i32 : i32, i32
  }
  func.func @transform_1(%arg0: i32) -> (i32, i32, i32) {
    %c0_i32 = arith.constant 0 : i32
    %c0_i32_0 = arith.constant 0 : i32
    %c0_i32_1 = arith.constant 0 : i32
    %c0_i32_2 = arith.constant 0 : i32
    return %c0_i32, %c0_i32_0, %c0_i32_1 : i32, i32, i32
  }
  func.func @transform_2(%arg0: i32) -> (i32, i32) {
    %c0_i32 = arith.constant 0 : i32
    %c0_i32_0 = arith.constant 0 : i32
    %c0_i32_1 = arith.constant 0 : i32
    return %c0_i32, %c0_i32_0 : i32, i32
  }
  func.func @transform_3(%arg0: i32) -> (i32, i32) {
    %c0_i32 = arith.constant 0 : i32
    %c0_i32_0 = arith.constant 0 : i32
    %c0_i32_1 = arith.constant 0 : i32
    return %c0_i32, %c0_i32_0 : i32, i32
  }
  func.func @transform_4(%arg0: i32) -> (i32, i32) {
    %c0_i32 = arith.constant 0 : i32
    %c0_i32_0 = arith.constant 0 : i32
    return %arg0, %c0_i32 : i32, i32
  }
  func.func @transform_5(%arg0: i32) -> (i32, i32, i32) {
    %c0_i32 = arith.constant 0 : i32
    %c0_i32_0 = arith.constant 0 : i32
    %c0_i32_1 = arith.constant 0 : i32
    return %arg0, %c0_i32, %c0_i32_0 : i32, i32, i32
  }
  func.func @transform_6(%arg0: i32) -> (i32, i32, i32) {
    %c0_i32 = arith.constant 0 : i32
    %c0_i32_0 = arith.constant 0 : i32
    %c0_i32_1 = arith.constant 0 : i32
    return %arg0, %c0_i32, %c0_i32_0 : i32, i32, i32
  }
}

module attributes {stable_mosaic.version = 11 : i64} {
  func.func @_tail2_kernel(%arg0: i32, %arg1: memref<12x192xbf16, #tpu.memory_space<vmem>>, %arg2: memref<1x192xf32, #tpu.memory_space<vmem>>, %arg3: memref<1x192xf32, #tpu.memory_space<vmem>>, %arg4: memref<3x192x256xbf16, #tpu.memory_space<vmem>>, %arg5: memref<1x256xf32, #tpu.memory_space<vmem>>, %arg6: memref<8x10xbf16, #tpu.memory_space<vmem>>, %arg7: memref<8x256xbf16, #tpu.memory_space<vmem>>, %arg8: memref<1x1x256xf32, #tpu.memory_space<vmem>>, %arg9: memref<1x1x256xf32, #tpu.memory_space<vmem>>) attributes {dimension_semantics = [#tpu.dimension_semantics<parallel>], iteration_bounds = array<i64: 1>, scalar_prefetch = 0 : i64, scratch_operands = 0 : i64, tpu.core_type = #tpu.core_type<tc>, window_params = [{transform_indices = @transform_0, window_bounds = array<i64: 12, 192>}, {pipeline_mode = #tpu.pipeline_mode<synchronous>, transform_indices = @transform_1, window_bounds = array<i64: 1, 192>}, {pipeline_mode = #tpu.pipeline_mode<synchronous>, transform_indices = @transform_2, window_bounds = array<i64: 1, 192>}, {pipeline_mode = #tpu.pipeline_mode<synchronous>, transform_indices = @transform_3, window_bounds = array<i64: 3, 192, 256>}, {pipeline_mode = #tpu.pipeline_mode<synchronous>, transform_indices = @transform_4, window_bounds = array<i64: 1, 256>}, {pipeline_mode = #tpu.pipeline_mode<synchronous>, transform_indices = @transform_5, window_bounds = array<i64: 8, 10>}, {transform_indices = @transform_6, window_bounds = array<i64: 8, 256>}, {transform_indices = @transform_7, window_bounds = array<i64: 1, 1, 256>}, {transform_indices = @transform_8, window_bounds = array<i64: 1, 1, 256>}]} {
    %c0 = arith.constant 0 : index
    %c0_0 = arith.constant 0 : index
    %0 = vector.load %arg1[%c0, %c0_0] : memref<12x192xbf16, #tpu.memory_space<vmem>>, vector<12x192xbf16>
    %1 = arith.extf %0 : vector<12x192xbf16> to vector<12x192xf32>
    %c0_1 = arith.constant 0 : index
    %c0_2 = arith.constant 0 : index
    %2 = vector.load %arg2[%c0_1, %c0_2] : memref<1x192xf32, #tpu.memory_space<vmem>>, vector<1x192xf32>
    %3 = vector.broadcast %2 : vector<1x192xf32> to vector<12x192xf32>
    %4 = arith.mulf %1, %3 : vector<12x192xf32>
    %c0_3 = arith.constant 0 : index
    %c0_4 = arith.constant 0 : index
    %5 = vector.load %arg3[%c0_3, %c0_4] : memref<1x192xf32, #tpu.memory_space<vmem>>, vector<1x192xf32>
    %6 = vector.broadcast %5 : vector<1x192xf32> to vector<12x192xf32>
    %7 = arith.addf %4, %6 : vector<12x192xf32>
    %8 = vector.extract_strided_slice %7 {offsets = [0, 0], sizes = [10, 192], strides = [1, 1]} : vector<12x192xf32> to vector<10x192xf32>
    %9 = arith.truncf %8 : vector<10x192xf32> to vector<10x192xbf16>
    %c0_5 = arith.constant 0 : index
    %c0_6 = arith.constant 0 : index
    %c0_7 = arith.constant 0 : index
    %10 = vector.load %arg4[%c0_5, %c0_6, %c0_7] : memref<3x192x256xbf16, #tpu.memory_space<vmem>>, vector<1x192x256xbf16>
    %11 = vector.shape_cast %10 : vector<1x192x256xbf16> to vector<192x256xbf16>
    %cst = arith.constant dense<0.000000e+00> : vector<10x256xf32>
    %12 = tpu.matmul %9, %11, %cst {dimension_numbers = #tpu.dot_dimension_numbers<[1], [0], [0], [1], [0, 0, 1, 1], [], []>} : vector<10x192xbf16>, vector<192x256xbf16>, vector<10x256xf32> -> vector<10x256xf32>
    %13 = vector.extract_strided_slice %7 {offsets = [1, 0], sizes = [10, 192], strides = [1, 1]} : vector<12x192xf32> to vector<10x192xf32>
    %14 = arith.truncf %13 : vector<10x192xf32> to vector<10x192xbf16>
    %c1 = arith.constant 1 : index
    %c0_8 = arith.constant 0 : index
    %c0_9 = arith.constant 0 : index
    %15 = vector.load %arg4[%c1, %c0_8, %c0_9] : memref<3x192x256xbf16, #tpu.memory_space<vmem>>, vector<1x192x256xbf16>
    %16 = vector.shape_cast %15 : vector<1x192x256xbf16> to vector<192x256xbf16>
    %cst_10 = arith.constant dense<0.000000e+00> : vector<10x256xf32>
    %17 = tpu.matmul %14, %16, %cst_10 {dimension_numbers = #tpu.dot_dimension_numbers<[1], [0], [0], [1], [0, 0, 1, 1], [], []>} : vector<10x192xbf16>, vector<192x256xbf16>, vector<10x256xf32> -> vector<10x256xf32>
    %18 = arith.addf %12, %17 : vector<10x256xf32>
    %19 = vector.extract_strided_slice %7 {offsets = [2, 0], sizes = [10, 192], strides = [1, 1]} : vector<12x192xf32> to vector<10x192xf32>
    %20 = arith.truncf %19 : vector<10x192xf32> to vector<10x192xbf16>
    %c2 = arith.constant 2 : index
    %c0_11 = arith.constant 0 : index
    %c0_12 = arith.constant 0 : index
    %21 = vector.load %arg4[%c2, %c0_11, %c0_12] : memref<3x192x256xbf16, #tpu.memory_space<vmem>>, vector<1x192x256xbf16>
    %22 = vector.shape_cast %21 : vector<1x192x256xbf16> to vector<192x256xbf16>
    %cst_13 = arith.constant dense<0.000000e+00> : vector<10x256xf32>
    %23 = tpu.matmul %20, %22, %cst_13 {dimension_numbers = #tpu.dot_dimension_numbers<[1], [0], [0], [1], [0, 0, 1, 1], [], []>} : vector<10x192xbf16>, vector<192x256xbf16>, vector<10x256xf32> -> vector<10x256xf32>
    %24 = arith.addf %18, %23 : vector<10x256xf32>
    %c0_14 = arith.constant 0 : index
    %c0_15 = arith.constant 0 : index
    %25 = vector.load %arg5[%c0_14, %c0_15] : memref<1x256xf32, #tpu.memory_space<vmem>>, vector<1x256xf32>
    %26 = vector.broadcast %25 : vector<1x256xf32> to vector<10x256xf32>
    %27 = arith.addf %24, %26 : vector<10x256xf32>
    %cst_16 = arith.constant 0.000000e+00 : f32
    %28 = vector.broadcast %cst_16 : f32 to vector<10x256xf32>
    %29 = arith.maximumf %27, %28 : vector<10x256xf32>
    %c0_17 = arith.constant 0 : index
    %c0_18 = arith.constant 0 : index
    %30 = vector.load %arg6[%c0_17, %c0_18] : memref<8x10xbf16, #tpu.memory_space<vmem>>, vector<8x10xbf16>
    %31 = arith.truncf %29 : vector<10x256xf32> to vector<10x256xbf16>
    %cst_19 = arith.constant dense<0.000000e+00> : vector<8x256xf32>
    %32 = tpu.matmul %30, %31, %cst_19 {dimension_numbers = #tpu.dot_dimension_numbers<[1], [0], [0], [1], [0, 0, 1, 1], [], []>} : vector<8x10xbf16>, vector<10x256xbf16>, vector<8x256xf32> -> vector<8x256xf32>
    %33 = arith.truncf %32 : vector<8x256xf32> to vector<8x256xbf16>
    %c0_20 = arith.constant 0 : index
    %c0_21 = arith.constant 0 : index
    %34 = vector.load %arg7[%c0_20, %c0_21] : memref<8x256xbf16, #tpu.memory_space<vmem>>, vector<8x256xbf16>
    tpu.vector_store %arg7[%c0_20, %c0_21], %33 {strides = array<i32>} : memref<8x256xbf16, #tpu.memory_space<vmem>>, vector<8x256xbf16>,
    %c2_i32 = arith.constant 2 : i32
    %35 = arith.muli %arg0, %c2_i32 : i32
    %c2_i32_22 = arith.constant 2 : i32
    %36 = arith.subi %c2_i32_22, %35 : i32
    %c4_i32 = arith.constant 4 : i32
    %37 = arith.muli %36, %c4_i32 : i32
    %38 = tpu.iota {dimensions = array<i32: 0>} : vector<8x1xi32>
    %39 = vector.broadcast %37 : i32 to vector<8x1xi32>
    %40 = arith.cmpi slt, %38, %39 : vector<8x1xi32>
    %41 = arith.extui %40 : vector<8x1xi1> to vector<8x1xi32>
    %42 = arith.sitofp %41 : vector<8x1xi32> to vector<8x1xf32>
    %43 = vector.broadcast %42 : vector<8x1xf32> to vector<8x256xf32>
    %44 = arith.mulf %32, %43 : vector<8x256xf32>
    %cst_23 = arith.constant dense<0.000000e+00> : vector<256xf32>
    %45 = vector.multi_reduction <add>, %44, %cst_23 [0] : vector<8x256xf32> to vector<256xf32>
    %46 = vector.shape_cast %45 : vector<256xf32> to vector<1x256xf32>
    %47 = arith.mulf %32, %32 : vector<8x256xf32>
    %48 = vector.broadcast %42 : vector<8x1xf32> to vector<8x256xf32>
    %49 = arith.mulf %47, %48 : vector<8x256xf32>
    %cst_24 = arith.constant dense<0.000000e+00> : vector<256xf32>
    %50 = vector.multi_reduction <add>, %49, %cst_24 [0] : vector<8x256xf32> to vector<256xf32>
    %51 = vector.shape_cast %50 : vector<256xf32> to vector<1x256xf32>
    %c0_25 = arith.constant 0 : index
    %c0_26 = arith.constant 0 : index
    %c0_27 = arith.constant 0 : index
    %52 = vector.load %arg8[%c0_25, %c0_26, %c0_27] : memref<1x1x256xf32, #tpu.memory_space<vmem>>, vector<1x1x256xf32>
    %53 = vector.shape_cast %52 : vector<1x1x256xf32> to vector<1x256xf32>
    %54 = vector.shape_cast %46 : vector<1x256xf32> to vector<1x1x256xf32>
    tpu.vector_store %arg8[%c0_25, %c0_26, %c0_27], %54 {strides = array<i32>} : memref<1x1x256xf32, #tpu.memory_space<vmem>>, vector<1x1x256xf32>,
    %c0_28 = arith.constant 0 : index
    %c0_29 = arith.constant 0 : index
    %c0_30 = arith.constant 0 : index
    %55 = vector.load %arg9[%c0_28, %c0_29, %c0_30] : memref<1x1x256xf32, #tpu.memory_space<vmem>>, vector<1x1x256xf32>
    %56 = vector.shape_cast %55 : vector<1x1x256xf32> to vector<1x256xf32>
    %57 = vector.shape_cast %51 : vector<1x256xf32> to vector<1x1x256xf32>
    tpu.vector_store %arg9[%c0_28, %c0_29, %c0_30], %57 {strides = array<i32>} : memref<1x1x256xf32, #tpu.memory_space<vmem>>, vector<1x1x256xf32>,
    return
  }
  func.func @transform_0(%arg0: i32) -> (i32, i32) {
    %c0_i32 = arith.constant 0 : i32
    %c0_i32_0 = arith.constant 0 : i32
    return %arg0, %c0_i32 : i32, i32
  }
  func.func @transform_1(%arg0: i32) -> (i32, i32) {
    %c0_i32 = arith.constant 0 : i32
    %c0_i32_0 = arith.constant 0 : i32
    %c0_i32_1 = arith.constant 0 : i32
    return %c0_i32, %c0_i32_0 : i32, i32
  }
  func.func @transform_2(%arg0: i32) -> (i32, i32) {
    %c0_i32 = arith.constant 0 : i32
    %c0_i32_0 = arith.constant 0 : i32
    %c0_i32_1 = arith.constant 0 : i32
    return %c0_i32, %c0_i32_0 : i32, i32
  }
  func.func @transform_3(%arg0: i32) -> (i32, i32, i32) {
    %c0_i32 = arith.constant 0 : i32
    %c0_i32_0 = arith.constant 0 : i32
    %c0_i32_1 = arith.constant 0 : i32
    %c0_i32_2 = arith.constant 0 : i32
    return %c0_i32, %c0_i32_0, %c0_i32_1 : i32, i32, i32
  }
  func.func @transform_4(%arg0: i32) -> (i32, i32) {
    %c0_i32 = arith.constant 0 : i32
    %c0_i32_0 = arith.constant 0 : i32
    %c0_i32_1 = arith.constant 0 : i32
    return %c0_i32, %c0_i32_0 : i32, i32
  }
  func.func @transform_5(%arg0: i32) -> (i32, i32) {
    %c0_i32 = arith.constant 0 : i32
    %c0_i32_0 = arith.constant 0 : i32
    %c0_i32_1 = arith.constant 0 : i32
    return %c0_i32, %c0_i32_0 : i32, i32
  }
  func.func @transform_6(%arg0: i32) -> (i32, i32) {
    %c0_i32 = arith.constant 0 : i32
    %c0_i32_0 = arith.constant 0 : i32
    return %arg0, %c0_i32 : i32, i32
  }
  func.func @transform_7(%arg0: i32) -> (i32, i32, i32) {
    %c0_i32 = arith.constant 0 : i32
    %c0_i32_0 = arith.constant 0 : i32
    %c0_i32_1 = arith.constant 0 : i32
    return %arg0, %c0_i32, %c0_i32_0 : i32, i32, i32
  }
  func.func @transform_8(%arg0: i32) -> (i32, i32, i32) {
    %c0_i32 = arith.constant 0 : i32
    %c0_i32_0 = arith.constant 0 : i32
    %c0_i32_1 = arith.constant 0 : i32
    return %arg0, %c0_i32, %c0_i32_0 : i32, i32, i32
  }
}

module attributes {stable_mosaic.version = 11 : i64} {
  func.func @_tail3_kernel(%arg0: i32, %arg1: memref<8x256xbf16, #tpu.memory_space<vmem>>, %arg2: memref<1x256xf32, #tpu.memory_space<vmem>>, %arg3: memref<1x256xf32, #tpu.memory_space<vmem>>, %arg4: memref<256x256xbf16, #tpu.memory_space<vmem>>, %arg5: memref<1x256xf32, #tpu.memory_space<vmem>>, %arg6: memref<8x256xbf16, #tpu.memory_space<vmem>>, %arg7: memref<1x1x256xf32, #tpu.memory_space<vmem>>, %arg8: memref<1x1x256xf32, #tpu.memory_space<vmem>>) attributes {dimension_semantics = [#tpu.dimension_semantics<parallel>], iteration_bounds = array<i64: 1>, scalar_prefetch = 0 : i64, scratch_operands = 0 : i64, tpu.core_type = #tpu.core_type<tc>, window_params = [{transform_indices = @transform_0, window_bounds = array<i64: 8, 256>}, {pipeline_mode = #tpu.pipeline_mode<synchronous>, transform_indices = @transform_1, window_bounds = array<i64: 1, 256>}, {pipeline_mode = #tpu.pipeline_mode<synchronous>, transform_indices = @transform_2, window_bounds = array<i64: 1, 256>}, {pipeline_mode = #tpu.pipeline_mode<synchronous>, transform_indices = @transform_3, window_bounds = array<i64: 256, 256>}, {pipeline_mode = #tpu.pipeline_mode<synchronous>, transform_indices = @transform_4, window_bounds = array<i64: 1, 256>}, {transform_indices = @transform_5, window_bounds = array<i64: 8, 256>}, {transform_indices = @transform_6, window_bounds = array<i64: 1, 1, 256>}, {transform_indices = @transform_7, window_bounds = array<i64: 1, 1, 256>}]} {
    %c0 = arith.constant 0 : index
    %c0_0 = arith.constant 0 : index
    %0 = vector.load %arg1[%c0, %c0_0] : memref<8x256xbf16, #tpu.memory_space<vmem>>, vector<8x256xbf16>
    %1 = arith.extf %0 : vector<8x256xbf16> to vector<8x256xf32>
    %c0_1 = arith.constant 0 : index
    %c0_2 = arith.constant 0 : index
    %2 = vector.load %arg2[%c0_1, %c0_2] : memref<1x256xf32, #tpu.memory_space<vmem>>, vector<1x256xf32>
    %3 = vector.broadcast %2 : vector<1x256xf32> to vector<8x256xf32>
    %4 = arith.mulf %1, %3 : vector<8x256xf32>
    %c0_3 = arith.constant 0 : index
    %c0_4 = arith.constant 0 : index
    %5 = vector.load %arg3[%c0_3, %c0_4] : memref<1x256xf32, #tpu.memory_space<vmem>>, vector<1x256xf32>
    %6 = vector.broadcast %5 : vector<1x256xf32> to vector<8x256xf32>
    %7 = arith.addf %4, %6 : vector<8x256xf32>
    %8 = arith.truncf %7 : vector<8x256xf32> to vector<8x256xbf16>
    %c0_5 = arith.constant 0 : index
    %c0_6 = arith.constant 0 : index
    %9 = vector.load %arg4[%c0_5, %c0_6] : memref<256x256xbf16, #tpu.memory_space<vmem>>, vector<256x256xbf16>
    %cst = arith.constant dense<0.000000e+00> : vector<8x256xf32>
    %10 = tpu.matmul %8, %9, %cst {dimension_numbers = #tpu.dot_dimension_numbers<[1], [0], [0], [1], [0, 0, 1, 1], [], []>} : vector<8x256xbf16>, vector<256x256xbf16>, vector<8x256xf32> -> vector<8x256xf32>
    %c0_7 = arith.constant 0 : index
    %c0_8 = arith.constant 0 : index
    %11 = vector.load %arg5[%c0_7, %c0_8] : memref<1x256xf32, #tpu.memory_space<vmem>>, vector<1x256xf32>
    %12 = vector.broadcast %11 : vector<1x256xf32> to vector<8x256xf32>
    %13 = arith.addf %10, %12 : vector<8x256xf32>
    %cst_9 = arith.constant 0.000000e+00 : f32
    %14 = vector.broadcast %cst_9 : f32 to vector<8x256xf32>
    %15 = arith.maximumf %13, %14 : vector<8x256xf32>
    %16 = arith.truncf %15 : vector<8x256xf32> to vector<8x256xbf16>
    %c0_10 = arith.constant 0 : index
    %c0_11 = arith.constant 0 : index
    %17 = vector.load %arg6[%c0_10, %c0_11] : memref<8x256xbf16, #tpu.memory_space<vmem>>, vector<8x256xbf16>
    tpu.vector_store %arg6[%c0_10, %c0_11], %16 {strides = array<i32>} : memref<8x256xbf16, #tpu.memory_space<vmem>>, vector<8x256xbf16>,
    %c2_i32 = arith.constant 2 : i32
    %18 = arith.muli %arg0, %c2_i32 : i32
    %c2_i32_12 = arith.constant 2 : i32
    %19 = arith.subi %c2_i32_12, %18 : i32
    %c4_i32 = arith.constant 4 : i32
    %20 = arith.muli %19, %c4_i32 : i32
    %21 = tpu.iota {dimensions = array<i32: 0>} : vector<8x1xi32>
    %22 = vector.broadcast %20 : i32 to vector<8x1xi32>
    %23 = arith.cmpi slt, %21, %22 : vector<8x1xi32>
    %24 = arith.extui %23 : vector<8x1xi1> to vector<8x1xi32>
    %25 = arith.sitofp %24 : vector<8x1xi32> to vector<8x1xf32>
    %26 = vector.broadcast %25 : vector<8x1xf32> to vector<8x256xf32>
    %27 = arith.mulf %15, %26 : vector<8x256xf32>
    %cst_13 = arith.constant dense<0.000000e+00> : vector<256xf32>
    %28 = vector.multi_reduction <add>, %27, %cst_13 [0] : vector<8x256xf32> to vector<256xf32>
    %29 = vector.shape_cast %28 : vector<256xf32> to vector<1x256xf32>
    %30 = arith.mulf %15, %15 : vector<8x256xf32>
    %31 = vector.broadcast %25 : vector<8x1xf32> to vector<8x256xf32>
    %32 = arith.mulf %30, %31 : vector<8x256xf32>
    %cst_14 = arith.constant dense<0.000000e+00> : vector<256xf32>
    %33 = vector.multi_reduction <add>, %32, %cst_14 [0] : vector<8x256xf32> to vector<256xf32>
    %34 = vector.shape_cast %33 : vector<256xf32> to vector<1x256xf32>
    %c0_15 = arith.constant 0 : index
    %c0_16 = arith.constant 0 : index
    %c0_17 = arith.constant 0 : index
    %35 = vector.load %arg7[%c0_15, %c0_16, %c0_17] : memref<1x1x256xf32, #tpu.memory_space<vmem>>, vector<1x1x256xf32>
    %36 = vector.shape_cast %35 : vector<1x1x256xf32> to vector<1x256xf32>
    %37 = vector.shape_cast %29 : vector<1x256xf32> to vector<1x1x256xf32>
    tpu.vector_store %arg7[%c0_15, %c0_16, %c0_17], %37 {strides = array<i32>} : memref<1x1x256xf32, #tpu.memory_space<vmem>>, vector<1x1x256xf32>,
    %c0_18 = arith.constant 0 : index
    %c0_19 = arith.constant 0 : index
    %c0_20 = arith.constant 0 : index
    %38 = vector.load %arg8[%c0_18, %c0_19, %c0_20] : memref<1x1x256xf32, #tpu.memory_space<vmem>>, vector<1x1x256xf32>
    %39 = vector.shape_cast %38 : vector<1x1x256xf32> to vector<1x256xf32>
    %40 = vector.shape_cast %34 : vector<1x256xf32> to vector<1x1x256xf32>
    tpu.vector_store %arg8[%c0_18, %c0_19, %c0_20], %40 {strides = array<i32>} : memref<1x1x256xf32, #tpu.memory_space<vmem>>, vector<1x1x256xf32>,
    return
  }
  func.func @transform_0(%arg0: i32) -> (i32, i32) {
    %c0_i32 = arith.constant 0 : i32
    %c0_i32_0 = arith.constant 0 : i32
    return %arg0, %c0_i32 : i32, i32
  }
  func.func @transform_1(%arg0: i32) -> (i32, i32) {
    %c0_i32 = arith.constant 0 : i32
    %c0_i32_0 = arith.constant 0 : i32
    %c0_i32_1 = arith.constant 0 : i32
    return %c0_i32, %c0_i32_0 : i32, i32
  }
  func.func @transform_2(%arg0: i32) -> (i32, i32) {
    %c0_i32 = arith.constant 0 : i32
    %c0_i32_0 = arith.constant 0 : i32
    %c0_i32_1 = arith.constant 0 : i32
    return %c0_i32, %c0_i32_0 : i32, i32
  }
  func.func @transform_3(%arg0: i32) -> (i32, i32) {
    %c0_i32 = arith.constant 0 : i32
    %c0_i32_0 = arith.constant 0 : i32
    %c0_i32_1 = arith.constant 0 : i32
    return %c0_i32, %c0_i32_0 : i32, i32
  }
  func.func @transform_4(%arg0: i32) -> (i32, i32) {
    %c0_i32 = arith.constant 0 : i32
    %c0_i32_0 = arith.constant 0 : i32
    %c0_i32_1 = arith.constant 0 : i32
    return %c0_i32, %c0_i32_0 : i32, i32
  }
  func.func @transform_5(%arg0: i32) -> (i32, i32) {
    %c0_i32 = arith.constant 0 : i32
    %c0_i32_0 = arith.constant 0 : i32
    return %arg0, %c0_i32 : i32, i32
  }
  func.func @transform_6(%arg0: i32) -> (i32, i32, i32) {
    %c0_i32 = arith.constant 0 : i32
    %c0_i32_0 = arith.constant 0 : i32
    %c0_i32_1 = arith.constant 0 : i32
    return %arg0, %c0_i32, %c0_i32_0 : i32, i32, i32
  }
  func.func @transform_7(%arg0: i32) -> (i32, i32, i32) {
    %c0_i32 = arith.constant 0 : i32
    %c0_i32_0 = arith.constant 0 : i32
    %c0_i32_1 = arith.constant 0 : i32
    return %arg0, %c0_i32, %c0_i32_0 : i32, i32, i32
  }
}

module attributes {stable_mosaic.version = 11 : i64} {
  func.func @_tail4_kernel(%arg0: i32, %arg1: memref<8x256xbf16, #tpu.memory_space<vmem>>, %arg2: memref<1x256xf32, #tpu.memory_space<vmem>>, %arg3: memref<1x256xf32, #tpu.memory_space<vmem>>, %arg4: memref<4x2x8xf32, #tpu.memory_space<vmem>>, %arg5: memref<4x256x128xf32, #tpu.memory_space<vmem>>, %arg6: memref<1x128xf32, #tpu.memory_space<vmem>>, %arg7: memref<128x64xf32, #tpu.memory_space<vmem>>, %arg8: memref<1x64xf32, #tpu.memory_space<vmem>>, %arg9: memref<64x1xf32, #tpu.memory_space<vmem>>, %arg10: memref<1x1xf32, #tpu.memory_space<vmem>>, %arg11: memref<2x1xf32, #tpu.memory_space<vmem>>) attributes {dimension_semantics = [#tpu.dimension_semantics<parallel>], iteration_bounds = array<i64: 1>, scalar_prefetch = 0 : i64, scratch_operands = 0 : i64, tpu.core_type = #tpu.core_type<tc>, window_params = [{transform_indices = @transform_0, window_bounds = array<i64: 8, 256>}, {pipeline_mode = #tpu.pipeline_mode<synchronous>, transform_indices = @transform_1, window_bounds = array<i64: 1, 256>}, {pipeline_mode = #tpu.pipeline_mode<synchronous>, transform_indices = @transform_2, window_bounds = array<i64: 1, 256>}, {pipeline_mode = #tpu.pipeline_mode<synchronous>, transform_indices = @transform_3, window_bounds = array<i64: 4, 2, 8>}, {pipeline_mode = #tpu.pipeline_mode<synchronous>, transform_indices = @transform_4, window_bounds = array<i64: 4, 256, 128>}, {pipeline_mode = #tpu.pipeline_mode<synchronous>, transform_indices = @transform_5, window_bounds = array<i64: 1, 128>}, {pipeline_mode = #tpu.pipeline_mode<synchronous>, transform_indices = @transform_6, window_bounds = array<i64: 128, 64>}, {pipeline_mode = #tpu.pipeline_mode<synchronous>, transform_indices = @transform_7, window_bounds = array<i64: 1, 64>}, {pipeline_mode = #tpu.pipeline_mode<synchronous>, transform_indices = @transform_8, window_bounds = array<i64: 64, 1>}, {pipeline_mode = #tpu.pipeline_mode<synchronous>, transform_indices = @transform_9, window_bounds = array<i64: 1, 1>}, {transform_indices = @transform_10, window_bounds = array<i64: 2, 1>}]} {
    %c0 = arith.constant 0 : index
    %c0_0 = arith.constant 0 : index
    %0 = vector.load %arg1[%c0, %c0_0] : memref<8x256xbf16, #tpu.memory_space<vmem>>, vector<8x256xbf16>
    %1 = arith.extf %0 : vector<8x256xbf16> to vector<8x256xf32>
    %c0_1 = arith.constant 0 : index
    %c0_2 = arith.constant 0 : index
    %2 = vector.load %arg2[%c0_1, %c0_2] : memref<1x256xf32, #tpu.memory_space<vmem>>, vector<1x256xf32>
    %3 = vector.broadcast %2 : vector<1x256xf32> to vector<8x256xf32>
    %4 = arith.mulf %1, %3 : vector<8x256xf32>
    %c0_3 = arith.constant 0 : index
    %c0_4 = arith.constant 0 : index
    %5 = vector.load %arg3[%c0_3, %c0_4] : memref<1x256xf32, #tpu.memory_space<vmem>>, vector<1x256xf32>
    %6 = vector.broadcast %5 : vector<1x256xf32> to vector<8x256xf32>
    %7 = arith.addf %4, %6 : vector<8x256xf32>
    %c0_5 = arith.constant 0 : index
    %c0_6 = arith.constant 0 : index
    %c0_7 = arith.constant 0 : index
    %8 = vector.load %arg4[%c0_5, %c0_6, %c0_7] : memref<4x2x8xf32, #tpu.memory_space<vmem>>, vector<1x2x8xf32>
    %9 = vector.shape_cast %8 : vector<1x2x8xf32> to vector<2x8xf32>
    %cst = arith.constant dense<0.000000e+00> : vector<2x256xf32>
    %10 = tpu.matmul %9, %7, %cst {dimension_numbers = #tpu.dot_dimension_numbers<[1], [0], [0], [1], [0, 0, 1, 1], [], []>} : vector<2x8xf32>, vector<8x256xf32>, vector<2x256xf32> -> vector<2x256xf32>
    %c0_8 = arith.constant 0 : index
    %c0_9 = arith.constant 0 : index
    %c0_10 = arith.constant 0 : index
    %11 = vector.load %arg5[%c0_8, %c0_9, %c0_10] : memref<4x256x128xf32, #tpu.memory_space<vmem>>, vector<1x256x128xf32>
    %12 = vector.shape_cast %11 : vector<1x256x128xf32> to vector<256x128xf32>
    %cst_11 = arith.constant dense<0.000000e+00> : vector<2x128xf32>
    %13 = tpu.matmul %10, %12, %cst_11 {dimension_numbers = #tpu.dot_dimension_numbers<[1], [0], [0], [1], [0, 0, 1, 1], [], []>} : vector<2x256xf32>, vector<256x128xf32>, vector<2x128xf32> -> vector<2x128xf32>
    %c1 = arith.constant 1 : index
    %c0_12 = arith.constant 0 : index
    %c0_13 = arith.constant 0 : index
    %14 = vector.load %arg4[%c1, %c0_12, %c0_13] : memref<4x2x8xf32, #tpu.memory_space<vmem>>, vector<1x2x8xf32>
    %15 = vector.shape_cast %14 : vector<1x2x8xf32> to vector<2x8xf32>
    %cst_14 = arith.constant dense<0.000000e+00> : vector<2x256xf32>
    %16 = tpu.matmul %15, %7, %cst_14 {dimension_numbers = #tpu.dot_dimension_numbers<[1], [0], [0], [1], [0, 0, 1, 1], [], []>} : vector<2x8xf32>, vector<8x256xf32>, vector<2x256xf32> -> vector<2x256xf32>
    %c1_15 = arith.constant 1 : index
    %c0_16 = arith.constant 0 : index
    %c0_17 = arith.constant 0 : index
    %17 = vector.load %arg5[%c1_15, %c0_16, %c0_17] : memref<4x256x128xf32, #tpu.memory_space<vmem>>, vector<1x256x128xf32>
    %18 = vector.shape_cast %17 : vector<1x256x128xf32> to vector<256x128xf32>
    %cst_18 = arith.constant dense<0.000000e+00> : vector<2x128xf32>
    %19 = tpu.matmul %16, %18, %cst_18 {dimension_numbers = #tpu.dot_dimension_numbers<[1], [0], [0], [1], [0, 0, 1, 1], [], []>} : vector<2x256xf32>, vector<256x128xf32>, vector<2x128xf32> -> vector<2x128xf32>
    %20 = arith.addf %13, %19 : vector<2x128xf32>
    %c2 = arith.constant 2 : index
    %c0_19 = arith.constant 0 : index
    %c0_20 = arith.constant 0 : index
    %21 = vector.load %arg4[%c2, %c0_19, %c0_20] : memref<4x2x8xf32, #tpu.memory_space<vmem>>, vector<1x2x8xf32>
    %22 = vector.shape_cast %21 : vector<1x2x8xf32> to vector<2x8xf32>
    %cst_21 = arith.constant dense<0.000000e+00> : vector<2x256xf32>
    %23 = tpu.matmul %22, %7, %cst_21 {dimension_numbers = #tpu.dot_dimension_numbers<[1], [0], [0], [1], [0, 0, 1, 1], [], []>} : vector<2x8xf32>, vector<8x256xf32>, vector<2x256xf32> -> vector<2x256xf32>
    %c2_22 = arith.constant 2 : index
    %c0_23 = arith.constant 0 : index
    %c0_24 = arith.constant 0 : index
    %24 = vector.load %arg5[%c2_22, %c0_23, %c0_24] : memref<4x256x128xf32, #tpu.memory_space<vmem>>, vector<1x256x128xf32>
    %25 = vector.shape_cast %24 : vector<1x256x128xf32> to vector<256x128xf32>
    %cst_25 = arith.constant dense<0.000000e+00> : vector<2x128xf32>
    %26 = tpu.matmul %23, %25, %cst_25 {dimension_numbers = #tpu.dot_dimension_numbers<[1], [0], [0], [1], [0, 0, 1, 1], [], []>} : vector<2x256xf32>, vector<256x128xf32>, vector<2x128xf32> -> vector<2x128xf32>
    %27 = arith.addf %20, %26 : vector<2x128xf32>
    %c3 = arith.constant 3 : index
    %c0_26 = arith.constant 0 : index
    %c0_27 = arith.constant 0 : index
    %28 = vector.load %arg4[%c3, %c0_26, %c0_27] : memref<4x2x8xf32, #tpu.memory_space<vmem>>, vector<1x2x8xf32>
    %29 = vector.shape_cast %28 : vector<1x2x8xf32> to vector<2x8xf32>
    %cst_28 = arith.constant dense<0.000000e+00> : vector<2x256xf32>
    %30 = tpu.matmul %29, %7, %cst_28 {dimension_numbers = #tpu.dot_dimension_numbers<[1], [0], [0], [1], [0, 0, 1, 1], [], []>} : vector<2x8xf32>, vector<8x256xf32>, vector<2x256xf32> -> vector<2x256xf32>
    %c3_29 = arith.constant 3 : index
    %c0_30 = arith.constant 0 : index
    %c0_31 = arith.constant 0 : index
    %31 = vector.load %arg5[%c3_29, %c0_30, %c0_31] : memref<4x256x128xf32, #tpu.memory_space<vmem>>, vector<1x256x128xf32>
    %32 = vector.shape_cast %31 : vector<1x256x128xf32> to vector<256x128xf32>
    %cst_32 = arith.constant dense<0.000000e+00> : vector<2x128xf32>
    %33 = tpu.matmul %30, %32, %cst_32 {dimension_numbers = #tpu.dot_dimension_numbers<[1], [0], [0], [1], [0, 0, 1, 1], [], []>} : vector<2x256xf32>, vector<256x128xf32>, vector<2x128xf32> -> vector<2x128xf32>
    %34 = arith.addf %27, %33 : vector<2x128xf32>
    %c0_33 = arith.constant 0 : index
    %c0_34 = arith.constant 0 : index
    %35 = vector.load %arg6[%c0_33, %c0_34] : memref<1x128xf32, #tpu.memory_space<vmem>>, vector<1x128xf32>
    %36 = vector.broadcast %35 : vector<1x128xf32> to vector<2x128xf32>
    %37 = arith.addf %34, %36 : vector<2x128xf32>
    %cst_35 = arith.constant 0.000000e+00 : f32
    %38 = vector.broadcast %cst_35 : f32 to vector<2x128xf32>
    %39 = arith.maximumf %37, %38 : vector<2x128xf32>
    %c0_36 = arith.constant 0 : index
    %c0_37 = arith.constant 0 : index
    %40 = vector.load %arg7[%c0_36, %c0_37] : memref<128x64xf32, #tpu.memory_space<vmem>>, vector<128x64xf32>
    %cst_38 = arith.constant dense<0.000000e+00> : vector<2x64xf32>
    %41 = tpu.matmul %39, %40, %cst_38 {dimension_numbers = #tpu.dot_dimension_numbers<[1], [0], [0], [1], [0, 0, 1, 1], [], []>} : vector<2x128xf32>, vector<128x64xf32>, vector<2x64xf32> -> vector<2x64xf32>
    %c0_39 = arith.constant 0 : index
    %c0_40 = arith.constant 0 : index
    %42 = vector.load %arg8[%c0_39, %c0_40] : memref<1x64xf32, #tpu.memory_space<vmem>>, vector<1x64xf32>
    %43 = vector.broadcast %42 : vector<1x64xf32> to vector<2x64xf32>
    %44 = arith.addf %41, %43 : vector<2x64xf32>
    %cst_41 = arith.constant 0.000000e+00 : f32
    %45 = vector.broadcast %cst_41 : f32 to vector<2x64xf32>
    %46 = arith.maximumf %44, %45 : vector<2x64xf32>
    %c0_42 = arith.constant 0 : index
    %c0_43 = arith.constant 0 : index
    %47 = vector.load %arg9[%c0_42, %c0_43] : memref<64x1xf32, #tpu.memory_space<vmem>>, vector<64x1xf32>
    %cst_44 = arith.constant dense<0.000000e+00> : vector<2x1xf32>
    %48 = tpu.matmul %46, %47, %cst_44 {dimension_numbers = #tpu.dot_dimension_numbers<[1], [0], [0], [1], [0, 0, 1, 1], [], []>} : vector<2x64xf32>, vector<64x1xf32>, vector<2x1xf32> -> vector<2x1xf32>
    %c0_45 = arith.constant 0 : index
    %c0_46 = arith.constant 0 : index
    %49 = vector.load %arg10[%c0_45, %c0_46] : memref<1x1xf32, #tpu.memory_space<vmem>>, vector<1x1xf32>
    %50 = vector.broadcast %49 : vector<1x1xf32> to vector<2x1xf32>
    %51 = arith.addf %48, %50 : vector<2x1xf32>
    %c0_47 = arith.constant 0 : index
    %c0_48 = arith.constant 0 : index
    %52 = vector.load %arg11[%c0_47, %c0_48] : memref<2x1xf32, #tpu.memory_space<vmem>>, vector<2x1xf32>
    tpu.vector_store %arg11[%c0_47, %c0_48], %51 {strides = array<i32>} : memref<2x1xf32, #tpu.memory_space<vmem>>, vector<2x1xf32>,
    return
  }
  func.func @transform_0(%arg0: i32) -> (i32, i32) {
    %c0_i32 = arith.constant 0 : i32
    %c0_i32_0 = arith.constant 0 : i32
    return %arg0, %c0_i32 : i32, i32
  }
  func.func @transform_1(%arg0: i32) -> (i32, i32) {
    %c0_i32 = arith.constant 0 : i32
    %c0_i32_0 = arith.constant 0 : i32
    %c0_i32_1 = arith.constant 0 : i32
    return %c0_i32, %c0_i32_0 : i32, i32
  }
  func.func @transform_2(%arg0: i32) -> (i32, i32) {
    %c0_i32 = arith.constant 0 : i32
    %c0_i32_0 = arith.constant 0 : i32
    %c0_i32_1 = arith.constant 0 : i32
    return %c0_i32, %c0_i32_0 : i32, i32
  }
  func.func @transform_3(%arg0: i32) -> (i32, i32, i32) {
    %c0_i32 = arith.constant 0 : i32
    %c0_i32_0 = arith.constant 0 : i32
    %c0_i32_1 = arith.constant 0 : i32
    %c0_i32_2 = arith.constant 0 : i32
    return %c0_i32, %c0_i32_0, %c0_i32_1 : i32, i32, i32
  }
  func.func @transform_4(%arg0: i32) -> (i32, i32, i32) {
    %c0_i32 = arith.constant 0 : i32
    %c0_i32_0 = arith.constant 0 : i32
    %c0_i32_1 = arith.constant 0 : i32
    %c0_i32_2 = arith.constant 0 : i32
    return %c0_i32, %c0_i32_0, %c0_i32_1 : i32, i32, i32
  }
  func.func @transform_5(%arg0: i32) -> (i32, i32) {
    %c0_i32 = arith.constant 0 : i32
    %c0_i32_0 = arith.constant 0 : i32
    %c0_i32_1 = arith.constant 0 : i32
    return %c0_i32, %c0_i32_0 : i32, i32
  }
  func.func @transform_6(%arg0: i32) -> (i32, i32) {
    %c0_i32 = arith.constant 0 : i32
    %c0_i32_0 = arith.constant 0 : i32
    %c0_i32_1 = arith.constant 0 : i32
    return %c0_i32, %c0_i32_0 : i32, i32
  }
  func.func @transform_7(%arg0: i32) -> (i32, i32) {
    %c0_i32 = arith.constant 0 : i32
    %c0_i32_0 = arith.constant 0 : i32
    %c0_i32_1 = arith.constant 0 : i32
    return %c0_i32, %c0_i32_0 : i32, i32
  }
  func.func @transform_8(%arg0: i32) -> (i32, i32) {
    %c0_i32 = arith.constant 0 : i32
    %c0_i32_0 = arith.constant 0 : i32
    %c0_i32_1 = arith.constant 0 : i32
    return %c0_i32, %c0_i32_0 : i32, i32
  }
  func.func @transform_9(%arg0: i32) -> (i32, i32) {
    %c0_i32 = arith.constant 0 : i32
    %c0_i32_0 = arith.constant 0 : i32
    %c0_i32_1 = arith.constant 0 : i32
    return %c0_i32, %c0_i32_0 : i32, i32
  }
  func.func @transform_10(%arg0: i32) -> (i32, i32) {
    %c0_i32 = arith.constant 0 : i32
    %c0_i32_0 = arith.constant 0 : i32
    return %arg0, %c0_i32 : i32, i32
  }
}

</mosaic_0001>

<llo_original>
// kernel: topological_nn_forward.7
$region0: #{topological_nn_forward.7}
  #allocation0 [shape = 'u32[]', space=smem, size = 0x4, offset = 0x4, fixed_abs, tag = 'smem constant byte address 0x4 - core index']
  #allocation1 [shape = 'u32[72,128]{1,0:T(1,128)}', space=vmem, size = 0x9000, scoped, tag = 'internal scratch']
  %s0 = inlined_call_operand.vmem [shape: bf16[12,192], index: 0, kind: input, shape index: {}]
  %s1 = inlined_call_operand.vmem [shape: f32[1,192], index: 1, kind: input, shape index: {}]
  %s2 = inlined_call_operand.vmem [shape: f32[1,192], index: 2, kind: input, shape index: {}]
  %s3 = inlined_call_operand.hbm [shape: bf16[3,192,256], index: 3, kind: input, shape index: {}]
  %s4 = inlined_call_operand.vmem [shape: f32[1,256], index: 4, kind: input, shape index: {}]
  %s5 = inlined_call_operand.vmem [shape: bf16[8,10], index: 5, kind: input, shape index: {}]
  %s6 = inlined_call_operand.vmem [shape: bf16[8,256], index: 6, kind: output, shape index: {0}]
  %s7 = inlined_call_operand.vmem [shape: f32[1,1,256], index: 7, kind: output, shape index: {1}]
  %s8 = inlined_call_operand.vmem [shape: f32[1,1,256], index: 8, kind: output, shape index: {2}]
  %9 = xla_tuple %s6, %s7, %s8
  %s10 = sld [smem:[#allocation0]]
  $region54: #{topological_nn_forward.7} parent=0
    _
  %s12 = ssub.s32 1, %s10
  %s13 = scalar_select 0, %s12, %s10
  $region1: #{topological_nn_forward.7} parent=0
    #allocation2 [shape = 'u8[294912]{0}', space=vmem, size = 0x48000, scoped, tag = 'input window, operand 3, single buffered']
    #allocation3 [shape = 's32[1]{0}', space=sflag, size = 0x4, scoped, tag = 'scoped memory for topological_nn_forward.7']
    %14 = vsyncpa [#allocation3], 0
    // Predicated region
    $region2: #{topological_nn_forward.7} parent=1 // pred_check
      _
    $region3: #{topological_nn_forward.7} parent=1 // pred_check_branch
      %16 = sbr.rel (0) target = $region5
    $region4: #{topological_nn_forward.7} parent=1 // pred_region
      _
    $region5: #{topological_nn_forward.7} parent=1 // pred_fallthru
      _
    // Predicated region
    $region6: #{topological_nn_forward.7} parent=1 // pred_check
      _
    $region7: #{topological_nn_forward.7} parent=1 // pred_check_branch
      %18 = sbr.rel (0) target = $region9
    $region8: #{topological_nn_forward.7} parent=1 // pred_region
      _
    $region9: #{topological_nn_forward.7} parent=1 // pred_fallthru
      _
    // Predicated region
    $region10: #{topological_nn_forward.7} parent=1 // pred_check
      _
    $region11: #{topological_nn_forward.7} parent=1 // pred_check_branch
      %20 = sbr.rel (0) target = $region13
    $region12: #{topological_nn_forward.7} parent=1 // pred_region
      _
    $region13: #{topological_nn_forward.7} parent=1 // pred_fallthru
      _
    // Predicated region
    $region14: #{topological_nn_forward.7} parent=1 // pred_check
      _
    $region15: #{topological_nn_forward.7} parent=1 // pred_check_branch
      %22 = sbr.rel (0) target = $region17
    $region16: #{topological_nn_forward.7} parent=1 // pred_region
      %24 = vsyncadd [#allocation3], 0
      %s25 = sshll.u32 %s3, 4
      %s26 = int_to_ptr.hbm [resolvable:$true] %s25
      %s27 = sshll.u32 [#allocation2], 4
      %s28 = int_to_ptr.vmem [resolvable:$true] %s27
      %33 = dma.hbm_to_vmem [thread:$0]  %s26, 9216, %s28, [#allocation3], 128, 128, 8
    $region17: #{topological_nn_forward.7} parent=1 // pred_fallthru
      _
    // Predicated region
    $region18: #{topological_nn_forward.7} parent=1 // pred_check
      _
    $region19: #{topological_nn_forward.7} parent=1 // pred_check_branch
      %35 = sbr.rel (0) target = $region21
    $region20: #{topological_nn_forward.7} parent=1 // pred_region
      _
    $region21: #{topological_nn_forward.7} parent=1 // pred_fallthru
      _
    // Predicated region
    $region22: #{topological_nn_forward.7} parent=1 // pred_check
      _
    $region23: #{topological_nn_forward.7} parent=1 // pred_check_branch
      %37 = sbr.rel (0) target = $region25
    $region24: #{topological_nn_forward.7} parent=1 // pred_region
      _
    $region25: #{topological_nn_forward.7} parent=1 // pred_fallthru
      _
    // Predicated region
    $region26: #{topological_nn_forward.7} parent=1 // pred_check
      _
    $region27: #{topological_nn_forward.7} parent=1 // pred_check_branch
      %39 = sbr.rel (0) target = $region29
    $region28: #{topological_nn_forward.7} parent=1 // pred_region
      %41 = dma.done [#allocation3], 9216
    $region29: #{topological_nn_forward.7} parent=1 // pred_fallthru
      _
    %v43 = vld [vmem:[%s0] sm:$0xff]
    %v44 = vld [vmem:[%s0 + $0x8] sm:$0x33]
    %v45 = vunpack.c.l.bf16 %v43
    %v46 = vunpack.c.h.bf16 %v43
    %v47 = vunpack.c.l.bf16 %v44
    %v48 = vunpack.c.h.bf16 %v44
    %v49 = vld [vmem:[%s1] sm:$0x3]
    %v51 = vperm.slane %v49, 0
    %v52 = vperm.slane %v49, 1
    %v55 = vmul.f32 %v45, %v51
    %v56 = vmul.f32 %v46, %v52
    %v57 = vmul.f32 %v47, %v51
    %v58 = vmul.f32 %v48, %v52
    %v59 = vld [vmem:[%s2] sm:$0x3]
    %v61 = vperm.slane %v59, 0
    %v62 = vperm.slane %v59, 1
    %v65 = vadd.f32 %v55, %v61
    %v66 = vadd.f32 %v56, %v62
    %v67 = vadd.f32 %v57, %v61
    %v68 = vadd.f32 %v58, %v62
    %v69 = vpack.c.bf16 %v67, %v65
    %v70 = vpack.c.bf16 %v68, %v66
    %v71 = vld [vmem:[#allocation2] sm:$0xff]
    %v72 = vld [vmem:[#allocation2 + $0x8] sm:$0xff]
    %v73 = vld [vmem:[#allocation2 + $0x10] sm:$0xff]
    %v74 = vld [vmem:[#allocation2 + $0x18] sm:$0xff]
    %v75 = vld [vmem:[#allocation2 + $0x20] sm:$0xff]
    %v76 = vld [vmem:[#allocation2 + $0x28] sm:$0xff]
    %v77 = vld [vmem:[#allocation2 + $0x30] sm:$0xff]
    %v78 = vld [vmem:[#allocation2 + $0x38] sm:$0xff]
    %v79 = vld [vmem:[#allocation2 + $0x40] sm:$0xff]
    %v80 = vld [vmem:[#allocation2 + $0x48] sm:$0xff]
    %v81 = vld [vmem:[#allocation2 + $0x50] sm:$0xff]
    %v82 = vld [vmem:[#allocation2 + $0x58] sm:$0xff]
    %v83 = vld [vmem:[#allocation2 + $0x60] sm:$0xff]
    %v84 = vld [vmem:[#allocation2 + $0x68] sm:$0xff]
    %v85 = vld [vmem:[#allocation2 + $0x70] sm:$0xff]
    %v86 = vld [vmem:[#allocation2 + $0x78] sm:$0xff]
    %v87 = vld [vmem:[#allocation2 + $0x80] sm:$0xff]
    %v88 = vld [vmem:[#allocation2 + $0x88] sm:$0xff]
    %v89 = vld [vmem:[#allocation2 + $0x90] sm:$0xff]
    %v90 = vld [vmem:[#allocation2 + $0x98] sm:$0xff]
    %v91 = vld [vmem:[#allocation2 + $0xa0] sm:$0xff]
    %v92 = vld [vmem:[#allocation2 + $0xa8] sm:$0xff]
    %v93 = vld [vmem:[#allocation2 + $0xb0] sm:$0xff]
    %v94 = vld [vmem:[#allocation2 + $0xb8] sm:$0xff]
    %s95 = scalar_lea.vmem [#allocation2], 192
    %v96 = vld [vmem:[%s95] sm:$0xff]
    %v97 = vld [vmem:[%s95 + $0x8] sm:$0xff]
    %v98 = vld [vmem:[%s95 + $0x10] sm:$0xff]
    %v99 = vld [vmem:[%s95 + $0x18] sm:$0xff]
    %v100 = vld [vmem:[%s95 + $0x20] sm:$0xff]
    %v101 = vld [vmem:[%s95 + $0x28] sm:$0xff]
    %v102 = vld [vmem:[%s95 + $0x30] sm:$0xff]
    %v103 = vld [vmem:[%s95 + $0x38] sm:$0xff]
    %v104 = vld [vmem:[%s95 + $0x40] sm:$0xff]
    %v105 = vld [vmem:[%s95 + $0x48] sm:$0xff]
    %v106 = vld [vmem:[%s95 + $0x50] sm:$0xff]
    %v107 = vld [vmem:[%s95 + $0x58] sm:$0xff]
    %v108 = vld [vmem:[%s95 + $0x60] sm:$0xff]
    %v109 = vld [vmem:[%s95 + $0x68] sm:$0xff]
    %v110 = vld [vmem:[%s95 + $0x70] sm:$0xff]
    %v111 = vld [vmem:[%s95 + $0x78] sm:$0xff]
    %v112 = vld [vmem:[%s95 + $0x80] sm:$0xff]
    %v113 = vld [vmem:[%s95 + $0x88] sm:$0xff]
    %v114 = vld [vmem:[%s95 + $0x90] sm:$0xff]
    %v115 = vld [vmem:[%s95 + $0x98] sm:$0xff]
    %v116 = vld [vmem:[%s95 + $0xa0] sm:$0xff]
    %v117 = vld [vmem:[%s95 + $0xa8] sm:$0xff]
    %v118 = vld [vmem:[%s95 + $0xb0] sm:$0xff]
    %v119 = vld [vmem:[%s95 + $0xb8] sm:$0xff]
    %v121 = vshrl.u32 %v69, 16
    %v123 = vshll.u32 %v69, 16
    %v125 = vrot.slane %v123, 1
    %v126 = vor.u32 %v121, %v125
    %v128 = vshrl.u32 %v70, 16
    %v130 = vshll.u32 %v70, 16
    %v132 = vrot.slane %v130, 1
    %v133 = vor.u32 %v128, %v132
    %v159 = vunpack.c.l.b16 %v96
    %v160 = vunpack.c.h.b16 %v96
    %v161 = vunpack.c.l.b16 %v97
    %v162 = vunpack.c.h.b16 %v97
    %v163 = vunpack.c.l.b16 %v98
    %v164 = vunpack.c.h.b16 %v98
    %v165 = vunpack.c.l.b16 %v99
    %v166 = vunpack.c.h.b16 %v99
    %v167 = vunpack.c.l.b16 %v100
    %v168 = vunpack.c.h.b16 %v100
    %v169 = vunpack.c.l.b16 %v101
    %v170 = vunpack.c.h.b16 %v101
    %v171 = vunpack.c.l.b16 %v102
    %v172 = vunpack.c.h.b16 %v102
    %v173 = vunpack.c.l.b16 %v103
    %v174 = vunpack.c.h.b16 %v103
    %v175 = vunpack.c.l.b16 %v104
    %v176 = vunpack.c.h.b16 %v104
    %v177 = vunpack.c.l.b16 %v105
    %v178 = vunpack.c.h.b16 %v105
    %v179 = vunpack.c.l.b16 %v106
    %v180 = vunpack.c.h.b16 %v106
    %v181 = vunpack.c.l.b16 %v107
    %v182 = vunpack.c.h.b16 %v107
    %v183 = vunpack.c.l.b16 %v108
    %v184 = vunpack.c.h.b16 %v108
    %v185 = vunpack.c.l.b16 %v109
    %v186 = vunpack.c.h.b16 %v109
    %v187 = vunpack.c.l.b16 %v110
    %v188 = vunpack.c.h.b16 %v110
    %v189 = vunpack.c.l.b16 %v111
    %v190 = vunpack.c.h.b16 %v111
    %v191 = vunpack.c.l.b16 %v112
    %v192 = vunpack.c.h.b16 %v112
    %v193 = vunpack.c.l.b16 %v113
    %v194 = vunpack.c.h.b16 %v113
    %v195 = vunpack.c.l.b16 %v114
    %v196 = vunpack.c.h.b16 %v114
    %v197 = vunpack.c.l.b16 %v115
    %v198 = vunpack.c.h.b16 %v115
    %v199 = vunpack.c.l.b16 %v116
    %v200 = vunpack.c.h.b16 %v116
    %v201 = vunpack.c.l.b16 %v117
    %v202 = vunpack.c.h.b16 %v117
    %v203 = vunpack.c.l.b16 %v118
    %v204 = vunpack.c.h.b16 %v118
    %v205 = vunpack.c.l.b16 %v119
    %v206 = vunpack.c.h.b16 %v119
    %v207 = vpack.c.b16 %v161, %v159
    %v208 = vpack.c.b16 %v162, %v160
    %v209 = vpack.c.b16 %v165, %v163
    %v210 = vpack.c.b16 %v166, %v164
    %v211 = vpack.c.b16 %v169, %v167
    %v212 = vpack.c.b16 %v170, %v168
    %v213 = vpack.c.b16 %v173, %v171
    %v214 = vpack.c.b16 %v174, %v172
    %v215 = vpack.c.b16 %v177, %v175
    %v216 = vpack.c.b16 %v178, %v176
    %v217 = vpack.c.b16 %v181, %v179
    %v218 = vpack.c.b16 %v182, %v180
    %v219 = vpack.c.b16 %v185, %v183
    %v220 = vpack.c.b16 %v186, %v184
    %v221 = vpack.c.b16 %v189, %v187
    %v222 = vpack.c.b16 %v190, %v188
    %v223 = vpack.c.b16 %v193, %v191
    %v224 = vpack.c.b16 %v194, %v192
    %v225 = vpack.c.b16 %v197, %v195
    %v226 = vpack.c.b16 %v198, %v196
    %v227 = vpack.c.b16 %v201, %v199
    %v228 = vpack.c.b16 %v202, %v200
    %v229 = vpack.c.b16 %v205, %v203
    %v230 = vpack.c.b16 %v206, %v204
    %vm255 = vcmask 523264
    %v257 = vsel %vm255, %v133, 0
    %259 = vmatpush.bf16.msra.mxu0 %v221
    %260 = vmatpush.bf16.msra.mxu0 %v219
    %261 = vmatpush.bf16.msra.mxu0 %v217
    %262 = vmatpush.bf16.msra.mxu0 %v215
    %263 = vmatpush.bf16.msra.mxu0 %v213
    %264 = vmatpush.bf16.msra.mxu0 %v211
    %265 = vmatpush.bf16.msra.mxu0 %v209
    %266 = vmatpush.bf16.msra.mxu0 %v207
    %267 = vmatmul.bf16.gmra.mxu0 %v126
    %v268 = vpop.f32.mrf.mxu0
    %v269 = vadd.f32 0.0, %v268
    %v270 = vpop.f32.mrf.mxu0
    %v271 = vadd.f32 0.0, %v270
    %272 = vdwg.mxu0
    %273 = vmatpush.bf16.msra.mxu0 0
    %274 = vmatpush.bf16.msra.mxu0 0
    %275 = vmatpush.bf16.msra.mxu0 0
    %276 = vmatpush.bf16.msra.mxu0 0
    %277 = vmatpush.bf16.msra.mxu0 %v229
    %278 = vmatpush.bf16.msra.mxu0 %v227
    %279 = vmatpush.bf16.msra.mxu0 %v225
    %280 = vmatpush.bf16.msra.mxu0 %v223
    %281 = vmatmul.bf16.gmra.mxu0 %v257
    %v282 = vpop.f32.mrf.mxu0
    %v283 = vadd.f32 %v269, %v282
    %v284 = vpop.f32.mrf.mxu0
    %v285 = vadd.f32 %v271, %v284
    %286 = vdwg.mxu0
    %287 = vmatpush.bf16.msra.mxu0 %v222
    %288 = vmatpush.bf16.msra.mxu0 %v220
    %289 = vmatpush.bf16.msra.mxu0 %v218
    %290 = vmatpush.bf16.msra.mxu0 %v216
    %291 = vmatpush.bf16.msra.mxu0 %v214
    %292 = vmatpush.bf16.msra.mxu0 %v212
    %293 = vmatpush.bf16.msra.mxu0 %v210
    %294 = vmatpush.bf16.msra.mxu0 %v208
    %295 = vmatmul.bf16.gmra.mxu0 %v126
    %v296 = vpop.f32.mrf.mxu0
    %v297 = vadd.f32 0.0, %v296
    %v298 = vpop.f32.mrf.mxu0
    %v299 = vadd.f32 0.0, %v298
    %300 = vdwg.mxu0
    %301 = vmatpush.bf16.msra.mxu0 0
    %302 = vmatpush.bf16.msra.mxu0 0
    %303 = vmatpush.bf16.msra.mxu0 0
    %304 = vmatpush.bf16.msra.mxu0 0
    %305 = vmatpush.bf16.msra.mxu0 %v230
    %306 = vmatpush.bf16.msra.mxu0 %v228
    %307 = vmatpush.bf16.msra.mxu0 %v226
    %308 = vmatpush.bf16.msra.mxu0 %v224
    %309 = vmatmul.bf16.gmra.mxu0 %v257
    %v310 = vpop.f32.mrf.mxu0
    %v311 = vadd.f32 %v297, %v310
    %v312 = vpop.f32.mrf.mxu0
    %v313 = vadd.f32 %v299, %v312
    %314 = vdwg.mxu0
    %v339 = vunpack.c.l.b16 %v71
    %v340 = vunpack.c.h.b16 %v71
    %v341 = vunpack.c.l.b16 %v72
    %v342 = vunpack.c.h.b16 %v72
    %v343 = vunpack.c.l.b16 %v73
    %v344 = vunpack.c.h.b16 %v73
    %v345 = vunpack.c.l.b16 %v74
    %v346 = vunpack.c.h.b16 %v74
    %v347 = vunpack.c.l.b16 %v75
    %v348 = vunpack.c.h.b16 %v75
    %v349 = vunpack.c.l.b16 %v76
    %v350 = vunpack.c.h.b16 %v76
    %v351 = vunpack.c.l.b16 %v77
    %v352 = vunpack.c.h.b16 %v77
    %v353 = vunpack.c.l.b16 %v78
    %v354 = vunpack.c.h.b16 %v78
    %v355 = vunpack.c.l.b16 %v79
    %v356 = vunpack.c.h.b16 %v79
    %v357 = vunpack.c.l.b16 %v80
    %v358 = vunpack.c.h.b16 %v80
    %v359 = vunpack.c.l.b16 %v81
    %v360 = vunpack.c.h.b16 %v81
    %v361 = vunpack.c.l.b16 %v82
    %v362 = vunpack.c.h.b16 %v82
    %v363 = vunpack.c.l.b16 %v83
    %v364 = vunpack.c.h.b16 %v83
    %v365 = vunpack.c.l.b16 %v84
    %v366 = vunpack.c.h.b16 %v84
    %v367 = vunpack.c.l.b16 %v85
    %v368 = vunpack.c.h.b16 %v85
    %v369 = vunpack.c.l.b16 %v86
    %v370 = vunpack.c.h.b16 %v86
    %v371 = vunpack.c.l.b16 %v87
    %v372 = vunpack.c.h.b16 %v87
    %v373 = vunpack.c.l.b16 %v88
    %v374 = vunpack.c.h.b16 %v88
    %v375 = vunpack.c.l.b16 %v89
    %v376 = vunpack.c.h.b16 %v89
    %v377 = vunpack.c.l.b16 %v90
    %v378 = vunpack.c.h.b16 %v90
    %v379 = vunpack.c.l.b16 %v91
    %v380 = vunpack.c.h.b16 %v91
    %v381 = vunpack.c.l.b16 %v92
    %v382 = vunpack.c.h.b16 %v92
    %v383 = vunpack.c.l.b16 %v93
    %v384 = vunpack.c.h.b16 %v93
    %v385 = vunpack.c.l.b16 %v94
    %v386 = vunpack.c.h.b16 %v94
    %v387 = vpack.c.b16 %v341, %v339
    %v388 = vpack.c.b16 %v342, %v340
    %v389 = vpack.c.b16 %v345, %v343
    %v390 = vpack.c.b16 %v346, %v344
    %v391 = vpack.c.b16 %v349, %v347
    %v392 = vpack.c.b16 %v350, %v348
    %v393 = vpack.c.b16 %v353, %v351
    %v394 = vpack.c.b16 %v354, %v352
    %v395 = vpack.c.b16 %v357, %v355
    %v396 = vpack.c.b16 %v358, %v356
    %v397 = vpack.c.b16 %v361, %v359
    %v398 = vpack.c.b16 %v362, %v360
    %v399 = vpack.c.b16 %v365, %v363
    %v400 = vpack.c.b16 %v366, %v364
    %v401 = vpack.c.b16 %v369, %v367
    %v402 = vpack.c.b16 %v370, %v368
    %v403 = vpack.c.b16 %v373, %v371
    %v404 = vpack.c.b16 %v374, %v372
    %v405 = vpack.c.b16 %v377, %v375
    %v406 = vpack.c.b16 %v378, %v376
    %v407 = vpack.c.b16 %v381, %v379
    %v408 = vpack.c.b16 %v382, %v380
    %v409 = vpack.c.b16 %v385, %v383
    %v410 = vpack.c.b16 %v386, %v384
    %v435 = vsel %vm255, %v70, 0
    %437 = vmatpush.bf16.msra.mxu0 %v401
    %438 = vmatpush.bf16.msra.mxu0 %v399
    %439 = vmatpush.bf16.msra.mxu0 %v397
    %440 = vmatpush.bf16.msra.mxu0 %v395
    %441 = vmatpush.bf16.msra.mxu0 %v393
    %442 = vmatpush.bf16.msra.mxu0 %v391
    %443 = vmatpush.bf16.msra.mxu0 %v389
    %444 = vmatpush.bf16.msra.mxu0 %v387
    %445 = vmatmul.bf16.gmra.mxu0 %v69
    %v446 = vpop.f32.mrf.mxu0
    %v447 = vadd.f32 %v283, %v446
    %v448 = vpop.f32.mrf.mxu0
    %v449 = vadd.f32 %v285, %v448
    %450 = vdwg.mxu0
    %451 = vmatpush.bf16.msra.mxu0 0
    %452 = vmatpush.bf16.msra.mxu0 0
    %453 = vmatpush.bf16.msra.mxu0 0
    %454 = vmatpush.bf16.msra.mxu0 0
    %455 = vmatpush.bf16.msra.mxu0 %v409
    %456 = vmatpush.bf16.msra.mxu0 %v407
    %457 = vmatpush.bf16.msra.mxu0 %v405
    %458 = vmatpush.bf16.msra.mxu0 %v403
    %459 = vmatmul.bf16.gmra.mxu0 %v435
    %v460 = vpop.f32.mrf.mxu0
    %v461 = vadd.f32 %v447, %v460
    %v462 = vpop.f32.mrf.mxu0
    %v463 = vadd.f32 %v449, %v462
    %464 = vdwg.mxu0
    %465 = vmatpush.bf16.msra.mxu0 %v402
    %466 = vmatpush.bf16.msra.mxu0 %v400
    %467 = vmatpush.bf16.msra.mxu0 %v398
    %468 = vmatpush.bf16.msra.mxu0 %v396
    %469 = vmatpush.bf16.msra.mxu0 %v394
    %470 = vmatpush.bf16.msra.mxu0 %v392
    %471 = vmatpush.bf16.msra.mxu0 %v390
    %472 = vmatpush.bf16.msra.mxu0 %v388
    %473 = vmatmul.bf16.gmra.mxu0 %v69
    %v474 = vpop.f32.mrf.mxu0
    %v475 = vadd.f32 %v311, %v474
    %v476 = vpop.f32.mrf.mxu0
    %v477 = vadd.f32 %v313, %v476
    %478 = vdwg.mxu0
    %479 = vmatpush.bf16.msra.mxu0 0
    %480 = vmatpush.bf16.msra.mxu0 0
    %481 = vmatpush.bf16.msra.mxu0 0
    %482 = vmatpush.bf16.msra.mxu0 0
    %483 = vmatpush.bf16.msra.mxu0 %v410
    %484 = vmatpush.bf16.msra.mxu0 %v408
    %485 = vmatpush.bf16.msra.mxu0 %v406
    %486 = vmatpush.bf16.msra.mxu0 %v404
    %487 = vmatmul.bf16.gmra.mxu0 %v435
    %v488 = vpop.f32.mrf.mxu0
    %v489 = vadd.f32 %v475, %v488
    %v490 = vpop.f32.mrf.mxu0
    %v491 = vadd.f32 %v477, %v490
    %492 = vdwg.mxu0
    %s493 = scalar_lea.vmem [#allocation2], 384
    %v494 = vld [vmem:[%s493] sm:$0xff]
    %v495 = vld [vmem:[%s493 + $0x8] sm:$0xff]
    %v496 = vld [vmem:[%s493 + $0x10] sm:$0xff]
    %v497 = vld [vmem:[%s493 + $0x18] sm:$0xff]
    %v498 = vld [vmem:[%s493 + $0x20] sm:$0xff]
    %v499 = vld [vmem:[%s493 + $0x28] sm:$0xff]
    %v500 = vld [vmem:[%s493 + $0x30] sm:$0xff]
    %v501 = vld [vmem:[%s493 + $0x38] sm:$0xff]
    %v502 = vld [vmem:[%s493 + $0x40] sm:$0xff]
    %v503 = vld [vmem:[%s493 + $0x48] sm:$0xff]
    %v504 = vld [vmem:[%s493 + $0x50] sm:$0xff]
    %v505 = vld [vmem:[%s493 + $0x58] sm:$0xff]
    %v506 = vld [vmem:[%s493 + $0x60] sm:$0xff]
    %v507 = vld [vmem:[%s493 + $0x68] sm:$0xff]
    %v508 = vld [vmem:[%s493 + $0x70] sm:$0xff]
    %v509 = vld [vmem:[%s493 + $0x78] sm:$0xff]
    %v510 = vld [vmem:[%s493 + $0x80] sm:$0xff]
    %v511 = vld [vmem:[%s493 + $0x88] sm:$0xff]
    %v512 = vld [vmem:[%s493 + $0x90] sm:$0xff]
    %v513 = vld [vmem:[%s493 + $0x98] sm:$0xff]
    %v514 = vld [vmem:[%s493 + $0xa0] sm:$0xff]
    %v515 = vld [vmem:[%s493 + $0xa8] sm:$0xff]
    %v516 = vld [vmem:[%s493 + $0xb0] sm:$0xff]
    %v517 = vld [vmem:[%s493 + $0xb8] sm:$0xff]
    %v520 = vrot.slane %v69, 1
    %v521 = vrot.slane %v70, 1
    %v547 = vunpack.c.l.b16 %v494
    %v548 = vunpack.c.h.b16 %v494
    %v549 = vunpack.c.l.b16 %v495
    %v550 = vunpack.c.h.b16 %v495
    %v551 = vunpack.c.l.b16 %v496
    %v552 = vunpack.c.h.b16 %v496
    %v553 = vunpack.c.l.b16 %v497
    %v554 = vunpack.c.h.b16 %v497
    %v555 = vunpack.c.l.b16 %v498
    %v556 = vunpack.c.h.b16 %v498
    %v557 = vunpack.c.l.b16 %v499
    %v558 = vunpack.c.h.b16 %v499
    %v559 = vunpack.c.l.b16 %v500
    %v560 = vunpack.c.h.b16 %v500
    %v561 = vunpack.c.l.b16 %v501
    %v562 = vunpack.c.h.b16 %v501
    %v563 = vunpack.c.l.b16 %v502
    %v564 = vunpack.c.h.b16 %v502
    %v565 = vunpack.c.l.b16 %v503
    %v566 = vunpack.c.h.b16 %v503
    %v567 = vunpack.c.l.b16 %v504
    %v568 = vunpack.c.h.b16 %v504
    %v569 = vunpack.c.l.b16 %v505
    %v570 = vunpack.c.h.b16 %v505
    %v571 = vunpack.c.l.b16 %v506
    %v572 = vunpack.c.h.b16 %v506
    %v573 = vunpack.c.l.b16 %v507
    %v574 = vunpack.c.h.b16 %v507
    %v575 = vunpack.c.l.b16 %v508
    %v576 = vunpack.c.h.b16 %v508
    %v577 = vunpack.c.l.b16 %v509
    %v578 = vunpack.c.h.b16 %v509
    %v579 = vunpack.c.l.b16 %v510
    %v580 = vunpack.c.h.b16 %v510
    %v581 = vunpack.c.l.b16 %v511
    %v582 = vunpack.c.h.b16 %v511
    %v583 = vunpack.c.l.b16 %v512
    %v584 = vunpack.c.h.b16 %v512
    %v585 = vunpack.c.l.b16 %v513
    %v586 = vunpack.c.h.b16 %v513
    %v587 = vunpack.c.l.b16 %v514
    %v588 = vunpack.c.h.b16 %v514
    %v589 = vunpack.c.l.b16 %v515
    %v590 = vunpack.c.h.b16 %v515
    %v591 = vunpack.c.l.b16 %v516
    %v592 = vunpack.c.h.b16 %v516
    %v593 = vunpack.c.l.b16 %v517
    %v594 = vunpack.c.h.b16 %v517
    %v595 = vpack.c.b16 %v549, %v547
    %v596 = vpack.c.b16 %v550, %v548
    %v597 = vpack.c.b16 %v553, %v551
    %v598 = vpack.c.b16 %v554, %v552
    %v599 = vpack.c.b16 %v557, %v555
    %v600 = vpack.c.b16 %v558, %v556
    %v601 = vpack.c.b16 %v561, %v559
    %v602 = vpack.c.b16 %v562, %v560
    %v603 = vpack.c.b16 %v565, %v563
    %v604 = vpack.c.b16 %v566, %v564
    %v605 = vpack.c.b16 %v569, %v567
    %v606 = vpack.c.b16 %v570, %v568
    %v607 = vpack.c.b16 %v573, %v571
    %v608 = vpack.c.b16 %v574, %v572
    %v609 = vpack.c.b16 %v577, %v575
    %v610 = vpack.c.b16 %v578, %v576
    %v611 = vpack.c.b16 %v581, %v579
    %v612 = vpack.c.b16 %v582, %v580
    %v613 = vpack.c.b16 %v585, %v583
    %v614 = vpack.c.b16 %v586, %v584
    %v615 = vpack.c.b16 %v589, %v587
    %v616 = vpack.c.b16 %v590, %v588
    %v617 = vpack.c.b16 %v593, %v591
    %v618 = vpack.c.b16 %v594, %v592
    %v644 = vsel %vm255, %v521, 0
    %646 = vmatpush.bf16.msra.mxu0 %v609
    %647 = vmatpush.bf16.msra.mxu0 %v607
    %648 = vmatpush.bf16.msra.mxu0 %v605
    %649 = vmatpush.bf16.msra.mxu0 %v603
    %650 = vmatpush.bf16.msra.mxu0 %v601
    %651 = vmatpush.bf16.msra.mxu0 %v599
    %652 = vmatpush.bf16.msra.mxu0 %v597
    %653 = vmatpush.bf16.msra.mxu0 %v595
    %654 = vmatmul.bf16.gmra.mxu0 %v520
    %v655 = vpop.f32.mrf.mxu0
    %v656 = vadd.f32 0.0, %v655
    %v657 = vpop.f32.mrf.mxu0
    %v658 = vadd.f32 0.0, %v657
    %659 = vdwg.mxu0
    %660 = vmatpush.bf16.msra.mxu0 0
    %661 = vmatpush.bf16.msra.mxu0 0
    %662 = vmatpush.bf16.msra.mxu0 0
    %663 = vmatpush.bf16.msra.mxu0 0
    %664 = vmatpush.bf16.msra.mxu0 %v617
    %665 = vmatpush.bf16.msra.mxu0 %v615
    %666 = vmatpush.bf16.msra.mxu0 %v613
    %667 = vmatpush.bf16.msra.mxu0 %v611
    %668 = vmatmul.bf16.gmra.mxu0 %v644
    %v669 = vpop.f32.mrf.mxu0
    %v670 = vadd.f32 %v656, %v669
    %v671 = vpop.f32.mrf.mxu0
    %v672 = vadd.f32 %v658, %v671
    %673 = vdwg.mxu0
    %674 = vmatpush.bf16.msra.mxu0 %v610
    %675 = vmatpush.bf16.msra.mxu0 %v608
    %676 = vmatpush.bf16.msra.mxu0 %v606
    %677 = vmatpush.bf16.msra.mxu0 %v604
    %678 = vmatpush.bf16.msra.mxu0 %v602
    %679 = vmatpush.bf16.msra.mxu0 %v600
    %680 = vmatpush.bf16.msra.mxu0 %v598
    %681 = vmatpush.bf16.msra.mxu0 %v596
    %682 = vmatmul.bf16.gmra.mxu0 %v520
    %v683 = vpop.f32.mrf.mxu0
    %v684 = vadd.f32 0.0, %v683
    %v685 = vpop.f32.mrf.mxu0
    %v686 = vadd.f32 0.0, %v685
    %687 = vdwg.mxu0
    %688 = vmatpush.bf16.msra.mxu0 0
    %689 = vmatpush.bf16.msra.mxu0 0
    %690 = vmatpush.bf16.msra.mxu0 0
    %691 = vmatpush.bf16.msra.mxu0 0
    %692 = vmatpush.bf16.msra.mxu0 %v618
    %693 = vmatpush.bf16.msra.mxu0 %v616
    %694 = vmatpush.bf16.msra.mxu0 %v614
    %695 = vmatpush.bf16.msra.mxu0 %v612
    %696 = vmatmul.bf16.gmra.mxu0 %v644
    %v697 = vpop.f32.mrf.mxu0
    %v698 = vadd.f32 %v684, %v697
    %v699 = vpop.f32.mrf.mxu0
    %v700 = vadd.f32 %v686, %v699
    %701 = vdwg.mxu0
    %v702 = vadd.f32 %v461, %v670
    %v703 = vadd.f32 %v489, %v698
    %v704 = vadd.f32 %v463, %v672
    %v705 = vadd.f32 %v491, %v700
    %v706 = vld [vmem:[%s4] sm:$0x3]
    %v708 = vperm.slane %v706, 0
    %v709 = vperm.slane %v706, 1
    %v712 = vadd.f32 %v702, %v708
    %v713 = vadd.f32 %v703, %v709
    %v714 = vadd.f32 %v704, %v708
    %v715 = vadd.f32 %v705, %v709
    %v716 = vmax.f32 %v712, 0.0
    %v717 = vmax.f32 %v713, 0.0
    %v718 = vmax.f32 %v714, 0.0
    %v719 = vmax.f32 %v715, 0.0
    %v720 = vld [vmem:[%s5] sm:$0xf]
    %v721 = vpack.c.bf16 %v718, %v716
    %v722 = vpack.c.bf16 %v719, %v717
    %vm723 = vcmask 80896
    %v725 = vsel %vm723, %v720, 0
    %vm727 = vcmask 1044480
    %v729 = vsel %vm727, %v721, 0
    %v732 = vsel %vm727, %v722, 0
    %734 = vmatpush.bf16.msra.mxu0 0
    %735 = vmatpush.bf16.msra.mxu0 0
    %736 = vmatpush.bf16.msra.mxu0 0
    %737 = vmatpush.bf16.msra.mxu0 0
    %738 = vmatpush.bf16.msra.mxu0 0
    %739 = vmatpush.bf16.msra.mxu0 0
    %740 = vmatpush.bf16.msra.mxu0 0
    %741 = vmatpush.bf16.msra.mxu0 %v729
    %742 = vmatmul.bf16.gmra.mxu0 %v725
    %v743 = vpop.f32.mrf.mxu0
    %v744 = vadd.f32 0.0, %v743
    %v745 = vpop.f32.mrf.mxu0
    %746 = vdwg.mxu0
    %747 = vmatpush.bf16.msra.mxu0 0
    %748 = vmatpush.bf16.msra.mxu0 0
    %749 = vmatpush.bf16.msra.mxu0 0
    %750 = vmatpush.bf16.msra.mxu0 0
    %751 = vmatpush.bf16.msra.mxu0 0
    %752 = vmatpush.bf16.msra.mxu0 0
    %753 = vmatpush.bf16.msra.mxu0 0
    %754 = vmatpush.bf16.msra.mxu0 %v732
    %755 = vmatmul.bf16.gmra.mxu0 %v725
    %v756 = vpop.f32.mrf.mxu0
    %v757 = vadd.f32 0.0, %v756
    %v758 = vpop.f32.mrf.mxu0
    %759 = vdwg.mxu0
    %v760 = vpack.c.bf16 %v757, %v744
    %761 = vst [vmem:[%s6] sm:$0xff] %v760
    %s762 = smul.u32 0, 2
    %s763 = ssub.s32 2, %s762
    %s764 = smul.u32 %s763, 4
    %v765 = vlaneseq
    %v766 = vshrl.u32 %v765, 7
    %v767 = vstv %s764
    %vm768 = vcmp.lt.s32.totalorder %v766, %v767
    %v769 = vsel %vm768, 1, 0
    %v770 = vcvt.s32.f32 %v769
    %v771 = vmul.f32 %v744, %v770
    %v772 = vmul.f32 %v757, %v770
    %v773 = vrot.slane %v771, 4
    %v774 = vadd.f32 %v771, %v773
    %v775 = vrot.slane %v774, 2
    %v776 = vadd.f32 %v774, %v775
    %v777 = vrot.slane %v776, 1
    %v778 = vadd.f32 %v776, %v777
    %v779 = vrot.slane %v772, 4
    %v780 = vadd.f32 %v772, %v779
    %v781 = vrot.slane %v780, 2
    %v782 = vadd.f32 %v780, %v781
    %v783 = vrot.slane %v782, 1
    %v784 = vadd.f32 %v782, %v783
    %v785 = vmul.f32 %v744, %v744
    %v786 = vmul.f32 %v757, %v757
    %v787 = vmul.f32 %v785, %v770
    %v788 = vmul.f32 %v786, %v770
    %v789 = vrot.slane %v787, 4
    %v790 = vadd.f32 %v787, %v789
    %v791 = vrot.slane %v790, 2
    %v792 = vadd.f32 %v790, %v791
    %v793 = vrot.slane %v792, 1
    %v794 = vadd.f32 %v792, %v793
    %v795 = vrot.slane %v788, 4
    %v796 = vadd.f32 %v788, %v795
    %v797 = vrot.slane %v796, 2
    %v798 = vadd.f32 %v796, %v797
    %v799 = vrot.slane %v798, 1
    %v800 = vadd.f32 %v798, %v799
    %v803 = vrot.slane %v784, 7
    %vm804 = vcmask 1040384
    %v805 = vsel %vm804, %v778, %v803
    %v807 = vlaneseq
    %vm808 = vcmp.ge.s32.totalorder %v807, 0
    %vm809 = vcmp.lt.s32.totalorder %v807, 256
    %vm810 = vmand %vm808, %vm809
    %811 = vst.msk [vmem:[%s7] sm:$0x3] %vm810, %v805
    %v814 = vrot.slane %v800, 7
    %v815 = vsel %vm804, %v794, %v814
    %817 = vst.msk [vmem:[%s8] sm:$0x3] %vm810, %v815
    // Predicated region
    $region30: #{topological_nn_forward.7} parent=1 // pred_check
      _
    $region31: #{topological_nn_forward.7} parent=1 // pred_check_branch
      %819 = sbr.rel (0) target = $region33
    $region32: #{topological_nn_forward.7} parent=1 // pred_region
      _
    $region33: #{topological_nn_forward.7} parent=1 // pred_fallthru
      _
    // Predicated region
    $region34: #{topological_nn_forward.7} parent=1 // pred_check
      _
    $region35: #{topological_nn_forward.7} parent=1 // pred_check_branch
      %821 = sbr.rel (0) target = $region37
    $region36: #{topological_nn_forward.7} parent=1 // pred_region
      _
    $region37: #{topological_nn_forward.7} parent=1 // pred_fallthru
      _
    // Predicated region
    $region38: #{topological_nn_forward.7} parent=1 // pred_check
      _
    $region39: #{topological_nn_forward.7} parent=1 // pred_check_branch
      %823 = sbr.rel (0) target = $region41
    $region40: #{topological_nn_forward.7} parent=1 // pred_region
      _
    $region41: #{topological_nn_forward.7} parent=1 // pred_fallthru
      _
    // Predicated region
    $region42: #{topological_nn_forward.7} parent=1 // pred_check
      _
    $region43: #{topological_nn_forward.7} parent=1 // pred_check_branch
      %825 = sbr.rel (0) target = $region45
    $region44: #{topological_nn_forward.7} parent=1 // pred_region
      _
    $region45: #{topological_nn_forward.7} parent=1 // pred_fallthru
      _
    // Predicated region
    $region46: #{topological_nn_forward.7} parent=1 // pred_check
      _
    $region47: #{topological_nn_forward.7} parent=1 // pred_check_branch
      %827 = sbr.rel (0) target = $region49
    $region48: #{topological_nn_forward.7} parent=1 // pred_region
      _
    $region49: #{topological_nn_forward.7} parent=1 // pred_fallthru
      _
    // Predicated region
    $region50: #{topological_nn_forward.7} parent=1 // pred_check
      _
    $region51: #{topological_nn_forward.7} parent=1 // pred_check_branch
      %829 = sbr.rel (0) target = $region53
    $region52: #{topological_nn_forward.7} parent=1 // pred_region
      _
    $region53: #{topological_nn_forward.7} parent=1 // pred_fallthru
      _
    %830 = vsyncpa [#allocation3], 1

// kernel: topological_nn_forward.6
$region0: #{topological_nn_forward.6}
  #allocation0 [shape = 'u32[]', space=smem, size = 0x4, offset = 0x4, fixed_abs, tag = 'smem constant byte address 0x4 - core index']
  #allocation1 [shape = 'u32[72,128]{1,0:T(1,128)}', space=vmem, size = 0x9000, scoped, tag = 'internal scratch']
  %s0 = inlined_call_operand.vmem [shape: bf16[20,170], index: 0, kind: input, shape index: {}]
  %s1 = inlined_call_operand.hbm [shape: bf16[5,170,192], index: 1, kind: input, shape index: {}]
  %s2 = inlined_call_operand.vmem [shape: f32[1,192], index: 2, kind: input, shape index: {}]
  %s3 = inlined_call_operand.vmem [shape: bf16[12,16], index: 3, kind: input, shape index: {}]
  %s4 = inlined_call_operand.vmem [shape: bf16[12,192], index: 4, kind: output, shape index: {0}]
  %s5 = inlined_call_operand.vmem [shape: f32[1,1,192], index: 5, kind: output, shape index: {1}]
  %s6 = inlined_call_operand.vmem [shape: f32[1,1,192], index: 6, kind: output, shape index: {2}]
  %7 = xla_tuple %s4, %s5, %s6
  %s8 = sld [smem:[#allocation0]]
  $region46: #{topological_nn_forward.6} parent=0
    _
  %s10 = ssub.s32 1, %s8
  %s11 = scalar_select 0, %s10, %s8
  $region1: #{topological_nn_forward.6} parent=0
    #allocation2 [shape = 'u8[450560]{0}', space=vmem, size = 0x6e000, scoped, tag = 'input window, operand 1, single buffered']
    #allocation3 [shape = 's32[1]{0}', space=sflag, size = 0x4, scoped, tag = 'scoped memory for topological_nn_forward.6']
    %12 = vsyncpa [#allocation3], 0
    // Predicated region
    $region2: #{topological_nn_forward.6} parent=1 // pred_check
      _
    $region3: #{topological_nn_forward.6} parent=1 // pred_check_branch
      %14 = sbr.rel (0) target = $region5
    $region4: #{topological_nn_forward.6} parent=1 // pred_region
      _
    $region5: #{topological_nn_forward.6} parent=1 // pred_fallthru
      _
    // Predicated region
    $region6: #{topological_nn_forward.6} parent=1 // pred_check
      _
    $region7: #{topological_nn_forward.6} parent=1 // pred_check_branch
      %16 = sbr.rel (0) target = $region9
    $region8: #{topological_nn_forward.6} parent=1 // pred_region
      %18 = vsyncadd [#allocation3], 0
      %s19 = sshll.u32 %s1, 4
      %s20 = int_to_ptr.hbm [resolvable:$true] %s19
      %s21 = sshll.u32 [#allocation2], 4
      %s22 = int_to_ptr.vmem [resolvable:$true] %s21
      %27 = dma.hbm_to_vmem [thread:$0]  %s20, 14080, %s22, [#allocation3], 128, 128, 8
    $region9: #{topological_nn_forward.6} parent=1 // pred_fallthru
      _
    // Predicated region
    $region10: #{topological_nn_forward.6} parent=1 // pred_check
      _
    $region11: #{topological_nn_forward.6} parent=1 // pred_check_branch
      %29 = sbr.rel (0) target = $region13
    $region12: #{topological_nn_forward.6} parent=1 // pred_region
      _
    $region13: #{topological_nn_forward.6} parent=1 // pred_fallthru
      _
    // Predicated region
    $region14: #{topological_nn_forward.6} parent=1 // pred_check
      _
    $region15: #{topological_nn_forward.6} parent=1 // pred_check_branch
      %31 = sbr.rel (0) target = $region17
    $region16: #{topological_nn_forward.6} parent=1 // pred_region
      _
    $region17: #{topological_nn_forward.6} parent=1 // pred_fallthru
      _
    // Predicated region
    $region18: #{topological_nn_forward.6} parent=1 // pred_check
      _
    $region19: #{topological_nn_forward.6} parent=1 // pred_check_branch
      %33 = sbr.rel (0) target = $region21
    $region20: #{topological_nn_forward.6} parent=1 // pred_region
      %35 = dma.done [#allocation3], 14080
    $region21: #{topological_nn_forward.6} parent=1 // pred_fallthru
      _
    %v37 = vld [vmem:[%s0] sm:$0xff]
    %v38 = vld [vmem:[%s0 + $0x8] sm:$0xff]
    %v39 = vld [vmem:[%s0 + $0x10] sm:$0x33]
    %v40 = vunpack.c.l.bf16 %v37
    %v41 = vunpack.c.h.bf16 %v37
    %v42 = vunpack.c.l.bf16 %v38
    %v43 = vunpack.c.h.bf16 %v38
    %v44 = vunpack.c.l.bf16 %v39
    %v45 = vunpack.c.h.bf16 %v39
    %v46 = vpack.c.bf16 %v42, %v40
    %v47 = vpack.c.bf16 %v43, %v41
    %v48 = vld [vmem:[#allocation2] sm:$0xff]
    %v49 = vld [vmem:[#allocation2 + $0x8] sm:$0xff]
    %v50 = vld [vmem:[#allocation2 + $0x10] sm:$0xff]
    %v51 = vld [vmem:[#allocation2 + $0x18] sm:$0xff]
    %v52 = vld [vmem:[#allocation2 + $0x20] sm:$0xff]
    %v53 = vld [vmem:[#allocation2 + $0x28] sm:$0xff]
    %v54 = vld [vmem:[#allocation2 + $0x30] sm:$0xff]
    %v55 = vld [vmem:[#allocation2 + $0x38] sm:$0xff]
    %v56 = vld [vmem:[#allocation2 + $0x40] sm:$0xff]
    %v57 = vld [vmem:[#allocation2 + $0x48] sm:$0xff]
    %v58 = vld [vmem:[#allocation2 + $0x50] sm:$0xff]
    %v59 = vld [vmem:[#allocation2 + $0x58] sm:$0xff]
    %v60 = vld [vmem:[#allocation2 + $0x60] sm:$0xff]
    %v61 = vld [vmem:[#allocation2 + $0x68] sm:$0xff]
    %v62 = vld [vmem:[#allocation2 + $0x70] sm:$0xff]
    %v63 = vld [vmem:[#allocation2 + $0x78] sm:$0xff]
    %v64 = vld [vmem:[#allocation2 + $0x80] sm:$0xff]
    %v65 = vld [vmem:[#allocation2 + $0x88] sm:$0xff]
    %v66 = vld [vmem:[#allocation2 + $0x90] sm:$0xff]
    %v67 = vld [vmem:[#allocation2 + $0x98] sm:$0xff]
    %v68 = vld [vmem:[#allocation2 + $0xa0] sm:$0xff]
    %v69 = vld [vmem:[#allocation2 + $0xa8] sm:$0x11]
    %v70 = vpack.c.bf16 %v44, %v44
    %v71 = vpack.c.bf16 %v45, %v45
    %s72 = scalar_lea.vmem [#allocation2], 176
    %v73 = vld [vmem:[%s72] sm:$0xff]
    %v74 = vld [vmem:[%s72 + $0x8] sm:$0xff]
    %v75 = vld [vmem:[%s72 + $0x10] sm:$0xff]
    %v76 = vld [vmem:[%s72 + $0x18] sm:$0xff]
    %v77 = vld [vmem:[%s72 + $0x20] sm:$0xff]
    %v78 = vld [vmem:[%s72 + $0x28] sm:$0xff]
    %v79 = vld [vmem:[%s72 + $0x30] sm:$0xff]
    %v80 = vld [vmem:[%s72 + $0x38] sm:$0xff]
    %v81 = vld [vmem:[%s72 + $0x40] sm:$0xff]
    %v82 = vld [vmem:[%s72 + $0x48] sm:$0xff]
    %v83 = vld [vmem:[%s72 + $0x50] sm:$0xff]
    %v84 = vld [vmem:[%s72 + $0x58] sm:$0xff]
    %v85 = vld [vmem:[%s72 + $0x60] sm:$0xff]
    %v86 = vld [vmem:[%s72 + $0x68] sm:$0xff]
    %v87 = vld [vmem:[%s72 + $0x70] sm:$0xff]
    %v88 = vld [vmem:[%s72 + $0x78] sm:$0xff]
    %v89 = vld [vmem:[%s72 + $0x80] sm:$0xff]
    %v90 = vld [vmem:[%s72 + $0x88] sm:$0xff]
    %v91 = vld [vmem:[%s72 + $0x90] sm:$0xff]
    %v92 = vld [vmem:[%s72 + $0x98] sm:$0xff]
    %v93 = vld [vmem:[%s72 + $0xa0] sm:$0xff]
    %v94 = vld [vmem:[%s72 + $0xa8] sm:$0x11]
    %vm95 = vsmask.f32 7424
    %v97 = vshrl.u32 %v46, 16
    %v99 = vshll.u32 %v46, 16
    %v101 = vrot.slane %v99, 1
    %v102 = vor.u32 %v97, %v101
    %v104 = vshll.u32 %v70, 16
    %v106 = vrot.slane %v104, 1
    %v107 = vsel %vm95, %v102, %v106
    %v109 = vshrl.u32 %v47, 16
    %v111 = vshll.u32 %v47, 16
    %v113 = vrot.slane %v111, 1
    %v114 = vor.u32 %v109, %v113
    %v116 = vshll.u32 %v71, 16
    %v118 = vrot.slane %v116, 1
    %v119 = vsel %vm95, %v114, %v118
    %v143 = vunpack.c.l.b16 %v73
    %v144 = vunpack.c.h.b16 %v73
    %v145 = vunpack.c.l.b16 %v74
    %v146 = vunpack.c.h.b16 %v74
    %v147 = vunpack.c.l.b16 %v75
    %v148 = vunpack.c.h.b16 %v75
    %v149 = vunpack.c.l.b16 %v76
    %v150 = vunpack.c.h.b16 %v76
    %v151 = vunpack.c.l.b16 %v77
    %v152 = vunpack.c.h.b16 %v77
    %v153 = vunpack.c.l.b16 %v78
    %v154 = vunpack.c.h.b16 %v78
    %v155 = vunpack.c.l.b16 %v79
    %v156 = vunpack.c.h.b16 %v79
    %v157 = vunpack.c.l.b16 %v80
    %v158 = vunpack.c.h.b16 %v80
    %v159 = vunpack.c.l.b16 %v81
    %v160 = vunpack.c.h.b16 %v81
    %v161 = vunpack.c.l.b16 %v82
    %v162 = vunpack.c.h.b16 %v82
    %v163 = vunpack.c.l.b16 %v83
    %v164 = vunpack.c.h.b16 %v83
    %v165 = vunpack.c.l.b16 %v84
    %v166 = vunpack.c.h.b16 %v84
    %v167 = vunpack.c.l.b16 %v85
    %v168 = vunpack.c.h.b16 %v85
    %v169 = vunpack.c.l.b16 %v86
    %v170 = vunpack.c.h.b16 %v86
    %v171 = vunpack.c.l.b16 %v87
    %v172 = vunpack.c.h.b16 %v87
    %v173 = vunpack.c.l.b16 %v88
    %v174 = vunpack.c.h.b16 %v88
    %v175 = vunpack.c.l.b16 %v89
    %v176 = vunpack.c.h.b16 %v89
    %v177 = vunpack.c.l.b16 %v90
    %v178 = vunpack.c.h.b16 %v90
    %v179 = vunpack.c.l.b16 %v91
    %v180 = vunpack.c.h.b16 %v91
    %v181 = vunpack.c.l.b16 %v92
    %v182 = vunpack.c.h.b16 %v92
    %v183 = vunpack.c.l.b16 %v93
    %v184 = vunpack.c.h.b16 %v93
    %v185 = vunpack.c.l.b16 %v94
    %v186 = vunpack.c.h.b16 %v94
    %v187 = vpack.c.b16 %v145, %v143
    %v188 = vpack.c.b16 %v146, %v144
    %v189 = vpack.c.b16 %v149, %v147
    %v190 = vpack.c.b16 %v150, %v148
    %v191 = vpack.c.b16 %v153, %v151
    %v192 = vpack.c.b16 %v154, %v152
    %v193 = vpack.c.b16 %v157, %v155
    %v194 = vpack.c.b16 %v158, %v156
    %v195 = vpack.c.b16 %v161, %v159
    %v196 = vpack.c.b16 %v162, %v160
    %v197 = vpack.c.b16 %v165, %v163
    %v198 = vpack.c.b16 %v166, %v164
    %v199 = vpack.c.b16 %v169, %v167
    %v200 = vpack.c.b16 %v170, %v168
    %v201 = vpack.c.b16 %v173, %v171
    %v202 = vpack.c.b16 %v174, %v172
    %v203 = vpack.c.b16 %v177, %v175
    %v204 = vpack.c.b16 %v178, %v176
    %v205 = vpack.c.b16 %v181, %v179
    %v206 = vpack.c.b16 %v182, %v180
    %v207 = vpack.c.b16 %v185, %v183
    %v208 = vpack.c.b16 %v186, %v184
    %vm229 = vcmask 343040
    %v231 = vsel %vm229, %v119, 0
    %vm233 = vcmask 1044480
    %v235 = vsel %vm233, %v207, 0
    %v238 = vsel %vm233, %v208, 0
    %240 = vmatpush.bf16.msra.mxu0 %v201
    %241 = vmatpush.bf16.msra.mxu0 %v199
    %242 = vmatpush.bf16.msra.mxu0 %v197
    %243 = vmatpush.bf16.msra.mxu0 %v195
    %244 = vmatpush.bf16.msra.mxu0 %v193
    %245 = vmatpush.bf16.msra.mxu0 %v191
    %246 = vmatpush.bf16.msra.mxu0 %v189
    %247 = vmatpush.bf16.msra.mxu0 %v187
    %248 = vmatmul.bf16.gmra.mxu0 %v107
    %v249 = vpop.f32.mrf.mxu0
    %v250 = vadd.f32 0.0, %v249
    %v251 = vpop.f32.mrf.mxu0
    %v252 = vadd.f32 0.0, %v251
    %253 = vdwg.mxu0
    %254 = vmatpush.bf16.msra.mxu0 0
    %255 = vmatpush.bf16.msra.mxu0 0
    %256 = vmatpush.bf16.msra.mxu0 0
    %257 = vmatpush.bf16.msra.mxu0 0
    %258 = vmatpush.bf16.msra.mxu0 0
    %259 = vmatpush.bf16.msra.mxu0 %v235
    %260 = vmatpush.bf16.msra.mxu0 %v205
    %261 = vmatpush.bf16.msra.mxu0 %v203
    %262 = vmatmul.bf16.gmra.mxu0 %v231
    %v263 = vpop.f32.mrf.mxu0
    %v264 = vadd.f32 %v250, %v263
    %v265 = vpop.f32.mrf.mxu0
    %v266 = vadd.f32 %v252, %v265
    %267 = vdwg.mxu0
    %268 = vmatpush.bf16.msra.mxu0 %v202
    %269 = vmatpush.bf16.msra.mxu0 %v200
    %270 = vmatpush.bf16.msra.mxu0 %v198
    %271 = vmatpush.bf16.msra.mxu0 %v196
    %272 = vmatpush.bf16.msra.mxu0 %v194
    %273 = vmatpush.bf16.msra.mxu0 %v192
    %274 = vmatpush.bf16.msra.mxu0 %v190
    %275 = vmatpush.bf16.msra.mxu0 %v188
    %276 = vmatmul.bf16.gmra.mxu0 %v107
    %v277 = vpop.f32.mrf.mxu0
    %v278 = vadd.f32 0.0, %v277
    %v279 = vpop.f32.mrf.mxu0
    %v280 = vadd.f32 0.0, %v279
    %281 = vdwg.mxu0
    %282 = vmatpush.bf16.msra.mxu0 0
    %283 = vmatpush.bf16.msra.mxu0 0
    %284 = vmatpush.bf16.msra.mxu0 0
    %285 = vmatpush.bf16.msra.mxu0 0
    %286 = vmatpush.bf16.msra.mxu0 0
    %287 = vmatpush.bf16.msra.mxu0 %v238
    %288 = vmatpush.bf16.msra.mxu0 %v206
    %289 = vmatpush.bf16.msra.mxu0 %v204
    %290 = vmatmul.bf16.gmra.mxu0 %v231
    %v291 = vpop.f32.mrf.mxu0
    %v292 = vadd.f32 %v278, %v291
    %v293 = vpop.f32.mrf.mxu0
    %v294 = vadd.f32 %v280, %v293
    %295 = vdwg.mxu0
    %v318 = vunpack.c.l.b16 %v48
    %v319 = vunpack.c.h.b16 %v48
    %v320 = vunpack.c.l.b16 %v49
    %v321 = vunpack.c.h.b16 %v49
    %v322 = vunpack.c.l.b16 %v50
    %v323 = vunpack.c.h.b16 %v50
    %v324 = vunpack.c.l.b16 %v51
    %v325 = vunpack.c.h.b16 %v51
    %v326 = vunpack.c.l.b16 %v52
    %v327 = vunpack.c.h.b16 %v52
    %v328 = vunpack.c.l.b16 %v53
    %v329 = vunpack.c.h.b16 %v53
    %v330 = vunpack.c.l.b16 %v54
    %v331 = vunpack.c.h.b16 %v54
    %v332 = vunpack.c.l.b16 %v55
    %v333 = vunpack.c.h.b16 %v55
    %v334 = vunpack.c.l.b16 %v56
    %v335 = vunpack.c.h.b16 %v56
    %v336 = vunpack.c.l.b16 %v57
    %v337 = vunpack.c.h.b16 %v57
    %v338 = vunpack.c.l.b16 %v58
    %v339 = vunpack.c.h.b16 %v58
    %v340 = vunpack.c.l.b16 %v59
    %v341 = vunpack.c.h.b16 %v59
    %v342 = vunpack.c.l.b16 %v60
    %v343 = vunpack.c.h.b16 %v60
    %v344 = vunpack.c.l.b16 %v61
    %v345 = vunpack.c.h.b16 %v61
    %v346 = vunpack.c.l.b16 %v62
    %v347 = vunpack.c.h.b16 %v62
    %v348 = vunpack.c.l.b16 %v63
    %v349 = vunpack.c.h.b16 %v63
    %v350 = vunpack.c.l.b16 %v64
    %v351 = vunpack.c.h.b16 %v64
    %v352 = vunpack.c.l.b16 %v65
    %v353 = vunpack.c.h.b16 %v65
    %v354 = vunpack.c.l.b16 %v66
    %v355 = vunpack.c.h.b16 %v66
    %v356 = vunpack.c.l.b16 %v67
    %v357 = vunpack.c.h.b16 %v67
    %v358 = vunpack.c.l.b16 %v68
    %v359 = vunpack.c.h.b16 %v68
    %v360 = vunpack.c.l.b16 %v69
    %v361 = vunpack.c.h.b16 %v69
    %v362 = vpack.c.b16 %v320, %v318
    %v363 = vpack.c.b16 %v321, %v319
    %v364 = vpack.c.b16 %v324, %v322
    %v365 = vpack.c.b16 %v325, %v323
    %v366 = vpack.c.b16 %v328, %v326
    %v367 = vpack.c.b16 %v329, %v327
    %v368 = vpack.c.b16 %v332, %v330
    %v369 = vpack.c.b16 %v333, %v331
    %v370 = vpack.c.b16 %v336, %v334
    %v371 = vpack.c.b16 %v337, %v335
    %v372 = vpack.c.b16 %v340, %v338
    %v373 = vpack.c.b16 %v341, %v339
    %v374 = vpack.c.b16 %v344, %v342
    %v375 = vpack.c.b16 %v345, %v343
    %v376 = vpack.c.b16 %v348, %v346
    %v377 = vpack.c.b16 %v349, %v347
    %v378 = vpack.c.b16 %v352, %v350
    %v379 = vpack.c.b16 %v353, %v351
    %v380 = vpack.c.b16 %v356, %v354
    %v381 = vpack.c.b16 %v357, %v355
    %v382 = vpack.c.b16 %v360, %v358
    %v383 = vpack.c.b16 %v361, %v359
    %v404 = vsel %vm229, %v47, 0
    %v407 = vsel %vm233, %v382, 0
    %v410 = vsel %vm233, %v383, 0
    %412 = vmatpush.bf16.msra.mxu0 %v376
    %413 = vmatpush.bf16.msra.mxu0 %v374
    %414 = vmatpush.bf16.msra.mxu0 %v372
    %415 = vmatpush.bf16.msra.mxu0 %v370
    %416 = vmatpush.bf16.msra.mxu0 %v368
    %417 = vmatpush.bf16.msra.mxu0 %v366
    %418 = vmatpush.bf16.msra.mxu0 %v364
    %419 = vmatpush.bf16.msra.mxu0 %v362
    %420 = vmatmul.bf16.gmra.mxu0 %v46
    %v421 = vpop.f32.mrf.mxu0
    %v422 = vadd.f32 %v264, %v421
    %v423 = vpop.f32.mrf.mxu0
    %v424 = vadd.f32 %v266, %v423
    %425 = vdwg.mxu0
    %426 = vmatpush.bf16.msra.mxu0 0
    %427 = vmatpush.bf16.msra.mxu0 0
    %428 = vmatpush.bf16.msra.mxu0 0
    %429 = vmatpush.bf16.msra.mxu0 0
    %430 = vmatpush.bf16.msra.mxu0 0
    %431 = vmatpush.bf16.msra.mxu0 %v407
    %432 = vmatpush.bf16.msra.mxu0 %v380
    %433 = vmatpush.bf16.msra.mxu0 %v378
    %434 = vmatmul.bf16.gmra.mxu0 %v404
    %v435 = vpop.f32.mrf.mxu0
    %v436 = vadd.f32 %v422, %v435
    %v437 = vpop.f32.mrf.mxu0
    %v438 = vadd.f32 %v424, %v437
    %439 = vdwg.mxu0
    %440 = vmatpush.bf16.msra.mxu0 %v377
    %441 = vmatpush.bf16.msra.mxu0 %v375
    %442 = vmatpush.bf16.msra.mxu0 %v373
    %443 = vmatpush.bf16.msra.mxu0 %v371
    %444 = vmatpush.bf16.msra.mxu0 %v369
    %445 = vmatpush.bf16.msra.mxu0 %v367
    %446 = vmatpush.bf16.msra.mxu0 %v365
    %447 = vmatpush.bf16.msra.mxu0 %v363
    %448 = vmatmul.bf16.gmra.mxu0 %v46
    %v449 = vpop.f32.mrf.mxu0
    %v450 = vadd.f32 %v292, %v449
    %v451 = vpop.f32.mrf.mxu0
    %v452 = vadd.f32 %v294, %v451
    %453 = vdwg.mxu0
    %454 = vmatpush.bf16.msra.mxu0 0
    %455 = vmatpush.bf16.msra.mxu0 0
    %456 = vmatpush.bf16.msra.mxu0 0
    %457 = vmatpush.bf16.msra.mxu0 0
    %458 = vmatpush.bf16.msra.mxu0 0
    %459 = vmatpush.bf16.msra.mxu0 %v410
    %460 = vmatpush.bf16.msra.mxu0 %v381
    %461 = vmatpush.bf16.msra.mxu0 %v379
    %462 = vmatmul.bf16.gmra.mxu0 %v404
    %v463 = vpop.f32.mrf.mxu0
    %v464 = vadd.f32 %v450, %v463
    %v465 = vpop.f32.mrf.mxu0
    %v466 = vadd.f32 %v452, %v465
    %467 = vdwg.mxu0
    %s468 = scalar_lea.vmem [#allocation2], 352
    %v469 = vld [vmem:[%s468] sm:$0xff]
    %v470 = vld [vmem:[%s468 + $0x8] sm:$0xff]
    %v471 = vld [vmem:[%s468 + $0x10] sm:$0xff]
    %v472 = vld [vmem:[%s468 + $0x18] sm:$0xff]
    %v473 = vld [vmem:[%s468 + $0x20] sm:$0xff]
    %v474 = vld [vmem:[%s468 + $0x28] sm:$0xff]
    %v475 = vld [vmem:[%s468 + $0x30] sm:$0xff]
    %v476 = vld [vmem:[%s468 + $0x38] sm:$0xff]
    %v477 = vld [vmem:[%s468 + $0x40] sm:$0xff]
    %v478 = vld [vmem:[%s468 + $0x48] sm:$0xff]
    %v479 = vld [vmem:[%s468 + $0x50] sm:$0xff]
    %v480 = vld [vmem:[%s468 + $0x58] sm:$0xff]
    %v481 = vld [vmem:[%s468 + $0x60] sm:$0xff]
    %v482 = vld [vmem:[%s468 + $0x68] sm:$0xff]
    %v483 = vld [vmem:[%s468 + $0x70] sm:$0xff]
    %v484 = vld [vmem:[%s468 + $0x78] sm:$0xff]
    %v485 = vld [vmem:[%s468 + $0x80] sm:$0xff]
    %v486 = vld [vmem:[%s468 + $0x88] sm:$0xff]
    %v487 = vld [vmem:[%s468 + $0x90] sm:$0xff]
    %v488 = vld [vmem:[%s468 + $0x98] sm:$0xff]
    %v489 = vld [vmem:[%s468 + $0xa0] sm:$0xff]
    %v490 = vld [vmem:[%s468 + $0xa8] sm:$0x11]
    %vm495 = vcmask 1046528
    %v496 = vrot.slane %v46, 1
    %v497 = vrot.slane %v70, 1
    %v498 = vsel %vm495, %v496, %v497
    %v499 = vrot.slane %v47, 1
    %v500 = vrot.slane %v71, 1
    %v501 = vsel %vm495, %v499, %v500
    %v525 = vunpack.c.l.b16 %v469
    %v526 = vunpack.c.h.b16 %v469
    %v527 = vunpack.c.l.b16 %v470
    %v528 = vunpack.c.h.b16 %v470
    %v529 = vunpack.c.l.b16 %v471
    %v530 = vunpack.c.h.b16 %v471
    %v531 = vunpack.c.l.b16 %v472
    %v532 = vunpack.c.h.b16 %v472
    %v533 = vunpack.c.l.b16 %v473
    %v534 = vunpack.c.h.b16 %v473
    %v535 = vunpack.c.l.b16 %v474
    %v536 = vunpack.c.h.b16 %v474
    %v537 = vunpack.c.l.b16 %v475
    %v538 = vunpack.c.h.b16 %v475
    %v539 = vunpack.c.l.b16 %v476
    %v540 = vunpack.c.h.b16 %v476
    %v541 = vunpack.c.l.b16 %v477
    %v542 = vunpack.c.h.b16 %v477
    %v543 = vunpack.c.l.b16 %v478
    %v544 = vunpack.c.h.b16 %v478
    %v545 = vunpack.c.l.b16 %v479
    %v546 = vunpack.c.h.b16 %v479
    %v547 = vunpack.c.l.b16 %v480
    %v548 = vunpack.c.h.b16 %v480
    %v549 = vunpack.c.l.b16 %v481
    %v550 = vunpack.c.h.b16 %v481
    %v551 = vunpack.c.l.b16 %v482
    %v552 = vunpack.c.h.b16 %v482
    %v553 = vunpack.c.l.b16 %v483
    %v554 = vunpack.c.h.b16 %v483
    %v555 = vunpack.c.l.b16 %v484
    %v556 = vunpack.c.h.b16 %v484
    %v557 = vunpack.c.l.b16 %v485
    %v558 = vunpack.c.h.b16 %v485
    %v559 = vunpack.c.l.b16 %v486
    %v560 = vunpack.c.h.b16 %v486
    %v561 = vunpack.c.l.b16 %v487
    %v562 = vunpack.c.h.b16 %v487
    %v563 = vunpack.c.l.b16 %v488
    %v564 = vunpack.c.h.b16 %v488
    %v565 = vunpack.c.l.b16 %v489
    %v566 = vunpack.c.h.b16 %v489
    %v567 = vunpack.c.l.b16 %v490
    %v568 = vunpack.c.h.b16 %v490
    %v569 = vpack.c.b16 %v527, %v525
    %v570 = vpack.c.b16 %v528, %v526
    %v571 = vpack.c.b16 %v531, %v529
    %v572 = vpack.c.b16 %v532, %v530
    %v573 = vpack.c.b16 %v535, %v533
    %v574 = vpack.c.b16 %v536, %v534
    %v575 = vpack.c.b16 %v539, %v537
    %v576 = vpack.c.b16 %v540, %v538
    %v577 = vpack.c.b16 %v543, %v541
    %v578 = vpack.c.b16 %v544, %v542
    %v579 = vpack.c.b16 %v547, %v545
    %v580 = vpack.c.b16 %v548, %v546
    %v581 = vpack.c.b16 %v551, %v549
    %v582 = vpack.c.b16 %v552, %v550
    %v583 = vpack.c.b16 %v555, %v553
    %v584 = vpack.c.b16 %v556, %v554
    %v585 = vpack.c.b16 %v559, %v557
    %v586 = vpack.c.b16 %v560, %v558
    %v587 = vpack.c.b16 %v563, %v561
    %v588 = vpack.c.b16 %v564, %v562
    %v589 = vpack.c.b16 %v567, %v565
    %v590 = vpack.c.b16 %v568, %v566
    %v612 = vsel %vm229, %v501, 0
    %v615 = vsel %vm233, %v589, 0
    %v618 = vsel %vm233, %v590, 0
    %620 = vmatpush.bf16.msra.mxu0 %v583
    %621 = vmatpush.bf16.msra.mxu0 %v581
    %622 = vmatpush.bf16.msra.mxu0 %v579
    %623 = vmatpush.bf16.msra.mxu0 %v577
    %624 = vmatpush.bf16.msra.mxu0 %v575
    %625 = vmatpush.bf16.msra.mxu0 %v573
    %626 = vmatpush.bf16.msra.mxu0 %v571
    %627 = vmatpush.bf16.msra.mxu0 %v569
    %628 = vmatmul.bf16.gmra.mxu0 %v498
    %v629 = vpop.f32.mrf.mxu0
    %v630 = vadd.f32 0.0, %v629
    %v631 = vpop.f32.mrf.mxu0
    %v632 = vadd.f32 0.0, %v631
    %633 = vdwg.mxu0
    %634 = vmatpush.bf16.msra.mxu0 0
    %635 = vmatpush.bf16.msra.mxu0 0
    %636 = vmatpush.bf16.msra.mxu0 0
    %637 = vmatpush.bf16.msra.mxu0 0
    %638 = vmatpush.bf16.msra.mxu0 0
    %639 = vmatpush.bf16.msra.mxu0 %v615
    %640 = vmatpush.bf16.msra.mxu0 %v587
    %641 = vmatpush.bf16.msra.mxu0 %v585
    %642 = vmatmul.bf16.gmra.mxu0 %v612
    %v643 = vpop.f32.mrf.mxu0
    %v644 = vadd.f32 %v630, %v643
    %v645 = vpop.f32.mrf.mxu0
    %v646 = vadd.f32 %v632, %v645
    %647 = vdwg.mxu0
    %648 = vmatpush.bf16.msra.mxu0 %v584
    %649 = vmatpush.bf16.msra.mxu0 %v582
    %650 = vmatpush.bf16.msra.mxu0 %v580
    %651 = vmatpush.bf16.msra.mxu0 %v578
    %652 = vmatpush.bf16.msra.mxu0 %v576
    %653 = vmatpush.bf16.msra.mxu0 %v574
    %654 = vmatpush.bf16.msra.mxu0 %v572
    %655 = vmatpush.bf16.msra.mxu0 %v570
    %656 = vmatmul.bf16.gmra.mxu0 %v498
    %v657 = vpop.f32.mrf.mxu0
    %v658 = vadd.f32 0.0, %v657
    %v659 = vpop.f32.mrf.mxu0
    %v660 = vadd.f32 0.0, %v659
    %661 = vdwg.mxu0
    %662 = vmatpush.bf16.msra.mxu0 0
    %663 = vmatpush.bf16.msra.mxu0 0
    %664 = vmatpush.bf16.msra.mxu0 0
    %665 = vmatpush.bf16.msra.mxu0 0
    %666 = vmatpush.bf16.msra.mxu0 0
    %667 = vmatpush.bf16.msra.mxu0 %v618
    %668 = vmatpush.bf16.msra.mxu0 %v588
    %669 = vmatpush.bf16.msra.mxu0 %v586
    %670 = vmatmul.bf16.gmra.mxu0 %v612
    %v671 = vpop.f32.mrf.mxu0
    %v672 = vadd.f32 %v658, %v671
    %v673 = vpop.f32.mrf.mxu0
    %v674 = vadd.f32 %v660, %v673
    %675 = vdwg.mxu0
    %v676 = vadd.f32 %v436, %v644
    %v677 = vadd.f32 %v464, %v672
    %v678 = vadd.f32 %v438, %v646
    %v679 = vadd.f32 %v466, %v674
    %s680 = scalar_lea.vmem [#allocation2], 528
    %v681 = vld [vmem:[%s680] sm:$0xff]
    %v682 = vld [vmem:[%s680 + $0x8] sm:$0xff]
    %v683 = vld [vmem:[%s680 + $0x10] sm:$0xff]
    %v684 = vld [vmem:[%s680 + $0x18] sm:$0xff]
    %v685 = vld [vmem:[%s680 + $0x20] sm:$0xff]
    %v686 = vld [vmem:[%s680 + $0x28] sm:$0xff]
    %v687 = vld [vmem:[%s680 + $0x30] sm:$0xff]
    %v688 = vld [vmem:[%s680 + $0x38] sm:$0xff]
    %v689 = vld [vmem:[%s680 + $0x40] sm:$0xff]
    %v690 = vld [vmem:[%s680 + $0x48] sm:$0xff]
    %v691 = vld [vmem:[%s680 + $0x50] sm:$0xff]
    %v692 = vld [vmem:[%s680 + $0x58] sm:$0xff]
    %v693 = vld [vmem:[%s680 + $0x60] sm:$0xff]
    %v694 = vld [vmem:[%s680 + $0x68] sm:$0xff]
    %v695 = vld [vmem:[%s680 + $0x70] sm:$0xff]
    %v696 = vld [vmem:[%s680 + $0x78] sm:$0xff]
    %v697 = vld [vmem:[%s680 + $0x80] sm:$0xff]
    %v698 = vld [vmem:[%s680 + $0x88] sm:$0xff]
    %v699 = vld [vmem:[%s680 + $0x90] sm:$0xff]
    %v700 = vld [vmem:[%s680 + $0x98] sm:$0xff]
    %v701 = vld [vmem:[%s680 + $0xa0] sm:$0xff]
    %v702 = vld [vmem:[%s680 + $0xa8] sm:$0x11]
    %vm703 = vsmask.f32 6400
    %v704 = vrot.slane %v97, 1
    %v705 = vrot.slane %v99, 2
    %v706 = vor.u32 %v704, %v705
    %v707 = vshrl.u32 %v70, 16
    %v709 = vrot.slane %v707, 1
    %v710 = vrot.slane %v104, 2
    %v711 = vor.u32 %v709, %v710
    %v712 = vsel %vm703, %v706, %v711
    %v713 = vrot.slane %v109, 1
    %v714 = vrot.slane %v111, 2
    %v715 = vor.u32 %v713, %v714
    %v716 = vshrl.u32 %v71, 16
    %v718 = vrot.slane %v716, 1
    %v719 = vrot.slane %v116, 2
    %v720 = vor.u32 %v718, %v719
    %v721 = vsel %vm703, %v715, %v720
    %v745 = vunpack.c.l.b16 %v681
    %v746 = vunpack.c.h.b16 %v681
    %v747 = vunpack.c.l.b16 %v682
    %v748 = vunpack.c.h.b16 %v682
    %v749 = vunpack.c.l.b16 %v683
    %v750 = vunpack.c.h.b16 %v683
    %v751 = vunpack.c.l.b16 %v684
    %v752 = vunpack.c.h.b16 %v684
    %v753 = vunpack.c.l.b16 %v685
    %v754 = vunpack.c.h.b16 %v685
    %v755 = vunpack.c.l.b16 %v686
    %v756 = vunpack.c.h.b16 %v686
    %v757 = vunpack.c.l.b16 %v687
    %v758 = vunpack.c.h.b16 %v687
    %v759 = vunpack.c.l.b16 %v688
    %v760 = vunpack.c.h.b16 %v688
    %v761 = vunpack.c.l.b16 %v689
    %v762 = vunpack.c.h.b16 %v689
    %v763 = vunpack.c.l.b16 %v690
    %v764 = vunpack.c.h.b16 %v690
    %v765 = vunpack.c.l.b16 %v691
    %v766 = vunpack.c.h.b16 %v691
    %v767 = vunpack.c.l.b16 %v692
    %v768 = vunpack.c.h.b16 %v692
    %v769 = vunpack.c.l.b16 %v693
    %v770 = vunpack.c.h.b16 %v693
    %v771 = vunpack.c.l.b16 %v694
    %v772 = vunpack.c.h.b16 %v694
    %v773 = vunpack.c.l.b16 %v695
    %v774 = vunpack.c.h.b16 %v695
    %v775 = vunpack.c.l.b16 %v696
    %v776 = vunpack.c.h.b16 %v696
    %v777 = vunpack.c.l.b16 %v697
    %v778 = vunpack.c.h.b16 %v697
    %v779 = vunpack.c.l.b16 %v698
    %v780 = vunpack.c.h.b16 %v698
    %v781 = vunpack.c.l.b16 %v699
    %v782 = vunpack.c.h.b16 %v699
    %v783 = vunpack.c.l.b16 %v700
    %v784 = vunpack.c.h.b16 %v700
    %v785 = vunpack.c.l.b16 %v701
    %v786 = vunpack.c.h.b16 %v701
    %v787 = vunpack.c.l.b16 %v702
    %v788 = vunpack.c.h.b16 %v702
    %v789 = vpack.c.b16 %v747, %v745
    %v790 = vpack.c.b16 %v748, %v746
    %v791 = vpack.c.b16 %v751, %v749
    %v792 = vpack.c.b16 %v752, %v750
    %v793 = vpack.c.b16 %v755, %v753
    %v794 = vpack.c.b16 %v756, %v754
    %v795 = vpack.c.b16 %v759, %v757
    %v796 = vpack.c.b16 %v760, %v758
    %v797 = vpack.c.b16 %v763, %v761
    %v798 = vpack.c.b16 %v764, %v762
    %v799 = vpack.c.b16 %v767, %v765
    %v800 = vpack.c.b16 %v768, %v766
    %v801 = vpack.c.b16 %v771, %v769
    %v802 = vpack.c.b16 %v772, %v770
    %v803 = vpack.c.b16 %v775, %v773
    %v804 = vpack.c.b16 %v776, %v774
    %v805 = vpack.c.b16 %v779, %v777
    %v806 = vpack.c.b16 %v780, %v778
    %v807 = vpack.c.b16 %v783, %v781
    %v808 = vpack.c.b16 %v784, %v782
    %v809 = vpack.c.b16 %v787, %v785
    %v810 = vpack.c.b16 %v788, %v786
    %v832 = vsel %vm229, %v721, 0
    %v835 = vsel %vm233, %v809, 0
    %v838 = vsel %vm233, %v810, 0
    %840 = vmatpush.bf16.msra.mxu0 %v803
    %841 = vmatpush.bf16.msra.mxu0 %v801
    %842 = vmatpush.bf16.msra.mxu0 %v799
    %843 = vmatpush.bf16.msra.mxu0 %v797
    %844 = vmatpush.bf16.msra.mxu0 %v795
    %845 = vmatpush.bf16.msra.mxu0 %v793
    %846 = vmatpush.bf16.msra.mxu0 %v791
    %847 = vmatpush.bf16.msra.mxu0 %v789
    %848 = vmatmul.bf16.gmra.mxu0 %v712
    %v849 = vpop.f32.mrf.mxu0
    %v850 = vadd.f32 0.0, %v849
    %v851 = vpop.f32.mrf.mxu0
    %v852 = vadd.f32 0.0, %v851
    %853 = vdwg.mxu0
    %854 = vmatpush.bf16.msra.mxu0 0
    %855 = vmatpush.bf16.msra.mxu0 0
    %856 = vmatpush.bf16.msra.mxu0 0
    %857 = vmatpush.bf16.msra.mxu0 0
    %858 = vmatpush.bf16.msra.mxu0 0
    %859 = vmatpush.bf16.msra.mxu0 %v835
    %860 = vmatpush.bf16.msra.mxu0 %v807
    %861 = vmatpush.bf16.msra.mxu0 %v805
    %862 = vmatmul.bf16.gmra.mxu0 %v832
    %v863 = vpop.f32.mrf.mxu0
    %v864 = vadd.f32 %v850, %v863
    %v865 = vpop.f32.mrf.mxu0
    %v866 = vadd.f32 %v852, %v865
    %867 = vdwg.mxu0
    %868 = vmatpush.bf16.msra.mxu0 %v804
    %869 = vmatpush.bf16.msra.mxu0 %v802
    %870 = vmatpush.bf16.msra.mxu0 %v800
    %871 = vmatpush.bf16.msra.mxu0 %v798
    %872 = vmatpush.bf16.msra.mxu0 %v796
    %873 = vmatpush.bf16.msra.mxu0 %v794
    %874 = vmatpush.bf16.msra.mxu0 %v792
    %875 = vmatpush.bf16.msra.mxu0 %v790
    %876 = vmatmul.bf16.gmra.mxu0 %v712
    %v877 = vpop.f32.mrf.mxu0
    %v878 = vadd.f32 0.0, %v877
    %v879 = vpop.f32.mrf.mxu0
    %v880 = vadd.f32 0.0, %v879
    %881 = vdwg.mxu0
    %882 = vmatpush.bf16.msra.mxu0 0
    %883 = vmatpush.bf16.msra.mxu0 0
    %884 = vmatpush.bf16.msra.mxu0 0
    %885 = vmatpush.bf16.msra.mxu0 0
    %886 = vmatpush.bf16.msra.mxu0 0
    %887 = vmatpush.bf16.msra.mxu0 %v838
    %888 = vmatpush.bf16.msra.mxu0 %v808
    %889 = vmatpush.bf16.msra.mxu0 %v806
    %890 = vmatmul.bf16.gmra.mxu0 %v832
    %v891 = vpop.f32.mrf.mxu0
    %v892 = vadd.f32 %v878, %v891
    %v893 = vpop.f32.mrf.mxu0
    %v894 = vadd.f32 %v880, %v893
    %895 = vdwg.mxu0
    %v896 = vadd.f32 %v676, %v864
    %v897 = vadd.f32 %v677, %v892
    %v898 = vadd.f32 %v678, %v866
    %v899 = vadd.f32 %v679, %v894
    %s900 = scalar_lea.vmem [#allocation2], 704
    %v901 = vld [vmem:[%s900] sm:$0xff]
    %v902 = vld [vmem:[%s900 + $0x8] sm:$0xff]
    %v903 = vld [vmem:[%s900 + $0x10] sm:$0xff]
    %v904 = vld [vmem:[%s900 + $0x18] sm:$0xff]
    %v905 = vld [vmem:[%s900 + $0x20] sm:$0xff]
    %v906 = vld [vmem:[%s900 + $0x28] sm:$0xff]
    %v907 = vld [vmem:[%s900 + $0x30] sm:$0xff]
    %v908 = vld [vmem:[%s900 + $0x38] sm:$0xff]
    %v909 = vld [vmem:[%s900 + $0x40] sm:$0xff]
    %v910 = vld [vmem:[%s900 + $0x48] sm:$0xff]
    %v911 = vld [vmem:[%s900 + $0x50] sm:$0xff]
    %v912 = vld [vmem:[%s900 + $0x58] sm:$0xff]
    %v913 = vld [vmem:[%s900 + $0x60] sm:$0xff]
    %v914 = vld [vmem:[%s900 + $0x68] sm:$0xff]
    %v915 = vld [vmem:[%s900 + $0x70] sm:$0xff]
    %v916 = vld [vmem:[%s900 + $0x78] sm:$0xff]
    %v917 = vld [vmem:[%s900 + $0x80] sm:$0xff]
    %v918 = vld [vmem:[%s900 + $0x88] sm:$0xff]
    %v919 = vld [vmem:[%s900 + $0x90] sm:$0xff]
    %v920 = vld [vmem:[%s900 + $0x98] sm:$0xff]
    %v921 = vld [vmem:[%s900 + $0xa0] sm:$0xff]
    %v922 = vld [vmem:[%s900 + $0xa8] sm:$0x11]
    %vm923 = vcmask 1045504
    %v924 = vrot.slane %v46, 2
    %v925 = vrot.slane %v70, 2
    %v926 = vsel %vm923, %v924, %v925
    %v927 = vrot.slane %v47, 2
    %v928 = vrot.slane %v71, 2
    %v929 = vsel %vm923, %v927, %v928
    %v953 = vunpack.c.l.b16 %v901
    %v954 = vunpack.c.h.b16 %v901
    %v955 = vunpack.c.l.b16 %v902
    %v956 = vunpack.c.h.b16 %v902
    %v957 = vunpack.c.l.b16 %v903
    %v958 = vunpack.c.h.b16 %v903
    %v959 = vunpack.c.l.b16 %v904
    %v960 = vunpack.c.h.b16 %v904
    %v961 = vunpack.c.l.b16 %v905
    %v962 = vunpack.c.h.b16 %v905
    %v963 = vunpack.c.l.b16 %v906
    %v964 = vunpack.c.h.b16 %v906
    %v965 = vunpack.c.l.b16 %v907
    %v966 = vunpack.c.h.b16 %v907
    %v967 = vunpack.c.l.b16 %v908
    %v968 = vunpack.c.h.b16 %v908
    %v969 = vunpack.c.l.b16 %v909
    %v970 = vunpack.c.h.b16 %v909
    %v971 = vunpack.c.l.b16 %v910
    %v972 = vunpack.c.h.b16 %v910
    %v973 = vunpack.c.l.b16 %v911
    %v974 = vunpack.c.h.b16 %v911
    %v975 = vunpack.c.l.b16 %v912
    %v976 = vunpack.c.h.b16 %v912
    %v977 = vunpack.c.l.b16 %v913
    %v978 = vunpack.c.h.b16 %v913
    %v979 = vunpack.c.l.b16 %v914
    %v980 = vunpack.c.h.b16 %v914
    %v981 = vunpack.c.l.b16 %v915
    %v982 = vunpack.c.h.b16 %v915
    %v983 = vunpack.c.l.b16 %v916
    %v984 = vunpack.c.h.b16 %v916
    %v985 = vunpack.c.l.b16 %v917
    %v986 = vunpack.c.h.b16 %v917
    %v987 = vunpack.c.l.b16 %v918
    %v988 = vunpack.c.h.b16 %v918
    %v989 = vunpack.c.l.b16 %v919
    %v990 = vunpack.c.h.b16 %v919
    %v991 = vunpack.c.l.b16 %v920
    %v992 = vunpack.c.h.b16 %v920
    %v993 = vunpack.c.l.b16 %v921
    %v994 = vunpack.c.h.b16 %v921
    %v995 = vunpack.c.l.b16 %v922
    %v996 = vunpack.c.h.b16 %v922
    %v997 = vpack.c.b16 %v955, %v953
    %v998 = vpack.c.b16 %v956, %v954
    %v999 = vpack.c.b16 %v959, %v957
    %v1000 = vpack.c.b16 %v960, %v958
    %v1001 = vpack.c.b16 %v963, %v961
    %v1002 = vpack.c.b16 %v964, %v962
    %v1003 = vpack.c.b16 %v967, %v965
    %v1004 = vpack.c.b16 %v968, %v966
    %v1005 = vpack.c.b16 %v971, %v969
    %v1006 = vpack.c.b16 %v972, %v970
    %v1007 = vpack.c.b16 %v975, %v973
    %v1008 = vpack.c.b16 %v976, %v974
    %v1009 = vpack.c.b16 %v979, %v977
    %v1010 = vpack.c.b16 %v980, %v978
    %v1011 = vpack.c.b16 %v983, %v981
    %v1012 = vpack.c.b16 %v984, %v982
    %v1013 = vpack.c.b16 %v987, %v985
    %v1014 = vpack.c.b16 %v988, %v986
    %v1015 = vpack.c.b16 %v991, %v989
    %v1016 = vpack.c.b16 %v992, %v990
    %v1017 = vpack.c.b16 %v995, %v993
    %v1018 = vpack.c.b16 %v996, %v994
    %v1040 = vsel %vm229, %v929, 0
    %v1043 = vsel %vm233, %v1017, 0
    %v1046 = vsel %vm233, %v1018, 0
    %1048 = vmatpush.bf16.msra.mxu0 %v1011
    %1049 = vmatpush.bf16.msra.mxu0 %v1009
    %1050 = vmatpush.bf16.msra.mxu0 %v1007
    %1051 = vmatpush.bf16.msra.mxu0 %v1005
    %1052 = vmatpush.bf16.msra.mxu0 %v1003
    %1053 = vmatpush.bf16.msra.mxu0 %v1001
    %1054 = vmatpush.bf16.msra.mxu0 %v999
    %1055 = vmatpush.bf16.msra.mxu0 %v997
    %1056 = vmatmul.bf16.gmra.mxu0 %v926
    %v1057 = vpop.f32.mrf.mxu0
    %v1058 = vadd.f32 0.0, %v1057
    %v1059 = vpop.f32.mrf.mxu0
    %v1060 = vadd.f32 0.0, %v1059
    %1061 = vdwg.mxu0
    %1062 = vmatpush.bf16.msra.mxu0 0
    %1063 = vmatpush.bf16.msra.mxu0 0
    %1064 = vmatpush.bf16.msra.mxu0 0
    %1065 = vmatpush.bf16.msra.mxu0 0
    %1066 = vmatpush.bf16.msra.mxu0 0
    %1067 = vmatpush.bf16.msra.mxu0 %v1043
    %1068 = vmatpush.bf16.msra.mxu0 %v1015
    %1069 = vmatpush.bf16.msra.mxu0 %v1013
    %1070 = vmatmul.bf16.gmra.mxu0 %v1040
    %v1071 = vpop.f32.mrf.mxu0
    %v1072 = vadd.f32 %v1058, %v1071
    %v1073 = vpop.f32.mrf.mxu0
    %v1074 = vadd.f32 %v1060, %v1073
    %1075 = vdwg.mxu0
    %1076 = vmatpush.bf16.msra.mxu0 %v1012
    %1077 = vmatpush.bf16.msra.mxu0 %v1010
    %1078 = vmatpush.bf16.msra.mxu0 %v1008
    %1079 = vmatpush.bf16.msra.mxu0 %v1006
    %1080 = vmatpush.bf16.msra.mxu0 %v1004
    %1081 = vmatpush.bf16.msra.mxu0 %v1002
    %1082 = vmatpush.bf16.msra.mxu0 %v1000
    %1083 = vmatpush.bf16.msra.mxu0 %v998
    %1084 = vmatmul.bf16.gmra.mxu0 %v926
    %v1085 = vpop.f32.mrf.mxu0
    %v1086 = vadd.f32 0.0, %v1085
    %v1087 = vpop.f32.mrf.mxu0
    %v1088 = vadd.f32 0.0, %v1087
    %1089 = vdwg.mxu0
    %1090 = vmatpush.bf16.msra.mxu0 0
    %1091 = vmatpush.bf16.msra.mxu0 0
    %1092 = vmatpush.bf16.msra.mxu0 0
    %1093 = vmatpush.bf16.msra.mxu0 0
    %1094 = vmatpush.bf16.msra.mxu0 0
    %1095 = vmatpush.bf16.msra.mxu0 %v1046
    %1096 = vmatpush.bf16.msra.mxu0 %v1016
    %1097 = vmatpush.bf16.msra.mxu0 %v1014
    %1098 = vmatmul.bf16.gmra.mxu0 %v1040
    %v1099 = vpop.f32.mrf.mxu0
    %v1100 = vadd.f32 %v1086, %v1099
    %v1101 = vpop.f32.mrf.mxu0
    %v1102 = vadd.f32 %v1088, %v1101
    %1103 = vdwg.mxu0
    %v1104 = vadd.f32 %v896, %v1072
    %v1105 = vadd.f32 %v897, %v1100
    %v1106 = vadd.f32 %v898, %v1074
    %v1107 = vadd.f32 %v899, %v1102
    %v1108 = vld [vmem:[%s2] sm:$0x3]
    %v1110 = vperm.slane %v1108, 0
    %v1111 = vperm.slane %v1108, 1
    %v1114 = vadd.f32 %v1104, %v1110
    %v1115 = vadd.f32 %v1105, %v1111
    %v1116 = vadd.f32 %v1106, %v1110
    %v1117 = vadd.f32 %v1107, %v1111
    %v1118 = vmax.f32 %v1114, 0.0
    %v1119 = vmax.f32 %v1115, 0.0
    %v1120 = vmax.f32 %v1116, 0.0
    %v1121 = vmax.f32 %v1117, 0.0
    %v1122 = vld [vmem:[%s3] sm:$0xf]
    %v1123 = vld [vmem:[%s3 + $0x4] sm:$0x3]
    %v1124 = vpack.c.bf16 %v1120, %v1118
    %v1125 = vpack.c.bf16 %v1121, %v1119
    %v1128 = vunpack.c.l.b16 %v1122
    %v1129 = vunpack.c.l.b16 %v1123
    %v1130 = vpack.c.b16 %v1129, %v1128
    %vm1131 = vcmask 130048
    %v1133 = vsel %vm1131, %v1130, 0
    %1135 = vmatpush.bf16.msra.mxu0 0
    %1136 = vmatpush.bf16.msra.mxu0 0
    %1137 = vmatpush.bf16.msra.mxu0 0
    %1138 = vmatpush.bf16.msra.mxu0 0
    %1139 = vmatpush.bf16.msra.mxu0 0
    %1140 = vmatpush.bf16.msra.mxu0 0
    %1141 = vmatpush.bf16.msra.mxu0 0
    %1142 = vmatpush.bf16.msra.mxu0 %v1124
    %1143 = vmatmul.bf16.gmra.mxu0 %v1133
    %v1144 = vpop.f32.mrf.mxu0
    %v1145 = vadd.f32 0.0, %v1144
    %v1146 = vpop.f32.mrf.mxu0
    %v1147 = vadd.f32 0.0, %v1146
    %1148 = vdwg.mxu0
    %1149 = vmatpush.bf16.msra.mxu0 0
    %1150 = vmatpush.bf16.msra.mxu0 0
    %1151 = vmatpush.bf16.msra.mxu0 0
    %1152 = vmatpush.bf16.msra.mxu0 0
    %1153 = vmatpush.bf16.msra.mxu0 0
    %1154 = vmatpush.bf16.msra.mxu0 0
    %1155 = vmatpush.bf16.msra.mxu0 0
    %1156 = vmatpush.bf16.msra.mxu0 %v1125
    %1157 = vmatmul.bf16.gmra.mxu0 %v1133
    %v1158 = vpop.f32.mrf.mxu0
    %v1159 = vadd.f32 0.0, %v1158
    %v1160 = vpop.f32.mrf.mxu0
    %v1161 = vadd.f32 0.0, %v1160
    %1162 = vdwg.mxu0
    %v1163 = vpack.c.bf16 %v1159, %v1145
    %v1164 = vpack.c.bf16 %v1161, %v1147
    %vm1165 = vcmask 1043456
    %vm1166 = vcmask 523268
    %vm1167 = vmor %vm1166, %vm1165
    %1168 = vst.msk [vmem:[%s4] sm:$0xff] %vm1167, %v1163
    %vm1169 = vcmask 1041408
    %vm1170 = vcmask 521220
    %vm1171 = vmor %vm1170, %vm1169
    %1172 = vst.msk [vmem:[%s4 + $0x8] sm:$0x33] %vm1171, %v1164
    %s1173 = smul.u32 0, 2
    %s1174 = ssub.s32 2, %s1173
    %s1175 = smul.u32 %s1174, 6
    %v1176 = vlaneseq
    %v1177 = vshrl.u32 %v1176, 7
    %v1178 = vadd.s32 %v1177, 8
    %v1179 = vstv %s1175
    %vm1180 = vcmp.lt.s32.totalorder %v1177, %v1179
    %vm1181 = vcmp.lt.s32.totalorder %v1178, %v1179
    %v1182 = vsel %vm1180, 1, 0
    %v1183 = vsel %vm1181, 1, 0
    %v1184 = vcvt.s32.f32 %v1182
    %v1185 = vcvt.s32.f32 %v1183
    %v1186 = vmul.f32 %v1145, %v1184
    %v1187 = vmul.f32 %v1159, %v1184
    %v1188 = vmul.f32 %v1147, %v1185
    %v1189 = vmul.f32 %v1161, %v1185
    %v1190 = vsel %vm1165, %v1188, 0.0
    %v1191 = vadd.f32 %v1186, %v1190
    %v1192 = vrot.slane %v1191, 4
    %v1193 = vadd.f32 %v1191, %v1192
    %v1194 = vrot.slane %v1193, 2
    %v1195 = vadd.f32 %v1193, %v1194
    %v1196 = vrot.slane %v1195, 1
    %v1197 = vadd.f32 %v1195, %v1196
    %vm1198 = vcmask 523264
    %v1199 = vsel %vm1198, %v1187, 0.0
    %vm1200 = vcmask 519168
    %v1201 = vsel %vm1200, %v1189, 0.0
    %v1202 = vadd.f32 %v1199, %v1201
    %v1203 = vrot.slane %v1202, 4
    %v1204 = vadd.f32 %v1202, %v1203
    %v1205 = vrot.slane %v1204, 2
    %v1206 = vadd.f32 %v1204, %v1205
    %v1207 = vrot.slane %v1206, 1
    %v1208 = vadd.f32 %v1206, %v1207
    %v1209 = vmul.f32 %v1145, %v1145
    %v1210 = vmul.f32 %v1159, %v1159
    %v1211 = vmul.f32 %v1147, %v1147
    %v1212 = vmul.f32 %v1161, %v1161
    %v1213 = vmul.f32 %v1209, %v1184
    %v1214 = vmul.f32 %v1210, %v1184
    %v1215 = vmul.f32 %v1211, %v1185
    %v1216 = vmul.f32 %v1212, %v1185
    %v1217 = vsel %vm1165, %v1215, 0.0
    %v1218 = vadd.f32 %v1213, %v1217
    %v1219 = vrot.slane %v1218, 4
    %v1220 = vadd.f32 %v1218, %v1219
    %v1221 = vrot.slane %v1220, 2
    %v1222 = vadd.f32 %v1220, %v1221
    %v1223 = vrot.slane %v1222, 1
    %v1224 = vadd.f32 %v1222, %v1223
    %v1225 = vsel %vm1198, %v1214, 0.0
    %v1226 = vsel %vm1200, %v1216, 0.0
    %v1227 = vadd.f32 %v1225, %v1226
    %v1228 = vrot.slane %v1227, 4
    %v1229 = vadd.f32 %v1227, %v1228
    %v1230 = vrot.slane %v1229, 2
    %v1231 = vadd.f32 %v1229, %v1230
    %v1232 = vrot.slane %v1231, 1
    %v1233 = vadd.f32 %v1231, %v1232
    %v1236 = vrot.slane %v1208, 7
    %vm1237 = vcmask 1040384
    %v1238 = vsel %vm1237, %v1197, %v1236
    %v1240 = vlaneseq
    %vm1241 = vcmp.ge.s32.totalorder %v1240, 0
    %vm1242 = vcmp.lt.s32.totalorder %v1240, 192
    %vm1243 = vmand %vm1241, %vm1242
    %1244 = vst.msk [vmem:[%s5] sm:$0x3] %vm1243, %v1238
    %v1247 = vrot.slane %v1233, 7
    %v1248 = vsel %vm1237, %v1224, %v1247
    %1250 = vst.msk [vmem:[%s6] sm:$0x3] %vm1243, %v1248
    // Predicated region
    $region22: #{topological_nn_forward.6} parent=1 // pred_check
      _
    $region23: #{topological_nn_forward.6} parent=1 // pred_check_branch
      %1252 = sbr.rel (0) target = $region25
    $region24: #{topological_nn_forward.6} parent=1 // pred_region
      _
    $region25: #{topological_nn_forward.6} parent=1 // pred_fallthru
      _
    // Predicated region
    $region26: #{topological_nn_forward.6} parent=1 // pred_check
      _
    $region27: #{topological_nn_forward.6} parent=1 // pred_check_branch
      %1254 = sbr.rel (0) target = $region29
    $region28: #{topological_nn_forward.6} parent=1 // pred_region
      _
    $region29: #{topological_nn_forward.6} parent=1 // pred_fallthru
      _
    // Predicated region
    $region30: #{topological_nn_forward.6} parent=1 // pred_check
      _
    $region31: #{topological_nn_forward.6} parent=1 // pred_check_branch
      %1256 = sbr.rel (0) target = $region33
    $region32: #{topological_nn_forward.6} parent=1 // pred_region
      _
    $region33: #{topological_nn_forward.6} parent=1 // pred_fallthru
      _
    // Predicated region
    $region34: #{topological_nn_forward.6} parent=1 // pred_check
      _
    $region35: #{topological_nn_forward.6} parent=1 // pred_check_branch
      %1258 = sbr.rel (0) target = $region37
    $region36: #{topological_nn_forward.6} parent=1 // pred_region
      _
    $region37: #{topological_nn_forward.6} parent=1 // pred_fallthru
      _
    // Predicated region
    $region38: #{topological_nn_forward.6} parent=1 // pred_check
      _
    $region39: #{topological_nn_forward.6} parent=1 // pred_check_branch
      %1260 = sbr.rel (0) target = $region41
    $region40: #{topological_nn_forward.6} parent=1 // pred_region
      _
    $region41: #{topological_nn_forward.6} parent=1 // pred_fallthru
      _
    // Predicated region
    $region42: #{topological_nn_forward.6} parent=1 // pred_check
      _
    $region43: #{topological_nn_forward.6} parent=1 // pred_check_branch
      %1262 = sbr.rel (0) target = $region45
    $region44: #{topological_nn_forward.6} parent=1 // pred_region
      _
    $region45: #{topological_nn_forward.6} parent=1 // pred_fallthru
      _
    %1263 = vsyncpa [#allocation3], 1

// kernel: topological_nn_forward.8
$region0: #{topological_nn_forward.8}
  #allocation0 [shape = 'u32[]', space=smem, size = 0x4, offset = 0x4, fixed_abs, tag = 'smem constant byte address 0x4 - core index']
  #allocation1 [shape = 'u32[72,128]{1,0:T(1,128)}', space=vmem, size = 0x9000, scoped, tag = 'internal scratch']
  %s0 = inlined_call_operand.vmem [shape: bf16[8,256], index: 0, kind: input, shape index: {}]
  %s1 = inlined_call_operand.vmem [shape: f32[1,256], index: 1, kind: input, shape index: {}]
  %s2 = inlined_call_operand.vmem [shape: f32[1,256], index: 2, kind: input, shape index: {}]
  %s3 = inlined_call_operand.vmem [shape: bf16[256,256], index: 3, kind: input, shape index: {}]
  %s4 = inlined_call_operand.vmem [shape: f32[1,256], index: 4, kind: input, shape index: {}]
  %s5 = inlined_call_operand.vmem [shape: bf16[8,256], index: 5, kind: output, shape index: {0}]
  %s6 = inlined_call_operand.vmem [shape: f32[1,1,256], index: 6, kind: output, shape index: {1}]
  %s7 = inlined_call_operand.vmem [shape: f32[1,1,256], index: 7, kind: output, shape index: {2}]
  %8 = xla_tuple %s5, %s6, %s7
  %s9 = sld [smem:[#allocation0]]
  $region46: #{topological_nn_forward.8} parent=0
    _
  %s11 = ssub.s32 1, %s9
  %s12 = scalar_select 0, %s11, %s9
  // Predicated region
  $region2: #{topological_nn_forward.8} parent=0 // pred_check
    _
  $region3: #{topological_nn_forward.8} parent=0 // pred_check_branch
    %14 = sbr.rel (0) target = $region5
  $region4: #{topological_nn_forward.8} parent=0 // pred_region
    _
  $region5: #{topological_nn_forward.8} parent=0 // pred_fallthru
    _
  // Predicated region
  $region6: #{topological_nn_forward.8} parent=0 // pred_check
    _
  $region7: #{topological_nn_forward.8} parent=0 // pred_check_branch
    %16 = sbr.rel (0) target = $region9
  $region8: #{topological_nn_forward.8} parent=0 // pred_region
    _
  $region9: #{topological_nn_forward.8} parent=0 // pred_fallthru
    _
  // Predicated region
  $region10: #{topological_nn_forward.8} parent=0 // pred_check
    _
  $region11: #{topological_nn_forward.8} parent=0 // pred_check_branch
    %18 = sbr.rel (0) target = $region13
  $region12: #{topological_nn_forward.8} parent=0 // pred_region
    _
  $region13: #{topological_nn_forward.8} parent=0 // pred_fallthru
    _
  // Predicated region
  $region14: #{topological_nn_forward.8} parent=0 // pred_check
    _
  $region15: #{topological_nn_forward.8} parent=0 // pred_check_branch
    %20 = sbr.rel (0) target = $region17
  $region16: #{topological_nn_forward.8} parent=0 // pred_region
    _
  $region17: #{topological_nn_forward.8} parent=0 // pred_fallthru
    _
  // Predicated region
  $region18: #{topological_nn_forward.8} parent=0 // pred_check
    _
  $region19: #{topological_nn_forward.8} parent=0 // pred_check_branch
    %22 = sbr.rel (0) target = $region21
  $region20: #{topological_nn_forward.8} parent=0 // pred_region
    _
  $region21: #{topological_nn_forward.8} parent=0 // pred_fallthru
    _
  %v23 = vld [vmem:[%s0] sm:$0xff]
  %v24 = vunpack.c.l.bf16 %v23
  %v25 = vunpack.c.h.bf16 %v23
  %v26 = vld [vmem:[%s1] sm:$0x3]
  %v28 = vperm.slane %v26, 0
  %v29 = vperm.slane %v26, 1
  %v32 = vmul.f32 %v24, %v28
  %v33 = vmul.f32 %v25, %v29
  %v34 = vld [vmem:[%s2] sm:$0x3]
  %v36 = vperm.slane %v34, 0
  %v37 = vperm.slane %v34, 1
  %v40 = vadd.f32 %v32, %v36
  %v41 = vadd.f32 %v33, %v37
  %v42 = vpack.c.bf16 %v40, %v40
  %v43 = vpack.c.bf16 %v41, %v41
  %v44 = vld [vmem:[%s3] sm:$0xff]
  %v45 = vld [vmem:[%s3 + $0x8] sm:$0xff]
  %v46 = vld [vmem:[%s3 + $0x10] sm:$0xff]
  %v47 = vld [vmem:[%s3 + $0x18] sm:$0xff]
  %v48 = vld [vmem:[%s3 + $0x20] sm:$0xff]
  %v49 = vld [vmem:[%s3 + $0x28] sm:$0xff]
  %v50 = vld [vmem:[%s3 + $0x30] sm:$0xff]
  %v51 = vld [vmem:[%s3 + $0x38] sm:$0xff]
  %v52 = vld [vmem:[%s3 + $0x40] sm:$0xff]
  %v53 = vld [vmem:[%s3 + $0x48] sm:$0xff]
  %v54 = vld [vmem:[%s3 + $0x50] sm:$0xff]
  %v55 = vld [vmem:[%s3 + $0x58] sm:$0xff]
  %v56 = vld [vmem:[%s3 + $0x60] sm:$0xff]
  %v57 = vld [vmem:[%s3 + $0x68] sm:$0xff]
  %v58 = vld [vmem:[%s3 + $0x70] sm:$0xff]
  %v59 = vld [vmem:[%s3 + $0x78] sm:$0xff]
  %v60 = vld [vmem:[%s3 + $0x80] sm:$0xff]
  %v61 = vld [vmem:[%s3 + $0x88] sm:$0xff]
  %v62 = vld [vmem:[%s3 + $0x90] sm:$0xff]
  %v63 = vld [vmem:[%s3 + $0x98] sm:$0xff]
  %v64 = vld [vmem:[%s3 + $0xa0] sm:$0xff]
  %v65 = vld [vmem:[%s3 + $0xa8] sm:$0xff]
  %v66 = vld [vmem:[%s3 + $0xb0] sm:$0xff]
  %v67 = vld [vmem:[%s3 + $0xb8] sm:$0xff]
  %v68 = vld [vmem:[%s3 + $0xc0] sm:$0xff]
  %v69 = vld [vmem:[%s3 + $0xc8] sm:$0xff]
  %v70 = vld [vmem:[%s3 + $0xd0] sm:$0xff]
  %v71 = vld [vmem:[%s3 + $0xd8] sm:$0xff]
  %v72 = vld [vmem:[%s3 + $0xe0] sm:$0xff]
  %v73 = vld [vmem:[%s3 + $0xe8] sm:$0xff]
  %v74 = vld [vmem:[%s3 + $0xf0] sm:$0xff]
  %v75 = vld [vmem:[%s3 + $0xf8] sm:$0xff]
  %v76 = vld [vmem:[%s4] sm:$0x3]
  %v78 = vperm.slane %v76, 0
  %v79 = vperm.slane %v76, 1
  %v114 = vunpack.c.l.b16 %v44
  %v115 = vunpack.c.h.b16 %v44
  %v116 = vunpack.c.l.b16 %v45
  %v117 = vunpack.c.h.b16 %v45
  %v118 = vunpack.c.l.b16 %v46
  %v119 = vunpack.c.h.b16 %v46
  %v120 = vunpack.c.l.b16 %v47
  %v121 = vunpack.c.h.b16 %v47
  %v122 = vunpack.c.l.b16 %v48
  %v123 = vunpack.c.h.b16 %v48
  %v124 = vunpack.c.l.b16 %v49
  %v125 = vunpack.c.h.b16 %v49
  %v126 = vunpack.c.l.b16 %v50
  %v127 = vunpack.c.h.b16 %v50
  %v128 = vunpack.c.l.b16 %v51
  %v129 = vunpack.c.h.b16 %v51
  %v130 = vunpack.c.l.b16 %v52
  %v131 = vunpack.c.h.b16 %v52
  %v132 = vunpack.c.l.b16 %v53
  %v133 = vunpack.c.h.b16 %v53
  %v134 = vunpack.c.l.b16 %v54
  %v135 = vunpack.c.h.b16 %v54
  %v136 = vunpack.c.l.b16 %v55
  %v137 = vunpack.c.h.b16 %v55
  %v138 = vunpack.c.l.b16 %v56
  %v139 = vunpack.c.h.b16 %v56
  %v140 = vunpack.c.l.b16 %v57
  %v141 = vunpack.c.h.b16 %v57
  %v142 = vunpack.c.l.b16 %v58
  %v143 = vunpack.c.h.b16 %v58
  %v144 = vunpack.c.l.b16 %v59
  %v145 = vunpack.c.h.b16 %v59
  %v146 = vunpack.c.l.b16 %v60
  %v147 = vunpack.c.h.b16 %v60
  %v148 = vunpack.c.l.b16 %v61
  %v149 = vunpack.c.h.b16 %v61
  %v150 = vunpack.c.l.b16 %v62
  %v151 = vunpack.c.h.b16 %v62
  %v152 = vunpack.c.l.b16 %v63
  %v153 = vunpack.c.h.b16 %v63
  %v154 = vunpack.c.l.b16 %v64
  %v155 = vunpack.c.h.b16 %v64
  %v156 = vunpack.c.l.b16 %v65
  %v157 = vunpack.c.h.b16 %v65
  %v158 = vunpack.c.l.b16 %v66
  %v159 = vunpack.c.h.b16 %v66
  %v160 = vunpack.c.l.b16 %v67
  %v161 = vunpack.c.h.b16 %v67
  %v162 = vunpack.c.l.b16 %v68
  %v163 = vunpack.c.h.b16 %v68
  %v164 = vunpack.c.l.b16 %v69
  %v165 = vunpack.c.h.b16 %v69
  %v166 = vunpack.c.l.b16 %v70
  %v167 = vunpack.c.h.b16 %v70
  %v168 = vunpack.c.l.b16 %v71
  %v169 = vunpack.c.h.b16 %v71
  %v170 = vunpack.c.l.b16 %v72
  %v171 = vunpack.c.h.b16 %v72
  %v172 = vunpack.c.l.b16 %v73
  %v173 = vunpack.c.h.b16 %v73
  %v174 = vunpack.c.l.b16 %v74
  %v175 = vunpack.c.h.b16 %v74
  %v176 = vunpack.c.l.b16 %v75
  %v177 = vunpack.c.h.b16 %v75
  %v178 = vpack.c.b16 %v116, %v114
  %v179 = vpack.c.b16 %v117, %v115
  %v180 = vpack.c.b16 %v120, %v118
  %v181 = vpack.c.b16 %v121, %v119
  %v182 = vpack.c.b16 %v124, %v122
  %v183 = vpack.c.b16 %v125, %v123
  %v184 = vpack.c.b16 %v128, %v126
  %v185 = vpack.c.b16 %v129, %v127
  %v186 = vpack.c.b16 %v132, %v130
  %v187 = vpack.c.b16 %v133, %v131
  %v188 = vpack.c.b16 %v136, %v134
  %v189 = vpack.c.b16 %v137, %v135
  %v190 = vpack.c.b16 %v140, %v138
  %v191 = vpack.c.b16 %v141, %v139
  %v192 = vpack.c.b16 %v144, %v142
  %v193 = vpack.c.b16 %v145, %v143
  %v194 = vpack.c.b16 %v148, %v146
  %v195 = vpack.c.b16 %v149, %v147
  %v196 = vpack.c.b16 %v152, %v150
  %v197 = vpack.c.b16 %v153, %v151
  %v198 = vpack.c.b16 %v156, %v154
  %v199 = vpack.c.b16 %v157, %v155
  %v200 = vpack.c.b16 %v160, %v158
  %v201 = vpack.c.b16 %v161, %v159
  %v202 = vpack.c.b16 %v164, %v162
  %v203 = vpack.c.b16 %v165, %v163
  %v204 = vpack.c.b16 %v168, %v166
  %v205 = vpack.c.b16 %v169, %v167
  %v206 = vpack.c.b16 %v172, %v170
  %v207 = vpack.c.b16 %v173, %v171
  %v208 = vpack.c.b16 %v176, %v174
  %v209 = vpack.c.b16 %v177, %v175
  %242 = vmatpush.bf16.msra.mxu0 %v192
  %243 = vmatpush.bf16.msra.mxu0 %v190
  %244 = vmatpush.bf16.msra.mxu0 %v188
  %245 = vmatpush.bf16.msra.mxu0 %v186
  %246 = vmatpush.bf16.msra.mxu0 %v184
  %247 = vmatpush.bf16.msra.mxu0 %v182
  %248 = vmatpush.bf16.msra.mxu0 %v180
  %249 = vmatpush.bf16.msra.mxu0 %v178
  %250 = vmatmul.bf16.gmra.mxu0 %v42
  %v251 = vpop.f32.mrf.mxu0
  %v252 = vadd.f32 %v78, %v251
  %v253 = vpop.f32.mrf.mxu0
  %254 = vdwg.mxu0
  %255 = vmatpush.bf16.msra.mxu0 %v208
  %256 = vmatpush.bf16.msra.mxu0 %v206
  %257 = vmatpush.bf16.msra.mxu0 %v204
  %258 = vmatpush.bf16.msra.mxu0 %v202
  %259 = vmatpush.bf16.msra.mxu0 %v200
  %260 = vmatpush.bf16.msra.mxu0 %v198
  %261 = vmatpush.bf16.msra.mxu0 %v196
  %262 = vmatpush.bf16.msra.mxu0 %v194
  %263 = vmatmul.bf16.gmra.mxu0 %v43
  %v264 = vpop.f32.mrf.mxu0
  %v265 = vadd.f32 %v252, %v264
  %v266 = vpop.f32.mrf.mxu0
  %267 = vdwg.mxu0
  %268 = vmatpush.bf16.msra.mxu0 %v193
  %269 = vmatpush.bf16.msra.mxu0 %v191
  %270 = vmatpush.bf16.msra.mxu0 %v189
  %271 = vmatpush.bf16.msra.mxu0 %v187
  %272 = vmatpush.bf16.msra.mxu0 %v185
  %273 = vmatpush.bf16.msra.mxu0 %v183
  %274 = vmatpush.bf16.msra.mxu0 %v181
  %275 = vmatpush.bf16.msra.mxu0 %v179
  %276 = vmatmul.bf16.gmra.mxu0 %v42
  %v277 = vpop.f32.mrf.mxu0
  %v278 = vadd.f32 %v79, %v277
  %v279 = vpop.f32.mrf.mxu0
  %280 = vdwg.mxu0
  %281 = vmatpush.bf16.msra.mxu0 %v209
  %282 = vmatpush.bf16.msra.mxu0 %v207
  %283 = vmatpush.bf16.msra.mxu0 %v205
  %284 = vmatpush.bf16.msra.mxu0 %v203
  %285 = vmatpush.bf16.msra.mxu0 %v201
  %286 = vmatpush.bf16.msra.mxu0 %v199
  %287 = vmatpush.bf16.msra.mxu0 %v197
  %288 = vmatpush.bf16.msra.mxu0 %v195
  %289 = vmatmul.bf16.gmra.mxu0 %v43
  %v290 = vpop.f32.mrf.mxu0
  %v291 = vadd.f32 %v278, %v290
  %v292 = vpop.f32.mrf.mxu0
  %293 = vdwg.mxu0
  %v294 = vmax.f32 %v265, 0.0
  %v295 = vmax.f32 %v291, 0.0
  %v296 = vpack.c.bf16 %v295, %v294
  %297 = vst [vmem:[%s5] sm:$0xff] %v296
  %s298 = smul.u32 0, 2
  %s299 = ssub.s32 2, %s298
  %s300 = smul.u32 %s299, 4
  %v301 = vlaneseq
  %v302 = vshrl.u32 %v301, 7
  %v303 = vstv %s300
  %vm304 = vcmp.lt.s32.totalorder %v302, %v303
  %v305 = vsel %vm304, 1, 0
  %v306 = vcvt.s32.f32 %v305
  %v307 = vmul.f32 %v294, %v306
  %v308 = vmul.f32 %v295, %v306
  %v309 = vrot.slane %v307, 4
  %v310 = vadd.f32 %v307, %v309
  %v311 = vrot.slane %v310, 2
  %v312 = vadd.f32 %v310, %v311
  %v313 = vrot.slane %v312, 1
  %v314 = vadd.f32 %v312, %v313
  %v315 = vrot.slane %v308, 4
  %v316 = vadd.f32 %v308, %v315
  %v317 = vrot.slane %v316, 2
  %v318 = vadd.f32 %v316, %v317
  %v319 = vrot.slane %v318, 1
  %v320 = vadd.f32 %v318, %v319
  %v321 = vmul.f32 %v294, %v294
  %v322 = vmul.f32 %v295, %v295
  %v323 = vmul.f32 %v321, %v306
  %v324 = vmul.f32 %v322, %v306
  %v325 = vrot.slane %v323, 4
  %v326 = vadd.f32 %v323, %v325
  %v327 = vrot.slane %v326, 2
  %v328 = vadd.f32 %v326, %v327
  %v329 = vrot.slane %v328, 1
  %v330 = vadd.f32 %v328, %v329
  %v331 = vrot.slane %v324, 4
  %v332 = vadd.f32 %v324, %v331
  %v333 = vrot.slane %v332, 2
  %v334 = vadd.f32 %v332, %v333
  %v335 = vrot.slane %v334, 1
  %v336 = vadd.f32 %v334, %v335
  %v339 = vrot.slane %v320, 7
  %vm340 = vcmask 1040384
  %v341 = vsel %vm340, %v314, %v339
  %v343 = vlaneseq
  %vm344 = vcmp.ge.s32.totalorder %v343, 0
  %vm345 = vcmp.lt.s32.totalorder %v343, 256
  %vm346 = vmand %vm344, %vm345
  %347 = vst.msk [vmem:[%s6] sm:$0x3] %vm346, %v341
  %v350 = vrot.slane %v336, 7
  %v351 = vsel %vm340, %v330, %v350
  %353 = vst.msk [vmem:[%s7] sm:$0x3] %vm346, %v351
  // Predicated region
  $region22: #{topological_nn_forward.8} parent=0 // pred_check
    _
  $region23: #{topological_nn_forward.8} parent=0 // pred_check_branch
    %355 = sbr.rel (0) target = $region25
  $region24: #{topological_nn_forward.8} parent=0 // pred_region
    _
  $region25: #{topological_nn_forward.8} parent=0 // pred_fallthru
    _
  // Predicated region
  $region26: #{topological_nn_forward.8} parent=0 // pred_check
    _
  $region27: #{topological_nn_forward.8} parent=0 // pred_check_branch
    %357 = sbr.rel (0) target = $region29
  $region28: #{topological_nn_forward.8} parent=0 // pred_region
    _
  $region29: #{topological_nn_forward.8} parent=0 // pred_fallthru
    _
  // Predicated region
  $region30: #{topological_nn_forward.8} parent=0 // pred_check
    _
  $region31: #{topological_nn_forward.8} parent=0 // pred_check_branch
    %359 = sbr.rel (0) target = $region33
  $region32: #{topological_nn_forward.8} parent=0 // pred_region
    _
  $region33: #{topological_nn_forward.8} parent=0 // pred_fallthru
    _
  // Predicated region
  $region34: #{topological_nn_forward.8} parent=0 // pred_check
    _
  $region35: #{topological_nn_forward.8} parent=0 // pred_check_branch
    %361 = sbr.rel (0) target = $region37
  $region36: #{topological_nn_forward.8} parent=0 // pred_region
    _
  $region37: #{topological_nn_forward.8} parent=0 // pred_fallthru
    _
  // Predicated region
  $region38: #{topological_nn_forward.8} parent=0 // pred_check
    _
  $region39: #{topological_nn_forward.8} parent=0 // pred_check_branch
    %363 = sbr.rel (0) target = $region41
  $region40: #{topological_nn_forward.8} parent=0 // pred_region
    _
  $region41: #{topological_nn_forward.8} parent=0 // pred_fallthru
    _
  // Predicated region
  $region42: #{topological_nn_forward.8} parent=0 // pred_check
    _
  $region43: #{topological_nn_forward.8} parent=0 // pred_check_branch
    %365 = sbr.rel (0) target = $region45
  $region44: #{topological_nn_forward.8} parent=0 // pred_region
    _
  $region45: #{topological_nn_forward.8} parent=0 // pred_fallthru
    _

// kernel: topological_nn_forward.9
$region0: #{topological_nn_forward.9}
  #allocation0 [shape = 'u32[]', space=smem, size = 0x4, offset = 0x4, fixed_abs, tag = 'smem constant byte address 0x4 - core index']
  #allocation1 [shape = 'u32[72,128]{1,0:T(1,128)}', space=vmem, size = 0x9000, scoped, tag = 'internal scratch']
  #allocation2 [shape = 'f32[1,1]{1,0:T(1,128)S(1)}', space=vmem, size = 0x200, scoped, tag = 'scoped memory for topological_nn_forward.9']
  %s0 = inlined_call_operand.vmem [shape: bf16[8,256], index: 0, kind: input, shape index: {}]
  %s1 = inlined_call_operand.vmem [shape: f32[1,256], index: 1, kind: input, shape index: {}]
  %s2 = inlined_call_operand.vmem [shape: f32[1,256], index: 2, kind: input, shape index: {}]
  %s3 = inlined_call_operand.vmem [shape: f32[4,2,8], index: 3, kind: input, shape index: {}]
  %s4 = inlined_call_operand.vmem [shape: f32[4,256,128], index: 4, kind: input, shape index: {}]
  %s5 = inlined_call_operand.vmem [shape: f32[1,128], index: 5, kind: input, shape index: {}]
  %s6 = inlined_call_operand.vmem [shape: f32[128,64], index: 6, kind: input, shape index: {}]
  %s7 = inlined_call_operand.vmem [shape: f32[1,64], index: 7, kind: input, shape index: {}]
  %s8 = inlined_call_operand.vmem [shape: f32[64,1], index: 8, kind: input, shape index: {}]
  %s9 = inlined_call_operand.<no memory space> [shape: f32[1,1], index: 9, kind: input, shape index: {}]
  %s10 = inlined_call_operand.vmem [shape: f32[2,1], index: 10, kind: output, shape index: {}]
  %s11 = sld [smem:[#allocation0]]
  $region50: #{topological_nn_forward.9} parent=0
    _
  %s13 = ssub.s32 1, %s11
  %s14 = scalar_select 0, %s13, %s11
  %v15 = vstv %s9
  %16 = vst [vmem:[#allocation2] sm:$0x1] %v15
  // Predicated region
  $region2: #{topological_nn_forward.9} parent=0 // pred_check
    _
  $region3: #{topological_nn_forward.9} parent=0 // pred_check_branch
    %18 = sbr.rel (0) target = $region5
  $region4: #{topological_nn_forward.9} parent=0 // pred_region
    _
  $region5: #{topological_nn_forward.9} parent=0 // pred_fallthru
    _
  // Predicated region
  $region6: #{topological_nn_forward.9} parent=0 // pred_check
    _
  $region7: #{topological_nn_forward.9} parent=0 // pred_check_branch
    %20 = sbr.rel (0) target = $region9
  $region8: #{topological_nn_forward.9} parent=0 // pred_region
    _
  $region9: #{topological_nn_forward.9} parent=0 // pred_fallthru
    _
  // Predicated region
  $region10: #{topological_nn_forward.9} parent=0 // pred_check
    _
  $region11: #{topological_nn_forward.9} parent=0 // pred_check_branch
    %22 = sbr.rel (0) target = $region13
  $region12: #{topological_nn_forward.9} parent=0 // pred_region
    _
  $region13: #{topological_nn_forward.9} parent=0 // pred_fallthru
    _
  // Predicated region
  $region14: #{topological_nn_forward.9} parent=0 // pred_check
    _
  $region15: #{topological_nn_forward.9} parent=0 // pred_check_branch
    %24 = sbr.rel (0) target = $region17
  $region16: #{topological_nn_forward.9} parent=0 // pred_region
    _
  $region17: #{topological_nn_forward.9} parent=0 // pred_fallthru
    _
  // Predicated region
  $region18: #{topological_nn_forward.9} parent=0 // pred_check
    _
  $region19: #{topological_nn_forward.9} parent=0 // pred_check_branch
    %26 = sbr.rel (0) target = $region21
  $region20: #{topological_nn_forward.9} parent=0 // pred_region
    _
  $region21: #{topological_nn_forward.9} parent=0 // pred_fallthru
    _
  // Predicated region
  $region22: #{topological_nn_forward.9} parent=0 // pred_check
    _
  $region23: #{topological_nn_forward.9} parent=0 // pred_check_branch
    %28 = sbr.rel (0) target = $region25
  $region24: #{topological_nn_forward.9} parent=0 // pred_region
    _
  $region25: #{topological_nn_forward.9} parent=0 // pred_fallthru
    _
  // Predicated region
  $region26: #{topological_nn_forward.9} parent=0 // pred_check
    _
  $region27: #{topological_nn_forward.9} parent=0 // pred_check_branch
    %30 = sbr.rel (0) target = $region29
  $region28: #{topological_nn_forward.9} parent=0 // pred_region
    _
  $region29: #{topological_nn_forward.9} parent=0 // pred_fallthru
    _
  // Predicated region
  $region30: #{topological_nn_forward.9} parent=0 // pred_check
    _
  $region31: #{topological_nn_forward.9} parent=0 // pred_check_branch
    %32 = sbr.rel (0) target = $region33
  $region32: #{topological_nn_forward.9} parent=0 // pred_region
    _
  $region33: #{topological_nn_forward.9} parent=0 // pred_fallthru
    _
  // Predicated region
  $region34: #{topological_nn_forward.9} parent=0 // pred_check
    _
  $region35: #{topological_nn_forward.9} parent=0 // pred_check_branch
    %34 = sbr.rel (0) target = $region37
  $region36: #{topological_nn_forward.9} parent=0 // pred_region
    _
  $region37: #{topological_nn_forward.9} parent=0 // pred_fallthru
    _
  // Predicated region
  $region38: #{topological_nn_forward.9} parent=0 // pred_check
    _
  $region39: #{topological_nn_forward.9} parent=0 // pred_check_branch
    %36 = sbr.rel (0) target = $region41
  $region40: #{topological_nn_forward.9} parent=0 // pred_region
    _
  $region41: #{topological_nn_forward.9} parent=0 // pred_fallthru
    _
  %v37 = vld [vmem:[%s0] sm:$0xff]
  %v38 = vunpack.c.l.bf16 %v37
  %v39 = vunpack.c.h.bf16 %v37
  %v40 = vld [vmem:[%s1] sm:$0x3]
  %v42 = vperm.slane %v40, 0
  %v43 = vperm.slane %v40, 1
  %v46 = vmul.f32 %v38, %v42
  %v47 = vmul.f32 %v39, %v43
  %v48 = vld [vmem:[%s2] sm:$0x3]
  %v50 = vperm.slane %v48, 0
  %v51 = vperm.slane %v48, 1
  %v54 = vadd.f32 %v46, %v50
  %v55 = vadd.f32 %v47, %v51
  %v56 = vld [vmem:[%s3] sm:$0x3]
  %vm57 = vcmask 64512
  %v59 = vsel %vm57, %v56, 0
  %61 = vmatpush.msra.mxu0 0.0
  %62 = vmatpush.msra.mxu0 0.0
  %63 = vmatpush.msra.mxu0 0.0
  %64 = vmatpush.msra.mxu0 0.0
  %65 = vmatpush.msra.mxu0 0.0
  %66 = vmatpush.msra.mxu0 0.0
  %67 = vmatpush.msra.mxu0 0.0
  %68 = vmatpush.msra.mxu0 0.0
  %69 = vmatpush.msra.mxu0 0.0
  %70 = vmatpush.msra.mxu0 0.0
  %71 = vmatpush.msra.mxu0 0.0
  %72 = vmatpush.msra.mxu0 0.0
  %73 = vmatpush.msra.mxu0 0.0
  %74 = vmatpush.msra.mxu0 0.0
  %75 = vmatpush.msra.mxu0 0.0
  %76 = vmatpush.msra.mxu0 %v54
  %77 = vmatmul.f32.gmra.mxu0 %v59
  %v78 = vpop.f32.mrf.mxu0
  %v79 = vadd.f32 0.0, %v78
  %80 = vdwg.mxu0
  %81 = vmatpush.msra.mxu0 0.0
  %82 = vmatpush.msra.mxu0 0.0
  %83 = vmatpush.msra.mxu0 0.0
  %84 = vmatpush.msra.mxu0 0.0
  %85 = vmatpush.msra.mxu0 0.0
  %86 = vmatpush.msra.mxu0 0.0
  %87 = vmatpush.msra.mxu0 0.0
  %88 = vmatpush.msra.mxu0 0.0
  %89 = vmatpush.msra.mxu0 0.0
  %90 = vmatpush.msra.mxu0 0.0
  %91 = vmatpush.msra.mxu0 0.0
  %92 = vmatpush.msra.mxu0 0.0
  %93 = vmatpush.msra.mxu0 0.0
  %94 = vmatpush.msra.mxu0 0.0
  %95 = vmatpush.msra.mxu0 0.0
  %96 = vmatpush.msra.mxu0 %v55
  %97 = vmatmul.f32.gmra.mxu0 %v59
  %v98 = vpop.f32.mrf.mxu0
  %v99 = vadd.f32 0.0, %v98
  %100 = vdwg.mxu0
  %v101 = vld [vmem:[%s4] sm:$0xff]
  %v102 = vld [vmem:[%s4 + $0x8] sm:$0xff]
  %v103 = vld [vmem:[%s4 + $0x10] sm:$0xff]
  %v104 = vld [vmem:[%s4 + $0x18] sm:$0xff]
  %v105 = vld [vmem:[%s4 + $0x20] sm:$0xff]
  %v106 = vld [vmem:[%s4 + $0x28] sm:$0xff]
  %v107 = vld [vmem:[%s4 + $0x30] sm:$0xff]
  %v108 = vld [vmem:[%s4 + $0x38] sm:$0xff]
  %v109 = vld [vmem:[%s4 + $0x40] sm:$0xff]
  %v110 = vld [vmem:[%s4 + $0x48] sm:$0xff]
  %v111 = vld [vmem:[%s4 + $0x50] sm:$0xff]
  %v112 = vld [vmem:[%s4 + $0x58] sm:$0xff]
  %v113 = vld [vmem:[%s4 + $0x60] sm:$0xff]
  %v114 = vld [vmem:[%s4 + $0x68] sm:$0xff]
  %v115 = vld [vmem:[%s4 + $0x70] sm:$0xff]
  %v116 = vld [vmem:[%s4 + $0x78] sm:$0xff]
  %v117 = vld [vmem:[%s4 + $0x80] sm:$0xff]
  %v118 = vld [vmem:[%s4 + $0x88] sm:$0xff]
  %v119 = vld [vmem:[%s4 + $0x90] sm:$0xff]
  %v120 = vld [vmem:[%s4 + $0x98] sm:$0xff]
  %v121 = vld [vmem:[%s4 + $0xa0] sm:$0xff]
  %v122 = vld [vmem:[%s4 + $0xa8] sm:$0xff]
  %v123 = vld [vmem:[%s4 + $0xb0] sm:$0xff]
  %v124 = vld [vmem:[%s4 + $0xb8] sm:$0xff]
  %v125 = vld [vmem:[%s4 + $0xc0] sm:$0xff]
  %v126 = vld [vmem:[%s4 + $0xc8] sm:$0xff]
  %v127 = vld [vmem:[%s4 + $0xd0] sm:$0xff]
  %v128 = vld [vmem:[%s4 + $0xd8] sm:$0xff]
  %v129 = vld [vmem:[%s4 + $0xe0] sm:$0xff]
  %v130 = vld [vmem:[%s4 + $0xe8] sm:$0xff]
  %v131 = vld [vmem:[%s4 + $0xf0] sm:$0xff]
  %v132 = vld [vmem:[%s4 + $0xf8] sm:$0xff]
  %s133 = scalar_lea.vmem %s3, 2
  %v134 = vld [vmem:[%s133] sm:$0x3]
  %v136 = vsel %vm57, %v134, 0
  %138 = vmatpush.msra.mxu0 0.0
  %139 = vmatpush.msra.mxu0 0.0
  %140 = vmatpush.msra.mxu0 0.0
  %141 = vmatpush.msra.mxu0 0.0
  %142 = vmatpush.msra.mxu0 0.0
  %143 = vmatpush.msra.mxu0 0.0
  %144 = vmatpush.msra.mxu0 0.0
  %145 = vmatpush.msra.mxu0 0.0
  %146 = vmatpush.msra.mxu0 0.0
  %147 = vmatpush.msra.mxu0 0.0
  %148 = vmatpush.msra.mxu0 0.0
  %149 = vmatpush.msra.mxu0 0.0
  %150 = vmatpush.msra.mxu0 0.0
  %151 = vmatpush.msra.mxu0 0.0
  %152 = vmatpush.msra.mxu0 0.0
  %153 = vmatpush.msra.mxu0 %v54
  %154 = vmatmul.f32.gmra.mxu0 %v136
  %v155 = vpop.f32.mrf.mxu0
  %v156 = vadd.f32 0.0, %v155
  %157 = vdwg.mxu0
  %158 = vmatpush.msra.mxu0 0.0
  %159 = vmatpush.msra.mxu0 0.0
  %160 = vmatpush.msra.mxu0 0.0
  %161 = vmatpush.msra.mxu0 0.0
  %162 = vmatpush.msra.mxu0 0.0
  %163 = vmatpush.msra.mxu0 0.0
  %164 = vmatpush.msra.mxu0 0.0
  %165 = vmatpush.msra.mxu0 0.0
  %166 = vmatpush.msra.mxu0 0.0
  %167 = vmatpush.msra.mxu0 0.0
  %168 = vmatpush.msra.mxu0 0.0
  %169 = vmatpush.msra.mxu0 0.0
  %170 = vmatpush.msra.mxu0 0.0
  %171 = vmatpush.msra.mxu0 0.0
  %172 = vmatpush.msra.mxu0 0.0
  %173 = vmatpush.msra.mxu0 %v55
  %174 = vmatmul.f32.gmra.mxu0 %v136
  %v175 = vpop.f32.mrf.mxu0
  %v176 = vadd.f32 0.0, %v175
  %177 = vdwg.mxu0
  %s178 = scalar_lea.vmem %s4, 256
  %v179 = vld [vmem:[%s178] sm:$0xff]
  %v180 = vld [vmem:[%s178 + $0x8] sm:$0xff]
  %v181 = vld [vmem:[%s178 + $0x10] sm:$0xff]
  %v182 = vld [vmem:[%s178 + $0x18] sm:$0xff]
  %v183 = vld [vmem:[%s178 + $0x20] sm:$0xff]
  %v184 = vld [vmem:[%s178 + $0x28] sm:$0xff]
  %v185 = vld [vmem:[%s178 + $0x30] sm:$0xff]
  %v186 = vld [vmem:[%s178 + $0x38] sm:$0xff]
  %v187 = vld [vmem:[%s178 + $0x40] sm:$0xff]
  %v188 = vld [vmem:[%s178 + $0x48] sm:$0xff]
  %v189 = vld [vmem:[%s178 + $0x50] sm:$0xff]
  %v190 = vld [vmem:[%s178 + $0x58] sm:$0xff]
  %v191 = vld [vmem:[%s178 + $0x60] sm:$0xff]
  %v192 = vld [vmem:[%s178 + $0x68] sm:$0xff]
  %v193 = vld [vmem:[%s178 + $0x70] sm:$0xff]
  %v194 = vld [vmem:[%s178 + $0x78] sm:$0xff]
  %v195 = vld [vmem:[%s178 + $0x80] sm:$0xff]
  %v196 = vld [vmem:[%s178 + $0x88] sm:$0xff]
  %v197 = vld [vmem:[%s178 + $0x90] sm:$0xff]
  %v198 = vld [vmem:[%s178 + $0x98] sm:$0xff]
  %v199 = vld [vmem:[%s178 + $0xa0] sm:$0xff]
  %v200 = vld [vmem:[%s178 + $0xa8] sm:$0xff]
  %v201 = vld [vmem:[%s178 + $0xb0] sm:$0xff]
  %v202 = vld [vmem:[%s178 + $0xb8] sm:$0xff]
  %v203 = vld [vmem:[%s178 + $0xc0] sm:$0xff]
  %v204 = vld [vmem:[%s178 + $0xc8] sm:$0xff]
  %v205 = vld [vmem:[%s178 + $0xd0] sm:$0xff]
  %v206 = vld [vmem:[%s178 + $0xd8] sm:$0xff]
  %v207 = vld [vmem:[%s178 + $0xe0] sm:$0xff]
  %v208 = vld [vmem:[%s178 + $0xe8] sm:$0xff]
  %v209 = vld [vmem:[%s178 + $0xf0] sm:$0xff]
  %v210 = vld [vmem:[%s178 + $0xf8] sm:$0xff]
  %211 = vmatpush.msra.mxu0 %v194
  %212 = vmatpush.msra.mxu0 %v193
  %213 = vmatpush.msra.mxu0 %v192
  %214 = vmatpush.msra.mxu0 %v191
  %215 = vmatpush.msra.mxu0 %v190
  %216 = vmatpush.msra.mxu0 %v189
  %217 = vmatpush.msra.mxu0 %v188
  %218 = vmatpush.msra.mxu0 %v187
  %219 = vmatpush.msra.mxu0 %v186
  %220 = vmatpush.msra.mxu0 %v185
  %221 = vmatpush.msra.mxu0 %v184
  %222 = vmatpush.msra.mxu0 %v183
  %223 = vmatpush.msra.mxu0 %v182
  %224 = vmatpush.msra.mxu0 %v181
  %225 = vmatpush.msra.mxu0 %v180
  %226 = vmatpush.msra.mxu0 %v179
  %227 = vmatmul.f32.gmra.mxu0 %v156
  %v228 = vpop.f32.mrf.mxu0
  %v229 = vadd.f32 0.0, %v228
  %230 = vdwg.mxu0
  %231 = vmatpush.msra.mxu0 %v210
  %232 = vmatpush.msra.mxu0 %v209
  %233 = vmatpush.msra.mxu0 %v208
  %234 = vmatpush.msra.mxu0 %v207
  %235 = vmatpush.msra.mxu0 %v206
  %236 = vmatpush.msra.mxu0 %v205
  %237 = vmatpush.msra.mxu0 %v204
  %238 = vmatpush.msra.mxu0 %v203
  %239 = vmatpush.msra.mxu0 %v202
  %240 = vmatpush.msra.mxu0 %v201
  %241 = vmatpush.msra.mxu0 %v200
  %242 = vmatpush.msra.mxu0 %v199
  %243 = vmatpush.msra.mxu0 %v198
  %244 = vmatpush.msra.mxu0 %v197
  %245 = vmatpush.msra.mxu0 %v196
  %246 = vmatpush.msra.mxu0 %v195
  %247 = vmatmul.f32.gmra.mxu0 %v176
  %v248 = vpop.f32.mrf.mxu0
  %v249 = vadd.f32 %v229, %v248
  %250 = vdwg.mxu0
  %251 = vmatpush.msra.mxu0 %v116
  %252 = vmatpush.msra.mxu0 %v115
  %253 = vmatpush.msra.mxu0 %v114
  %254 = vmatpush.msra.mxu0 %v113
  %255 = vmatpush.msra.mxu0 %v112
  %256 = vmatpush.msra.mxu0 %v111
  %257 = vmatpush.msra.mxu0 %v110
  %258 = vmatpush.msra.mxu0 %v109
  %259 = vmatpush.msra.mxu0 %v108
  %260 = vmatpush.msra.mxu0 %v107
  %261 = vmatpush.msra.mxu0 %v106
  %262 = vmatpush.msra.mxu0 %v105
  %263 = vmatpush.msra.mxu0 %v104
  %264 = vmatpush.msra.mxu0 %v103
  %265 = vmatpush.msra.mxu0 %v102
  %266 = vmatpush.msra.mxu0 %v101
  %267 = vmatmul.f32.gmra.mxu0 %v79
  %v268 = vpop.f32.mrf.mxu0
  %v269 = vadd.f32 %v249, %v268
  %270 = vdwg.mxu0
  %271 = vmatpush.msra.mxu0 %v132
  %272 = vmatpush.msra.mxu0 %v131
  %273 = vmatpush.msra.mxu0 %v130
  %274 = vmatpush.msra.mxu0 %v129
  %275 = vmatpush.msra.mxu0 %v128
  %276 = vmatpush.msra.mxu0 %v127
  %277 = vmatpush.msra.mxu0 %v126
  %278 = vmatpush.msra.mxu0 %v125
  %279 = vmatpush.msra.mxu0 %v124
  %280 = vmatpush.msra.mxu0 %v123
  %281 = vmatpush.msra.mxu0 %v122
  %282 = vmatpush.msra.mxu0 %v121
  %283 = vmatpush.msra.mxu0 %v120
  %284 = vmatpush.msra.mxu0 %v119
  %285 = vmatpush.msra.mxu0 %v118
  %286 = vmatpush.msra.mxu0 %v117
  %287 = vmatmul.f32.gmra.mxu0 %v99
  %v288 = vpop.f32.mrf.mxu0
  %v289 = vadd.f32 %v269, %v288
  %290 = vdwg.mxu0
  %s291 = scalar_lea.vmem %s3, 4
  %v292 = vld [vmem:[%s291] sm:$0x3]
  %v294 = vsel %vm57, %v292, 0
  %296 = vmatpush.msra.mxu0 0.0
  %297 = vmatpush.msra.mxu0 0.0
  %298 = vmatpush.msra.mxu0 0.0
  %299 = vmatpush.msra.mxu0 0.0
  %300 = vmatpush.msra.mxu0 0.0
  %301 = vmatpush.msra.mxu0 0.0
  %302 = vmatpush.msra.mxu0 0.0
  %303 = vmatpush.msra.mxu0 0.0
  %304 = vmatpush.msra.mxu0 0.0
  %305 = vmatpush.msra.mxu0 0.0
  %306 = vmatpush.msra.mxu0 0.0
  %307 = vmatpush.msra.mxu0 0.0
  %308 = vmatpush.msra.mxu0 0.0
  %309 = vmatpush.msra.mxu0 0.0
  %310 = vmatpush.msra.mxu0 0.0
  %311 = vmatpush.msra.mxu0 %v54
  %312 = vmatmul.f32.gmra.mxu0 %v294
  %v313 = vpop.f32.mrf.mxu0
  %v314 = vadd.f32 0.0, %v313
  %315 = vdwg.mxu0
  %316 = vmatpush.msra.mxu0 0.0
  %317 = vmatpush.msra.mxu0 0.0
  %318 = vmatpush.msra.mxu0 0.0
  %319 = vmatpush.msra.mxu0 0.0
  %320 = vmatpush.msra.mxu0 0.0
  %321 = vmatpush.msra.mxu0 0.0
  %322 = vmatpush.msra.mxu0 0.0
  %323 = vmatpush.msra.mxu0 0.0
  %324 = vmatpush.msra.mxu0 0.0
  %325 = vmatpush.msra.mxu0 0.0
  %326 = vmatpush.msra.mxu0 0.0
  %327 = vmatpush.msra.mxu0 0.0
  %328 = vmatpush.msra.mxu0 0.0
  %329 = vmatpush.msra.mxu0 0.0
  %330 = vmatpush.msra.mxu0 0.0
  %331 = vmatpush.msra.mxu0 %v55
  %332 = vmatmul.f32.gmra.mxu0 %v294
  %v333 = vpop.f32.mrf.mxu0
  %v334 = vadd.f32 0.0, %v333
  %335 = vdwg.mxu0
  %s336 = scalar_lea.vmem %s4, 512
  %v337 = vld [vmem:[%s336] sm:$0xff]
  %v338 = vld [vmem:[%s336 + $0x8] sm:$0xff]
  %v339 = vld [vmem:[%s336 + $0x10] sm:$0xff]
  %v340 = vld [vmem:[%s336 + $0x18] sm:$0xff]
  %v341 = vld [vmem:[%s336 + $0x20] sm:$0xff]
  %v342 = vld [vmem:[%s336 + $0x28] sm:$0xff]
  %v343 = vld [vmem:[%s336 + $0x30] sm:$0xff]
  %v344 = vld [vmem:[%s336 + $0x38] sm:$0xff]
  %v345 = vld [vmem:[%s336 + $0x40] sm:$0xff]
  %v346 = vld [vmem:[%s336 + $0x48] sm:$0xff]
  %v347 = vld [vmem:[%s336 + $0x50] sm:$0xff]
  %v348 = vld [vmem:[%s336 + $0x58] sm:$0xff]
  %v349 = vld [vmem:[%s336 + $0x60] sm:$0xff]
  %v350 = vld [vmem:[%s336 + $0x68] sm:$0xff]
  %v351 = vld [vmem:[%s336 + $0x70] sm:$0xff]
  %v352 = vld [vmem:[%s336 + $0x78] sm:$0xff]
  %v353 = vld [vmem:[%s336 + $0x80] sm:$0xff]
  %v354 = vld [vmem:[%s336 + $0x88] sm:$0xff]
  %v355 = vld [vmem:[%s336 + $0x90] sm:$0xff]
  %v356 = vld [vmem:[%s336 + $0x98] sm:$0xff]
  %v357 = vld [vmem:[%s336 + $0xa0] sm:$0xff]
  %v358 = vld [vmem:[%s336 + $0xa8] sm:$0xff]
  %v359 = vld [vmem:[%s336 + $0xb0] sm:$0xff]
  %v360 = vld [vmem:[%s336 + $0xb8] sm:$0xff]
  %v361 = vld [vmem:[%s336 + $0xc0] sm:$0xff]
  %v362 = vld [vmem:[%s336 + $0xc8] sm:$0xff]
  %v363 = vld [vmem:[%s336 + $0xd0] sm:$0xff]
  %v364 = vld [vmem:[%s336 + $0xd8] sm:$0xff]
  %v365 = vld [vmem:[%s336 + $0xe0] sm:$0xff]
  %v366 = vld [vmem:[%s336 + $0xe8] sm:$0xff]
  %v367 = vld [vmem:[%s336 + $0xf0] sm:$0xff]
  %v368 = vld [vmem:[%s336 + $0xf8] sm:$0xff]
  %369 = vmatpush.msra.mxu0 %v352
  %370 = vmatpush.msra.mxu0 %v351
  %371 = vmatpush.msra.mxu0 %v350
  %372 = vmatpush.msra.mxu0 %v349
  %373 = vmatpush.msra.mxu0 %v348
  %374 = vmatpush.msra.mxu0 %v347
  %375 = vmatpush.msra.mxu0 %v346
  %376 = vmatpush.msra.mxu0 %v345
  %377 = vmatpush.msra.mxu0 %v344
  %378 = vmatpush.msra.mxu0 %v343
  %379 = vmatpush.msra.mxu0 %v342
  %380 = vmatpush.msra.mxu0 %v341
  %381 = vmatpush.msra.mxu0 %v340
  %382 = vmatpush.msra.mxu0 %v339
  %383 = vmatpush.msra.mxu0 %v338
  %384 = vmatpush.msra.mxu0 %v337
  %385 = vmatmul.f32.gmra.mxu0 %v314
  %v386 = vpop.f32.mrf.mxu0
  %v387 = vadd.f32 0.0, %v386
  %388 = vdwg.mxu0
  %389 = vmatpush.msra.mxu0 %v368
  %390 = vmatpush.msra.mxu0 %v367
  %391 = vmatpush.msra.mxu0 %v366
  %392 = vmatpush.msra.mxu0 %v365
  %393 = vmatpush.msra.mxu0 %v364
  %394 = vmatpush.msra.mxu0 %v363
  %395 = vmatpush.msra.mxu0 %v362
  %396 = vmatpush.msra.mxu0 %v361
  %397 = vmatpush.msra.mxu0 %v360
  %398 = vmatpush.msra.mxu0 %v359
  %399 = vmatpush.msra.mxu0 %v358
  %400 = vmatpush.msra.mxu0 %v357
  %401 = vmatpush.msra.mxu0 %v356
  %402 = vmatpush.msra.mxu0 %v355
  %403 = vmatpush.msra.mxu0 %v354
  %404 = vmatpush.msra.mxu0 %v353
  %405 = vmatmul.f32.gmra.mxu0 %v334
  %v406 = vpop.f32.mrf.mxu0
  %v407 = vadd.f32 %v387, %v406
  %408 = vdwg.mxu0
  %v409 = vadd.f32 %v289, %v407
  %s410 = scalar_lea.vmem %s3, 6
  %v411 = vld [vmem:[%s410] sm:$0x3]
  %v413 = vsel %vm57, %v411, 0
  %415 = vmatpush.msra.mxu0 0.0
  %416 = vmatpush.msra.mxu0 0.0
  %417 = vmatpush.msra.mxu0 0.0
  %418 = vmatpush.msra.mxu0 0.0
  %419 = vmatpush.msra.mxu0 0.0
  %420 = vmatpush.msra.mxu0 0.0
  %421 = vmatpush.msra.mxu0 0.0
  %422 = vmatpush.msra.mxu0 0.0
  %423 = vmatpush.msra.mxu0 0.0
  %424 = vmatpush.msra.mxu0 0.0
  %425 = vmatpush.msra.mxu0 0.0
  %426 = vmatpush.msra.mxu0 0.0
  %427 = vmatpush.msra.mxu0 0.0
  %428 = vmatpush.msra.mxu0 0.0
  %429 = vmatpush.msra.mxu0 0.0
  %430 = vmatpush.msra.mxu0 %v54
  %431 = vmatmul.f32.gmra.mxu0 %v413
  %v432 = vpop.f32.mrf.mxu0
  %v433 = vadd.f32 0.0, %v432
  %434 = vdwg.mxu0
  %435 = vmatpush.msra.mxu0 0.0
  %436 = vmatpush.msra.mxu0 0.0
  %437 = vmatpush.msra.mxu0 0.0
  %438 = vmatpush.msra.mxu0 0.0
  %439 = vmatpush.msra.mxu0 0.0
  %440 = vmatpush.msra.mxu0 0.0
  %441 = vmatpush.msra.mxu0 0.0
  %442 = vmatpush.msra.mxu0 0.0
  %443 = vmatpush.msra.mxu0 0.0
  %444 = vmatpush.msra.mxu0 0.0
  %445 = vmatpush.msra.mxu0 0.0
  %446 = vmatpush.msra.mxu0 0.0
  %447 = vmatpush.msra.mxu0 0.0
  %448 = vmatpush.msra.mxu0 0.0
  %449 = vmatpush.msra.mxu0 0.0
  %450 = vmatpush.msra.mxu0 %v55
  %451 = vmatmul.f32.gmra.mxu0 %v413
  %v452 = vpop.f32.mrf.mxu0
  %v453 = vadd.f32 0.0, %v452
  %454 = vdwg.mxu0
  %s455 = scalar_lea.vmem %s4, 768
  %v456 = vld [vmem:[%s455] sm:$0xff]
  %v457 = vld [vmem:[%s455 + $0x8] sm:$0xff]
  %v458 = vld [vmem:[%s455 + $0x10] sm:$0xff]
  %v459 = vld [vmem:[%s455 + $0x18] sm:$0xff]
  %v460 = vld [vmem:[%s455 + $0x20] sm:$0xff]
  %v461 = vld [vmem:[%s455 + $0x28] sm:$0xff]
  %v462 = vld [vmem:[%s455 + $0x30] sm:$0xff]
  %v463 = vld [vmem:[%s455 + $0x38] sm:$0xff]
  %v464 = vld [vmem:[%s455 + $0x40] sm:$0xff]
  %v465 = vld [vmem:[%s455 + $0x48] sm:$0xff]
  %v466 = vld [vmem:[%s455 + $0x50] sm:$0xff]
  %v467 = vld [vmem:[%s455 + $0x58] sm:$0xff]
  %v468 = vld [vmem:[%s455 + $0x60] sm:$0xff]
  %v469 = vld [vmem:[%s455 + $0x68] sm:$0xff]
  %v470 = vld [vmem:[%s455 + $0x70] sm:$0xff]
  %v471 = vld [vmem:[%s455 + $0x78] sm:$0xff]
  %v472 = vld [vmem:[%s455 + $0x80] sm:$0xff]
  %v473 = vld [vmem:[%s455 + $0x88] sm:$0xff]
  %v474 = vld [vmem:[%s455 + $0x90] sm:$0xff]
  %v475 = vld [vmem:[%s455 + $0x98] sm:$0xff]
  %v476 = vld [vmem:[%s455 + $0xa0] sm:$0xff]
  %v477 = vld [vmem:[%s455 + $0xa8] sm:$0xff]
  %v478 = vld [vmem:[%s455 + $0xb0] sm:$0xff]
  %v479 = vld [vmem:[%s455 + $0xb8] sm:$0xff]
  %v480 = vld [vmem:[%s455 + $0xc0] sm:$0xff]
  %v481 = vld [vmem:[%s455 + $0xc8] sm:$0xff]
  %v482 = vld [vmem:[%s455 + $0xd0] sm:$0xff]
  %v483 = vld [vmem:[%s455 + $0xd8] sm:$0xff]
  %v484 = vld [vmem:[%s455 + $0xe0] sm:$0xff]
  %v485 = vld [vmem:[%s455 + $0xe8] sm:$0xff]
  %v486 = vld [vmem:[%s455 + $0xf0] sm:$0xff]
  %v487 = vld [vmem:[%s455 + $0xf8] sm:$0xff]
  %488 = vmatpush.msra.mxu0 %v471
  %489 = vmatpush.msra.mxu0 %v470
  %490 = vmatpush.msra.mxu0 %v469
  %491 = vmatpush.msra.mxu0 %v468
  %492 = vmatpush.msra.mxu0 %v467
  %493 = vmatpush.msra.mxu0 %v466
  %494 = vmatpush.msra.mxu0 %v465
  %495 = vmatpush.msra.mxu0 %v464
  %496 = vmatpush.msra.mxu0 %v463
  %497 = vmatpush.msra.mxu0 %v462
  %498 = vmatpush.msra.mxu0 %v461
  %499 = vmatpush.msra.mxu0 %v460
  %500 = vmatpush.msra.mxu0 %v459
  %501 = vmatpush.msra.mxu0 %v458
  %502 = vmatpush.msra.mxu0 %v457
  %503 = vmatpush.msra.mxu0 %v456
  %504 = vmatmul.f32.gmra.mxu0 %v433
  %v505 = vpop.f32.mrf.mxu0
  %v506 = vadd.f32 0.0, %v505
  %507 = vdwg.mxu0
  %508 = vmatpush.msra.mxu0 %v487
  %509 = vmatpush.msra.mxu0 %v486
  %510 = vmatpush.msra.mxu0 %v485
  %511 = vmatpush.msra.mxu0 %v484
  %512 = vmatpush.msra.mxu0 %v483
  %513 = vmatpush.msra.mxu0 %v482
  %514 = vmatpush.msra.mxu0 %v481
  %515 = vmatpush.msra.mxu0 %v480
  %516 = vmatpush.msra.mxu0 %v479
  %517 = vmatpush.msra.mxu0 %v478
  %518 = vmatpush.msra.mxu0 %v477
  %519 = vmatpush.msra.mxu0 %v476
  %520 = vmatpush.msra.mxu0 %v475
  %521 = vmatpush.msra.mxu0 %v474
  %522 = vmatpush.msra.mxu0 %v473
  %523 = vmatpush.msra.mxu0 %v472
  %524 = vmatmul.f32.gmra.mxu0 %v453
  %v525 = vpop.f32.mrf.mxu0
  %v526 = vadd.f32 %v506, %v525
  %527 = vdwg.mxu0
  %v528 = vadd.f32 %v409, %v526
  %v529 = vld [vmem:[%s5] sm:$0x1]
  %v531 = vperm.slane %v529, 0
  %v533 = vadd.f32 %v528, %v531
  %v534 = vmax.f32 %v533, 0.0
  %v535 = vld [vmem:[%s6] sm:$0xff]
  %v536 = vld [vmem:[%s6 + $0x8] sm:$0xff]
  %v537 = vld [vmem:[%s6 + $0x10] sm:$0xff]
  %v538 = vld [vmem:[%s6 + $0x18] sm:$0xff]
  %v539 = vld [vmem:[%s6 + $0x20] sm:$0xff]
  %v540 = vld [vmem:[%s6 + $0x28] sm:$0xff]
  %v541 = vld [vmem:[%s6 + $0x30] sm:$0xff]
  %v542 = vld [vmem:[%s6 + $0x38] sm:$0xff]
  %v543 = vld [vmem:[%s6 + $0x40] sm:$0xff]
  %v544 = vld [vmem:[%s6 + $0x48] sm:$0xff]
  %v545 = vld [vmem:[%s6 + $0x50] sm:$0xff]
  %v546 = vld [vmem:[%s6 + $0x58] sm:$0xff]
  %v547 = vld [vmem:[%s6 + $0x60] sm:$0xff]
  %v548 = vld [vmem:[%s6 + $0x68] sm:$0xff]
  %v549 = vld [vmem:[%s6 + $0x70] sm:$0xff]
  %v550 = vld [vmem:[%s6 + $0x78] sm:$0xff]
  %v551 = vld [vmem:[%s7] sm:$0x1]
  %v553 = vperm.slane %v551, 0
  %555 = vmatpush.msra.mxu0 %v550
  %556 = vmatpush.msra.mxu0 %v549
  %557 = vmatpush.msra.mxu0 %v548
  %558 = vmatpush.msra.mxu0 %v547
  %559 = vmatpush.msra.mxu0 %v546
  %560 = vmatpush.msra.mxu0 %v545
  %561 = vmatpush.msra.mxu0 %v544
  %562 = vmatpush.msra.mxu0 %v543
  %563 = vmatpush.msra.mxu0 %v542
  %564 = vmatpush.msra.mxu0 %v541
  %565 = vmatpush.msra.mxu0 %v540
  %566 = vmatpush.msra.mxu0 %v539
  %567 = vmatpush.msra.mxu0 %v538
  %568 = vmatpush.msra.mxu0 %v537
  %569 = vmatpush.msra.mxu0 %v536
  %570 = vmatpush.msra.mxu0 %v535
  %571 = vmatmul.f32.gmra.mxu0 %v534
  %v572 = vpop.f32.mrf.mxu0
  %v573 = vadd.f32 %v553, %v572
  %574 = vdwg.mxu0
  %v575 = vmax.f32 %v573, 0.0
  %v576 = vld [vmem:[%s8] sm:$0xff]
  %v577 = vld [vmem:[%s8 + $0x8] sm:$0xff]
  %v578 = vld [vmem:[%s8 + $0x10] sm:$0xff]
  %v579 = vld [vmem:[%s8 + $0x18] sm:$0xff]
  %v580 = vld [vmem:[%s8 + $0x20] sm:$0xff]
  %v581 = vld [vmem:[%s8 + $0x28] sm:$0xff]
  %v582 = vld [vmem:[%s8 + $0x30] sm:$0xff]
  %v583 = vld [vmem:[%s8 + $0x38] sm:$0xff]
  %v584 = vld [vmem:[#allocation2] sm:$0x1]
  %v586 = vperm.slane %v584, 0
  %vm588 = vcmask 523264
  %v590 = vsel %vm588, %v575, 0
  %592 = vmatpush.msra.mxu0 0.0
  %593 = vmatpush.msra.mxu0 0.0
  %594 = vmatpush.msra.mxu0 0.0
  %595 = vmatpush.msra.mxu0 0.0
  %596 = vmatpush.msra.mxu0 0.0
  %597 = vmatpush.msra.mxu0 0.0
  %598 = vmatpush.msra.mxu0 0.0
  %599 = vmatpush.msra.mxu0 0.0
  %600 = vmatpush.msra.mxu0 %v583
  %601 = vmatpush.msra.mxu0 %v582
  %602 = vmatpush.msra.mxu0 %v581
  %603 = vmatpush.msra.mxu0 %v580
  %604 = vmatpush.msra.mxu0 %v579
  %605 = vmatpush.msra.mxu0 %v578
  %606 = vmatpush.msra.mxu0 %v577
  %607 = vmatpush.msra.mxu0 %v576
  %608 = vmatmul.f32.gmra.mxu0 %v590
  %v609 = vpop.f32.mrf.mxu0
  %v610 = vadd.f32 %v586, %v609
  %611 = vdwg.mxu0
  %vm612 = vcmask 1024
  %613 = vst.msk [vmem:[%s10] sm:$0x3] %vm612, %v610
  // Predicated region
  $region42: #{topological_nn_forward.9} parent=0 // pred_check
    _
  $region43: #{topological_nn_forward.9} parent=0 // pred_check_branch
    %615 = sbr.rel (0) target = $region45
  $region44: #{topological_nn_forward.9} parent=0 // pred_region
    _
  $region45: #{topological_nn_forward.9} parent=0 // pred_fallthru
    _
  // Predicated region
  $region46: #{topological_nn_forward.9} parent=0 // pred_check
    _
  $region47: #{topological_nn_forward.9} parent=0 // pred_check_branch
    %617 = sbr.rel (0) target = $region49
  $region48: #{topological_nn_forward.9} parent=0 // pred_region
    _
  $region49: #{topological_nn_forward.9} parent=0 // pred_fallthru
    _

// kernel: topological_nn_forward.5
$region0: #{topological_nn_forward.5}
  #allocation0 [shape = 'u32[]', space=smem, size = 0x4, offset = 0x4, fixed_abs, tag = 'smem constant byte address 0x4 - core index']
  #allocation1 [shape = 'u32[72,128]{1,0:T(1,128)}', space=vmem, size = 0x9000, scoped, tag = 'internal scratch']
  %s0 = inlined_call_operand.vmem [shape: bf16[140,70], index: 0, kind: input, shape index: {}]
  %s1 = inlined_call_operand.hbm [shape: bf16[5,70,528], index: 1, kind: input, shape index: {}]
  %s2 = inlined_call_operand.vmem [shape: f32[1,528], index: 2, kind: input, shape index: {}]
  %s3 = inlined_call_operand.vmem [shape: bf16[526,176], index: 3, kind: input, shape index: {}]
  %s4 = inlined_call_operand.vmem [shape: bf16[44,134], index: 4, kind: input, shape index: {}]
  %s5 = inlined_call_operand.hbm [shape: bf16[3,176,320], index: 5, kind: input, shape index: {}]
  %s6 = inlined_call_operand.vmem [shape: f32[1,320], index: 6, kind: input, shape index: {}]
  %s7 = inlined_call_operand.vmem [shape: bf16[319,160], index: 7, kind: input, shape index: {}]
  %s8 = inlined_call_operand.vmem [shape: bf16[20,41], index: 8, kind: input, shape index: {}]
  %s9 = inlined_call_operand.vmem [shape: bf16[20,160], index: 9, kind: output, shape index: {}]
  %s10 = sld [smem:[#allocation0]]
  $region54: #{topological_nn_forward.5} parent=0
    _
  %s12 = ssub.s32 1, %s10
  %s13 = scalar_select 0, %s12, %s10
  $region1: #{topological_nn_forward.5} parent=0
    #allocation2 [shape = 'u8[460800]{0}', space=vmem, size = 0x70800, scoped, tag = 'input window, operand 1, single buffered']
    #allocation3 [shape = 's32[1]{0}', space=sflag, size = 0x4, scoped, tag = 'scoped memory for topological_nn_forward.5']
    #allocation4 [shape = 'u8[405504]{0}', space=vmem, size = 0x63000, scoped, tag = 'input window, operand 5, single buffered']
    #allocation5 [shape = 's32[1]{0}', space=sflag, size = 0x4, scoped, tag = 'scoped memory for topological_nn_forward.5']
    %14 = vsyncpa [#allocation3], 0
    %15 = vsyncpa [#allocation5], 0
    // Predicated region
    $region2: #{topological_nn_forward.5} parent=1 // pred_check
      _
    $region3: #{topological_nn_forward.5} parent=1 // pred_check_branch
      %17 = sbr.rel (0) target = $region5
    $region4: #{topological_nn_forward.5} parent=1 // pred_region
      _
    $region5: #{topological_nn_forward.5} parent=1 // pred_fallthru
      _
    // Predicated region
    $region6: #{topological_nn_forward.5} parent=1 // pred_check
      _
    $region7: #{topological_nn_forward.5} parent=1 // pred_check_branch
      %19 = sbr.rel (0) target = $region9
    $region8: #{topological_nn_forward.5} parent=1 // pred_region
      %21 = vsyncadd [#allocation3], 0
      %s22 = sshll.u32 %s1, 4
      %s23 = int_to_ptr.hbm [resolvable:$true] %s22
      %s24 = sshll.u32 [#allocation2], 4
      %s25 = int_to_ptr.vmem [resolvable:$true] %s24
      %30 = dma.hbm_to_vmem [thread:$0]  %s23, 14400, %s25, [#allocation3], 320, 320, 20
    $region9: #{topological_nn_forward.5} parent=1 // pred_fallthru
      _
    // Predicated region
    $region10: #{topological_nn_forward.5} parent=1 // pred_check
      _
    $region11: #{topological_nn_forward.5} parent=1 // pred_check_branch
      %32 = sbr.rel (0) target = $region13
    $region12: #{topological_nn_forward.5} parent=1 // pred_region
      _
    $region13: #{topological_nn_forward.5} parent=1 // pred_fallthru
      _
    // Predicated region
    $region14: #{topological_nn_forward.5} parent=1 // pred_check
      _
    $region15: #{topological_nn_forward.5} parent=1 // pred_check_branch
      %34 = sbr.rel (0) target = $region17
    $region16: #{topological_nn_forward.5} parent=1 // pred_region
      _
    $region17: #{topological_nn_forward.5} parent=1 // pred_fallthru
      _
    // Predicated region
    $region18: #{topological_nn_forward.5} parent=1 // pred_check
      _
    $region19: #{topological_nn_forward.5} parent=1 // pred_check_branch
      %36 = sbr.rel (0) target = $region21
    $region20: #{topological_nn_forward.5} parent=1 // pred_region
      _
    $region21: #{topological_nn_forward.5} parent=1 // pred_fallthru
      _
    // Predicated region
    $region22: #{topological_nn_forward.5} parent=1 // pred_check
      _
    $region23: #{topological_nn_forward.5} parent=1 // pred_check_branch
      %38 = sbr.rel (0) target = $region25
    $region24: #{topological_nn_forward.5} parent=1 // pred_region
      %40 = vsyncadd [#allocation5], 0
      %s41 = sshll.u32 %s5, 4
      %s42 = int_to_ptr.hbm [resolvable:$true] %s41
      %s43 = sshll.u32 [#allocation4], 4
      %s44 = int_to_ptr.vmem [resolvable:$true] %s43
      %49 = dma.hbm_to_vmem [thread:$0]  %s42, 12672, %s44, [#allocation5], 192, 192, 12
    $region25: #{topological_nn_forward.5} parent=1 // pred_fallthru
      _
    // Predicated region
    $region26: #{topological_nn_forward.5} parent=1 // pred_check
      _
    $region27: #{topological_nn_forward.5} parent=1 // pred_check_branch
      %51 = sbr.rel (0) target = $region29
    $region28: #{topological_nn_forward.5} parent=1 // pred_region
      _
    $region29: #{topological_nn_forward.5} parent=1 // pred_fallthru
      _
    // Predicated region
    $region30: #{topological_nn_forward.5} parent=1 // pred_check
      _
    $region31: #{topological_nn_forward.5} parent=1 // pred_check_branch
      %53 = sbr.rel (0) target = $region33
    $region32: #{topological_nn_forward.5} parent=1 // pred_region
      _
    $region33: #{topological_nn_forward.5} parent=1 // pred_fallthru
      _
    // Predicated region
    $region34: #{topological_nn_forward.5} parent=1 // pred_check
      _
    $region35: #{topological_nn_forward.5} parent=1 // pred_check_branch
      %55 = sbr.rel (0) target = $region37
    $region36: #{topological_nn_forward.5} parent=1 // pred_region
      _
    $region37: #{topological_nn_forward.5} parent=1 // pred_fallthru
      _
    // Predicated region
    $region38: #{topological_nn_forward.5} parent=1 // pred_check
      _
    $region39: #{topological_nn_forward.5} parent=1 // pred_check_branch
      %57 = sbr.rel (0) target = $region41
    $region40: #{topological_nn_forward.5} parent=1 // pred_region
      %59 = dma.done [#allocation3], 14400
    $region41: #{topological_nn_forward.5} parent=1 // pred_fallthru
      _
    // Predicated region
    $region42: #{topological_nn_forward.5} parent=1 // pred_check
      _
    $region43: #{topological_nn_forward.5} parent=1 // pred_check_branch
      %61 = sbr.rel (0) target = $region45
    $region44: #{topological_nn_forward.5} parent=1 // pred_region
      %63 = dma.done [#allocation5], 12672
    $region45: #{topological_nn_forward.5} parent=1 // pred_fallthru
      _
    %v65 = vld [vmem:[%s0] sm:$0xf]
    %v66 = vld [vmem:[%s0 + $0x4] sm:$0xf]
    %v67 = vld [vmem:[%s0 + $0x8] sm:$0xf]
    %v68 = vld [vmem:[%s0 + $0xc] sm:$0xf]
    %v69 = vld [vmem:[%s0 + $0x10] sm:$0xf]
    %v70 = vld [vmem:[%s0 + $0x14] sm:$0xf]
    %v71 = vld [vmem:[%s0 + $0x18] sm:$0xf]
    %v72 = vld [vmem:[%s0 + $0x1c] sm:$0xf]
    %v73 = vld [vmem:[%s0 + $0x20] sm:$0xf]
    %v74 = vld [vmem:[%s0 + $0x24] sm:$0xf]
    %v75 = vld [vmem:[%s0 + $0x28] sm:$0xf]
    %v76 = vld [vmem:[%s0 + $0x2c] sm:$0xf]
    %v77 = vld [vmem:[%s0 + $0x30] sm:$0xf]
    %v78 = vld [vmem:[%s0 + $0x34] sm:$0xf]
    %v79 = vld [vmem:[%s0 + $0x38] sm:$0xf]
    %v80 = vld [vmem:[%s0 + $0x3c] sm:$0xf]
    %v81 = vld [vmem:[%s0 + $0x40] sm:$0xf]
    %v82 = vld [vmem:[%s0 + $0x44] sm:$0x3]
    %v83 = vunpack.c.l.bf16 %v65
    %v84 = vunpack.c.l.bf16 %v66
    %v85 = vunpack.c.l.bf16 %v67
    %v86 = vunpack.c.l.bf16 %v68
    %v87 = vunpack.c.l.bf16 %v69
    %v88 = vunpack.c.l.bf16 %v70
    %v89 = vunpack.c.l.bf16 %v71
    %v90 = vunpack.c.l.bf16 %v72
    %v91 = vunpack.c.l.bf16 %v73
    %v92 = vunpack.c.l.bf16 %v74
    %v93 = vunpack.c.l.bf16 %v75
    %v94 = vunpack.c.l.bf16 %v76
    %v95 = vunpack.c.l.bf16 %v77
    %v96 = vunpack.c.l.bf16 %v78
    %v97 = vunpack.c.l.bf16 %v79
    %v98 = vunpack.c.l.bf16 %v80
    %v99 = vunpack.c.l.bf16 %v81
    %v100 = vunpack.c.l.bf16 %v82
    %v101 = vpack.c.bf16 %v84, %v83
    %v102 = vpack.c.bf16 %v86, %v85
    %v103 = vpack.c.bf16 %v88, %v87
    %v104 = vpack.c.bf16 %v90, %v89
    %v105 = vpack.c.bf16 %v92, %v91
    %v106 = vpack.c.bf16 %v94, %v93
    %v107 = vpack.c.bf16 %v96, %v95
    %v108 = vpack.c.bf16 %v98, %v97
    %v109 = vpack.c.bf16 %v99, %v99
    %v110 = vld [vmem:[#allocation2] sm:$0xff]
    %v111 = vld [vmem:[#allocation2 + $0x8] sm:$0xff]
    %v112 = vld [vmem:[#allocation2 + $0x10] sm:$0xf]
    %v113 = vld [vmem:[#allocation2 + $0x14] sm:$0xff]
    %v114 = vld [vmem:[#allocation2 + $0x1c] sm:$0xff]
    %v115 = vld [vmem:[#allocation2 + $0x24] sm:$0xf]
    %v116 = vld [vmem:[#allocation2 + $0x28] sm:$0xff]
    %v117 = vld [vmem:[#allocation2 + $0x30] sm:$0xff]
    %v118 = vld [vmem:[#allocation2 + $0x38] sm:$0xf]
    %v119 = vld [vmem:[#allocation2 + $0x3c] sm:$0xff]
    %v120 = vld [vmem:[#allocation2 + $0x44] sm:$0xff]
    %v121 = vld [vmem:[#allocation2 + $0x4c] sm:$0xf]
    %v122 = vld [vmem:[#allocation2 + $0x50] sm:$0xff]
    %v123 = vld [vmem:[#allocation2 + $0x58] sm:$0xff]
    %v124 = vld [vmem:[#allocation2 + $0x60] sm:$0xf]
    %v125 = vld [vmem:[#allocation2 + $0x64] sm:$0xff]
    %v126 = vld [vmem:[#allocation2 + $0x6c] sm:$0xff]
    %v127 = vld [vmem:[#allocation2 + $0x74] sm:$0xf]
    %v128 = vld [vmem:[#allocation2 + $0x78] sm:$0xff]
    %v129 = vld [vmem:[#allocation2 + $0x80] sm:$0xff]
    %v130 = vld [vmem:[#allocation2 + $0x88] sm:$0xf]
    %v131 = vld [vmem:[#allocation2 + $0x8c] sm:$0xff]
    %v132 = vld [vmem:[#allocation2 + $0x94] sm:$0xff]
    %v133 = vld [vmem:[#allocation2 + $0x9c] sm:$0xf]
    %v134 = vld [vmem:[#allocation2 + $0xa0] sm:$0x77]
    %v135 = vld [vmem:[#allocation2 + $0xa8] sm:$0x77]
    %v136 = vld [vmem:[#allocation2 + $0xb0] sm:$0x7]
    %v137 = vpack.c.bf16 %v100, %v99
    %s138 = scalar_lea.vmem [#allocation2], 180
    %v139 = vld [vmem:[%s138] sm:$0xff]
    %v140 = vld [vmem:[%s138 + $0x8] sm:$0xff]
    %v141 = vld [vmem:[%s138 + $0x10] sm:$0xf]
    %v142 = vld [vmem:[%s138 + $0x14] sm:$0xff]
    %v143 = vld [vmem:[%s138 + $0x1c] sm:$0xff]
    %v144 = vld [vmem:[%s138 + $0x24] sm:$0xf]
    %v145 = vld [vmem:[%s138 + $0x28] sm:$0xff]
    %v146 = vld [vmem:[%s138 + $0x30] sm:$0xff]
    %v147 = vld [vmem:[%s138 + $0x38] sm:$0xf]
    %v148 = vld [vmem:[%s138 + $0x3c] sm:$0xff]
    %v149 = vld [vmem:[%s138 + $0x44] sm:$0xff]
    %v150 = vld [vmem:[%s138 + $0x4c] sm:$0xf]
    %v151 = vld [vmem:[%s138 + $0x50] sm:$0xff]
    %v152 = vld [vmem:[%s138 + $0x58] sm:$0xff]
    %v153 = vld [vmem:[%s138 + $0x60] sm:$0xf]
    %v154 = vld [vmem:[%s138 + $0x64] sm:$0xff]
    %v155 = vld [vmem:[%s138 + $0x6c] sm:$0xff]
    %v156 = vld [vmem:[%s138 + $0x74] sm:$0xf]
    %v157 = vld [vmem:[%s138 + $0x78] sm:$0xff]
    %v158 = vld [vmem:[%s138 + $0x80] sm:$0xff]
    %v159 = vld [vmem:[%s138 + $0x88] sm:$0xf]
    %v160 = vld [vmem:[%s138 + $0x8c] sm:$0xff]
    %v161 = vld [vmem:[%s138 + $0x94] sm:$0xff]
    %v162 = vld [vmem:[%s138 + $0x9c] sm:$0xf]
    %v163 = vld [vmem:[%s138 + $0xa0] sm:$0x77]
    %v164 = vld [vmem:[%s138 + $0xa8] sm:$0x77]
    %v165 = vld [vmem:[%s138 + $0xb0] sm:$0x7]
    %vm166 = vsmask.f32 7424
    %v168 = vshrl.u32 %v101, 16
    %v170 = vshll.u32 %v101, 16
    %v172 = vrot.slane %v170, 1
    %v173 = vor.u32 %v168, %v172
    %v175 = vshll.u32 %v102, 16
    %v177 = vrot.slane %v175, 1
    %v178 = vsel %vm166, %v173, %v177
    %v179 = vshrl.u32 %v102, 16
    %v181 = vor.u32 %v179, %v177
    %v183 = vshll.u32 %v103, 16
    %v185 = vrot.slane %v183, 1
    %v186 = vsel %vm166, %v181, %v185
    %v187 = vshrl.u32 %v103, 16
    %v189 = vor.u32 %v187, %v185
    %v191 = vshll.u32 %v104, 16
    %v193 = vrot.slane %v191, 1
    %v194 = vsel %vm166, %v189, %v193
    %v195 = vshrl.u32 %v104, 16
    %v197 = vor.u32 %v195, %v193
    %v199 = vshll.u32 %v105, 16
    %v201 = vrot.slane %v199, 1
    %v202 = vsel %vm166, %v197, %v201
    %v203 = vshrl.u32 %v105, 16
    %v205 = vor.u32 %v203, %v201
    %v207 = vshll.u32 %v106, 16
    %v209 = vrot.slane %v207, 1
    %v210 = vsel %vm166, %v205, %v209
    %v211 = vshrl.u32 %v106, 16
    %v213 = vor.u32 %v211, %v209
    %v215 = vshll.u32 %v107, 16
    %v217 = vrot.slane %v215, 1
    %v218 = vsel %vm166, %v213, %v217
    %v219 = vshrl.u32 %v107, 16
    %v221 = vor.u32 %v219, %v217
    %v223 = vshll.u32 %v108, 16
    %v225 = vrot.slane %v223, 1
    %v226 = vsel %vm166, %v221, %v225
    %v227 = vshrl.u32 %v108, 16
    %v229 = vor.u32 %v227, %v225
    %v231 = vshll.u32 %v137, 16
    %v233 = vrot.slane %v231, 1
    %v234 = vsel %vm166, %v229, %v233
    %v235 = vshrl.u32 %v137, 16
    %v237 = vor.u32 %v235, %v233
    %v265 = vunpack.c.l.b16 %v139
    %v266 = vunpack.c.h.b16 %v139
    %v267 = vunpack.c.l.b16 %v140
    %v268 = vunpack.c.h.b16 %v140
    %v269 = vunpack.c.l.b16 %v141
    %v270 = vunpack.c.l.b16 %v142
    %v271 = vunpack.c.h.b16 %v142
    %v272 = vunpack.c.l.b16 %v143
    %v273 = vunpack.c.h.b16 %v143
    %v274 = vunpack.c.l.b16 %v144
    %v275 = vunpack.c.l.b16 %v145
    %v276 = vunpack.c.h.b16 %v145
    %v277 = vunpack.c.l.b16 %v146
    %v278 = vunpack.c.h.b16 %v146
    %v279 = vunpack.c.l.b16 %v147
    %v280 = vunpack.c.l.b16 %v148
    %v281 = vunpack.c.h.b16 %v148
    %v282 = vunpack.c.l.b16 %v149
    %v283 = vunpack.c.h.b16 %v149
    %v284 = vunpack.c.l.b16 %v150
    %v285 = vunpack.c.l.b16 %v151
    %v286 = vunpack.c.h.b16 %v151
    %v287 = vunpack.c.l.b16 %v152
    %v288 = vunpack.c.h.b16 %v152
    %v289 = vunpack.c.l.b16 %v153
    %v290 = vunpack.c.l.b16 %v154
    %v291 = vunpack.c.h.b16 %v154
    %v292 = vunpack.c.l.b16 %v155
    %v293 = vunpack.c.h.b16 %v155
    %v294 = vunpack.c.l.b16 %v156
    %v295 = vunpack.c.l.b16 %v157
    %v296 = vunpack.c.h.b16 %v157
    %v297 = vunpack.c.l.b16 %v158
    %v298 = vunpack.c.h.b16 %v158
    %v299 = vunpack.c.l.b16 %v159
    %v300 = vunpack.c.l.b16 %v160
    %v301 = vunpack.c.h.b16 %v160
    %v302 = vunpack.c.l.b16 %v161
    %v303 = vunpack.c.h.b16 %v161
    %v304 = vunpack.c.l.b16 %v162
    %v305 = vunpack.c.l.b16 %v163
    %v306 = vunpack.c.h.b16 %v163
    %v307 = vunpack.c.l.b16 %v164
    %v308 = vunpack.c.h.b16 %v164
    %v309 = vunpack.c.l.b16 %v165
    %v310 = vpack.c.b16 %v270, %v265
    %v311 = vpack.c.b16 %v271, %v266
    %v312 = vpack.c.b16 %v272, %v267
    %v313 = vpack.c.b16 %v273, %v268
    %v314 = vpack.c.b16 %v274, %v269
    %v315 = vpack.c.b16 %v280, %v275
    %v316 = vpack.c.b16 %v281, %v276
    %v317 = vpack.c.b16 %v282, %v277
    %v318 = vpack.c.b16 %v283, %v278
    %v319 = vpack.c.b16 %v284, %v279
    %v320 = vpack.c.b16 %v290, %v285
    %v321 = vpack.c.b16 %v291, %v286
    %v322 = vpack.c.b16 %v292, %v287
    %v323 = vpack.c.b16 %v293, %v288
    %v324 = vpack.c.b16 %v294, %v289
    %v325 = vpack.c.b16 %v300, %v295
    %v326 = vpack.c.b16 %v301, %v296
    %v327 = vpack.c.b16 %v302, %v297
    %v328 = vpack.c.b16 %v303, %v298
    %v329 = vpack.c.b16 %v304, %v299
    %v330 = vpack.c.b16 %v305, %v305
    %v331 = vpack.c.b16 %v306, %v306
    %v332 = vpack.c.b16 %v307, %v307
    %v333 = vpack.c.b16 %v308, %v308
    %v334 = vpack.c.b16 %v309, %v309
    %vm355 = vcmask 572416
    %v357 = vsel %vm355, %v178, 0
    %v360 = vsel %vm355, %v186, 0
    %v363 = vsel %vm355, %v194, 0
    %v366 = vsel %vm355, %v202, 0
    %v369 = vsel %vm355, %v210, 0
    %v372 = vsel %vm355, %v218, 0
    %v375 = vsel %vm355, %v226, 0
    %v378 = vsel %vm355, %v234, 0
    %v381 = vsel %vm355, %v237, 0
    %vm383 = vcmask 1042432
    %v385 = vsel %vm383, %v330, 0
    %v388 = vsel %vm383, %v331, 0
    %v391 = vsel %vm383, %v332, 0
    %v394 = vsel %vm383, %v333, 0
    %v397 = vsel %vm383, %v334, 0
    %399 = vmatpush.bf16.msra.mxu0 0
    %400 = vmatpush.bf16.msra.mxu0 0
    %401 = vmatpush.bf16.msra.mxu0 0
    %402 = vmatpush.bf16.msra.mxu0 %v385
    %403 = vmatpush.bf16.msra.mxu0 %v325
    %404 = vmatpush.bf16.msra.mxu0 %v320
    %405 = vmatpush.bf16.msra.mxu0 %v315
    %406 = vmatpush.bf16.msra.mxu0 %v310
    %407 = vmatmul.bf16.gmra.mxu0 %v357
    %v408 = vpop.f32.mrf.mxu0
    %v409 = vadd.f32 0.0, %v408
    %v410 = vpop.f32.mrf.mxu0
    %v411 = vadd.f32 0.0, %v410
    %412 = vmatmul.bf16.gmra.mxu0 %v360
    %v413 = vpop.f32.mrf.mxu0
    %v414 = vadd.f32 0.0, %v413
    %v415 = vpop.f32.mrf.mxu0
    %v416 = vadd.f32 0.0, %v415
    %417 = vmatmul.bf16.gmra.mxu0 %v363
    %v418 = vpop.f32.mrf.mxu0
    %v419 = vadd.f32 0.0, %v418
    %v420 = vpop.f32.mrf.mxu0
    %v421 = vadd.f32 0.0, %v420
    %422 = vmatmul.bf16.gmra.mxu0 %v366
    %v423 = vpop.f32.mrf.mxu0
    %v424 = vadd.f32 0.0, %v423
    %v425 = vpop.f32.mrf.mxu0
    %v426 = vadd.f32 0.0, %v425
    %427 = vmatmul.bf16.gmra.mxu0 %v369
    %v428 = vpop.f32.mrf.mxu0
    %v429 = vadd.f32 0.0, %v428
    %v430 = vpop.f32.mrf.mxu0
    %v431 = vadd.f32 0.0, %v430
    %432 = vmatmul.bf16.gmra.mxu0 %v372
    %v433 = vpop.f32.mrf.mxu0
    %v434 = vadd.f32 0.0, %v433
    %v435 = vpop.f32.mrf.mxu0
    %v436 = vadd.f32 0.0, %v435
    %437 = vmatmul.bf16.gmra.mxu0 %v375
    %v438 = vpop.f32.mrf.mxu0
    %v439 = vadd.f32 0.0, %v438
    %v440 = vpop.f32.mrf.mxu0
    %v441 = vadd.f32 0.0, %v440
    %442 = vmatmul.bf16.gmra.mxu0 %v378
    %v443 = vpop.f32.mrf.mxu0
    %v444 = vadd.f32 0.0, %v443
    %v445 = vpop.f32.mrf.mxu0
    %v446 = vadd.f32 0.0, %v445
    %447 = vmatmul.bf16.gmra.mxu0 %v381
    %v448 = vpop.f32.mrf.mxu0
    %v449 = vadd.f32 0.0, %v448
    %v450 = vpop.f32.mrf.mxu0
    %451 = vdwg.mxu0
    %452 = vmatpush.bf16.msra.mxu0 0
    %453 = vmatpush.bf16.msra.mxu0 0
    %454 = vmatpush.bf16.msra.mxu0 0
    %455 = vmatpush.bf16.msra.mxu0 %v388
    %456 = vmatpush.bf16.msra.mxu0 %v326
    %457 = vmatpush.bf16.msra.mxu0 %v321
    %458 = vmatpush.bf16.msra.mxu0 %v316
    %459 = vmatpush.bf16.msra.mxu0 %v311
    %460 = vmatmul.bf16.gmra.mxu0 %v357
    %v461 = vpop.f32.mrf.mxu0
    %v462 = vadd.f32 0.0, %v461
    %v463 = vpop.f32.mrf.mxu0
    %v464 = vadd.f32 0.0, %v463
    %465 = vmatmul.bf16.gmra.mxu0 %v360
    %v466 = vpop.f32.mrf.mxu0
    %v467 = vadd.f32 0.0, %v466
    %v468 = vpop.f32.mrf.mxu0
    %v469 = vadd.f32 0.0, %v468
    %470 = vmatmul.bf16.gmra.mxu0 %v363
    %v471 = vpop.f32.mrf.mxu0
    %v472 = vadd.f32 0.0, %v471
    %v473 = vpop.f32.mrf.mxu0
    %v474 = vadd.f32 0.0, %v473
    %475 = vmatmul.bf16.gmra.mxu0 %v366
    %v476 = vpop.f32.mrf.mxu0
    %v477 = vadd.f32 0.0, %v476
    %v478 = vpop.f32.mrf.mxu0
    %v479 = vadd.f32 0.0, %v478
    %480 = vmatmul.bf16.gmra.mxu0 %v369
    %v481 = vpop.f32.mrf.mxu0
    %v482 = vadd.f32 0.0, %v481
    %v483 = vpop.f32.mrf.mxu0
    %v484 = vadd.f32 0.0, %v483
    %485 = vmatmul.bf16.gmra.mxu0 %v372
    %v486 = vpop.f32.mrf.mxu0
    %v487 = vadd.f32 0.0, %v486
    %v488 = vpop.f32.mrf.mxu0
    %v489 = vadd.f32 0.0, %v488
    %490 = vmatmul.bf16.gmra.mxu0 %v375
    %v491 = vpop.f32.mrf.mxu0
    %v492 = vadd.f32 0.0, %v491
    %v493 = vpop.f32.mrf.mxu0
    %v494 = vadd.f32 0.0, %v493
    %495 = vmatmul.bf16.gmra.mxu0 %v378
    %v496 = vpop.f32.mrf.mxu0
    %v497 = vadd.f32 0.0, %v496
    %v498 = vpop.f32.mrf.mxu0
    %v499 = vadd.f32 0.0, %v498
    %500 = vmatmul.bf16.gmra.mxu0 %v381
    %v501 = vpop.f32.mrf.mxu0
    %v502 = vadd.f32 0.0, %v501
    %v503 = vpop.f32.mrf.mxu0
    %504 = vdwg.mxu0
    %505 = vmatpush.bf16.msra.mxu0 0
    %506 = vmatpush.bf16.msra.mxu0 0
    %507 = vmatpush.bf16.msra.mxu0 0
    %508 = vmatpush.bf16.msra.mxu0 %v391
    %509 = vmatpush.bf16.msra.mxu0 %v327
    %510 = vmatpush.bf16.msra.mxu0 %v322
    %511 = vmatpush.bf16.msra.mxu0 %v317
    %512 = vmatpush.bf16.msra.mxu0 %v312
    %513 = vmatmul.bf16.gmra.mxu0 %v357
    %v514 = vpop.f32.mrf.mxu0
    %v515 = vadd.f32 0.0, %v514
    %v516 = vpop.f32.mrf.mxu0
    %v517 = vadd.f32 0.0, %v516
    %518 = vmatmul.bf16.gmra.mxu0 %v360
    %v519 = vpop.f32.mrf.mxu0
    %v520 = vadd.f32 0.0, %v519
    %v521 = vpop.f32.mrf.mxu0
    %v522 = vadd.f32 0.0, %v521
    %523 = vmatmul.bf16.gmra.mxu0 %v363
    %v524 = vpop.f32.mrf.mxu0
    %v525 = vadd.f32 0.0, %v524
    %v526 = vpop.f32.mrf.mxu0
    %v527 = vadd.f32 0.0, %v526
    %528 = vmatmul.bf16.gmra.mxu0 %v366
    %v529 = vpop.f32.mrf.mxu0
    %v530 = vadd.f32 0.0, %v529
    %v531 = vpop.f32.mrf.mxu0
    %v532 = vadd.f32 0.0, %v531
    %533 = vmatmul.bf16.gmra.mxu0 %v369
    %v534 = vpop.f32.mrf.mxu0
    %v535 = vadd.f32 0.0, %v534
    %v536 = vpop.f32.mrf.mxu0
    %v537 = vadd.f32 0.0, %v536
    %538 = vmatmul.bf16.gmra.mxu0 %v372
    %v539 = vpop.f32.mrf.mxu0
    %v540 = vadd.f32 0.0, %v539
    %v541 = vpop.f32.mrf.mxu0
    %v542 = vadd.f32 0.0, %v541
    %543 = vmatmul.bf16.gmra.mxu0 %v375
    %v544 = vpop.f32.mrf.mxu0
    %v545 = vadd.f32 0.0, %v544
    %v546 = vpop.f32.mrf.mxu0
    %v547 = vadd.f32 0.0, %v546
    %548 = vmatmul.bf16.gmra.mxu0 %v378
    %v549 = vpop.f32.mrf.mxu0
    %v550 = vadd.f32 0.0, %v549
    %v551 = vpop.f32.mrf.mxu0
    %v552 = vadd.f32 0.0, %v551
    %553 = vmatmul.bf16.gmra.mxu0 %v381
    %v554 = vpop.f32.mrf.mxu0
    %v555 = vadd.f32 0.0, %v554
    %v556 = vpop.f32.mrf.mxu0
    %557 = vdwg.mxu0
    %558 = vmatpush.bf16.msra.mxu0 0
    %559 = vmatpush.bf16.msra.mxu0 0
    %560 = vmatpush.bf16.msra.mxu0 0
    %561 = vmatpush.bf16.msra.mxu0 %v394
    %562 = vmatpush.bf16.msra.mxu0 %v328
    %563 = vmatpush.bf16.msra.mxu0 %v323
    %564 = vmatpush.bf16.msra.mxu0 %v318
    %565 = vmatpush.bf16.msra.mxu0 %v313
    %566 = vmatmul.bf16.gmra.mxu0 %v357
    %v567 = vpop.f32.mrf.mxu0
    %v568 = vadd.f32 0.0, %v567
    %v569 = vpop.f32.mrf.mxu0
    %v570 = vadd.f32 0.0, %v569
    %571 = vmatmul.bf16.gmra.mxu0 %v360
    %v572 = vpop.f32.mrf.mxu0
    %v573 = vadd.f32 0.0, %v572
    %v574 = vpop.f32.mrf.mxu0
    %v575 = vadd.f32 0.0, %v574
    %576 = vmatmul.bf16.gmra.mxu0 %v363
    %v577 = vpop.f32.mrf.mxu0
    %v578 = vadd.f32 0.0, %v577
    %v579 = vpop.f32.mrf.mxu0
    %v580 = vadd.f32 0.0, %v579
    %581 = vmatmul.bf16.gmra.mxu0 %v366
    %v582 = vpop.f32.mrf.mxu0
    %v583 = vadd.f32 0.0, %v582
    %v584 = vpop.f32.mrf.mxu0
    %v585 = vadd.f32 0.0, %v584
    %586 = vmatmul.bf16.gmra.mxu0 %v369
    %v587 = vpop.f32.mrf.mxu0
    %v588 = vadd.f32 0.0, %v587
    %v589 = vpop.f32.mrf.mxu0
    %v590 = vadd.f32 0.0, %v589
    %591 = vmatmul.bf16.gmra.mxu0 %v372
    %v592 = vpop.f32.mrf.mxu0
    %v593 = vadd.f32 0.0, %v592
    %v594 = vpop.f32.mrf.mxu0
    %v595 = vadd.f32 0.0, %v594
    %596 = vmatmul.bf16.gmra.mxu0 %v375
    %v597 = vpop.f32.mrf.mxu0
    %v598 = vadd.f32 0.0, %v597
    %v599 = vpop.f32.mrf.mxu0
    %v600 = vadd.f32 0.0, %v599
    %601 = vmatmul.bf16.gmra.mxu0 %v378
    %v602 = vpop.f32.mrf.mxu0
    %v603 = vadd.f32 0.0, %v602
    %v604 = vpop.f32.mrf.mxu0
    %v605 = vadd.f32 0.0, %v604
    %606 = vmatmul.bf16.gmra.mxu0 %v381
    %v607 = vpop.f32.mrf.mxu0
    %v608 = vadd.f32 0.0, %v607
    %v609 = vpop.f32.mrf.mxu0
    %610 = vdwg.mxu0
    %611 = vmatpush.bf16.msra.mxu0 0
    %612 = vmatpush.bf16.msra.mxu0 0
    %613 = vmatpush.bf16.msra.mxu0 0
    %614 = vmatpush.bf16.msra.mxu0 %v397
    %615 = vmatpush.bf16.msra.mxu0 %v329
    %616 = vmatpush.bf16.msra.mxu0 %v324
    %617 = vmatpush.bf16.msra.mxu0 %v319
    %618 = vmatpush.bf16.msra.mxu0 %v314
    %619 = vmatmul.bf16.gmra.mxu0 %v357
    %v620 = vpop.f32.mrf.mxu0
    %v621 = vadd.f32 0.0, %v620
    %v622 = vpop.f32.mrf.mxu0
    %v623 = vadd.f32 0.0, %v622
    %624 = vmatmul.bf16.gmra.mxu0 %v360
    %v625 = vpop.f32.mrf.mxu0
    %v626 = vadd.f32 0.0, %v625
    %v627 = vpop.f32.mrf.mxu0
    %v628 = vadd.f32 0.0, %v627
    %629 = vmatmul.bf16.gmra.mxu0 %v363
    %v630 = vpop.f32.mrf.mxu0
    %v631 = vadd.f32 0.0, %v630
    %v632 = vpop.f32.mrf.mxu0
    %v633 = vadd.f32 0.0, %v632
    %634 = vmatmul.bf16.gmra.mxu0 %v366
    %v635 = vpop.f32.mrf.mxu0
    %v636 = vadd.f32 0.0, %v635
    %v637 = vpop.f32.mrf.mxu0
    %v638 = vadd.f32 0.0, %v637
    %639 = vmatmul.bf16.gmra.mxu0 %v369
    %v640 = vpop.f32.mrf.mxu0
    %v641 = vadd.f32 0.0, %v640
    %v642 = vpop.f32.mrf.mxu0
    %v643 = vadd.f32 0.0, %v642
    %644 = vmatmul.bf16.gmra.mxu0 %v372
    %v645 = vpop.f32.mrf.mxu0
    %v646 = vadd.f32 0.0, %v645
    %v647 = vpop.f32.mrf.mxu0
    %v648 = vadd.f32 0.0, %v647
    %649 = vmatmul.bf16.gmra.mxu0 %v375
    %v650 = vpop.f32.mrf.mxu0
    %v651 = vadd.f32 0.0, %v650
    %v652 = vpop.f32.mrf.mxu0
    %v653 = vadd.f32 0.0, %v652
    %654 = vmatmul.bf16.gmra.mxu0 %v378
    %v655 = vpop.f32.mrf.mxu0
    %v656 = vadd.f32 0.0, %v655
    %v657 = vpop.f32.mrf.mxu0
    %v658 = vadd.f32 0.0, %v657
    %659 = vmatmul.bf16.gmra.mxu0 %v381
    %v660 = vpop.f32.mrf.mxu0
    %v661 = vadd.f32 0.0, %v660
    %v662 = vpop.f32.mrf.mxu0
    %663 = vdwg.mxu0
    %v691 = vunpack.c.l.b16 %v110
    %v692 = vunpack.c.h.b16 %v110
    %v693 = vunpack.c.l.b16 %v111
    %v694 = vunpack.c.h.b16 %v111
    %v695 = vunpack.c.l.b16 %v112
    %v696 = vunpack.c.l.b16 %v113
    %v697 = vunpack.c.h.b16 %v113
    %v698 = vunpack.c.l.b16 %v114
    %v699 = vunpack.c.h.b16 %v114
    %v700 = vunpack.c.l.b16 %v115
    %v701 = vunpack.c.l.b16 %v116
    %v702 = vunpack.c.h.b16 %v116
    %v703 = vunpack.c.l.b16 %v117
    %v704 = vunpack.c.h.b16 %v117
    %v705 = vunpack.c.l.b16 %v118
    %v706 = vunpack.c.l.b16 %v119
    %v707 = vunpack.c.h.b16 %v119
    %v708 = vunpack.c.l.b16 %v120
    %v709 = vunpack.c.h.b16 %v120
    %v710 = vunpack.c.l.b16 %v121
    %v711 = vunpack.c.l.b16 %v122
    %v712 = vunpack.c.h.b16 %v122
    %v713 = vunpack.c.l.b16 %v123
    %v714 = vunpack.c.h.b16 %v123
    %v715 = vunpack.c.l.b16 %v124
    %v716 = vunpack.c.l.b16 %v125
    %v717 = vunpack.c.h.b16 %v125
    %v718 = vunpack.c.l.b16 %v126
    %v719 = vunpack.c.h.b16 %v126
    %v720 = vunpack.c.l.b16 %v127
    %v721 = vunpack.c.l.b16 %v128
    %v722 = vunpack.c.h.b16 %v128
    %v723 = vunpack.c.l.b16 %v129
    %v724 = vunpack.c.h.b16 %v129
    %v725 = vunpack.c.l.b16 %v130
    %v726 = vunpack.c.l.b16 %v131
    %v727 = vunpack.c.h.b16 %v131
    %v728 = vunpack.c.l.b16 %v132
    %v729 = vunpack.c.h.b16 %v132
    %v730 = vunpack.c.l.b16 %v133
    %v731 = vunpack.c.l.b16 %v134
    %v732 = vunpack.c.h.b16 %v134
    %v733 = vunpack.c.l.b16 %v135
    %v734 = vunpack.c.h.b16 %v135
    %v735 = vunpack.c.l.b16 %v136
    %v736 = vpack.c.b16 %v696, %v691
    %v737 = vpack.c.b16 %v697, %v692
    %v738 = vpack.c.b16 %v698, %v693
    %v739 = vpack.c.b16 %v699, %v694
    %v740 = vpack.c.b16 %v700, %v695
    %v741 = vpack.c.b16 %v706, %v701
    %v742 = vpack.c.b16 %v707, %v702
    %v743 = vpack.c.b16 %v708, %v703
    %v744 = vpack.c.b16 %v709, %v704
    %v745 = vpack.c.b16 %v710, %v705
    %v746 = vpack.c.b16 %v716, %v711
    %v747 = vpack.c.b16 %v717, %v712
    %v748 = vpack.c.b16 %v718, %v713
    %v749 = vpack.c.b16 %v719, %v714
    %v750 = vpack.c.b16 %v720, %v715
    %v751 = vpack.c.b16 %v726, %v721
    %v752 = vpack.c.b16 %v727, %v722
    %v753 = vpack.c.b16 %v728, %v723
    %v754 = vpack.c.b16 %v729, %v724
    %v755 = vpack.c.b16 %v730, %v725
    %v756 = vpack.c.b16 %v731, %v731
    %v757 = vpack.c.b16 %v732, %v732
    %v758 = vpack.c.b16 %v733, %v733
    %v759 = vpack.c.b16 %v734, %v734
    %v760 = vpack.c.b16 %v735, %v735
    %v781 = vsel %vm355, %v101, 0
    %v783 = vsel %vm355, %v102, 0
    %v785 = vsel %vm355, %v103, 0
    %v787 = vsel %vm355, %v104, 0
    %v789 = vsel %vm355, %v105, 0
    %v791 = vsel %vm355, %v106, 0
    %v793 = vsel %vm355, %v107, 0
    %v795 = vsel %vm355, %v108, 0
    %v798 = vsel %vm355, %v109, 0
    %v801 = vsel %vm383, %v756, 0
    %v804 = vsel %vm383, %v757, 0
    %v807 = vsel %vm383, %v758, 0
    %v810 = vsel %vm383, %v759, 0
    %v813 = vsel %vm383, %v760, 0
    %815 = vmatpush.bf16.msra.mxu0 0
    %816 = vmatpush.bf16.msra.mxu0 0
    %817 = vmatpush.bf16.msra.mxu0 0
    %818 = vmatpush.bf16.msra.mxu0 %v801
    %819 = vmatpush.bf16.msra.mxu0 %v751
    %820 = vmatpush.bf16.msra.mxu0 %v746
    %821 = vmatpush.bf16.msra.mxu0 %v741
    %822 = vmatpush.bf16.msra.mxu0 %v736
    %823 = vmatmul.bf16.gmra.mxu0 %v781
    %v824 = vpop.f32.mrf.mxu0
    %v825 = vadd.f32 %v409, %v824
    %v826 = vpop.f32.mrf.mxu0
    %v827 = vadd.f32 %v411, %v826
    %828 = vmatmul.bf16.gmra.mxu0 %v783
    %v829 = vpop.f32.mrf.mxu0
    %v830 = vadd.f32 %v414, %v829
    %v831 = vpop.f32.mrf.mxu0
    %v832 = vadd.f32 %v416, %v831
    %833 = vmatmul.bf16.gmra.mxu0 %v785
    %v834 = vpop.f32.mrf.mxu0
    %v835 = vadd.f32 %v419, %v834
    %v836 = vpop.f32.mrf.mxu0
    %v837 = vadd.f32 %v421, %v836
    %838 = vmatmul.bf16.gmra.mxu0 %v787
    %v839 = vpop.f32.mrf.mxu0
    %v840 = vadd.f32 %v424, %v839
    %v841 = vpop.f32.mrf.mxu0
    %v842 = vadd.f32 %v426, %v841
    %843 = vmatmul.bf16.gmra.mxu0 %v789
    %v844 = vpop.f32.mrf.mxu0
    %v845 = vadd.f32 %v429, %v844
    %v846 = vpop.f32.mrf.mxu0
    %v847 = vadd.f32 %v431, %v846
    %848 = vmatmul.bf16.gmra.mxu0 %v791
    %v849 = vpop.f32.mrf.mxu0
    %v850 = vadd.f32 %v434, %v849
    %v851 = vpop.f32.mrf.mxu0
    %v852 = vadd.f32 %v436, %v851
    %853 = vmatmul.bf16.gmra.mxu0 %v793
    %v854 = vpop.f32.mrf.mxu0
    %v855 = vadd.f32 %v439, %v854
    %v856 = vpop.f32.mrf.mxu0
    %v857 = vadd.f32 %v441, %v856
    %858 = vmatmul.bf16.gmra.mxu0 %v795
    %v859 = vpop.f32.mrf.mxu0
    %v860 = vadd.f32 %v444, %v859
    %v861 = vpop.f32.mrf.mxu0
    %v862 = vadd.f32 %v446, %v861
    %863 = vmatmul.bf16.gmra.mxu0 %v798
    %v864 = vpop.f32.mrf.mxu0
    %v865 = vadd.f32 %v449, %v864
    %v866 = vpop.f32.mrf.mxu0
    %867 = vdwg.mxu0
    %868 = vmatpush.bf16.msra.mxu0 0
    %869 = vmatpush.bf16.msra.mxu0 0
    %870 = vmatpush.bf16.msra.mxu0 0
    %871 = vmatpush.bf16.msra.mxu0 %v804
    %872 = vmatpush.bf16.msra.mxu0 %v752
    %873 = vmatpush.bf16.msra.mxu0 %v747
    %874 = vmatpush.bf16.msra.mxu0 %v742
    %875 = vmatpush.bf16.msra.mxu0 %v737
    %876 = vmatmul.bf16.gmra.mxu0 %v781
    %v877 = vpop.f32.mrf.mxu0
    %v878 = vadd.f32 %v462, %v877
    %v879 = vpop.f32.mrf.mxu0
    %v880 = vadd.f32 %v464, %v879
    %881 = vmatmul.bf16.gmra.mxu0 %v783
    %v882 = vpop.f32.mrf.mxu0
    %v883 = vadd.f32 %v467, %v882
    %v884 = vpop.f32.mrf.mxu0
    %v885 = vadd.f32 %v469, %v884
    %886 = vmatmul.bf16.gmra.mxu0 %v785
    %v887 = vpop.f32.mrf.mxu0
    %v888 = vadd.f32 %v472, %v887
    %v889 = vpop.f32.mrf.mxu0
    %v890 = vadd.f32 %v474, %v889
    %891 = vmatmul.bf16.gmra.mxu0 %v787
    %v892 = vpop.f32.mrf.mxu0
    %v893 = vadd.f32 %v477, %v892
    %v894 = vpop.f32.mrf.mxu0
    %v895 = vadd.f32 %v479, %v894
    %896 = vmatmul.bf16.gmra.mxu0 %v789
    %v897 = vpop.f32.mrf.mxu0
    %v898 = vadd.f32 %v482, %v897
    %v899 = vpop.f32.mrf.mxu0
    %v900 = vadd.f32 %v484, %v899
    %901 = vmatmul.bf16.gmra.mxu0 %v791
    %v902 = vpop.f32.mrf.mxu0
    %v903 = vadd.f32 %v487, %v902
    %v904 = vpop.f32.mrf.mxu0
    %v905 = vadd.f32 %v489, %v904
    %906 = vmatmul.bf16.gmra.mxu0 %v793
    %v907 = vpop.f32.mrf.mxu0
    %v908 = vadd.f32 %v492, %v907
    %v909 = vpop.f32.mrf.mxu0
    %v910 = vadd.f32 %v494, %v909
    %911 = vmatmul.bf16.gmra.mxu0 %v795
    %v912 = vpop.f32.mrf.mxu0
    %v913 = vadd.f32 %v497, %v912
    %v914 = vpop.f32.mrf.mxu0
    %v915 = vadd.f32 %v499, %v914
    %916 = vmatmul.bf16.gmra.mxu0 %v798
    %v917 = vpop.f32.mrf.mxu0
    %v918 = vadd.f32 %v502, %v917
    %v919 = vpop.f32.mrf.mxu0
    %920 = vdwg.mxu0
    %921 = vmatpush.bf16.msra.mxu0 0
    %922 = vmatpush.bf16.msra.mxu0 0
    %923 = vmatpush.bf16.msra.mxu0 0
    %924 = vmatpush.bf16.msra.mxu0 %v807
    %925 = vmatpush.bf16.msra.mxu0 %v753
    %926 = vmatpush.bf16.msra.mxu0 %v748
    %927 = vmatpush.bf16.msra.mxu0 %v743
    %928 = vmatpush.bf16.msra.mxu0 %v738
    %929 = vmatmul.bf16.gmra.mxu0 %v781
    %v930 = vpop.f32.mrf.mxu0
    %v931 = vadd.f32 %v515, %v930
    %v932 = vpop.f32.mrf.mxu0
    %v933 = vadd.f32 %v517, %v932
    %934 = vmatmul.bf16.gmra.mxu0 %v783
    %v935 = vpop.f32.mrf.mxu0
    %v936 = vadd.f32 %v520, %v935
    %v937 = vpop.f32.mrf.mxu0
    %v938 = vadd.f32 %v522, %v937
    %939 = vmatmul.bf16.gmra.mxu0 %v785
    %v940 = vpop.f32.mrf.mxu0
    %v941 = vadd.f32 %v525, %v940
    %v942 = vpop.f32.mrf.mxu0
    %v943 = vadd.f32 %v527, %v942
    %944 = vmatmul.bf16.gmra.mxu0 %v787
    %v945 = vpop.f32.mrf.mxu0
    %v946 = vadd.f32 %v530, %v945
    %v947 = vpop.f32.mrf.mxu0
    %v948 = vadd.f32 %v532, %v947
    %949 = vmatmul.bf16.gmra.mxu0 %v789
    %v950 = vpop.f32.mrf.mxu0
    %v951 = vadd.f32 %v535, %v950
    %v952 = vpop.f32.mrf.mxu0
    %v953 = vadd.f32 %v537, %v952
    %954 = vmatmul.bf16.gmra.mxu0 %v791
    %v955 = vpop.f32.mrf.mxu0
    %v956 = vadd.f32 %v540, %v955
    %v957 = vpop.f32.mrf.mxu0
    %v958 = vadd.f32 %v542, %v957
    %959 = vmatmul.bf16.gmra.mxu0 %v793
    %v960 = vpop.f32.mrf.mxu0
    %v961 = vadd.f32 %v545, %v960
    %v962 = vpop.f32.mrf.mxu0
    %v963 = vadd.f32 %v547, %v962
    %964 = vmatmul.bf16.gmra.mxu0 %v795
    %v965 = vpop.f32.mrf.mxu0
    %v966 = vadd.f32 %v550, %v965
    %v967 = vpop.f32.mrf.mxu0
    %v968 = vadd.f32 %v552, %v967
    %969 = vmatmul.bf16.gmra.mxu0 %v798
    %v970 = vpop.f32.mrf.mxu0
    %v971 = vadd.f32 %v555, %v970
    %v972 = vpop.f32.mrf.mxu0
    %973 = vdwg.mxu0
    %974 = vmatpush.bf16.msra.mxu0 0
    %975 = vmatpush.bf16.msra.mxu0 0
    %976 = vmatpush.bf16.msra.mxu0 0
    %977 = vmatpush.bf16.msra.mxu0 %v810
    %978 = vmatpush.bf16.msra.mxu0 %v754
    %979 = vmatpush.bf16.msra.mxu0 %v749
    %980 = vmatpush.bf16.msra.mxu0 %v744
    %981 = vmatpush.bf16.msra.mxu0 %v739
    %982 = vmatmul.bf16.gmra.mxu0 %v781
    %v983 = vpop.f32.mrf.mxu0
    %v984 = vadd.f32 %v568, %v983
    %v985 = vpop.f32.mrf.mxu0
    %v986 = vadd.f32 %v570, %v985
    %987 = vmatmul.bf16.gmra.mxu0 %v783
    %v988 = vpop.f32.mrf.mxu0
    %v989 = vadd.f32 %v573, %v988
    %v990 = vpop.f32.mrf.mxu0
    %v991 = vadd.f32 %v575, %v990
    %992 = vmatmul.bf16.gmra.mxu0 %v785
    %v993 = vpop.f32.mrf.mxu0
    %v994 = vadd.f32 %v578, %v993
    %v995 = vpop.f32.mrf.mxu0
    %v996 = vadd.f32 %v580, %v995
    %997 = vmatmul.bf16.gmra.mxu0 %v787
    %v998 = vpop.f32.mrf.mxu0
    %v999 = vadd.f32 %v583, %v998
    %v1000 = vpop.f32.mrf.mxu0
    %v1001 = vadd.f32 %v585, %v1000
    %1002 = vmatmul.bf16.gmra.mxu0 %v789
    %v1003 = vpop.f32.mrf.mxu0
    %v1004 = vadd.f32 %v588, %v1003
    %v1005 = vpop.f32.mrf.mxu0
    %v1006 = vadd.f32 %v590, %v1005
    %1007 = vmatmul.bf16.gmra.mxu0 %v791
    %v1008 = vpop.f32.mrf.mxu0
    %v1009 = vadd.f32 %v593, %v1008
    %v1010 = vpop.f32.mrf.mxu0
    %v1011 = vadd.f32 %v595, %v1010
    %1012 = vmatmul.bf16.gmra.mxu0 %v793
    %v1013 = vpop.f32.mrf.mxu0
    %v1014 = vadd.f32 %v598, %v1013
    %v1015 = vpop.f32.mrf.mxu0
    %v1016 = vadd.f32 %v600, %v1015
    %1017 = vmatmul.bf16.gmra.mxu0 %v795
    %v1018 = vpop.f32.mrf.mxu0
    %v1019 = vadd.f32 %v603, %v1018
    %v1020 = vpop.f32.mrf.mxu0
    %v1021 = vadd.f32 %v605, %v1020
    %1022 = vmatmul.bf16.gmra.mxu0 %v798
    %v1023 = vpop.f32.mrf.mxu0
    %v1024 = vadd.f32 %v608, %v1023
    %v1025 = vpop.f32.mrf.mxu0
    %1026 = vdwg.mxu0
    %1027 = vmatpush.bf16.msra.mxu0 0
    %1028 = vmatpush.bf16.msra.mxu0 0
    %1029 = vmatpush.bf16.msra.mxu0 0
    %1030 = vmatpush.bf16.msra.mxu0 %v813
    %1031 = vmatpush.bf16.msra.mxu0 %v755
    %1032 = vmatpush.bf16.msra.mxu0 %v750
    %1033 = vmatpush.bf16.msra.mxu0 %v745
    %1034 = vmatpush.bf16.msra.mxu0 %v740
    %1035 = vmatmul.bf16.gmra.mxu0 %v781
    %v1036 = vpop.f32.mrf.mxu0
    %v1037 = vadd.f32 %v621, %v1036
    %v1038 = vpop.f32.mrf.mxu0
    %v1039 = vadd.f32 %v623, %v1038
    %1040 = vmatmul.bf16.gmra.mxu0 %v783
    %v1041 = vpop.f32.mrf.mxu0
    %v1042 = vadd.f32 %v626, %v1041
    %v1043 = vpop.f32.mrf.mxu0
    %v1044 = vadd.f32 %v628, %v1043
    %1045 = vmatmul.bf16.gmra.mxu0 %v785
    %v1046 = vpop.f32.mrf.mxu0
    %v1047 = vadd.f32 %v631, %v1046
    %v1048 = vpop.f32.mrf.mxu0
    %v1049 = vadd.f32 %v633, %v1048
    %1050 = vmatmul.bf16.gmra.mxu0 %v787
    %v1051 = vpop.f32.mrf.mxu0
    %v1052 = vadd.f32 %v636, %v1051
    %v1053 = vpop.f32.mrf.mxu0
    %v1054 = vadd.f32 %v638, %v1053
    %1055 = vmatmul.bf16.gmra.mxu0 %v789
    %v1056 = vpop.f32.mrf.mxu0
    %v1057 = vadd.f32 %v641, %v1056
    %v1058 = vpop.f32.mrf.mxu0
    %v1059 = vadd.f32 %v643, %v1058
    %1060 = vmatmul.bf16.gmra.mxu0 %v791
    %v1061 = vpop.f32.mrf.mxu0
    %v1062 = vadd.f32 %v646, %v1061
    %v1063 = vpop.f32.mrf.mxu0
    %v1064 = vadd.f32 %v648, %v1063
    %1065 = vmatmul.bf16.gmra.mxu0 %v793
    %v1066 = vpop.f32.mrf.mxu0
    %v1067 = vadd.f32 %v651, %v1066
    %v1068 = vpop.f32.mrf.mxu0
    %v1069 = vadd.f32 %v653, %v1068
    %1070 = vmatmul.bf16.gmra.mxu0 %v795
    %v1071 = vpop.f32.mrf.mxu0
    %v1072 = vadd.f32 %v656, %v1071
    %v1073 = vpop.f32.mrf.mxu0
    %v1074 = vadd.f32 %v658, %v1073
    %1075 = vmatmul.bf16.gmra.mxu0 %v798
    %v1076 = vpop.f32.mrf.mxu0
    %v1077 = vadd.f32 %v661, %v1076
    %v1078 = vpop.f32.mrf.mxu0
    %1079 = vdwg.mxu0
    %s1080 = scalar_lea.vmem [#allocation2], 360
    %v1081 = vld [vmem:[%s1080] sm:$0xff]
    %v1082 = vld [vmem:[%s1080 + $0x8] sm:$0xff]
    %v1083 = vld [vmem:[%s1080 + $0x10] sm:$0xf]
    %v1084 = vld [vmem:[%s1080 + $0x14] sm:$0xff]
    %v1085 = vld [vmem:[%s1080 + $0x1c] sm:$0xff]
    %v1086 = vld [vmem:[%s1080 + $0x24] sm:$0xf]
    %v1087 = vld [vmem:[%s1080 + $0x28] sm:$0xff]
    %v1088 = vld [vmem:[%s1080 + $0x30] sm:$0xff]
    %v1089 = vld [vmem:[%s1080 + $0x38] sm:$0xf]
    %v1090 = vld [vmem:[%s1080 + $0x3c] sm:$0xff]
    %v1091 = vld [vmem:[%s1080 + $0x44] sm:$0xff]
    %v1092 = vld [vmem:[%s1080 + $0x4c] sm:$0xf]
    %v1093 = vld [vmem:[%s1080 + $0x50] sm:$0xff]
    %v1094 = vld [vmem:[%s1080 + $0x58] sm:$0xff]
    %v1095 = vld [vmem:[%s1080 + $0x60] sm:$0xf]
    %v1096 = vld [vmem:[%s1080 + $0x64] sm:$0xff]
    %v1097 = vld [vmem:[%s1080 + $0x6c] sm:$0xff]
    %v1098 = vld [vmem:[%s1080 + $0x74] sm:$0xf]
    %v1099 = vld [vmem:[%s1080 + $0x78] sm:$0xff]
    %v1100 = vld [vmem:[%s1080 + $0x80] sm:$0xff]
    %v1101 = vld [vmem:[%s1080 + $0x88] sm:$0xf]
    %v1102 = vld [vmem:[%s1080 + $0x8c] sm:$0xff]
    %v1103 = vld [vmem:[%s1080 + $0x94] sm:$0xff]
    %v1104 = vld [vmem:[%s1080 + $0x9c] sm:$0xf]
    %v1105 = vld [vmem:[%s1080 + $0xa0] sm:$0x77]
    %v1106 = vld [vmem:[%s1080 + $0xa8] sm:$0x77]
    %v1107 = vld [vmem:[%s1080 + $0xb0] sm:$0x7]
    %vm1117 = vcmask 1046528
    %v1118 = vrot.slane %v101, 1
    %v1119 = vrot.slane %v102, 1
    %v1120 = vsel %vm1117, %v1118, %v1119
    %v1121 = vrot.slane %v103, 1
    %v1122 = vsel %vm1117, %v1119, %v1121
    %v1123 = vrot.slane %v104, 1
    %v1124 = vsel %vm1117, %v1121, %v1123
    %v1125 = vrot.slane %v105, 1
    %v1126 = vsel %vm1117, %v1123, %v1125
    %v1127 = vrot.slane %v106, 1
    %v1128 = vsel %vm1117, %v1125, %v1127
    %v1129 = vrot.slane %v107, 1
    %v1130 = vsel %vm1117, %v1127, %v1129
    %v1131 = vrot.slane %v108, 1
    %v1132 = vsel %vm1117, %v1129, %v1131
    %v1133 = vrot.slane %v137, 1
    %v1134 = vsel %vm1117, %v1131, %v1133
    %v1162 = vunpack.c.l.b16 %v1081
    %v1163 = vunpack.c.h.b16 %v1081
    %v1164 = vunpack.c.l.b16 %v1082
    %v1165 = vunpack.c.h.b16 %v1082
    %v1166 = vunpack.c.l.b16 %v1083
    %v1167 = vunpack.c.l.b16 %v1084
    %v1168 = vunpack.c.h.b16 %v1084
    %v1169 = vunpack.c.l.b16 %v1085
    %v1170 = vunpack.c.h.b16 %v1085
    %v1171 = vunpack.c.l.b16 %v1086
    %v1172 = vunpack.c.l.b16 %v1087
    %v1173 = vunpack.c.h.b16 %v1087
    %v1174 = vunpack.c.l.b16 %v1088
    %v1175 = vunpack.c.h.b16 %v1088
    %v1176 = vunpack.c.l.b16 %v1089
    %v1177 = vunpack.c.l.b16 %v1090
    %v1178 = vunpack.c.h.b16 %v1090
    %v1179 = vunpack.c.l.b16 %v1091
    %v1180 = vunpack.c.h.b16 %v1091
    %v1181 = vunpack.c.l.b16 %v1092
    %v1182 = vunpack.c.l.b16 %v1093
    %v1183 = vunpack.c.h.b16 %v1093
    %v1184 = vunpack.c.l.b16 %v1094
    %v1185 = vunpack.c.h.b16 %v1094
    %v1186 = vunpack.c.l.b16 %v1095
    %v1187 = vunpack.c.l.b16 %v1096
    %v1188 = vunpack.c.h.b16 %v1096
    %v1189 = vunpack.c.l.b16 %v1097
    %v1190 = vunpack.c.h.b16 %v1097
    %v1191 = vunpack.c.l.b16 %v1098
    %v1192 = vunpack.c.l.b16 %v1099
    %v1193 = vunpack.c.h.b16 %v1099
    %v1194 = vunpack.c.l.b16 %v1100
    %v1195 = vunpack.c.h.b16 %v1100
    %v1196 = vunpack.c.l.b16 %v1101
    %v1197 = vunpack.c.l.b16 %v1102
    %v1198 = vunpack.c.h.b16 %v1102
    %v1199 = vunpack.c.l.b16 %v1103
    %v1200 = vunpack.c.h.b16 %v1103
    %v1201 = vunpack.c.l.b16 %v1104
    %v1202 = vunpack.c.l.b16 %v1105
    %v1203 = vunpack.c.h.b16 %v1105
    %v1204 = vunpack.c.l.b16 %v1106
    %v1205 = vunpack.c.h.b16 %v1106
    %v1206 = vunpack.c.l.b16 %v1107
    %v1207 = vpack.c.b16 %v1167, %v1162
    %v1208 = vpack.c.b16 %v1168, %v1163
    %v1209 = vpack.c.b16 %v1169, %v1164
    %v1210 = vpack.c.b16 %v1170, %v1165
    %v1211 = vpack.c.b16 %v1171, %v1166
    %v1212 = vpack.c.b16 %v1177, %v1172
    %v1213 = vpack.c.b16 %v1178, %v1173
    %v1214 = vpack.c.b16 %v1179, %v1174
    %v1215 = vpack.c.b16 %v1180, %v1175
    %v1216 = vpack.c.b16 %v1181, %v1176
    %v1217 = vpack.c.b16 %v1187, %v1182
    %v1218 = vpack.c.b16 %v1188, %v1183
    %v1219 = vpack.c.b16 %v1189, %v1184
    %v1220 = vpack.c.b16 %v1190, %v1185
    %v1221 = vpack.c.b16 %v1191, %v1186
    %v1222 = vpack.c.b16 %v1197, %v1192
    %v1223 = vpack.c.b16 %v1198, %v1193
    %v1224 = vpack.c.b16 %v1199, %v1194
    %v1225 = vpack.c.b16 %v1200, %v1195
    %v1226 = vpack.c.b16 %v1201, %v1196
    %v1227 = vpack.c.b16 %v1202, %v1202
    %v1228 = vpack.c.b16 %v1203, %v1203
    %v1229 = vpack.c.b16 %v1204, %v1204
    %v1230 = vpack.c.b16 %v1205, %v1205
    %v1231 = vpack.c.b16 %v1206, %v1206
    %v1253 = vsel %vm355, %v1120, 0
    %v1256 = vsel %vm355, %v1122, 0
    %v1259 = vsel %vm355, %v1124, 0
    %v1262 = vsel %vm355, %v1126, 0
    %v1265 = vsel %vm355, %v1128, 0
    %v1268 = vsel %vm355, %v1130, 0
    %v1271 = vsel %vm355, %v1132, 0
    %v1274 = vsel %vm355, %v1134, 0
    %v1277 = vsel %vm355, %v1133, 0
    %v1280 = vsel %vm383, %v1227, 0
    %v1283 = vsel %vm383, %v1228, 0
    %v1286 = vsel %vm383, %v1229, 0
    %v1289 = vsel %vm383, %v1230, 0
    %v1292 = vsel %vm383, %v1231, 0
    %1294 = vmatpush.bf16.msra.mxu0 0
    %1295 = vmatpush.bf16.msra.mxu0 0
    %1296 = vmatpush.bf16.msra.mxu0 0
    %1297 = vmatpush.bf16.msra.mxu0 %v1280
    %1298 = vmatpush.bf16.msra.mxu0 %v1222
    %1299 = vmatpush.bf16.msra.mxu0 %v1217
    %1300 = vmatpush.bf16.msra.mxu0 %v1212
    %1301 = vmatpush.bf16.msra.mxu0 %v1207
    %1302 = vmatmul.bf16.gmra.mxu0 %v1253
    %v1303 = vpop.f32.mrf.mxu0
    %v1304 = vadd.f32 0.0, %v1303
    %v1305 = vpop.f32.mrf.mxu0
    %v1306 = vadd.f32 0.0, %v1305
    %1307 = vmatmul.bf16.gmra.mxu0 %v1256
    %v1308 = vpop.f32.mrf.mxu0
    %v1309 = vadd.f32 0.0, %v1308
    %v1310 = vpop.f32.mrf.mxu0
    %v1311 = vadd.f32 0.0, %v1310
    %1312 = vmatmul.bf16.gmra.mxu0 %v1259
    %v1313 = vpop.f32.mrf.mxu0
    %v1314 = vadd.f32 0.0, %v1313
    %v1315 = vpop.f32.mrf.mxu0
    %v1316 = vadd.f32 0.0, %v1315
    %1317 = vmatmul.bf16.gmra.mxu0 %v1262
    %v1318 = vpop.f32.mrf.mxu0
    %v1319 = vadd.f32 0.0, %v1318
    %v1320 = vpop.f32.mrf.mxu0
    %v1321 = vadd.f32 0.0, %v1320
    %1322 = vmatmul.bf16.gmra.mxu0 %v1265
    %v1323 = vpop.f32.mrf.mxu0
    %v1324 = vadd.f32 0.0, %v1323
    %v1325 = vpop.f32.mrf.mxu0
    %v1326 = vadd.f32 0.0, %v1325
    %1327 = vmatmul.bf16.gmra.mxu0 %v1268
    %v1328 = vpop.f32.mrf.mxu0
    %v1329 = vadd.f32 0.0, %v1328
    %v1330 = vpop.f32.mrf.mxu0
    %v1331 = vadd.f32 0.0, %v1330
    %1332 = vmatmul.bf16.gmra.mxu0 %v1271
    %v1333 = vpop.f32.mrf.mxu0
    %v1334 = vadd.f32 0.0, %v1333
    %v1335 = vpop.f32.mrf.mxu0
    %v1336 = vadd.f32 0.0, %v1335
    %1337 = vmatmul.bf16.gmra.mxu0 %v1274
    %v1338 = vpop.f32.mrf.mxu0
    %v1339 = vadd.f32 0.0, %v1338
    %v1340 = vpop.f32.mrf.mxu0
    %v1341 = vadd.f32 0.0, %v1340
    %1342 = vmatmul.bf16.gmra.mxu0 %v1277
    %v1343 = vpop.f32.mrf.mxu0
    %v1344 = vadd.f32 0.0, %v1343
    %v1345 = vpop.f32.mrf.mxu0
    %1346 = vdwg.mxu0
    %1347 = vmatpush.bf16.msra.mxu0 0
    %1348 = vmatpush.bf16.msra.mxu0 0
    %1349 = vmatpush.bf16.msra.mxu0 0
    %1350 = vmatpush.bf16.msra.mxu0 %v1283
    %1351 = vmatpush.bf16.msra.mxu0 %v1223
    %1352 = vmatpush.bf16.msra.mxu0 %v1218
    %1353 = vmatpush.bf16.msra.mxu0 %v1213
    %1354 = vmatpush.bf16.msra.mxu0 %v1208
    %1355 = vmatmul.bf16.gmra.mxu0 %v1253
    %v1356 = vpop.f32.mrf.mxu0
    %v1357 = vadd.f32 0.0, %v1356
    %v1358 = vpop.f32.mrf.mxu0
    %v1359 = vadd.f32 0.0, %v1358
    %1360 = vmatmul.bf16.gmra.mxu0 %v1256
    %v1361 = vpop.f32.mrf.mxu0
    %v1362 = vadd.f32 0.0, %v1361
    %v1363 = vpop.f32.mrf.mxu0
    %v1364 = vadd.f32 0.0, %v1363
    %1365 = vmatmul.bf16.gmra.mxu0 %v1259
    %v1366 = vpop.f32.mrf.mxu0
    %v1367 = vadd.f32 0.0, %v1366
    %v1368 = vpop.f32.mrf.mxu0
    %v1369 = vadd.f32 0.0, %v1368
    %1370 = vmatmul.bf16.gmra.mxu0 %v1262
    %v1371 = vpop.f32.mrf.mxu0
    %v1372 = vadd.f32 0.0, %v1371
    %v1373 = vpop.f32.mrf.mxu0
    %v1374 = vadd.f32 0.0, %v1373
    %1375 = vmatmul.bf16.gmra.mxu0 %v1265
    %v1376 = vpop.f32.mrf.mxu0
    %v1377 = vadd.f32 0.0, %v1376
    %v1378 = vpop.f32.mrf.mxu0
    %v1379 = vadd.f32 0.0, %v1378
    %1380 = vmatmul.bf16.gmra.mxu0 %v1268
    %v1381 = vpop.f32.mrf.mxu0
    %v1382 = vadd.f32 0.0, %v1381
    %v1383 = vpop.f32.mrf.mxu0
    %v1384 = vadd.f32 0.0, %v1383
    %1385 = vmatmul.bf16.gmra.mxu0 %v1271
    %v1386 = vpop.f32.mrf.mxu0
    %v1387 = vadd.f32 0.0, %v1386
    %v1388 = vpop.f32.mrf.mxu0
    %v1389 = vadd.f32 0.0, %v1388
    %1390 = vmatmul.bf16.gmra.mxu0 %v1274
    %v1391 = vpop.f32.mrf.mxu0
    %v1392 = vadd.f32 0.0, %v1391
    %v1393 = vpop.f32.mrf.mxu0
    %v1394 = vadd.f32 0.0, %v1393
    %1395 = vmatmul.bf16.gmra.mxu0 %v1277
    %v1396 = vpop.f32.mrf.mxu0
    %v1397 = vadd.f32 0.0, %v1396
    %v1398 = vpop.f32.mrf.mxu0
    %1399 = vdwg.mxu0
    %1400 = vmatpush.bf16.msra.mxu0 0
    %1401 = vmatpush.bf16.msra.mxu0 0
    %1402 = vmatpush.bf16.msra.mxu0 0
    %1403 = vmatpush.bf16.msra.mxu0 %v1286
    %1404 = vmatpush.bf16.msra.mxu0 %v1224
    %1405 = vmatpush.bf16.msra.mxu0 %v1219
    %1406 = vmatpush.bf16.msra.mxu0 %v1214
    %1407 = vmatpush.bf16.msra.mxu0 %v1209
    %1408 = vmatmul.bf16.gmra.mxu0 %v1253
    %v1409 = vpop.f32.mrf.mxu0
    %v1410 = vadd.f32 0.0, %v1409
    %v1411 = vpop.f32.mrf.mxu0
    %v1412 = vadd.f32 0.0, %v1411
    %1413 = vmatmul.bf16.gmra.mxu0 %v1256
    %v1414 = vpop.f32.mrf.mxu0
    %v1415 = vadd.f32 0.0, %v1414
    %v1416 = vpop.f32.mrf.mxu0
    %v1417 = vadd.f32 0.0, %v1416
    %1418 = vmatmul.bf16.gmra.mxu0 %v1259
    %v1419 = vpop.f32.mrf.mxu0
    %v1420 = vadd.f32 0.0, %v1419
    %v1421 = vpop.f32.mrf.mxu0
    %v1422 = vadd.f32 0.0, %v1421
    %1423 = vmatmul.bf16.gmra.mxu0 %v1262
    %v1424 = vpop.f32.mrf.mxu0
    %v1425 = vadd.f32 0.0, %v1424
    %v1426 = vpop.f32.mrf.mxu0
    %v1427 = vadd.f32 0.0, %v1426
    %1428 = vmatmul.bf16.gmra.mxu0 %v1265
    %v1429 = vpop.f32.mrf.mxu0
    %v1430 = vadd.f32 0.0, %v1429
    %v1431 = vpop.f32.mrf.mxu0
    %v1432 = vadd.f32 0.0, %v1431
    %1433 = vmatmul.bf16.gmra.mxu0 %v1268
    %v1434 = vpop.f32.mrf.mxu0
    %v1435 = vadd.f32 0.0, %v1434
    %v1436 = vpop.f32.mrf.mxu0
    %v1437 = vadd.f32 0.0, %v1436
    %1438 = vmatmul.bf16.gmra.mxu0 %v1271
    %v1439 = vpop.f32.mrf.mxu0
    %v1440 = vadd.f32 0.0, %v1439
    %v1441 = vpop.f32.mrf.mxu0
    %v1442 = vadd.f32 0.0, %v1441
    %1443 = vmatmul.bf16.gmra.mxu0 %v1274
    %v1444 = vpop.f32.mrf.mxu0
    %v1445 = vadd.f32 0.0, %v1444
    %v1446 = vpop.f32.mrf.mxu0
    %v1447 = vadd.f32 0.0, %v1446
    %1448 = vmatmul.bf16.gmra.mxu0 %v1277
    %v1449 = vpop.f32.mrf.mxu0
    %v1450 = vadd.f32 0.0, %v1449
    %v1451 = vpop.f32.mrf.mxu0
    %1452 = vdwg.mxu0
    %1453 = vmatpush.bf16.msra.mxu0 0
    %1454 = vmatpush.bf16.msra.mxu0 0
    %1455 = vmatpush.bf16.msra.mxu0 0
    %1456 = vmatpush.bf16.msra.mxu0 %v1289
    %1457 = vmatpush.bf16.msra.mxu0 %v1225
    %1458 = vmatpush.bf16.msra.mxu0 %v1220
    %1459 = vmatpush.bf16.msra.mxu0 %v1215
    %1460 = vmatpush.bf16.msra.mxu0 %v1210
    %1461 = vmatmul.bf16.gmra.mxu0 %v1253
    %v1462 = vpop.f32.mrf.mxu0
    %v1463 = vadd.f32 0.0, %v1462
    %v1464 = vpop.f32.mrf.mxu0
    %v1465 = vadd.f32 0.0, %v1464
    %1466 = vmatmul.bf16.gmra.mxu0 %v1256
    %v1467 = vpop.f32.mrf.mxu0
    %v1468 = vadd.f32 0.0, %v1467
    %v1469 = vpop.f32.mrf.mxu0
    %v1470 = vadd.f32 0.0, %v1469
    %1471 = vmatmul.bf16.gmra.mxu0 %v1259
    %v1472 = vpop.f32.mrf.mxu0
    %v1473 = vadd.f32 0.0, %v1472
    %v1474 = vpop.f32.mrf.mxu0
    %v1475 = vadd.f32 0.0, %v1474
    %1476 = vmatmul.bf16.gmra.mxu0 %v1262
    %v1477 = vpop.f32.mrf.mxu0
    %v1478 = vadd.f32 0.0, %v1477
    %v1479 = vpop.f32.mrf.mxu0
    %v1480 = vadd.f32 0.0, %v1479
    %1481 = vmatmul.bf16.gmra.mxu0 %v1265
    %v1482 = vpop.f32.mrf.mxu0
    %v1483 = vadd.f32 0.0, %v1482
    %v1484 = vpop.f32.mrf.mxu0
    %v1485 = vadd.f32 0.0, %v1484
    %1486 = vmatmul.bf16.gmra.mxu0 %v1268
    %v1487 = vpop.f32.mrf.mxu0
    %v1488 = vadd.f32 0.0, %v1487
    %v1489 = vpop.f32.mrf.mxu0
    %v1490 = vadd.f32 0.0, %v1489
    %1491 = vmatmul.bf16.gmra.mxu0 %v1271
    %v1492 = vpop.f32.mrf.mxu0
    %v1493 = vadd.f32 0.0, %v1492
    %v1494 = vpop.f32.mrf.mxu0
    %v1495 = vadd.f32 0.0, %v1494
    %1496 = vmatmul.bf16.gmra.mxu0 %v1274
    %v1497 = vpop.f32.mrf.mxu0
    %v1498 = vadd.f32 0.0, %v1497
    %v1499 = vpop.f32.mrf.mxu0
    %v1500 = vadd.f32 0.0, %v1499
    %1501 = vmatmul.bf16.gmra.mxu0 %v1277
    %v1502 = vpop.f32.mrf.mxu0
    %v1503 = vadd.f32 0.0, %v1502
    %v1504 = vpop.f32.mrf.mxu0
    %1505 = vdwg.mxu0
    %1506 = vmatpush.bf16.msra.mxu0 0
    %1507 = vmatpush.bf16.msra.mxu0 0
    %1508 = vmatpush.bf16.msra.mxu0 0
    %1509 = vmatpush.bf16.msra.mxu0 %v1292
    %1510 = vmatpush.bf16.msra.mxu0 %v1226
    %1511 = vmatpush.bf16.msra.mxu0 %v1221
    %1512 = vmatpush.bf16.msra.mxu0 %v1216
    %1513 = vmatpush.bf16.msra.mxu0 %v1211
    %1514 = vmatmul.bf16.gmra.mxu0 %v1253
    %v1515 = vpop.f32.mrf.mxu0
    %v1516 = vadd.f32 0.0, %v1515
    %v1517 = vpop.f32.mrf.mxu0
    %v1518 = vadd.f32 0.0, %v1517
    %1519 = vmatmul.bf16.gmra.mxu0 %v1256
    %v1520 = vpop.f32.mrf.mxu0
    %v1521 = vadd.f32 0.0, %v1520
    %v1522 = vpop.f32.mrf.mxu0
    %v1523 = vadd.f32 0.0, %v1522
    %1524 = vmatmul.bf16.gmra.mxu0 %v1259
    %v1525 = vpop.f32.mrf.mxu0
    %v1526 = vadd.f32 0.0, %v1525
    %v1527 = vpop.f32.mrf.mxu0
    %v1528 = vadd.f32 0.0, %v1527
    %1529 = vmatmul.bf16.gmra.mxu0 %v1262
    %v1530 = vpop.f32.mrf.mxu0
    %v1531 = vadd.f32 0.0, %v1530
    %v1532 = vpop.f32.mrf.mxu0
    %v1533 = vadd.f32 0.0, %v1532
    %1534 = vmatmul.bf16.gmra.mxu0 %v1265
    %v1535 = vpop.f32.mrf.mxu0
    %v1536 = vadd.f32 0.0, %v1535
    %v1537 = vpop.f32.mrf.mxu0
    %v1538 = vadd.f32 0.0, %v1537
    %1539 = vmatmul.bf16.gmra.mxu0 %v1268
    %v1540 = vpop.f32.mrf.mxu0
    %v1541 = vadd.f32 0.0, %v1540
    %v1542 = vpop.f32.mrf.mxu0
    %v1543 = vadd.f32 0.0, %v1542
    %1544 = vmatmul.bf16.gmra.mxu0 %v1271
    %v1545 = vpop.f32.mrf.mxu0
    %v1546 = vadd.f32 0.0, %v1545
    %v1547 = vpop.f32.mrf.mxu0
    %v1548 = vadd.f32 0.0, %v1547
    %1549 = vmatmul.bf16.gmra.mxu0 %v1274
    %v1550 = vpop.f32.mrf.mxu0
    %v1551 = vadd.f32 0.0, %v1550
    %v1552 = vpop.f32.mrf.mxu0
    %v1553 = vadd.f32 0.0, %v1552
    %1554 = vmatmul.bf16.gmra.mxu0 %v1277
    %v1555 = vpop.f32.mrf.mxu0
    %v1556 = vadd.f32 0.0, %v1555
    %v1557 = vpop.f32.mrf.mxu0
    %1558 = vdwg.mxu0
    %v1559 = vadd.f32 %v825, %v1304
    %v1560 = vadd.f32 %v878, %v1357
    %v1561 = vadd.f32 %v931, %v1410
    %v1562 = vadd.f32 %v984, %v1463
    %v1563 = vadd.f32 %v1037, %v1516
    %v1564 = vadd.f32 %v827, %v1306
    %v1565 = vadd.f32 %v880, %v1359
    %v1566 = vadd.f32 %v933, %v1412
    %v1567 = vadd.f32 %v986, %v1465
    %v1568 = vadd.f32 %v1039, %v1518
    %v1569 = vadd.f32 %v830, %v1309
    %v1570 = vadd.f32 %v883, %v1362
    %v1571 = vadd.f32 %v936, %v1415
    %v1572 = vadd.f32 %v989, %v1468
    %v1573 = vadd.f32 %v1042, %v1521
    %v1574 = vadd.f32 %v832, %v1311
    %v1575 = vadd.f32 %v885, %v1364
    %v1576 = vadd.f32 %v938, %v1417
    %v1577 = vadd.f32 %v991, %v1470
    %v1578 = vadd.f32 %v1044, %v1523
    %v1579 = vadd.f32 %v835, %v1314
    %v1580 = vadd.f32 %v888, %v1367
    %v1581 = vadd.f32 %v941, %v1420
    %v1582 = vadd.f32 %v994, %v1473
    %v1583 = vadd.f32 %v1047, %v1526
    %v1584 = vadd.f32 %v837, %v1316
    %v1585 = vadd.f32 %v890, %v1369
    %v1586 = vadd.f32 %v943, %v1422
    %v1587 = vadd.f32 %v996, %v1475
    %v1588 = vadd.f32 %v1049, %v1528
    %v1589 = vadd.f32 %v840, %v1319
    %v1590 = vadd.f32 %v893, %v1372
    %v1591 = vadd.f32 %v946, %v1425
    %v1592 = vadd.f32 %v999, %v1478
    %v1593 = vadd.f32 %v1052, %v1531
    %v1594 = vadd.f32 %v842, %v1321
    %v1595 = vadd.f32 %v895, %v1374
    %v1596 = vadd.f32 %v948, %v1427
    %v1597 = vadd.f32 %v1001, %v1480
    %v1598 = vadd.f32 %v1054, %v1533
    %v1599 = vadd.f32 %v845, %v1324
    %v1600 = vadd.f32 %v898, %v1377
    %v1601 = vadd.f32 %v951, %v1430
    %v1602 = vadd.f32 %v1004, %v1483
    %v1603 = vadd.f32 %v1057, %v1536
    %v1604 = vadd.f32 %v847, %v1326
    %v1605 = vadd.f32 %v900, %v1379
    %v1606 = vadd.f32 %v953, %v1432
    %v1607 = vadd.f32 %v1006, %v1485
    %v1608 = vadd.f32 %v1059, %v1538
    %v1609 = vadd.f32 %v850, %v1329
    %v1610 = vadd.f32 %v903, %v1382
    %v1611 = vadd.f32 %v956, %v1435
    %v1612 = vadd.f32 %v1009, %v1488
    %v1613 = vadd.f32 %v1062, %v1541
    %v1614 = vadd.f32 %v852, %v1331
    %v1615 = vadd.f32 %v905, %v1384
    %v1616 = vadd.f32 %v958, %v1437
    %v1617 = vadd.f32 %v1011, %v1490
    %v1618 = vadd.f32 %v1064, %v1543
    %v1619 = vadd.f32 %v855, %v1334
    %v1620 = vadd.f32 %v908, %v1387
    %v1621 = vadd.f32 %v961, %v1440
    %v1622 = vadd.f32 %v1014, %v1493
    %v1623 = vadd.f32 %v1067, %v1546
    %v1624 = vadd.f32 %v857, %v1336
    %v1625 = vadd.f32 %v910, %v1389
    %v1626 = vadd.f32 %v963, %v1442
    %v1627 = vadd.f32 %v1016, %v1495
    %v1628 = vadd.f32 %v1069, %v1548
    %v1629 = vadd.f32 %v860, %v1339
    %v1630 = vadd.f32 %v913, %v1392
    %v1631 = vadd.f32 %v966, %v1445
    %v1632 = vadd.f32 %v1019, %v1498
    %v1633 = vadd.f32 %v1072, %v1551
    %v1634 = vadd.f32 %v862, %v1341
    %v1635 = vadd.f32 %v915, %v1394
    %v1636 = vadd.f32 %v968, %v1447
    %v1637 = vadd.f32 %v1021, %v1500
    %v1638 = vadd.f32 %v1074, %v1553
    %v1639 = vadd.f32 %v865, %v1344
    %v1640 = vadd.f32 %v918, %v1397
    %v1641 = vadd.f32 %v971, %v1450
    %v1642 = vadd.f32 %v1024, %v1503
    %v1643 = vadd.f32 %v1077, %v1556
    %s1644 = scalar_lea.vmem [#allocation2], 540
    %v1645 = vld [vmem:[%s1644] sm:$0xff]
    %v1646 = vld [vmem:[%s1644 + $0x8] sm:$0xff]
    %v1647 = vld [vmem:[%s1644 + $0x10] sm:$0xf]
    %v1648 = vld [vmem:[%s1644 + $0x14] sm:$0xff]
    %v1649 = vld [vmem:[%s1644 + $0x1c] sm:$0xff]
    %v1650 = vld [vmem:[%s1644 + $0x24] sm:$0xf]
    %v1651 = vld [vmem:[%s1644 + $0x28] sm:$0xff]
    %v1652 = vld [vmem:[%s1644 + $0x30] sm:$0xff]
    %v1653 = vld [vmem:[%s1644 + $0x38] sm:$0xf]
    %v1654 = vld [vmem:[%s1644 + $0x3c] sm:$0xff]
    %v1655 = vld [vmem:[%s1644 + $0x44] sm:$0xff]
    %v1656 = vld [vmem:[%s1644 + $0x4c] sm:$0xf]
    %v1657 = vld [vmem:[%s1644 + $0x50] sm:$0xff]
    %v1658 = vld [vmem:[%s1644 + $0x58] sm:$0xff]
    %v1659 = vld [vmem:[%s1644 + $0x60] sm:$0xf]
    %v1660 = vld [vmem:[%s1644 + $0x64] sm:$0xff]
    %v1661 = vld [vmem:[%s1644 + $0x6c] sm:$0xff]
    %v1662 = vld [vmem:[%s1644 + $0x74] sm:$0xf]
    %v1663 = vld [vmem:[%s1644 + $0x78] sm:$0xff]
    %v1664 = vld [vmem:[%s1644 + $0x80] sm:$0xff]
    %v1665 = vld [vmem:[%s1644 + $0x88] sm:$0xf]
    %v1666 = vld [vmem:[%s1644 + $0x8c] sm:$0xff]
    %v1667 = vld [vmem:[%s1644 + $0x94] sm:$0xff]
    %v1668 = vld [vmem:[%s1644 + $0x9c] sm:$0xf]
    %v1669 = vld [vmem:[%s1644 + $0xa0] sm:$0x77]
    %v1670 = vld [vmem:[%s1644 + $0xa8] sm:$0x77]
    %v1671 = vld [vmem:[%s1644 + $0xb0] sm:$0x7]
    %vm1672 = vsmask.f32 6400
    %v1673 = vrot.slane %v168, 1
    %v1674 = vrot.slane %v170, 2
    %v1675 = vor.u32 %v1673, %v1674
    %v1676 = vrot.slane %v179, 1
    %v1677 = vrot.slane %v175, 2
    %v1678 = vor.u32 %v1676, %v1677
    %v1679 = vsel %vm1672, %v1675, %v1678
    %v1680 = vrot.slane %v187, 1
    %v1681 = vrot.slane %v183, 2
    %v1682 = vor.u32 %v1680, %v1681
    %v1683 = vsel %vm1672, %v1678, %v1682
    %v1684 = vrot.slane %v195, 1
    %v1685 = vrot.slane %v191, 2
    %v1686 = vor.u32 %v1684, %v1685
    %v1687 = vsel %vm1672, %v1682, %v1686
    %v1688 = vrot.slane %v203, 1
    %v1689 = vrot.slane %v199, 2
    %v1690 = vor.u32 %v1688, %v1689
    %v1691 = vsel %vm1672, %v1686, %v1690
    %v1692 = vrot.slane %v211, 1
    %v1693 = vrot.slane %v207, 2
    %v1694 = vor.u32 %v1692, %v1693
    %v1695 = vsel %vm1672, %v1690, %v1694
    %v1696 = vrot.slane %v219, 1
    %v1697 = vrot.slane %v215, 2
    %v1698 = vor.u32 %v1696, %v1697
    %v1699 = vsel %vm1672, %v1694, %v1698
    %v1700 = vrot.slane %v227, 1
    %v1701 = vrot.slane %v223, 2
    %v1702 = vor.u32 %v1700, %v1701
    %v1703 = vsel %vm1672, %v1698, %v1702
    %v1704 = vrot.slane %v235, 1
    %v1705 = vrot.slane %v231, 2
    %v1706 = vor.u32 %v1704, %v1705
    %v1707 = vsel %vm1672, %v1702, %v1706
    %v1735 = vunpack.c.l.b16 %v1645
    %v1736 = vunpack.c.h.b16 %v1645
    %v1737 = vunpack.c.l.b16 %v1646
    %v1738 = vunpack.c.h.b16 %v1646
    %v1739 = vunpack.c.l.b16 %v1647
    %v1740 = vunpack.c.l.b16 %v1648
    %v1741 = vunpack.c.h.b16 %v1648
    %v1742 = vunpack.c.l.b16 %v1649
    %v1743 = vunpack.c.h.b16 %v1649
    %v1744 = vunpack.c.l.b16 %v1650
    %v1745 = vunpack.c.l.b16 %v1651
    %v1746 = vunpack.c.h.b16 %v1651
    %v1747 = vunpack.c.l.b16 %v1652
    %v1748 = vunpack.c.h.b16 %v1652
    %v1749 = vunpack.c.l.b16 %v1653
    %v1750 = vunpack.c.l.b16 %v1654
    %v1751 = vunpack.c.h.b16 %v1654
    %v1752 = vunpack.c.l.b16 %v1655
    %v1753 = vunpack.c.h.b16 %v1655
    %v1754 = vunpack.c.l.b16 %v1656
    %v1755 = vunpack.c.l.b16 %v1657
    %v1756 = vunpack.c.h.b16 %v1657
    %v1757 = vunpack.c.l.b16 %v1658
    %v1758 = vunpack.c.h.b16 %v1658
    %v1759 = vunpack.c.l.b16 %v1659
    %v1760 = vunpack.c.l.b16 %v1660
    %v1761 = vunpack.c.h.b16 %v1660
    %v1762 = vunpack.c.l.b16 %v1661
    %v1763 = vunpack.c.h.b16 %v1661
    %v1764 = vunpack.c.l.b16 %v1662
    %v1765 = vunpack.c.l.b16 %v1663
    %v1766 = vunpack.c.h.b16 %v1663
    %v1767 = vunpack.c.l.b16 %v1664
    %v1768 = vunpack.c.h.b16 %v1664
    %v1769 = vunpack.c.l.b16 %v1665
    %v1770 = vunpack.c.l.b16 %v1666
    %v1771 = vunpack.c.h.b16 %v1666
    %v1772 = vunpack.c.l.b16 %v1667
    %v1773 = vunpack.c.h.b16 %v1667
    %v1774 = vunpack.c.l.b16 %v1668
    %v1775 = vunpack.c.l.b16 %v1669
    %v1776 = vunpack.c.h.b16 %v1669
    %v1777 = vunpack.c.l.b16 %v1670
    %v1778 = vunpack.c.h.b16 %v1670
    %v1779 = vunpack.c.l.b16 %v1671
    %v1780 = vpack.c.b16 %v1740, %v1735
    %v1781 = vpack.c.b16 %v1741, %v1736
    %v1782 = vpack.c.b16 %v1742, %v1737
    %v1783 = vpack.c.b16 %v1743, %v1738
    %v1784 = vpack.c.b16 %v1744, %v1739
    %v1785 = vpack.c.b16 %v1750, %v1745
    %v1786 = vpack.c.b16 %v1751, %v1746
    %v1787 = vpack.c.b16 %v1752, %v1747
    %v1788 = vpack.c.b16 %v1753, %v1748
    %v1789 = vpack.c.b16 %v1754, %v1749
    %v1790 = vpack.c.b16 %v1760, %v1755
    %v1791 = vpack.c.b16 %v1761, %v1756
    %v1792 = vpack.c.b16 %v1762, %v1757
    %v1793 = vpack.c.b16 %v1763, %v1758
    %v1794 = vpack.c.b16 %v1764, %v1759
    %v1795 = vpack.c.b16 %v1770, %v1765
    %v1796 = vpack.c.b16 %v1771, %v1766
    %v1797 = vpack.c.b16 %v1772, %v1767
    %v1798 = vpack.c.b16 %v1773, %v1768
    %v1799 = vpack.c.b16 %v1774, %v1769
    %v1800 = vpack.c.b16 %v1775, %v1775
    %v1801 = vpack.c.b16 %v1776, %v1776
    %v1802 = vpack.c.b16 %v1777, %v1777
    %v1803 = vpack.c.b16 %v1778, %v1778
    %v1804 = vpack.c.b16 %v1779, %v1779
    %v1826 = vsel %vm355, %v1679, 0
    %v1829 = vsel %vm355, %v1683, 0
    %v1832 = vsel %vm355, %v1687, 0
    %v1835 = vsel %vm355, %v1691, 0
    %v1838 = vsel %vm355, %v1695, 0
    %v1841 = vsel %vm355, %v1699, 0
    %v1844 = vsel %vm355, %v1703, 0
    %v1847 = vsel %vm355, %v1707, 0
    %v1850 = vsel %vm355, %v1706, 0
    %v1853 = vsel %vm383, %v1800, 0
    %v1856 = vsel %vm383, %v1801, 0
    %v1859 = vsel %vm383, %v1802, 0
    %v1862 = vsel %vm383, %v1803, 0
    %v1865 = vsel %vm383, %v1804, 0
    %1867 = vmatpush.bf16.msra.mxu0 0
    %1868 = vmatpush.bf16.msra.mxu0 0
    %1869 = vmatpush.bf16.msra.mxu0 0
    %1870 = vmatpush.bf16.msra.mxu0 %v1853
    %1871 = vmatpush.bf16.msra.mxu0 %v1795
    %1872 = vmatpush.bf16.msra.mxu0 %v1790
    %1873 = vmatpush.bf16.msra.mxu0 %v1785
    %1874 = vmatpush.bf16.msra.mxu0 %v1780
    %1875 = vmatmul.bf16.gmra.mxu0 %v1826
    %v1876 = vpop.f32.mrf.mxu0
    %v1877 = vadd.f32 0.0, %v1876
    %v1878 = vpop.f32.mrf.mxu0
    %v1879 = vadd.f32 0.0, %v1878
    %1880 = vmatmul.bf16.gmra.mxu0 %v1829
    %v1881 = vpop.f32.mrf.mxu0
    %v1882 = vadd.f32 0.0, %v1881
    %v1883 = vpop.f32.mrf.mxu0
    %v1884 = vadd.f32 0.0, %v1883
    %1885 = vmatmul.bf16.gmra.mxu0 %v1832
    %v1886 = vpop.f32.mrf.mxu0
    %v1887 = vadd.f32 0.0, %v1886
    %v1888 = vpop.f32.mrf.mxu0
    %v1889 = vadd.f32 0.0, %v1888
    %1890 = vmatmul.bf16.gmra.mxu0 %v1835
    %v1891 = vpop.f32.mrf.mxu0
    %v1892 = vadd.f32 0.0, %v1891
    %v1893 = vpop.f32.mrf.mxu0
    %v1894 = vadd.f32 0.0, %v1893
    %1895 = vmatmul.bf16.gmra.mxu0 %v1838
    %v1896 = vpop.f32.mrf.mxu0
    %v1897 = vadd.f32 0.0, %v1896
    %v1898 = vpop.f32.mrf.mxu0
    %v1899 = vadd.f32 0.0, %v1898
    %1900 = vmatmul.bf16.gmra.mxu0 %v1841
    %v1901 = vpop.f32.mrf.mxu0
    %v1902 = vadd.f32 0.0, %v1901
    %v1903 = vpop.f32.mrf.mxu0
    %v1904 = vadd.f32 0.0, %v1903
    %1905 = vmatmul.bf16.gmra.mxu0 %v1844
    %v1906 = vpop.f32.mrf.mxu0
    %v1907 = vadd.f32 0.0, %v1906
    %v1908 = vpop.f32.mrf.mxu0
    %v1909 = vadd.f32 0.0, %v1908
    %1910 = vmatmul.bf16.gmra.mxu0 %v1847
    %v1911 = vpop.f32.mrf.mxu0
    %v1912 = vadd.f32 0.0, %v1911
    %v1913 = vpop.f32.mrf.mxu0
    %v1914 = vadd.f32 0.0, %v1913
    %1915 = vmatmul.bf16.gmra.mxu0 %v1850
    %v1916 = vpop.f32.mrf.mxu0
    %v1917 = vadd.f32 0.0, %v1916
    %v1918 = vpop.f32.mrf.mxu0
    %1919 = vdwg.mxu0
    %1920 = vmatpush.bf16.msra.mxu0 0
    %1921 = vmatpush.bf16.msra.mxu0 0
    %1922 = vmatpush.bf16.msra.mxu0 0
    %1923 = vmatpush.bf16.msra.mxu0 %v1856
    %1924 = vmatpush.bf16.msra.mxu0 %v1796
    %1925 = vmatpush.bf16.msra.mxu0 %v1791
    %1926 = vmatpush.bf16.msra.mxu0 %v1786
    %1927 = vmatpush.bf16.msra.mxu0 %v1781
    %1928 = vmatmul.bf16.gmra.mxu0 %v1826
    %v1929 = vpop.f32.mrf.mxu0
    %v1930 = vadd.f32 0.0, %v1929
    %v1931 = vpop.f32.mrf.mxu0
    %v1932 = vadd.f32 0.0, %v1931
    %1933 = vmatmul.bf16.gmra.mxu0 %v1829
    %v1934 = vpop.f32.mrf.mxu0
    %v1935 = vadd.f32 0.0, %v1934
    %v1936 = vpop.f32.mrf.mxu0
    %v1937 = vadd.f32 0.0, %v1936
    %1938 = vmatmul.bf16.gmra.mxu0 %v1832
    %v1939 = vpop.f32.mrf.mxu0
    %v1940 = vadd.f32 0.0, %v1939
    %v1941 = vpop.f32.mrf.mxu0
    %v1942 = vadd.f32 0.0, %v1941
    %1943 = vmatmul.bf16.gmra.mxu0 %v1835
    %v1944 = vpop.f32.mrf.mxu0
    %v1945 = vadd.f32 0.0, %v1944
    %v1946 = vpop.f32.mrf.mxu0
    %v1947 = vadd.f32 0.0, %v1946
    %1948 = vmatmul.bf16.gmra.mxu0 %v1838
    %v1949 = vpop.f32.mrf.mxu0
    %v1950 = vadd.f32 0.0, %v1949
    %v1951 = vpop.f32.mrf.mxu0
    %v1952 = vadd.f32 0.0, %v1951
    %1953 = vmatmul.bf16.gmra.mxu0 %v1841
    %v1954 = vpop.f32.mrf.mxu0
    %v1955 = vadd.f32 0.0, %v1954
    %v1956 = vpop.f32.mrf.mxu0
    %v1957 = vadd.f32 0.0, %v1956
    %1958 = vmatmul.bf16.gmra.mxu0 %v1844
    %v1959 = vpop.f32.mrf.mxu0
    %v1960 = vadd.f32 0.0, %v1959
    %v1961 = vpop.f32.mrf.mxu0
    %v1962 = vadd.f32 0.0, %v1961
    %1963 = vmatmul.bf16.gmra.mxu0 %v1847
    %v1964 = vpop.f32.mrf.mxu0
    %v1965 = vadd.f32 0.0, %v1964
    %v1966 = vpop.f32.mrf.mxu0
    %v1967 = vadd.f32 0.0, %v1966
    %1968 = vmatmul.bf16.gmra.mxu0 %v1850
    %v1969 = vpop.f32.mrf.mxu0
    %v1970 = vadd.f32 0.0, %v1969
    %v1971 = vpop.f32.mrf.mxu0
    %1972 = vdwg.mxu0
    %1973 = vmatpush.bf16.msra.mxu0 0
    %1974 = vmatpush.bf16.msra.mxu0 0
    %1975 = vmatpush.bf16.msra.mxu0 0
    %1976 = vmatpush.bf16.msra.mxu0 %v1859
    %1977 = vmatpush.bf16.msra.mxu0 %v1797
    %1978 = vmatpush.bf16.msra.mxu0 %v1792
    %1979 = vmatpush.bf16.msra.mxu0 %v1787
    %1980 = vmatpush.bf16.msra.mxu0 %v1782
    %1981 = vmatmul.bf16.gmra.mxu0 %v1826
    %v1982 = vpop.f32.mrf.mxu0
    %v1983 = vadd.f32 0.0, %v1982
    %v1984 = vpop.f32.mrf.mxu0
    %v1985 = vadd.f32 0.0, %v1984
    %1986 = vmatmul.bf16.gmra.mxu0 %v1829
    %v1987 = vpop.f32.mrf.mxu0
    %v1988 = vadd.f32 0.0, %v1987
    %v1989 = vpop.f32.mrf.mxu0
    %v1990 = vadd.f32 0.0, %v1989
    %1991 = vmatmul.bf16.gmra.mxu0 %v1832
    %v1992 = vpop.f32.mrf.mxu0
    %v1993 = vadd.f32 0.0, %v1992
    %v1994 = vpop.f32.mrf.mxu0
    %v1995 = vadd.f32 0.0, %v1994
    %1996 = vmatmul.bf16.gmra.mxu0 %v1835
    %v1997 = vpop.f32.mrf.mxu0
    %v1998 = vadd.f32 0.0, %v1997
    %v1999 = vpop.f32.mrf.mxu0
    %v2000 = vadd.f32 0.0, %v1999
    %2001 = vmatmul.bf16.gmra.mxu0 %v1838
    %v2002 = vpop.f32.mrf.mxu0
    %v2003 = vadd.f32 0.0, %v2002
    %v2004 = vpop.f32.mrf.mxu0
    %v2005 = vadd.f32 0.0, %v2004
    %2006 = vmatmul.bf16.gmra.mxu0 %v1841
    %v2007 = vpop.f32.mrf.mxu0
    %v2008 = vadd.f32 0.0, %v2007
    %v2009 = vpop.f32.mrf.mxu0
    %v2010 = vadd.f32 0.0, %v2009
    %2011 = vmatmul.bf16.gmra.mxu0 %v1844
    %v2012 = vpop.f32.mrf.mxu0
    %v2013 = vadd.f32 0.0, %v2012
    %v2014 = vpop.f32.mrf.mxu0
    %v2015 = vadd.f32 0.0, %v2014
    %2016 = vmatmul.bf16.gmra.mxu0 %v1847
    %v2017 = vpop.f32.mrf.mxu0
    %v2018 = vadd.f32 0.0, %v2017
    %v2019 = vpop.f32.mrf.mxu0
    %v2020 = vadd.f32 0.0, %v2019
    %2021 = vmatmul.bf16.gmra.mxu0 %v1850
    %v2022 = vpop.f32.mrf.mxu0
    %v2023 = vadd.f32 0.0, %v2022
    %v2024 = vpop.f32.mrf.mxu0
    %2025 = vdwg.mxu0
    %2026 = vmatpush.bf16.msra.mxu0 0
    %2027 = vmatpush.bf16.msra.mxu0 0
    %2028 = vmatpush.bf16.msra.mxu0 0
    %2029 = vmatpush.bf16.msra.mxu0 %v1862
    %2030 = vmatpush.bf16.msra.mxu0 %v1798
    %2031 = vmatpush.bf16.msra.mxu0 %v1793
    %2032 = vmatpush.bf16.msra.mxu0 %v1788
    %2033 = vmatpush.bf16.msra.mxu0 %v1783
    %2034 = vmatmul.bf16.gmra.mxu0 %v1826
    %v2035 = vpop.f32.mrf.mxu0
    %v2036 = vadd.f32 0.0, %v2035
    %v2037 = vpop.f32.mrf.mxu0
    %v2038 = vadd.f32 0.0, %v2037
    %2039 = vmatmul.bf16.gmra.mxu0 %v1829
    %v2040 = vpop.f32.mrf.mxu0
    %v2041 = vadd.f32 0.0, %v2040
    %v2042 = vpop.f32.mrf.mxu0
    %v2043 = vadd.f32 0.0, %v2042
    %2044 = vmatmul.bf16.gmra.mxu0 %v1832
    %v2045 = vpop.f32.mrf.mxu0
    %v2046 = vadd.f32 0.0, %v2045
    %v2047 = vpop.f32.mrf.mxu0
    %v2048 = vadd.f32 0.0, %v2047
    %2049 = vmatmul.bf16.gmra.mxu0 %v1835
    %v2050 = vpop.f32.mrf.mxu0
    %v2051 = vadd.f32 0.0, %v2050
    %v2052 = vpop.f32.mrf.mxu0
    %v2053 = vadd.f32 0.0, %v2052
    %2054 = vmatmul.bf16.gmra.mxu0 %v1838
    %v2055 = vpop.f32.mrf.mxu0
    %v2056 = vadd.f32 0.0, %v2055
    %v2057 = vpop.f32.mrf.mxu0
    %v2058 = vadd.f32 0.0, %v2057
    %2059 = vmatmul.bf16.gmra.mxu0 %v1841
    %v2060 = vpop.f32.mrf.mxu0
    %v2061 = vadd.f32 0.0, %v2060
    %v2062 = vpop.f32.mrf.mxu0
    %v2063 = vadd.f32 0.0, %v2062
    %2064 = vmatmul.bf16.gmra.mxu0 %v1844
    %v2065 = vpop.f32.mrf.mxu0
    %v2066 = vadd.f32 0.0, %v2065
    %v2067 = vpop.f32.mrf.mxu0
    %v2068 = vadd.f32 0.0, %v2067
    %2069 = vmatmul.bf16.gmra.mxu0 %v1847
    %v2070 = vpop.f32.mrf.mxu0
    %v2071 = vadd.f32 0.0, %v2070
    %v2072 = vpop.f32.mrf.mxu0
    %v2073 = vadd.f32 0.0, %v2072
    %2074 = vmatmul.bf16.gmra.mxu0 %v1850
    %v2075 = vpop.f32.mrf.mxu0
    %v2076 = vadd.f32 0.0, %v2075
    %v2077 = vpop.f32.mrf.mxu0
    %2078 = vdwg.mxu0
    %2079 = vmatpush.bf16.msra.mxu0 0
    %2080 = vmatpush.bf16.msra.mxu0 0
    %2081 = vmatpush.bf16.msra.mxu0 0
    %2082 = vmatpush.bf16.msra.mxu0 %v1865
    %2083 = vmatpush.bf16.msra.mxu0 %v1799
    %2084 = vmatpush.bf16.msra.mxu0 %v1794
    %2085 = vmatpush.bf16.msra.mxu0 %v1789
    %2086 = vmatpush.bf16.msra.mxu0 %v1784
    %2087 = vmatmul.bf16.gmra.mxu0 %v1826
    %v2088 = vpop.f32.mrf.mxu0
    %v2089 = vadd.f32 0.0, %v2088
    %v2090 = vpop.f32.mrf.mxu0
    %v2091 = vadd.f32 0.0, %v2090
    %2092 = vmatmul.bf16.gmra.mxu0 %v1829
    %v2093 = vpop.f32.mrf.mxu0
    %v2094 = vadd.f32 0.0, %v2093
    %v2095 = vpop.f32.mrf.mxu0
    %v2096 = vadd.f32 0.0, %v2095
    %2097 = vmatmul.bf16.gmra.mxu0 %v1832
    %v2098 = vpop.f32.mrf.mxu0
    %v2099 = vadd.f32 0.0, %v2098
    %v2100 = vpop.f32.mrf.mxu0
    %v2101 = vadd.f32 0.0, %v2100
    %2102 = vmatmul.bf16.gmra.mxu0 %v1835
    %v2103 = vpop.f32.mrf.mxu0
    %v2104 = vadd.f32 0.0, %v2103
    %v2105 = vpop.f32.mrf.mxu0
    %v2106 = vadd.f32 0.0, %v2105
    %2107 = vmatmul.bf16.gmra.mxu0 %v1838
    %v2108 = vpop.f32.mrf.mxu0
    %v2109 = vadd.f32 0.0, %v2108
    %v2110 = vpop.f32.mrf.mxu0
    %v2111 = vadd.f32 0.0, %v2110
    %2112 = vmatmul.bf16.gmra.mxu0 %v1841
    %v2113 = vpop.f32.mrf.mxu0
    %v2114 = vadd.f32 0.0, %v2113
    %v2115 = vpop.f32.mrf.mxu0
    %v2116 = vadd.f32 0.0, %v2115
    %2117 = vmatmul.bf16.gmra.mxu0 %v1844
    %v2118 = vpop.f32.mrf.mxu0
    %v2119 = vadd.f32 0.0, %v2118
    %v2120 = vpop.f32.mrf.mxu0
    %v2121 = vadd.f32 0.0, %v2120
    %2122 = vmatmul.bf16.gmra.mxu0 %v1847
    %v2123 = vpop.f32.mrf.mxu0
    %v2124 = vadd.f32 0.0, %v2123
    %v2125 = vpop.f32.mrf.mxu0
    %v2126 = vadd.f32 0.0, %v2125
    %2127 = vmatmul.bf16.gmra.mxu0 %v1850
    %v2128 = vpop.f32.mrf.mxu0
    %v2129 = vadd.f32 0.0, %v2128
    %v2130 = vpop.f32.mrf.mxu0
    %2131 = vdwg.mxu0
    %v2132 = vadd.f32 %v1559, %v1877
    %v2133 = vadd.f32 %v1560, %v1930
    %v2134 = vadd.f32 %v1561, %v1983
    %v2135 = vadd.f32 %v1562, %v2036
    %v2136 = vadd.f32 %v1563, %v2089
    %v2137 = vadd.f32 %v1564, %v1879
    %v2138 = vadd.f32 %v1565, %v1932
    %v2139 = vadd.f32 %v1566, %v1985
    %v2140 = vadd.f32 %v1567, %v2038
    %v2141 = vadd.f32 %v1568, %v2091
    %v2142 = vadd.f32 %v1569, %v1882
    %v2143 = vadd.f32 %v1570, %v1935
    %v2144 = vadd.f32 %v1571, %v1988
    %v2145 = vadd.f32 %v1572, %v2041
    %v2146 = vadd.f32 %v1573, %v2094
    %v2147 = vadd.f32 %v1574, %v1884
    %v2148 = vadd.f32 %v1575, %v1937
    %v2149 = vadd.f32 %v1576, %v1990
    %v2150 = vadd.f32 %v1577, %v2043
    %v2151 = vadd.f32 %v1578, %v2096
    %v2152 = vadd.f32 %v1579, %v1887
    %v2153 = vadd.f32 %v1580, %v1940
    %v2154 = vadd.f32 %v1581, %v1993
    %v2155 = vadd.f32 %v1582, %v2046
    %v2156 = vadd.f32 %v1583, %v2099
    %v2157 = vadd.f32 %v1584, %v1889
    %v2158 = vadd.f32 %v1585, %v1942
    %v2159 = vadd.f32 %v1586, %v1995
    %v2160 = vadd.f32 %v1587, %v2048
    %v2161 = vadd.f32 %v1588, %v2101
    %v2162 = vadd.f32 %v1589, %v1892
    %v2163 = vadd.f32 %v1590, %v1945
    %v2164 = vadd.f32 %v1591, %v1998
    %v2165 = vadd.f32 %v1592, %v2051
    %v2166 = vadd.f32 %v1593, %v2104
    %v2167 = vadd.f32 %v1594, %v1894
    %v2168 = vadd.f32 %v1595, %v1947
    %v2169 = vadd.f32 %v1596, %v2000
    %v2170 = vadd.f32 %v1597, %v2053
    %v2171 = vadd.f32 %v1598, %v2106
    %v2172 = vadd.f32 %v1599, %v1897
    %v2173 = vadd.f32 %v1600, %v1950
    %v2174 = vadd.f32 %v1601, %v2003
    %v2175 = vadd.f32 %v1602, %v2056
    %v2176 = vadd.f32 %v1603, %v2109
    %v2177 = vadd.f32 %v1604, %v1899
    %v2178 = vadd.f32 %v1605, %v1952
    %v2179 = vadd.f32 %v1606, %v2005
    %v2180 = vadd.f32 %v1607, %v2058
    %v2181 = vadd.f32 %v1608, %v2111
    %v2182 = vadd.f32 %v1609, %v1902
    %v2183 = vadd.f32 %v1610, %v1955
    %v2184 = vadd.f32 %v1611, %v2008
    %v2185 = vadd.f32 %v1612, %v2061
    %v2186 = vadd.f32 %v1613, %v2114
    %v2187 = vadd.f32 %v1614, %v1904
    %v2188 = vadd.f32 %v1615, %v1957
    %v2189 = vadd.f32 %v1616, %v2010
    %v2190 = vadd.f32 %v1617, %v2063
    %v2191 = vadd.f32 %v1618, %v2116
    %v2192 = vadd.f32 %v1619, %v1907
    %v2193 = vadd.f32 %v1620, %v1960
    %v2194 = vadd.f32 %v1621, %v2013
    %v2195 = vadd.f32 %v1622, %v2066
    %v2196 = vadd.f32 %v1623, %v2119
    %v2197 = vadd.f32 %v1624, %v1909
    %v2198 = vadd.f32 %v1625, %v1962
    %v2199 = vadd.f32 %v1626, %v2015
    %v2200 = vadd.f32 %v1627, %v2068
    %v2201 = vadd.f32 %v1628, %v2121
    %v2202 = vadd.f32 %v1629, %v1912
    %v2203 = vadd.f32 %v1630, %v1965
    %v2204 = vadd.f32 %v1631, %v2018
    %v2205 = vadd.f32 %v1632, %v2071
    %v2206 = vadd.f32 %v1633, %v2124
    %v2207 = vadd.f32 %v1634, %v1914
    %v2208 = vadd.f32 %v1635, %v1967
    %v2209 = vadd.f32 %v1636, %v2020
    %v2210 = vadd.f32 %v1637, %v2073
    %v2211 = vadd.f32 %v1638, %v2126
    %v2212 = vadd.f32 %v1639, %v1917
    %v2213 = vadd.f32 %v1640, %v1970
    %v2214 = vadd.f32 %v1641, %v2023
    %v2215 = vadd.f32 %v1642, %v2076
    %v2216 = vadd.f32 %v1643, %v2129
    %s2217 = scalar_lea.vmem [#allocation2], 720
    %v2218 = vld [vmem:[%s2217] sm:$0xff]
    %v2219 = vld [vmem:[%s2217 + $0x8] sm:$0xff]
    %v2220 = vld [vmem:[%s2217 + $0x10] sm:$0xf]
    %v2221 = vld [vmem:[%s2217 + $0x14] sm:$0xff]
    %v2222 = vld [vmem:[%s2217 + $0x1c] sm:$0xff]
    %v2223 = vld [vmem:[%s2217 + $0x24] sm:$0xf]
    %v2224 = vld [vmem:[%s2217 + $0x28] sm:$0xff]
    %v2225 = vld [vmem:[%s2217 + $0x30] sm:$0xff]
    %v2226 = vld [vmem:[%s2217 + $0x38] sm:$0xf]
    %v2227 = vld [vmem:[%s2217 + $0x3c] sm:$0xff]
    %v2228 = vld [vmem:[%s2217 + $0x44] sm:$0xff]
    %v2229 = vld [vmem:[%s2217 + $0x4c] sm:$0xf]
    %v2230 = vld [vmem:[%s2217 + $0x50] sm:$0xff]
    %v2231 = vld [vmem:[%s2217 + $0x58] sm:$0xff]
    %v2232 = vld [vmem:[%s2217 + $0x60] sm:$0xf]
    %v2233 = vld [vmem:[%s2217 + $0x64] sm:$0xff]
    %v2234 = vld [vmem:[%s2217 + $0x6c] sm:$0xff]
    %v2235 = vld [vmem:[%s2217 + $0x74] sm:$0xf]
    %v2236 = vld [vmem:[%s2217 + $0x78] sm:$0xff]
    %v2237 = vld [vmem:[%s2217 + $0x80] sm:$0xff]
    %v2238 = vld [vmem:[%s2217 + $0x88] sm:$0xf]
    %v2239 = vld [vmem:[%s2217 + $0x8c] sm:$0xff]
    %v2240 = vld [vmem:[%s2217 + $0x94] sm:$0xff]
    %v2241 = vld [vmem:[%s2217 + $0x9c] sm:$0xf]
    %v2242 = vld [vmem:[%s2217 + $0xa0] sm:$0x77]
    %v2243 = vld [vmem:[%s2217 + $0xa8] sm:$0x77]
    %v2244 = vld [vmem:[%s2217 + $0xb0] sm:$0x7]
    %vm2245 = vcmask 1045504
    %v2246 = vrot.slane %v101, 2
    %v2247 = vrot.slane %v102, 2
    %v2248 = vsel %vm2245, %v2246, %v2247
    %v2249 = vrot.slane %v103, 2
    %v2250 = vsel %vm2245, %v2247, %v2249
    %v2251 = vrot.slane %v104, 2
    %v2252 = vsel %vm2245, %v2249, %v2251
    %v2253 = vrot.slane %v105, 2
    %v2254 = vsel %vm2245, %v2251, %v2253
    %v2255 = vrot.slane %v106, 2
    %v2256 = vsel %vm2245, %v2253, %v2255
    %v2257 = vrot.slane %v107, 2
    %v2258 = vsel %vm2245, %v2255, %v2257
    %v2259 = vrot.slane %v108, 2
    %v2260 = vsel %vm2245, %v2257, %v2259
    %v2261 = vrot.slane %v137, 2
    %v2262 = vsel %vm2245, %v2259, %v2261
    %v2290 = vunpack.c.l.b16 %v2218
    %v2291 = vunpack.c.h.b16 %v2218
    %v2292 = vunpack.c.l.b16 %v2219
    %v2293 = vunpack.c.h.b16 %v2219
    %v2294 = vunpack.c.l.b16 %v2220
    %v2295 = vunpack.c.l.b16 %v2221
    %v2296 = vunpack.c.h.b16 %v2221
    %v2297 = vunpack.c.l.b16 %v2222
    %v2298 = vunpack.c.h.b16 %v2222
    %v2299 = vunpack.c.l.b16 %v2223
    %v2300 = vunpack.c.l.b16 %v2224
    %v2301 = vunpack.c.h.b16 %v2224
    %v2302 = vunpack.c.l.b16 %v2225
    %v2303 = vunpack.c.h.b16 %v2225
    %v2304 = vunpack.c.l.b16 %v2226
    %v2305 = vunpack.c.l.b16 %v2227
    %v2306 = vunpack.c.h.b16 %v2227
    %v2307 = vunpack.c.l.b16 %v2228
    %v2308 = vunpack.c.h.b16 %v2228
    %v2309 = vunpack.c.l.b16 %v2229
    %v2310 = vunpack.c.l.b16 %v2230
    %v2311 = vunpack.c.h.b16 %v2230
    %v2312 = vunpack.c.l.b16 %v2231
    %v2313 = vunpack.c.h.b16 %v2231
    %v2314 = vunpack.c.l.b16 %v2232
    %v2315 = vunpack.c.l.b16 %v2233
    %v2316 = vunpack.c.h.b16 %v2233
    %v2317 = vunpack.c.l.b16 %v2234
    %v2318 = vunpack.c.h.b16 %v2234
    %v2319 = vunpack.c.l.b16 %v2235
    %v2320 = vunpack.c.l.b16 %v2236
    %v2321 = vunpack.c.h.b16 %v2236
    %v2322 = vunpack.c.l.b16 %v2237
    %v2323 = vunpack.c.h.b16 %v2237
    %v2324 = vunpack.c.l.b16 %v2238
    %v2325 = vunpack.c.l.b16 %v2239
    %v2326 = vunpack.c.h.b16 %v2239
    %v2327 = vunpack.c.l.b16 %v2240
    %v2328 = vunpack.c.h.b16 %v2240
    %v2329 = vunpack.c.l.b16 %v2241
    %v2330 = vunpack.c.l.b16 %v2242
    %v2331 = vunpack.c.h.b16 %v2242
    %v2332 = vunpack.c.l.b16 %v2243
    %v2333 = vunpack.c.h.b16 %v2243
    %v2334 = vunpack.c.l.b16 %v2244
    %v2335 = vpack.c.b16 %v2295, %v2290
    %v2336 = vpack.c.b16 %v2296, %v2291
    %v2337 = vpack.c.b16 %v2297, %v2292
    %v2338 = vpack.c.b16 %v2298, %v2293
    %v2339 = vpack.c.b16 %v2299, %v2294
    %v2340 = vpack.c.b16 %v2305, %v2300
    %v2341 = vpack.c.b16 %v2306, %v2301
    %v2342 = vpack.c.b16 %v2307, %v2302
    %v2343 = vpack.c.b16 %v2308, %v2303
    %v2344 = vpack.c.b16 %v2309, %v2304
    %v2345 = vpack.c.b16 %v2315, %v2310
    %v2346 = vpack.c.b16 %v2316, %v2311
    %v2347 = vpack.c.b16 %v2317, %v2312
    %v2348 = vpack.c.b16 %v2318, %v2313
    %v2349 = vpack.c.b16 %v2319, %v2314
    %v2350 = vpack.c.b16 %v2325, %v2320
    %v2351 = vpack.c.b16 %v2326, %v2321
    %v2352 = vpack.c.b16 %v2327, %v2322
    %v2353 = vpack.c.b16 %v2328, %v2323
    %v2354 = vpack.c.b16 %v2329, %v2324
    %v2355 = vpack.c.b16 %v2330, %v2330
    %v2356 = vpack.c.b16 %v2331, %v2331
    %v2357 = vpack.c.b16 %v2332, %v2332
    %v2358 = vpack.c.b16 %v2333, %v2333
    %v2359 = vpack.c.b16 %v2334, %v2334
    %v2381 = vsel %vm355, %v2248, 0
    %v2384 = vsel %vm355, %v2250, 0
    %v2387 = vsel %vm355, %v2252, 0
    %v2390 = vsel %vm355, %v2254, 0
    %v2393 = vsel %vm355, %v2256, 0
    %v2396 = vsel %vm355, %v2258, 0
    %v2399 = vsel %vm355, %v2260, 0
    %v2402 = vsel %vm355, %v2262, 0
    %v2405 = vsel %vm355, %v2261, 0
    %v2408 = vsel %vm383, %v2355, 0
    %v2411 = vsel %vm383, %v2356, 0
    %v2414 = vsel %vm383, %v2357, 0
    %v2417 = vsel %vm383, %v2358, 0
    %v2420 = vsel %vm383, %v2359, 0
    %2422 = vmatpush.bf16.msra.mxu0 0
    %2423 = vmatpush.bf16.msra.mxu0 0
    %2424 = vmatpush.bf16.msra.mxu0 0
    %2425 = vmatpush.bf16.msra.mxu0 %v2408
    %2426 = vmatpush.bf16.msra.mxu0 %v2350
    %2427 = vmatpush.bf16.msra.mxu0 %v2345
    %2428 = vmatpush.bf16.msra.mxu0 %v2340
    %2429 = vmatpush.bf16.msra.mxu0 %v2335
    %2430 = vmatmul.bf16.gmra.mxu0 %v2381
    %v2431 = vpop.f32.mrf.mxu0
    %v2432 = vadd.f32 0.0, %v2431
    %v2433 = vpop.f32.mrf.mxu0
    %v2434 = vadd.f32 0.0, %v2433
    %2435 = vmatmul.bf16.gmra.mxu0 %v2384
    %v2436 = vpop.f32.mrf.mxu0
    %v2437 = vadd.f32 0.0, %v2436
    %v2438 = vpop.f32.mrf.mxu0
    %v2439 = vadd.f32 0.0, %v2438
    %2440 = vmatmul.bf16.gmra.mxu0 %v2387
    %v2441 = vpop.f32.mrf.mxu0
    %v2442 = vadd.f32 0.0, %v2441
    %v2443 = vpop.f32.mrf.mxu0
    %v2444 = vadd.f32 0.0, %v2443
    %2445 = vmatmul.bf16.gmra.mxu0 %v2390
    %v2446 = vpop.f32.mrf.mxu0
    %v2447 = vadd.f32 0.0, %v2446
    %v2448 = vpop.f32.mrf.mxu0
    %v2449 = vadd.f32 0.0, %v2448
    %2450 = vmatmul.bf16.gmra.mxu0 %v2393
    %v2451 = vpop.f32.mrf.mxu0
    %v2452 = vadd.f32 0.0, %v2451
    %v2453 = vpop.f32.mrf.mxu0
    %v2454 = vadd.f32 0.0, %v2453
    %2455 = vmatmul.bf16.gmra.mxu0 %v2396
    %v2456 = vpop.f32.mrf.mxu0
    %v2457 = vadd.f32 0.0, %v2456
    %v2458 = vpop.f32.mrf.mxu0
    %v2459 = vadd.f32 0.0, %v2458
    %2460 = vmatmul.bf16.gmra.mxu0 %v2399
    %v2461 = vpop.f32.mrf.mxu0
    %v2462 = vadd.f32 0.0, %v2461
    %v2463 = vpop.f32.mrf.mxu0
    %v2464 = vadd.f32 0.0, %v2463
    %2465 = vmatmul.bf16.gmra.mxu0 %v2402
    %v2466 = vpop.f32.mrf.mxu0
    %v2467 = vadd.f32 0.0, %v2466
    %v2468 = vpop.f32.mrf.mxu0
    %v2469 = vadd.f32 0.0, %v2468
    %2470 = vmatmul.bf16.gmra.mxu0 %v2405
    %v2471 = vpop.f32.mrf.mxu0
    %v2472 = vadd.f32 0.0, %v2471
    %v2473 = vpop.f32.mrf.mxu0
    %2474 = vdwg.mxu0
    %2475 = vmatpush.bf16.msra.mxu0 0
    %2476 = vmatpush.bf16.msra.mxu0 0
    %2477 = vmatpush.bf16.msra.mxu0 0
    %2478 = vmatpush.bf16.msra.mxu0 %v2411
    %2479 = vmatpush.bf16.msra.mxu0 %v2351
    %2480 = vmatpush.bf16.msra.mxu0 %v2346
    %2481 = vmatpush.bf16.msra.mxu0 %v2341
    %2482 = vmatpush.bf16.msra.mxu0 %v2336
    %2483 = vmatmul.bf16.gmra.mxu0 %v2381
    %v2484 = vpop.f32.mrf.mxu0
    %v2485 = vadd.f32 0.0, %v2484
    %v2486 = vpop.f32.mrf.mxu0
    %v2487 = vadd.f32 0.0, %v2486
    %2488 = vmatmul.bf16.gmra.mxu0 %v2384
    %v2489 = vpop.f32.mrf.mxu0
    %v2490 = vadd.f32 0.0, %v2489
    %v2491 = vpop.f32.mrf.mxu0
    %v2492 = vadd.f32 0.0, %v2491
    %2493 = vmatmul.bf16.gmra.mxu0 %v2387
    %v2494 = vpop.f32.mrf.mxu0
    %v2495 = vadd.f32 0.0, %v2494
    %v2496 = vpop.f32.mrf.mxu0
    %v2497 = vadd.f32 0.0, %v2496
    %2498 = vmatmul.bf16.gmra.mxu0 %v2390
    %v2499 = vpop.f32.mrf.mxu0
    %v2500 = vadd.f32 0.0, %v2499
    %v2501 = vpop.f32.mrf.mxu0
    %v2502 = vadd.f32 0.0, %v2501
    %2503 = vmatmul.bf16.gmra.mxu0 %v2393
    %v2504 = vpop.f32.mrf.mxu0
    %v2505 = vadd.f32 0.0, %v2504
    %v2506 = vpop.f32.mrf.mxu0
    %v2507 = vadd.f32 0.0, %v2506
    %2508 = vmatmul.bf16.gmra.mxu0 %v2396
    %v2509 = vpop.f32.mrf.mxu0
    %v2510 = vadd.f32 0.0, %v2509
    %v2511 = vpop.f32.mrf.mxu0
    %v2512 = vadd.f32 0.0, %v2511
    %2513 = vmatmul.bf16.gmra.mxu0 %v2399
    %v2514 = vpop.f32.mrf.mxu0
    %v2515 = vadd.f32 0.0, %v2514
    %v2516 = vpop.f32.mrf.mxu0
    %v2517 = vadd.f32 0.0, %v2516
    %2518 = vmatmul.bf16.gmra.mxu0 %v2402
    %v2519 = vpop.f32.mrf.mxu0
    %v2520 = vadd.f32 0.0, %v2519
    %v2521 = vpop.f32.mrf.mxu0
    %v2522 = vadd.f32 0.0, %v2521
    %2523 = vmatmul.bf16.gmra.mxu0 %v2405
    %v2524 = vpop.f32.mrf.mxu0
    %v2525 = vadd.f32 0.0, %v2524
    %v2526 = vpop.f32.mrf.mxu0
    %2527 = vdwg.mxu0
    %2528 = vmatpush.bf16.msra.mxu0 0
    %2529 = vmatpush.bf16.msra.mxu0 0
    %2530 = vmatpush.bf16.msra.mxu0 0
    %2531 = vmatpush.bf16.msra.mxu0 %v2414
    %2532 = vmatpush.bf16.msra.mxu0 %v2352
    %2533 = vmatpush.bf16.msra.mxu0 %v2347
    %2534 = vmatpush.bf16.msra.mxu0 %v2342
    %2535 = vmatpush.bf16.msra.mxu0 %v2337
    %2536 = vmatmul.bf16.gmra.mxu0 %v2381
    %v2537 = vpop.f32.mrf.mxu0
    %v2538 = vadd.f32 0.0, %v2537
    %v2539 = vpop.f32.mrf.mxu0
    %v2540 = vadd.f32 0.0, %v2539
    %2541 = vmatmul.bf16.gmra.mxu0 %v2384
    %v2542 = vpop.f32.mrf.mxu0
    %v2543 = vadd.f32 0.0, %v2542
    %v2544 = vpop.f32.mrf.mxu0
    %v2545 = vadd.f32 0.0, %v2544
    %2546 = vmatmul.bf16.gmra.mxu0 %v2387
    %v2547 = vpop.f32.mrf.mxu0
    %v2548 = vadd.f32 0.0, %v2547
    %v2549 = vpop.f32.mrf.mxu0
    %v2550 = vadd.f32 0.0, %v2549
    %2551 = vmatmul.bf16.gmra.mxu0 %v2390
    %v2552 = vpop.f32.mrf.mxu0
    %v2553 = vadd.f32 0.0, %v2552
    %v2554 = vpop.f32.mrf.mxu0
    %v2555 = vadd.f32 0.0, %v2554
    %2556 = vmatmul.bf16.gmra.mxu0 %v2393
    %v2557 = vpop.f32.mrf.mxu0
    %v2558 = vadd.f32 0.0, %v2557
    %v2559 = vpop.f32.mrf.mxu0
    %v2560 = vadd.f32 0.0, %v2559
    %2561 = vmatmul.bf16.gmra.mxu0 %v2396
    %v2562 = vpop.f32.mrf.mxu0
    %v2563 = vadd.f32 0.0, %v2562
    %v2564 = vpop.f32.mrf.mxu0
    %v2565 = vadd.f32 0.0, %v2564
    %2566 = vmatmul.bf16.gmra.mxu0 %v2399
    %v2567 = vpop.f32.mrf.mxu0
    %v2568 = vadd.f32 0.0, %v2567
    %v2569 = vpop.f32.mrf.mxu0
    %v2570 = vadd.f32 0.0, %v2569
    %2571 = vmatmul.bf16.gmra.mxu0 %v2402
    %v2572 = vpop.f32.mrf.mxu0
    %v2573 = vadd.f32 0.0, %v2572
    %v2574 = vpop.f32.mrf.mxu0
    %v2575 = vadd.f32 0.0, %v2574
    %2576 = vmatmul.bf16.gmra.mxu0 %v2405
    %v2577 = vpop.f32.mrf.mxu0
    %v2578 = vadd.f32 0.0, %v2577
    %v2579 = vpop.f32.mrf.mxu0
    %2580 = vdwg.mxu0
    %2581 = vmatpush.bf16.msra.mxu0 0
    %2582 = vmatpush.bf16.msra.mxu0 0
    %2583 = vmatpush.bf16.msra.mxu0 0
    %2584 = vmatpush.bf16.msra.mxu0 %v2417
    %2585 = vmatpush.bf16.msra.mxu0 %v2353
    %2586 = vmatpush.bf16.msra.mxu0 %v2348
    %2587 = vmatpush.bf16.msra.mxu0 %v2343
    %2588 = vmatpush.bf16.msra.mxu0 %v2338
    %2589 = vmatmul.bf16.gmra.mxu0 %v2381
    %v2590 = vpop.f32.mrf.mxu0
    %v2591 = vadd.f32 0.0, %v2590
    %v2592 = vpop.f32.mrf.mxu0
    %v2593 = vadd.f32 0.0, %v2592
    %2594 = vmatmul.bf16.gmra.mxu0 %v2384
    %v2595 = vpop.f32.mrf.mxu0
    %v2596 = vadd.f32 0.0, %v2595
    %v2597 = vpop.f32.mrf.mxu0
    %v2598 = vadd.f32 0.0, %v2597
    %2599 = vmatmul.bf16.gmra.mxu0 %v2387
    %v2600 = vpop.f32.mrf.mxu0
    %v2601 = vadd.f32 0.0, %v2600
    %v2602 = vpop.f32.mrf.mxu0
    %v2603 = vadd.f32 0.0, %v2602
    %2604 = vmatmul.bf16.gmra.mxu0 %v2390
    %v2605 = vpop.f32.mrf.mxu0
    %v2606 = vadd.f32 0.0, %v2605
    %v2607 = vpop.f32.mrf.mxu0
    %v2608 = vadd.f32 0.0, %v2607
    %2609 = vmatmul.bf16.gmra.mxu0 %v2393
    %v2610 = vpop.f32.mrf.mxu0
    %v2611 = vadd.f32 0.0, %v2610
    %v2612 = vpop.f32.mrf.mxu0
    %v2613 = vadd.f32 0.0, %v2612
    %2614 = vmatmul.bf16.gmra.mxu0 %v2396
    %v2615 = vpop.f32.mrf.mxu0
    %v2616 = vadd.f32 0.0, %v2615
    %v2617 = vpop.f32.mrf.mxu0
    %v2618 = vadd.f32 0.0, %v2617
    %2619 = vmatmul.bf16.gmra.mxu0 %v2399
    %v2620 = vpop.f32.mrf.mxu0
    %v2621 = vadd.f32 0.0, %v2620
    %v2622 = vpop.f32.mrf.mxu0
    %v2623 = vadd.f32 0.0, %v2622
    %2624 = vmatmul.bf16.gmra.mxu0 %v2402
    %v2625 = vpop.f32.mrf.mxu0
    %v2626 = vadd.f32 0.0, %v2625
    %v2627 = vpop.f32.mrf.mxu0
    %v2628 = vadd.f32 0.0, %v2627
    %2629 = vmatmul.bf16.gmra.mxu0 %v2405
    %v2630 = vpop.f32.mrf.mxu0
    %v2631 = vadd.f32 0.0, %v2630
    %v2632 = vpop.f32.mrf.mxu0
    %2633 = vdwg.mxu0
    %2634 = vmatpush.bf16.msra.mxu0 0
    %2635 = vmatpush.bf16.msra.mxu0 0
    %2636 = vmatpush.bf16.msra.mxu0 0
    %2637 = vmatpush.bf16.msra.mxu0 %v2420
    %2638 = vmatpush.bf16.msra.mxu0 %v2354
    %2639 = vmatpush.bf16.msra.mxu0 %v2349
    %2640 = vmatpush.bf16.msra.mxu0 %v2344
    %2641 = vmatpush.bf16.msra.mxu0 %v2339
    %2642 = vmatmul.bf16.gmra.mxu0 %v2381
    %v2643 = vpop.f32.mrf.mxu0
    %v2644 = vadd.f32 0.0, %v2643
    %v2645 = vpop.f32.mrf.mxu0
    %v2646 = vadd.f32 0.0, %v2645
    %2647 = vmatmul.bf16.gmra.mxu0 %v2384
    %v2648 = vpop.f32.mrf.mxu0
    %v2649 = vadd.f32 0.0, %v2648
    %v2650 = vpop.f32.mrf.mxu0
    %v2651 = vadd.f32 0.0, %v2650
    %2652 = vmatmul.bf16.gmra.mxu0 %v2387
    %v2653 = vpop.f32.mrf.mxu0
    %v2654 = vadd.f32 0.0, %v2653
    %v2655 = vpop.f32.mrf.mxu0
    %v2656 = vadd.f32 0.0, %v2655
    %2657 = vmatmul.bf16.gmra.mxu0 %v2390
    %v2658 = vpop.f32.mrf.mxu0
    %v2659 = vadd.f32 0.0, %v2658
    %v2660 = vpop.f32.mrf.mxu0
    %v2661 = vadd.f32 0.0, %v2660
    %2662 = vmatmul.bf16.gmra.mxu0 %v2393
    %v2663 = vpop.f32.mrf.mxu0
    %v2664 = vadd.f32 0.0, %v2663
    %v2665 = vpop.f32.mrf.mxu0
    %v2666 = vadd.f32 0.0, %v2665
    %2667 = vmatmul.bf16.gmra.mxu0 %v2396
    %v2668 = vpop.f32.mrf.mxu0
    %v2669 = vadd.f32 0.0, %v2668
    %v2670 = vpop.f32.mrf.mxu0
    %v2671 = vadd.f32 0.0, %v2670
    %2672 = vmatmul.bf16.gmra.mxu0 %v2399
    %v2673 = vpop.f32.mrf.mxu0
    %v2674 = vadd.f32 0.0, %v2673
    %v2675 = vpop.f32.mrf.mxu0
    %v2676 = vadd.f32 0.0, %v2675
    %2677 = vmatmul.bf16.gmra.mxu0 %v2402
    %v2678 = vpop.f32.mrf.mxu0
    %v2679 = vadd.f32 0.0, %v2678
    %v2680 = vpop.f32.mrf.mxu0
    %v2681 = vadd.f32 0.0, %v2680
    %2682 = vmatmul.bf16.gmra.mxu0 %v2405
    %v2683 = vpop.f32.mrf.mxu0
    %v2684 = vadd.f32 0.0, %v2683
    %v2685 = vpop.f32.mrf.mxu0
    %2686 = vdwg.mxu0
    %v2687 = vadd.f32 %v2132, %v2432
    %v2688 = vadd.f32 %v2133, %v2485
    %v2689 = vadd.f32 %v2134, %v2538
    %v2690 = vadd.f32 %v2135, %v2591
    %v2691 = vadd.f32 %v2136, %v2644
    %v2692 = vadd.f32 %v2137, %v2434
    %v2693 = vadd.f32 %v2138, %v2487
    %v2694 = vadd.f32 %v2139, %v2540
    %v2695 = vadd.f32 %v2140, %v2593
    %v2696 = vadd.f32 %v2141, %v2646
    %v2697 = vadd.f32 %v2142, %v2437
    %v2698 = vadd.f32 %v2143, %v2490
    %v2699 = vadd.f32 %v2144, %v2543
    %v2700 = vadd.f32 %v2145, %v2596
    %v2701 = vadd.f32 %v2146, %v2649
    %v2702 = vadd.f32 %v2147, %v2439
    %v2703 = vadd.f32 %v2148, %v2492
    %v2704 = vadd.f32 %v2149, %v2545
    %v2705 = vadd.f32 %v2150, %v2598
    %v2706 = vadd.f32 %v2151, %v2651
    %v2707 = vadd.f32 %v2152, %v2442
    %v2708 = vadd.f32 %v2153, %v2495
    %v2709 = vadd.f32 %v2154, %v2548
    %v2710 = vadd.f32 %v2155, %v2601
    %v2711 = vadd.f32 %v2156, %v2654
    %v2712 = vadd.f32 %v2157, %v2444
    %v2713 = vadd.f32 %v2158, %v2497
    %v2714 = vadd.f32 %v2159, %v2550
    %v2715 = vadd.f32 %v2160, %v2603
    %v2716 = vadd.f32 %v2161, %v2656
    %v2717 = vadd.f32 %v2162, %v2447
    %v2718 = vadd.f32 %v2163, %v2500
    %v2719 = vadd.f32 %v2164, %v2553
    %v2720 = vadd.f32 %v2165, %v2606
    %v2721 = vadd.f32 %v2166, %v2659
    %v2722 = vadd.f32 %v2167, %v2449
    %v2723 = vadd.f32 %v2168, %v2502
    %v2724 = vadd.f32 %v2169, %v2555
    %v2725 = vadd.f32 %v2170, %v2608
    %v2726 = vadd.f32 %v2171, %v2661
    %v2727 = vadd.f32 %v2172, %v2452
    %v2728 = vadd.f32 %v2173, %v2505
    %v2729 = vadd.f32 %v2174, %v2558
    %v2730 = vadd.f32 %v2175, %v2611
    %v2731 = vadd.f32 %v2176, %v2664
    %v2732 = vadd.f32 %v2177, %v2454
    %v2733 = vadd.f32 %v2178, %v2507
    %v2734 = vadd.f32 %v2179, %v2560
    %v2735 = vadd.f32 %v2180, %v2613
    %v2736 = vadd.f32 %v2181, %v2666
    %v2737 = vadd.f32 %v2182, %v2457
    %v2738 = vadd.f32 %v2183, %v2510
    %v2739 = vadd.f32 %v2184, %v2563
    %v2740 = vadd.f32 %v2185, %v2616
    %v2741 = vadd.f32 %v2186, %v2669
    %v2742 = vadd.f32 %v2187, %v2459
    %v2743 = vadd.f32 %v2188, %v2512
    %v2744 = vadd.f32 %v2189, %v2565
    %v2745 = vadd.f32 %v2190, %v2618
    %v2746 = vadd.f32 %v2191, %v2671
    %v2747 = vadd.f32 %v2192, %v2462
    %v2748 = vadd.f32 %v2193, %v2515
    %v2749 = vadd.f32 %v2194, %v2568
    %v2750 = vadd.f32 %v2195, %v2621
    %v2751 = vadd.f32 %v2196, %v2674
    %v2752 = vadd.f32 %v2197, %v2464
    %v2753 = vadd.f32 %v2198, %v2517
    %v2754 = vadd.f32 %v2199, %v2570
    %v2755 = vadd.f32 %v2200, %v2623
    %v2756 = vadd.f32 %v2201, %v2676
    %v2757 = vadd.f32 %v2202, %v2467
    %v2758 = vadd.f32 %v2203, %v2520
    %v2759 = vadd.f32 %v2204, %v2573
    %v2760 = vadd.f32 %v2205, %v2626
    %v2761 = vadd.f32 %v2206, %v2679
    %v2762 = vadd.f32 %v2207, %v2469
    %v2763 = vadd.f32 %v2208, %v2522
    %v2764 = vadd.f32 %v2209, %v2575
    %v2765 = vadd.f32 %v2210, %v2628
    %v2766 = vadd.f32 %v2211, %v2681
    %v2767 = vadd.f32 %v2212, %v2472
    %v2768 = vadd.f32 %v2213, %v2525
    %v2769 = vadd.f32 %v2214, %v2578
    %v2770 = vadd.f32 %v2215, %v2631
    %v2771 = vadd.f32 %v2216, %v2684
    %v2772 = vld [vmem:[%s2] sm:$0x1f]
    %v2774 = vperm.slane %v2772, 0
    %v2775 = vperm.slane %v2772, 1
    %v2776 = vperm.slane %v2772, 2
    %v2777 = vperm.slane %v2772, 3
    %v2778 = vperm.slane %v2772, 4
    %v2784 = vadd.f32 %v2687, %v2774
    %v2785 = vadd.f32 %v2688, %v2775
    %v2786 = vadd.f32 %v2689, %v2776
    %v2787 = vadd.f32 %v2690, %v2777
    %v2788 = vadd.f32 %v2691, %v2778
    %v2789 = vadd.f32 %v2692, %v2774
    %v2790 = vadd.f32 %v2693, %v2775
    %v2791 = vadd.f32 %v2694, %v2776
    %v2792 = vadd.f32 %v2695, %v2777
    %v2793 = vadd.f32 %v2696, %v2778
    %v2794 = vadd.f32 %v2697, %v2774
    %v2795 = vadd.f32 %v2698, %v2775
    %v2796 = vadd.f32 %v2699, %v2776
    %v2797 = vadd.f32 %v2700, %v2777
    %v2798 = vadd.f32 %v2701, %v2778
    %v2799 = vadd.f32 %v2702, %v2774
    %v2800 = vadd.f32 %v2703, %v2775
    %v2801 = vadd.f32 %v2704, %v2776
    %v2802 = vadd.f32 %v2705, %v2777
    %v2803 = vadd.f32 %v2706, %v2778
    %v2804 = vadd.f32 %v2707, %v2774
    %v2805 = vadd.f32 %v2708, %v2775
    %v2806 = vadd.f32 %v2709, %v2776
    %v2807 = vadd.f32 %v2710, %v2777
    %v2808 = vadd.f32 %v2711, %v2778
    %v2809 = vadd.f32 %v2712, %v2774
    %v2810 = vadd.f32 %v2713, %v2775
    %v2811 = vadd.f32 %v2714, %v2776
    %v2812 = vadd.f32 %v2715, %v2777
    %v2813 = vadd.f32 %v2716, %v2778
    %v2814 = vadd.f32 %v2717, %v2774
    %v2815 = vadd.f32 %v2718, %v2775
    %v2816 = vadd.f32 %v2719, %v2776
    %v2817 = vadd.f32 %v2720, %v2777
    %v2818 = vadd.f32 %v2721, %v2778
    %v2819 = vadd.f32 %v2722, %v2774
    %v2820 = vadd.f32 %v2723, %v2775
    %v2821 = vadd.f32 %v2724, %v2776
    %v2822 = vadd.f32 %v2725, %v2777
    %v2823 = vadd.f32 %v2726, %v2778
    %v2824 = vadd.f32 %v2727, %v2774
    %v2825 = vadd.f32 %v2728, %v2775
    %v2826 = vadd.f32 %v2729, %v2776
    %v2827 = vadd.f32 %v2730, %v2777
    %v2828 = vadd.f32 %v2731, %v2778
    %v2829 = vadd.f32 %v2732, %v2774
    %v2830 = vadd.f32 %v2733, %v2775
    %v2831 = vadd.f32 %v2734, %v2776
    %v2832 = vadd.f32 %v2735, %v2777
    %v2833 = vadd.f32 %v2736, %v2778
    %v2834 = vadd.f32 %v2737, %v2774
    %v2835 = vadd.f32 %v2738, %v2775
    %v2836 = vadd.f32 %v2739, %v2776
    %v2837 = vadd.f32 %v2740, %v2777
    %v2838 = vadd.f32 %v2741, %v2778
    %v2839 = vadd.f32 %v2742, %v2774
    %v2840 = vadd.f32 %v2743, %v2775
    %v2841 = vadd.f32 %v2744, %v2776
    %v2842 = vadd.f32 %v2745, %v2777
    %v2843 = vadd.f32 %v2746, %v2778
    %v2844 = vadd.f32 %v2747, %v2774
    %v2845 = vadd.f32 %v2748, %v2775
    %v2846 = vadd.f32 %v2749, %v2776
    %v2847 = vadd.f32 %v2750, %v2777
    %v2848 = vadd.f32 %v2751, %v2778
    %v2849 = vadd.f32 %v2752, %v2774
    %v2850 = vadd.f32 %v2753, %v2775
    %v2851 = vadd.f32 %v2754, %v2776
    %v2852 = vadd.f32 %v2755, %v2777
    %v2853 = vadd.f32 %v2756, %v2778
    %v2854 = vadd.f32 %v2757, %v2774
    %v2855 = vadd.f32 %v2758, %v2775
    %v2856 = vadd.f32 %v2759, %v2776
    %v2857 = vadd.f32 %v2760, %v2777
    %v2858 = vadd.f32 %v2761, %v2778
    %v2859 = vadd.f32 %v2762, %v2774
    %v2860 = vadd.f32 %v2763, %v2775
    %v2861 = vadd.f32 %v2764, %v2776
    %v2862 = vadd.f32 %v2765, %v2777
    %v2863 = vadd.f32 %v2766, %v2778
    %v2864 = vadd.f32 %v2767, %v2774
    %v2865 = vadd.f32 %v2768, %v2775
    %v2866 = vadd.f32 %v2769, %v2776
    %v2867 = vadd.f32 %v2770, %v2777
    %v2868 = vadd.f32 %v2771, %v2778
    %v2869 = vmax.f32 %v2784, 0.0
    %v2870 = vmax.f32 %v2785, 0.0
    %v2871 = vmax.f32 %v2786, 0.0
    %v2872 = vmax.f32 %v2787, 0.0
    %v2873 = vmax.f32 %v2788, 0.0
    %v2874 = vmax.f32 %v2789, 0.0
    %v2875 = vmax.f32 %v2790, 0.0
    %v2876 = vmax.f32 %v2791, 0.0
    %v2877 = vmax.f32 %v2792, 0.0
    %v2878 = vmax.f32 %v2793, 0.0
    %v2879 = vmax.f32 %v2794, 0.0
    %v2880 = vmax.f32 %v2795, 0.0
    %v2881 = vmax.f32 %v2796, 0.0
    %v2882 = vmax.f32 %v2797, 0.0
    %v2883 = vmax.f32 %v2798, 0.0
    %v2884 = vmax.f32 %v2799, 0.0
    %v2885 = vmax.f32 %v2800, 0.0
    %v2886 = vmax.f32 %v2801, 0.0
    %v2887 = vmax.f32 %v2802, 0.0
    %v2888 = vmax.f32 %v2803, 0.0
    %v2889 = vmax.f32 %v2804, 0.0
    %v2890 = vmax.f32 %v2805, 0.0
    %v2891 = vmax.f32 %v2806, 0.0
    %v2892 = vmax.f32 %v2807, 0.0
    %v2893 = vmax.f32 %v2808, 0.0
    %v2894 = vmax.f32 %v2809, 0.0
    %v2895 = vmax.f32 %v2810, 0.0
    %v2896 = vmax.f32 %v2811, 0.0
    %v2897 = vmax.f32 %v2812, 0.0
    %v2898 = vmax.f32 %v2813, 0.0
    %v2899 = vmax.f32 %v2814, 0.0
    %v2900 = vmax.f32 %v2815, 0.0
    %v2901 = vmax.f32 %v2816, 0.0
    %v2902 = vmax.f32 %v2817, 0.0
    %v2903 = vmax.f32 %v2818, 0.0
    %v2904 = vmax.f32 %v2819, 0.0
    %v2905 = vmax.f32 %v2820, 0.0
    %v2906 = vmax.f32 %v2821, 0.0
    %v2907 = vmax.f32 %v2822, 0.0
    %v2908 = vmax.f32 %v2823, 0.0
    %v2909 = vmax.f32 %v2824, 0.0
    %v2910 = vmax.f32 %v2825, 0.0
    %v2911 = vmax.f32 %v2826, 0.0
    %v2912 = vmax.f32 %v2827, 0.0
    %v2913 = vmax.f32 %v2828, 0.0
    %v2914 = vmax.f32 %v2829, 0.0
    %v2915 = vmax.f32 %v2830, 0.0
    %v2916 = vmax.f32 %v2831, 0.0
    %v2917 = vmax.f32 %v2832, 0.0
    %v2918 = vmax.f32 %v2833, 0.0
    %v2919 = vmax.f32 %v2834, 0.0
    %v2920 = vmax.f32 %v2835, 0.0
    %v2921 = vmax.f32 %v2836, 0.0
    %v2922 = vmax.f32 %v2837, 0.0
    %v2923 = vmax.f32 %v2838, 0.0
    %v2924 = vmax.f32 %v2839, 0.0
    %v2925 = vmax.f32 %v2840, 0.0
    %v2926 = vmax.f32 %v2841, 0.0
    %v2927 = vmax.f32 %v2842, 0.0
    %v2928 = vmax.f32 %v2843, 0.0
    %v2929 = vmax.f32 %v2844, 0.0
    %v2930 = vmax.f32 %v2845, 0.0
    %v2931 = vmax.f32 %v2846, 0.0
    %v2932 = vmax.f32 %v2847, 0.0
    %v2933 = vmax.f32 %v2848, 0.0
    %v2934 = vmax.f32 %v2849, 0.0
    %v2935 = vmax.f32 %v2850, 0.0
    %v2936 = vmax.f32 %v2851, 0.0
    %v2937 = vmax.f32 %v2852, 0.0
    %v2938 = vmax.f32 %v2853, 0.0
    %v2939 = vmax.f32 %v2854, 0.0
    %v2940 = vmax.f32 %v2855, 0.0
    %v2941 = vmax.f32 %v2856, 0.0
    %v2942 = vmax.f32 %v2857, 0.0
    %v2943 = vmax.f32 %v2858, 0.0
    %v2944 = vmax.f32 %v2859, 0.0
    %v2945 = vmax.f32 %v2860, 0.0
    %v2946 = vmax.f32 %v2861, 0.0
    %v2947 = vmax.f32 %v2862, 0.0
    %v2948 = vmax.f32 %v2863, 0.0
    %v2949 = vmax.f32 %v2864, 0.0
    %v2950 = vmax.f32 %v2865, 0.0
    %v2951 = vmax.f32 %v2866, 0.0
    %v2952 = vmax.f32 %v2867, 0.0
    %v2953 = vmax.f32 %v2868, 0.0
    %3039 = vrot.lane.b32.xlu0 %v2869, 127
    %v3040 = vpop.permute.xlu0 %3039
    %3041 = vrot.lane.b32.xlu0 %v2870, 127
    %v3042 = vpop.permute.xlu0 %3041
    %3043 = vrot.lane.b32.xlu0 %v2871, 127
    %v3044 = vpop.permute.xlu0 %3043
    %3045 = vrot.lane.b32.xlu0 %v2872, 127
    %v3046 = vpop.permute.xlu0 %3045
    %3047 = vrot.lane.b32.xlu0 %v2873, 127
    %v3048 = vpop.permute.xlu0 %3047
    %3049 = vrot.lane.b32.xlu0 %v2874, 127
    %v3050 = vpop.permute.xlu0 %3049
    %3051 = vrot.lane.b32.xlu0 %v2875, 127
    %v3052 = vpop.permute.xlu0 %3051
    %3053 = vrot.lane.b32.xlu0 %v2876, 127
    %v3054 = vpop.permute.xlu0 %3053
    %3055 = vrot.lane.b32.xlu0 %v2877, 127
    %v3056 = vpop.permute.xlu0 %3055
    %3057 = vrot.lane.b32.xlu0 %v2878, 127
    %v3058 = vpop.permute.xlu0 %3057
    %3059 = vrot.lane.b32.xlu0 %v2879, 127
    %v3060 = vpop.permute.xlu0 %3059
    %3061 = vrot.lane.b32.xlu0 %v2880, 127
    %v3062 = vpop.permute.xlu0 %3061
    %3063 = vrot.lane.b32.xlu0 %v2881, 127
    %v3064 = vpop.permute.xlu0 %3063
    %3065 = vrot.lane.b32.xlu0 %v2882, 127
    %v3066 = vpop.permute.xlu0 %3065
    %3067 = vrot.lane.b32.xlu0 %v2883, 127
    %v3068 = vpop.permute.xlu0 %3067
    %3069 = vrot.lane.b32.xlu0 %v2884, 127
    %v3070 = vpop.permute.xlu0 %3069
    %3071 = vrot.lane.b32.xlu0 %v2885, 127
    %v3072 = vpop.permute.xlu0 %3071
    %3073 = vrot.lane.b32.xlu0 %v2886, 127
    %v3074 = vpop.permute.xlu0 %3073
    %3075 = vrot.lane.b32.xlu0 %v2887, 127
    %v3076 = vpop.permute.xlu0 %3075
    %3077 = vrot.lane.b32.xlu0 %v2888, 127
    %v3078 = vpop.permute.xlu0 %3077
    %3079 = vrot.lane.b32.xlu0 %v2889, 127
    %v3080 = vpop.permute.xlu0 %3079
    %3081 = vrot.lane.b32.xlu0 %v2890, 127
    %v3082 = vpop.permute.xlu0 %3081
    %3083 = vrot.lane.b32.xlu0 %v2891, 127
    %v3084 = vpop.permute.xlu0 %3083
    %3085 = vrot.lane.b32.xlu0 %v2892, 127
    %v3086 = vpop.permute.xlu0 %3085
    %3087 = vrot.lane.b32.xlu0 %v2893, 127
    %v3088 = vpop.permute.xlu0 %3087
    %3089 = vrot.lane.b32.xlu0 %v2894, 127
    %v3090 = vpop.permute.xlu0 %3089
    %3091 = vrot.lane.b32.xlu0 %v2895, 127
    %v3092 = vpop.permute.xlu0 %3091
    %3093 = vrot.lane.b32.xlu0 %v2896, 127
    %v3094 = vpop.permute.xlu0 %3093
    %3095 = vrot.lane.b32.xlu0 %v2897, 127
    %v3096 = vpop.permute.xlu0 %3095
    %3097 = vrot.lane.b32.xlu0 %v2898, 127
    %v3098 = vpop.permute.xlu0 %3097
    %3099 = vrot.lane.b32.xlu0 %v2899, 127
    %v3100 = vpop.permute.xlu0 %3099
    %3101 = vrot.lane.b32.xlu0 %v2900, 127
    %v3102 = vpop.permute.xlu0 %3101
    %3103 = vrot.lane.b32.xlu0 %v2901, 127
    %v3104 = vpop.permute.xlu0 %3103
    %3105 = vrot.lane.b32.xlu0 %v2902, 127
    %v3106 = vpop.permute.xlu0 %3105
    %3107 = vrot.lane.b32.xlu0 %v2903, 127
    %v3108 = vpop.permute.xlu0 %3107
    %3109 = vrot.lane.b32.xlu0 %v2904, 127
    %v3110 = vpop.permute.xlu0 %3109
    %3111 = vrot.lane.b32.xlu0 %v2905, 127
    %v3112 = vpop.permute.xlu0 %3111
    %3113 = vrot.lane.b32.xlu0 %v2906, 127
    %v3114 = vpop.permute.xlu0 %3113
    %3115 = vrot.lane.b32.xlu0 %v2907, 127
    %v3116 = vpop.permute.xlu0 %3115
    %3117 = vrot.lane.b32.xlu0 %v2908, 127
    %v3118 = vpop.permute.xlu0 %3117
    %3119 = vrot.lane.b32.xlu0 %v2909, 127
    %v3120 = vpop.permute.xlu0 %3119
    %3121 = vrot.lane.b32.xlu0 %v2910, 127
    %v3122 = vpop.permute.xlu0 %3121
    %3123 = vrot.lane.b32.xlu0 %v2911, 127
    %v3124 = vpop.permute.xlu0 %3123
    %3125 = vrot.lane.b32.xlu0 %v2912, 127
    %v3126 = vpop.permute.xlu0 %3125
    %3127 = vrot.lane.b32.xlu0 %v2913, 127
    %v3128 = vpop.permute.xlu0 %3127
    %3129 = vrot.lane.b32.xlu0 %v2914, 127
    %v3130 = vpop.permute.xlu0 %3129
    %3131 = vrot.lane.b32.xlu0 %v2915, 127
    %v3132 = vpop.permute.xlu0 %3131
    %3133 = vrot.lane.b32.xlu0 %v2916, 127
    %v3134 = vpop.permute.xlu0 %3133
    %3135 = vrot.lane.b32.xlu0 %v2917, 127
    %v3136 = vpop.permute.xlu0 %3135
    %3137 = vrot.lane.b32.xlu0 %v2918, 127
    %v3138 = vpop.permute.xlu0 %3137
    %3139 = vrot.lane.b32.xlu0 %v2919, 127
    %v3140 = vpop.permute.xlu0 %3139
    %3141 = vrot.lane.b32.xlu0 %v2920, 127
    %v3142 = vpop.permute.xlu0 %3141
    %3143 = vrot.lane.b32.xlu0 %v2921, 127
    %v3144 = vpop.permute.xlu0 %3143
    %3145 = vrot.lane.b32.xlu0 %v2922, 127
    %v3146 = vpop.permute.xlu0 %3145
    %3147 = vrot.lane.b32.xlu0 %v2923, 127
    %v3148 = vpop.permute.xlu0 %3147
    %3149 = vrot.lane.b32.xlu0 %v2924, 127
    %v3150 = vpop.permute.xlu0 %3149
    %3151 = vrot.lane.b32.xlu0 %v2925, 127
    %v3152 = vpop.permute.xlu0 %3151
    %3153 = vrot.lane.b32.xlu0 %v2926, 127
    %v3154 = vpop.permute.xlu0 %3153
    %3155 = vrot.lane.b32.xlu0 %v2927, 127
    %v3156 = vpop.permute.xlu0 %3155
    %3157 = vrot.lane.b32.xlu0 %v2928, 127
    %v3158 = vpop.permute.xlu0 %3157
    %3159 = vrot.lane.b32.xlu0 %v2929, 127
    %v3160 = vpop.permute.xlu0 %3159
    %3161 = vrot.lane.b32.xlu0 %v2930, 127
    %v3162 = vpop.permute.xlu0 %3161
    %3163 = vrot.lane.b32.xlu0 %v2931, 127
    %v3164 = vpop.permute.xlu0 %3163
    %3165 = vrot.lane.b32.xlu0 %v2932, 127
    %v3166 = vpop.permute.xlu0 %3165
    %3167 = vrot.lane.b32.xlu0 %v2933, 127
    %v3168 = vpop.permute.xlu0 %3167
    %3169 = vrot.lane.b32.xlu0 %v2934, 127
    %v3170 = vpop.permute.xlu0 %3169
    %3171 = vrot.lane.b32.xlu0 %v2935, 127
    %v3172 = vpop.permute.xlu0 %3171
    %3173 = vrot.lane.b32.xlu0 %v2936, 127
    %v3174 = vpop.permute.xlu0 %3173
    %3175 = vrot.lane.b32.xlu0 %v2937, 127
    %v3176 = vpop.permute.xlu0 %3175
    %3177 = vrot.lane.b32.xlu0 %v2938, 127
    %v3178 = vpop.permute.xlu0 %3177
    %3179 = vrot.lane.b32.xlu0 %v2939, 127
    %v3180 = vpop.permute.xlu0 %3179
    %3181 = vrot.lane.b32.xlu0 %v2940, 127
    %v3182 = vpop.permute.xlu0 %3181
    %3183 = vrot.lane.b32.xlu0 %v2941, 127
    %v3184 = vpop.permute.xlu0 %3183
    %3185 = vrot.lane.b32.xlu0 %v2942, 127
    %v3186 = vpop.permute.xlu0 %3185
    %3187 = vrot.lane.b32.xlu0 %v2943, 127
    %v3188 = vpop.permute.xlu0 %3187
    %3189 = vrot.lane.b32.xlu0 %v2944, 127
    %v3190 = vpop.permute.xlu0 %3189
    %3191 = vrot.lane.b32.xlu0 %v2945, 127
    %v3192 = vpop.permute.xlu0 %3191
    %3193 = vrot.lane.b32.xlu0 %v2946, 127
    %v3194 = vpop.permute.xlu0 %3193
    %3195 = vrot.lane.b32.xlu0 %v2947, 127
    %v3196 = vpop.permute.xlu0 %3195
    %3197 = vrot.lane.b32.xlu0 %v2948, 127
    %v3198 = vpop.permute.xlu0 %3197
    %3199 = vrot.lane.b32.xlu0 %v2949, 127
    %v3200 = vpop.permute.xlu0 %3199
    %3201 = vrot.lane.b32.xlu0 %v2950, 127
    %v3202 = vpop.permute.xlu0 %3201
    %3203 = vrot.lane.b32.xlu0 %v2951, 127
    %v3204 = vpop.permute.xlu0 %3203
    %3205 = vrot.lane.b32.xlu0 %v2952, 127
    %v3206 = vpop.permute.xlu0 %3205
    %3207 = vrot.lane.b32.xlu0 %v2953, 127
    %v3208 = vpop.permute.xlu0 %3207
    %vm3209 = vcmask 1039360
    %v3210 = vsel %vm3209, %v3040, %v3042
    %v3211 = vsel %vm3209, %v3042, %v3044
    %v3212 = vsel %vm3209, %v3044, %v3046
    %v3213 = vsel %vm3209, %v3046, %v3048
    %v3214 = vsel %vm3209, %v3050, %v3052
    %v3215 = vsel %vm3209, %v3052, %v3054
    %v3216 = vsel %vm3209, %v3054, %v3056
    %v3217 = vsel %vm3209, %v3056, %v3058
    %v3218 = vsel %vm3209, %v3060, %v3062
    %v3219 = vsel %vm3209, %v3062, %v3064
    %v3220 = vsel %vm3209, %v3064, %v3066
    %v3221 = vsel %vm3209, %v3066, %v3068
    %v3222 = vsel %vm3209, %v3070, %v3072
    %v3223 = vsel %vm3209, %v3072, %v3074
    %v3224 = vsel %vm3209, %v3074, %v3076
    %v3225 = vsel %vm3209, %v3076, %v3078
    %v3226 = vsel %vm3209, %v3080, %v3082
    %v3227 = vsel %vm3209, %v3082, %v3084
    %v3228 = vsel %vm3209, %v3084, %v3086
    %v3229 = vsel %vm3209, %v3086, %v3088
    %v3230 = vsel %vm3209, %v3090, %v3092
    %v3231 = vsel %vm3209, %v3092, %v3094
    %v3232 = vsel %vm3209, %v3094, %v3096
    %v3233 = vsel %vm3209, %v3096, %v3098
    %v3234 = vsel %vm3209, %v3100, %v3102
    %v3235 = vsel %vm3209, %v3102, %v3104
    %v3236 = vsel %vm3209, %v3104, %v3106
    %v3237 = vsel %vm3209, %v3106, %v3108
    %v3238 = vsel %vm3209, %v3110, %v3112
    %v3239 = vsel %vm3209, %v3112, %v3114
    %v3240 = vsel %vm3209, %v3114, %v3116
    %v3241 = vsel %vm3209, %v3116, %v3118
    %v3242 = vsel %vm3209, %v3120, %v3122
    %v3243 = vsel %vm3209, %v3122, %v3124
    %v3244 = vsel %vm3209, %v3124, %v3126
    %v3245 = vsel %vm3209, %v3126, %v3128
    %v3246 = vsel %vm3209, %v3130, %v3132
    %v3247 = vsel %vm3209, %v3132, %v3134
    %v3248 = vsel %vm3209, %v3134, %v3136
    %v3249 = vsel %vm3209, %v3136, %v3138
    %v3250 = vsel %vm3209, %v3140, %v3142
    %v3251 = vsel %vm3209, %v3142, %v3144
    %v3252 = vsel %vm3209, %v3144, %v3146
    %v3253 = vsel %vm3209, %v3146, %v3148
    %v3254 = vsel %vm3209, %v3150, %v3152
    %v3255 = vsel %vm3209, %v3152, %v3154
    %v3256 = vsel %vm3209, %v3154, %v3156
    %v3257 = vsel %vm3209, %v3156, %v3158
    %v3258 = vsel %vm3209, %v3160, %v3162
    %v3259 = vsel %vm3209, %v3162, %v3164
    %v3260 = vsel %vm3209, %v3164, %v3166
    %v3261 = vsel %vm3209, %v3166, %v3168
    %v3262 = vsel %vm3209, %v3170, %v3172
    %v3263 = vsel %vm3209, %v3172, %v3174
    %v3264 = vsel %vm3209, %v3174, %v3176
    %v3265 = vsel %vm3209, %v3176, %v3178
    %v3266 = vsel %vm3209, %v3180, %v3182
    %v3267 = vsel %vm3209, %v3182, %v3184
    %v3268 = vsel %vm3209, %v3184, %v3186
    %v3269 = vsel %vm3209, %v3186, %v3188
    %v3270 = vsel %vm3209, %v3190, %v3192
    %v3271 = vsel %vm3209, %v3192, %v3194
    %v3272 = vsel %vm3209, %v3194, %v3196
    %v3273 = vsel %vm3209, %v3196, %v3198
    %v3274 = vsel %vm3209, %v3200, %v3202
    %v3275 = vsel %vm3209, %v3202, %v3204
    %v3276 = vsel %vm3209, %v3204, %v3206
    %v3277 = vsel %vm3209, %v3206, %v3208
    %v3363 = vmax.f32 %v2869, %v3210
    %v3364 = vmax.f32 %v2870, %v3211
    %v3365 = vmax.f32 %v2871, %v3212
    %v3366 = vmax.f32 %v2872, %v3213
    %v3367 = vmax.f32 %v2873, %v3048
    %v3368 = vmax.f32 %v2874, %v3214
    %v3369 = vmax.f32 %v2875, %v3215
    %v3370 = vmax.f32 %v2876, %v3216
    %v3371 = vmax.f32 %v2877, %v3217
    %v3372 = vmax.f32 %v2878, %v3058
    %v3373 = vmax.f32 %v2879, %v3218
    %v3374 = vmax.f32 %v2880, %v3219
    %v3375 = vmax.f32 %v2881, %v3220
    %v3376 = vmax.f32 %v2882, %v3221
    %v3377 = vmax.f32 %v2883, %v3068
    %v3378 = vmax.f32 %v2884, %v3222
    %v3379 = vmax.f32 %v2885, %v3223
    %v3380 = vmax.f32 %v2886, %v3224
    %v3381 = vmax.f32 %v2887, %v3225
    %v3382 = vmax.f32 %v2888, %v3078
    %v3383 = vmax.f32 %v2889, %v3226
    %v3384 = vmax.f32 %v2890, %v3227
    %v3385 = vmax.f32 %v2891, %v3228
    %v3386 = vmax.f32 %v2892, %v3229
    %v3387 = vmax.f32 %v2893, %v3088
    %v3388 = vmax.f32 %v2894, %v3230
    %v3389 = vmax.f32 %v2895, %v3231
    %v3390 = vmax.f32 %v2896, %v3232
    %v3391 = vmax.f32 %v2897, %v3233
    %v3392 = vmax.f32 %v2898, %v3098
    %v3393 = vmax.f32 %v2899, %v3234
    %v3394 = vmax.f32 %v2900, %v3235
    %v3395 = vmax.f32 %v2901, %v3236
    %v3396 = vmax.f32 %v2902, %v3237
    %v3397 = vmax.f32 %v2903, %v3108
    %v3398 = vmax.f32 %v2904, %v3238
    %v3399 = vmax.f32 %v2905, %v3239
    %v3400 = vmax.f32 %v2906, %v3240
    %v3401 = vmax.f32 %v2907, %v3241
    %v3402 = vmax.f32 %v2908, %v3118
    %v3403 = vmax.f32 %v2909, %v3242
    %v3404 = vmax.f32 %v2910, %v3243
    %v3405 = vmax.f32 %v2911, %v3244
    %v3406 = vmax.f32 %v2912, %v3245
    %v3407 = vmax.f32 %v2913, %v3128
    %v3408 = vmax.f32 %v2914, %v3246
    %v3409 = vmax.f32 %v2915, %v3247
    %v3410 = vmax.f32 %v2916, %v3248
    %v3411 = vmax.f32 %v2917, %v3249
    %v3412 = vmax.f32 %v2918, %v3138
    %v3413 = vmax.f32 %v2919, %v3250
    %v3414 = vmax.f32 %v2920, %v3251
    %v3415 = vmax.f32 %v2921, %v3252
    %v3416 = vmax.f32 %v2922, %v3253
    %v3417 = vmax.f32 %v2923, %v3148
    %v3418 = vmax.f32 %v2924, %v3254
    %v3419 = vmax.f32 %v2925, %v3255
    %v3420 = vmax.f32 %v2926, %v3256
    %v3421 = vmax.f32 %v2927, %v3257
    %v3422 = vmax.f32 %v2928, %v3158
    %v3423 = vmax.f32 %v2929, %v3258
    %v3424 = vmax.f32 %v2930, %v3259
    %v3425 = vmax.f32 %v2931, %v3260
    %v3426 = vmax.f32 %v2932, %v3261
    %v3427 = vmax.f32 %v2933, %v3168
    %v3428 = vmax.f32 %v2934, %v3262
    %v3429 = vmax.f32 %v2935, %v3263
    %v3430 = vmax.f32 %v2936, %v3264
    %v3431 = vmax.f32 %v2937, %v3265
    %v3432 = vmax.f32 %v2938, %v3178
    %v3433 = vmax.f32 %v2939, %v3266
    %v3434 = vmax.f32 %v2940, %v3267
    %v3435 = vmax.f32 %v2941, %v3268
    %v3436 = vmax.f32 %v2942, %v3269
    %v3437 = vmax.f32 %v2943, %v3188
    %v3438 = vmax.f32 %v2944, %v3270
    %v3439 = vmax.f32 %v2945, %v3271
    %v3440 = vmax.f32 %v2946, %v3272
    %v3441 = vmax.f32 %v2947, %v3273
    %v3442 = vmax.f32 %v2948, %v3198
    %v3443 = vmax.f32 %v2949, %v3274
    %v3444 = vmax.f32 %v2950, %v3275
    %v3445 = vmax.f32 %v2951, %v3276
    %v3446 = vmax.f32 %v2952, %v3277
    %v3447 = vmax.f32 %v2953, %v3208
    %3448 = vrot.lane.b32.xlu0 %v2869, 126
    %v3449 = vpop.permute.xlu0 %3448
    %3450 = vrot.lane.b32.xlu0 %v2870, 126
    %v3451 = vpop.permute.xlu0 %3450
    %3452 = vrot.lane.b32.xlu0 %v2871, 126
    %v3453 = vpop.permute.xlu0 %3452
    %3454 = vrot.lane.b32.xlu0 %v2872, 126
    %v3455 = vpop.permute.xlu0 %3454
    %3456 = vrot.lane.b32.xlu0 %v2873, 126
    %v3457 = vpop.permute.xlu0 %3456
    %3458 = vrot.lane.b32.xlu0 %v2874, 126
    %v3459 = vpop.permute.xlu0 %3458
    %3460 = vrot.lane.b32.xlu0 %v2875, 126
    %v3461 = vpop.permute.xlu0 %3460
    %3462 = vrot.lane.b32.xlu0 %v2876, 126
    %v3463 = vpop.permute.xlu0 %3462
    %3464 = vrot.lane.b32.xlu0 %v2877, 126
    %v3465 = vpop.permute.xlu0 %3464
    %3466 = vrot.lane.b32.xlu0 %v2878, 126
    %v3467 = vpop.permute.xlu0 %3466
    %3468 = vrot.lane.b32.xlu0 %v2879, 126
    %v3469 = vpop.permute.xlu0 %3468
    %3470 = vrot.lane.b32.xlu0 %v2880, 126
    %v3471 = vpop.permute.xlu0 %3470
    %3472 = vrot.lane.b32.xlu0 %v2881, 126
    %v3473 = vpop.permute.xlu0 %3472
    %3474 = vrot.lane.b32.xlu0 %v2882, 126
    %v3475 = vpop.permute.xlu0 %3474
    %3476 = vrot.lane.b32.xlu0 %v2883, 126
    %v3477 = vpop.permute.xlu0 %3476
    %3478 = vrot.lane.b32.xlu0 %v2884, 126
    %v3479 = vpop.permute.xlu0 %3478
    %3480 = vrot.lane.b32.xlu0 %v2885, 126
    %v3481 = vpop.permute.xlu0 %3480
    %3482 = vrot.lane.b32.xlu0 %v2886, 126
    %v3483 = vpop.permute.xlu0 %3482
    %3484 = vrot.lane.b32.xlu0 %v2887, 126
    %v3485 = vpop.permute.xlu0 %3484
    %3486 = vrot.lane.b32.xlu0 %v2888, 126
    %v3487 = vpop.permute.xlu0 %3486
    %3488 = vrot.lane.b32.xlu0 %v2889, 126
    %v3489 = vpop.permute.xlu0 %3488
    %3490 = vrot.lane.b32.xlu0 %v2890, 126
    %v3491 = vpop.permute.xlu0 %3490
    %3492 = vrot.lane.b32.xlu0 %v2891, 126
    %v3493 = vpop.permute.xlu0 %3492
    %3494 = vrot.lane.b32.xlu0 %v2892, 126
    %v3495 = vpop.permute.xlu0 %3494
    %3496 = vrot.lane.b32.xlu0 %v2893, 126
    %v3497 = vpop.permute.xlu0 %3496
    %3498 = vrot.lane.b32.xlu0 %v2894, 126
    %v3499 = vpop.permute.xlu0 %3498
    %3500 = vrot.lane.b32.xlu0 %v2895, 126
    %v3501 = vpop.permute.xlu0 %3500
    %3502 = vrot.lane.b32.xlu0 %v2896, 126
    %v3503 = vpop.permute.xlu0 %3502
    %3504 = vrot.lane.b32.xlu0 %v2897, 126
    %v3505 = vpop.permute.xlu0 %3504
    %3506 = vrot.lane.b32.xlu0 %v2898, 126
    %v3507 = vpop.permute.xlu0 %3506
    %3508 = vrot.lane.b32.xlu0 %v2899, 126
    %v3509 = vpop.permute.xlu0 %3508
    %3510 = vrot.lane.b32.xlu0 %v2900, 126
    %v3511 = vpop.permute.xlu0 %3510
    %3512 = vrot.lane.b32.xlu0 %v2901, 126
    %v3513 = vpop.permute.xlu0 %3512
    %3514 = vrot.lane.b32.xlu0 %v2902, 126
    %v3515 = vpop.permute.xlu0 %3514
    %3516 = vrot.lane.b32.xlu0 %v2903, 126
    %v3517 = vpop.permute.xlu0 %3516
    %3518 = vrot.lane.b32.xlu0 %v2904, 126
    %v3519 = vpop.permute.xlu0 %3518
    %3520 = vrot.lane.b32.xlu0 %v2905, 126
    %v3521 = vpop.permute.xlu0 %3520
    %3522 = vrot.lane.b32.xlu0 %v2906, 126
    %v3523 = vpop.permute.xlu0 %3522
    %3524 = vrot.lane.b32.xlu0 %v2907, 126
    %v3525 = vpop.permute.xlu0 %3524
    %3526 = vrot.lane.b32.xlu0 %v2908, 126
    %v3527 = vpop.permute.xlu0 %3526
    %3528 = vrot.lane.b32.xlu0 %v2909, 126
    %v3529 = vpop.permute.xlu0 %3528
    %3530 = vrot.lane.b32.xlu0 %v2910, 126
    %v3531 = vpop.permute.xlu0 %3530
    %3532 = vrot.lane.b32.xlu0 %v2911, 126
    %v3533 = vpop.permute.xlu0 %3532
    %3534 = vrot.lane.b32.xlu0 %v2912, 126
    %v3535 = vpop.permute.xlu0 %3534
    %3536 = vrot.lane.b32.xlu0 %v2913, 126
    %v3537 = vpop.permute.xlu0 %3536
    %3538 = vrot.lane.b32.xlu0 %v2914, 126
    %v3539 = vpop.permute.xlu0 %3538
    %3540 = vrot.lane.b32.xlu0 %v2915, 126
    %v3541 = vpop.permute.xlu0 %3540
    %3542 = vrot.lane.b32.xlu0 %v2916, 126
    %v3543 = vpop.permute.xlu0 %3542
    %3544 = vrot.lane.b32.xlu0 %v2917, 126
    %v3545 = vpop.permute.xlu0 %3544
    %3546 = vrot.lane.b32.xlu0 %v2918, 126
    %v3547 = vpop.permute.xlu0 %3546
    %3548 = vrot.lane.b32.xlu0 %v2919, 126
    %v3549 = vpop.permute.xlu0 %3548
    %3550 = vrot.lane.b32.xlu0 %v2920, 126
    %v3551 = vpop.permute.xlu0 %3550
    %3552 = vrot.lane.b32.xlu0 %v2921, 126
    %v3553 = vpop.permute.xlu0 %3552
    %3554 = vrot.lane.b32.xlu0 %v2922, 126
    %v3555 = vpop.permute.xlu0 %3554
    %3556 = vrot.lane.b32.xlu0 %v2923, 126
    %v3557 = vpop.permute.xlu0 %3556
    %3558 = vrot.lane.b32.xlu0 %v2924, 126
    %v3559 = vpop.permute.xlu0 %3558
    %3560 = vrot.lane.b32.xlu0 %v2925, 126
    %v3561 = vpop.permute.xlu0 %3560
    %3562 = vrot.lane.b32.xlu0 %v2926, 126
    %v3563 = vpop.permute.xlu0 %3562
    %3564 = vrot.lane.b32.xlu0 %v2927, 126
    %v3565 = vpop.permute.xlu0 %3564
    %3566 = vrot.lane.b32.xlu0 %v2928, 126
    %v3567 = vpop.permute.xlu0 %3566
    %3568 = vrot.lane.b32.xlu0 %v2929, 126
    %v3569 = vpop.permute.xlu0 %3568
    %3570 = vrot.lane.b32.xlu0 %v2930, 126
    %v3571 = vpop.permute.xlu0 %3570
    %3572 = vrot.lane.b32.xlu0 %v2931, 126
    %v3573 = vpop.permute.xlu0 %3572
    %3574 = vrot.lane.b32.xlu0 %v2932, 126
    %v3575 = vpop.permute.xlu0 %3574
    %3576 = vrot.lane.b32.xlu0 %v2933, 126
    %v3577 = vpop.permute.xlu0 %3576
    %3578 = vrot.lane.b32.xlu0 %v2934, 126
    %v3579 = vpop.permute.xlu0 %3578
    %3580 = vrot.lane.b32.xlu0 %v2935, 126
    %v3581 = vpop.permute.xlu0 %3580
    %3582 = vrot.lane.b32.xlu0 %v2936, 126
    %v3583 = vpop.permute.xlu0 %3582
    %3584 = vrot.lane.b32.xlu0 %v2937, 126
    %v3585 = vpop.permute.xlu0 %3584
    %3586 = vrot.lane.b32.xlu0 %v2938, 126
    %v3587 = vpop.permute.xlu0 %3586
    %3588 = vrot.lane.b32.xlu0 %v2939, 126
    %v3589 = vpop.permute.xlu0 %3588
    %3590 = vrot.lane.b32.xlu0 %v2940, 126
    %v3591 = vpop.permute.xlu0 %3590
    %3592 = vrot.lane.b32.xlu0 %v2941, 126
    %v3593 = vpop.permute.xlu0 %3592
    %3594 = vrot.lane.b32.xlu0 %v2942, 126
    %v3595 = vpop.permute.xlu0 %3594
    %3596 = vrot.lane.b32.xlu0 %v2943, 126
    %v3597 = vpop.permute.xlu0 %3596
    %3598 = vrot.lane.b32.xlu0 %v2944, 126
    %v3599 = vpop.permute.xlu0 %3598
    %3600 = vrot.lane.b32.xlu0 %v2945, 126
    %v3601 = vpop.permute.xlu0 %3600
    %3602 = vrot.lane.b32.xlu0 %v2946, 126
    %v3603 = vpop.permute.xlu0 %3602
    %3604 = vrot.lane.b32.xlu0 %v2947, 126
    %v3605 = vpop.permute.xlu0 %3604
    %3606 = vrot.lane.b32.xlu0 %v2948, 126
    %v3607 = vpop.permute.xlu0 %3606
    %3608 = vrot.lane.b32.xlu0 %v2949, 126
    %v3609 = vpop.permute.xlu0 %3608
    %3610 = vrot.lane.b32.xlu0 %v2950, 126
    %v3611 = vpop.permute.xlu0 %3610
    %3612 = vrot.lane.b32.xlu0 %v2951, 126
    %v3613 = vpop.permute.xlu0 %3612
    %3614 = vrot.lane.b32.xlu0 %v2952, 126
    %v3615 = vpop.permute.xlu0 %3614
    %3616 = vrot.lane.b32.xlu0 %v2953, 126
    %v3617 = vpop.permute.xlu0 %3616
    %vm3618 = vcmask 1031168
    %v3619 = vsel %vm3618, %v3449, %v3451
    %v3620 = vsel %vm3618, %v3451, %v3453
    %v3621 = vsel %vm3618, %v3453, %v3455
    %v3622 = vsel %vm3618, %v3455, %v3457
    %v3623 = vsel %vm3618, %v3459, %v3461
    %v3624 = vsel %vm3618, %v3461, %v3463
    %v3625 = vsel %vm3618, %v3463, %v3465
    %v3626 = vsel %vm3618, %v3465, %v3467
    %v3627 = vsel %vm3618, %v3469, %v3471
    %v3628 = vsel %vm3618, %v3471, %v3473
    %v3629 = vsel %vm3618, %v3473, %v3475
    %v3630 = vsel %vm3618, %v3475, %v3477
    %v3631 = vsel %vm3618, %v3479, %v3481
    %v3632 = vsel %vm3618, %v3481, %v3483
    %v3633 = vsel %vm3618, %v3483, %v3485
    %v3634 = vsel %vm3618, %v3485, %v3487
    %v3635 = vsel %vm3618, %v3489, %v3491
    %v3636 = vsel %vm3618, %v3491, %v3493
    %v3637 = vsel %vm3618, %v3493, %v3495
    %v3638 = vsel %vm3618, %v3495, %v3497
    %v3639 = vsel %vm3618, %v3499, %v3501
    %v3640 = vsel %vm3618, %v3501, %v3503
    %v3641 = vsel %vm3618, %v3503, %v3505
    %v3642 = vsel %vm3618, %v3505, %v3507
    %v3643 = vsel %vm3618, %v3509, %v3511
    %v3644 = vsel %vm3618, %v3511, %v3513
    %v3645 = vsel %vm3618, %v3513, %v3515
    %v3646 = vsel %vm3618, %v3515, %v3517
    %v3647 = vsel %vm3618, %v3519, %v3521
    %v3648 = vsel %vm3618, %v3521, %v3523
    %v3649 = vsel %vm3618, %v3523, %v3525
    %v3650 = vsel %vm3618, %v3525, %v3527
    %v3651 = vsel %vm3618, %v3529, %v3531
    %v3652 = vsel %vm3618, %v3531, %v3533
    %v3653 = vsel %vm3618, %v3533, %v3535
    %v3654 = vsel %vm3618, %v3535, %v3537
    %v3655 = vsel %vm3618, %v3539, %v3541
    %v3656 = vsel %vm3618, %v3541, %v3543
    %v3657 = vsel %vm3618, %v3543, %v3545
    %v3658 = vsel %vm3618, %v3545, %v3547
    %v3659 = vsel %vm3618, %v3549, %v3551
    %v3660 = vsel %vm3618, %v3551, %v3553
    %v3661 = vsel %vm3618, %v3553, %v3555
    %v3662 = vsel %vm3618, %v3555, %v3557
    %v3663 = vsel %vm3618, %v3559, %v3561
    %v3664 = vsel %vm3618, %v3561, %v3563
    %v3665 = vsel %vm3618, %v3563, %v3565
    %v3666 = vsel %vm3618, %v3565, %v3567
    %v3667 = vsel %vm3618, %v3569, %v3571
    %v3668 = vsel %vm3618, %v3571, %v3573
    %v3669 = vsel %vm3618, %v3573, %v3575
    %v3670 = vsel %vm3618, %v3575, %v3577
    %v3671 = vsel %vm3618, %v3579, %v3581
    %v3672 = vsel %vm3618, %v3581, %v3583
    %v3673 = vsel %vm3618, %v3583, %v3585
    %v3674 = vsel %vm3618, %v3585, %v3587
    %v3675 = vsel %vm3618, %v3589, %v3591
    %v3676 = vsel %vm3618, %v3591, %v3593
    %v3677 = vsel %vm3618, %v3593, %v3595
    %v3678 = vsel %vm3618, %v3595, %v3597
    %v3679 = vsel %vm3618, %v3599, %v3601
    %v3680 = vsel %vm3618, %v3601, %v3603
    %v3681 = vsel %vm3618, %v3603, %v3605
    %v3682 = vsel %vm3618, %v3605, %v3607
    %v3683 = vsel %vm3618, %v3609, %v3611
    %v3684 = vsel %vm3618, %v3611, %v3613
    %v3685 = vsel %vm3618, %v3613, %v3615
    %v3686 = vsel %vm3618, %v3615, %v3617
    %v3772 = vmax.f32 %v3363, %v3619
    %v3773 = vmax.f32 %v3364, %v3620
    %v3774 = vmax.f32 %v3365, %v3621
    %v3775 = vmax.f32 %v3366, %v3622
    %v3776 = vmax.f32 %v3367, %v3457
    %v3777 = vmax.f32 %v3368, %v3623
    %v3778 = vmax.f32 %v3369, %v3624
    %v3779 = vmax.f32 %v3370, %v3625
    %v3780 = vmax.f32 %v3371, %v3626
    %v3781 = vmax.f32 %v3372, %v3467
    %v3782 = vmax.f32 %v3373, %v3627
    %v3783 = vmax.f32 %v3374, %v3628
    %v3784 = vmax.f32 %v3375, %v3629
    %v3785 = vmax.f32 %v3376, %v3630
    %v3786 = vmax.f32 %v3377, %v3477
    %v3787 = vmax.f32 %v3378, %v3631
    %v3788 = vmax.f32 %v3379, %v3632
    %v3789 = vmax.f32 %v3380, %v3633
    %v3790 = vmax.f32 %v3381, %v3634
    %v3791 = vmax.f32 %v3382, %v3487
    %v3792 = vmax.f32 %v3383, %v3635
    %v3793 = vmax.f32 %v3384, %v3636
    %v3794 = vmax.f32 %v3385, %v3637
    %v3795 = vmax.f32 %v3386, %v3638
    %v3796 = vmax.f32 %v3387, %v3497
    %v3797 = vmax.f32 %v3388, %v3639
    %v3798 = vmax.f32 %v3389, %v3640
    %v3799 = vmax.f32 %v3390, %v3641
    %v3800 = vmax.f32 %v3391, %v3642
    %v3801 = vmax.f32 %v3392, %v3507
    %v3802 = vmax.f32 %v3393, %v3643
    %v3803 = vmax.f32 %v3394, %v3644
    %v3804 = vmax.f32 %v3395, %v3645
    %v3805 = vmax.f32 %v3396, %v3646
    %v3806 = vmax.f32 %v3397, %v3517
    %v3807 = vmax.f32 %v3398, %v3647
    %v3808 = vmax.f32 %v3399, %v3648
    %v3809 = vmax.f32 %v3400, %v3649
    %v3810 = vmax.f32 %v3401, %v3650
    %v3811 = vmax.f32 %v3402, %v3527
    %v3812 = vmax.f32 %v3403, %v3651
    %v3813 = vmax.f32 %v3404, %v3652
    %v3814 = vmax.f32 %v3405, %v3653
    %v3815 = vmax.f32 %v3406, %v3654
    %v3816 = vmax.f32 %v3407, %v3537
    %v3817 = vmax.f32 %v3408, %v3655
    %v3818 = vmax.f32 %v3409, %v3656
    %v3819 = vmax.f32 %v3410, %v3657
    %v3820 = vmax.f32 %v3411, %v3658
    %v3821 = vmax.f32 %v3412, %v3547
    %v3822 = vmax.f32 %v3413, %v3659
    %v3823 = vmax.f32 %v3414, %v3660
    %v3824 = vmax.f32 %v3415, %v3661
    %v3825 = vmax.f32 %v3416, %v3662
    %v3826 = vmax.f32 %v3417, %v3557
    %v3827 = vmax.f32 %v3418, %v3663
    %v3828 = vmax.f32 %v3419, %v3664
    %v3829 = vmax.f32 %v3420, %v3665
    %v3830 = vmax.f32 %v3421, %v3666
    %v3831 = vmax.f32 %v3422, %v3567
    %v3832 = vmax.f32 %v3423, %v3667
    %v3833 = vmax.f32 %v3424, %v3668
    %v3834 = vmax.f32 %v3425, %v3669
    %v3835 = vmax.f32 %v3426, %v3670
    %v3836 = vmax.f32 %v3427, %v3577
    %v3837 = vmax.f32 %v3428, %v3671
    %v3838 = vmax.f32 %v3429, %v3672
    %v3839 = vmax.f32 %v3430, %v3673
    %v3840 = vmax.f32 %v3431, %v3674
    %v3841 = vmax.f32 %v3432, %v3587
    %v3842 = vmax.f32 %v3433, %v3675
    %v3843 = vmax.f32 %v3434, %v3676
    %v3844 = vmax.f32 %v3435, %v3677
    %v3845 = vmax.f32 %v3436, %v3678
    %v3846 = vmax.f32 %v3437, %v3597
    %v3847 = vmax.f32 %v3438, %v3679
    %v3848 = vmax.f32 %v3439, %v3680
    %v3849 = vmax.f32 %v3440, %v3681
    %v3850 = vmax.f32 %v3441, %v3682
    %v3851 = vmax.f32 %v3442, %v3607
    %v3852 = vmax.f32 %v3443, %v3683
    %v3853 = vmax.f32 %v3444, %v3684
    %v3854 = vmax.f32 %v3445, %v3685
    %v3855 = vmax.f32 %v3446, %v3686
    %v3856 = vmax.f32 %v3447, %v3617
    %v3857 = vpack.c.bf16 %v3777, %v3772
    %v3858 = vpack.c.bf16 %v3778, %v3773
    %v3859 = vpack.c.bf16 %v3779, %v3774
    %v3860 = vpack.c.bf16 %v3780, %v3775
    %v3861 = vpack.c.bf16 %v3781, %v3776
    %v3862 = vpack.c.bf16 %v3787, %v3782
    %v3863 = vpack.c.bf16 %v3788, %v3783
    %v3864 = vpack.c.bf16 %v3789, %v3784
    %v3865 = vpack.c.bf16 %v3790, %v3785
    %v3866 = vpack.c.bf16 %v3791, %v3786
    %v3867 = vpack.c.bf16 %v3797, %v3792
    %v3868 = vpack.c.bf16 %v3798, %v3793
    %v3869 = vpack.c.bf16 %v3799, %v3794
    %v3870 = vpack.c.bf16 %v3800, %v3795
    %v3871 = vpack.c.bf16 %v3801, %v3796
    %v3872 = vpack.c.bf16 %v3807, %v3802
    %v3873 = vpack.c.bf16 %v3808, %v3803
    %v3874 = vpack.c.bf16 %v3809, %v3804
    %v3875 = vpack.c.bf16 %v3810, %v3805
    %v3876 = vpack.c.bf16 %v3811, %v3806
    %v3877 = vpack.c.bf16 %v3817, %v3812
    %v3878 = vpack.c.bf16 %v3818, %v3813
    %v3879 = vpack.c.bf16 %v3819, %v3814
    %v3880 = vpack.c.bf16 %v3820, %v3815
    %v3881 = vpack.c.bf16 %v3821, %v3816
    %v3882 = vpack.c.bf16 %v3827, %v3822
    %v3883 = vpack.c.bf16 %v3828, %v3823
    %v3884 = vpack.c.bf16 %v3829, %v3824
    %v3885 = vpack.c.bf16 %v3830, %v3825
    %v3886 = vpack.c.bf16 %v3831, %v3826
    %v3887 = vpack.c.bf16 %v3837, %v3832
    %v3888 = vpack.c.bf16 %v3838, %v3833
    %v3889 = vpack.c.bf16 %v3839, %v3834
    %v3890 = vpack.c.bf16 %v3840, %v3835
    %v3891 = vpack.c.bf16 %v3841, %v3836
    %v3892 = vpack.c.bf16 %v3847, %v3842
    %v3893 = vpack.c.bf16 %v3848, %v3843
    %v3894 = vpack.c.bf16 %v3849, %v3844
    %v3895 = vpack.c.bf16 %v3850, %v3845
    %v3896 = vpack.c.bf16 %v3851, %v3846
    %v3897 = vpack.c.bf16 %v3852, %v3852
    %v3898 = vpack.c.bf16 %v3853, %v3853
    %v3899 = vpack.c.bf16 %v3854, %v3854
    %v3900 = vpack.c.bf16 %v3855, %v3855
    %v3901 = vpack.c.bf16 %v3856, %v3856
    %v3902 = vld [vmem:[%s3] sm:$0xff]
    %v3903 = vld [vmem:[%s3 + $0x8] sm:$0xff]
    %v3904 = vld [vmem:[%s3 + $0x10] sm:$0xff]
    %v3905 = vld [vmem:[%s3 + $0x18] sm:$0xff]
    %v3906 = vld [vmem:[%s3 + $0x20] sm:$0xff]
    %v3907 = vld [vmem:[%s3 + $0x28] sm:$0xff]
    %v3908 = vld [vmem:[%s3 + $0x30] sm:$0xff]
    %v3909 = vld [vmem:[%s3 + $0x38] sm:$0xff]
    %v3910 = vld [vmem:[%s3 + $0x40] sm:$0xff]
    %v3911 = vld [vmem:[%s3 + $0x48] sm:$0xff]
    %v3912 = vld [vmem:[%s3 + $0x50] sm:$0xff]
    %v3913 = vld [vmem:[%s3 + $0x58] sm:$0xff]
    %v3914 = vld [vmem:[%s3 + $0x60] sm:$0xff]
    %v3915 = vld [vmem:[%s3 + $0x68] sm:$0xff]
    %v3916 = vld [vmem:[%s3 + $0x70] sm:$0xff]
    %v3917 = vld [vmem:[%s3 + $0x78] sm:$0xff]
    %v3918 = vld [vmem:[%s3 + $0x80] sm:$0xff]
    %v3919 = vld [vmem:[%s3 + $0x88] sm:$0xff]
    %v3920 = vld [vmem:[%s3 + $0x90] sm:$0xff]
    %v3921 = vld [vmem:[%s3 + $0x98] sm:$0xff]
    %v3922 = vld [vmem:[%s3 + $0xa0] sm:$0xff]
    %v3923 = vld [vmem:[%s3 + $0xa8] sm:$0xff]
    %v3924 = vld [vmem:[%s3 + $0xb0] sm:$0xff]
    %v3925 = vld [vmem:[%s3 + $0xb8] sm:$0xff]
    %v3926 = vld [vmem:[%s3 + $0xc0] sm:$0xff]
    %v3927 = vld [vmem:[%s3 + $0xc8] sm:$0xff]
    %v3928 = vld [vmem:[%s3 + $0xd0] sm:$0xff]
    %v3929 = vld [vmem:[%s3 + $0xd8] sm:$0xff]
    %v3930 = vld [vmem:[%s3 + $0xe0] sm:$0xff]
    %v3931 = vld [vmem:[%s3 + $0xe8] sm:$0xff]
    %v3932 = vld [vmem:[%s3 + $0xf0] sm:$0xff]
    %v3933 = vld [vmem:[%s3 + $0xf8] sm:$0xff]
    %v3934 = vld [vmem:[%s3 + $0x100] sm:$0xff]
    %v3935 = vld [vmem:[%s3 + $0x108] sm:$0xff]
    %v3936 = vld [vmem:[%s3 + $0x110] sm:$0xff]
    %v3937 = vld [vmem:[%s3 + $0x118] sm:$0xff]
    %v3938 = vld [vmem:[%s3 + $0x120] sm:$0xff]
    %v3939 = vld [vmem:[%s3 + $0x128] sm:$0xff]
    %v3940 = vld [vmem:[%s3 + $0x130] sm:$0xff]
    %v3941 = vld [vmem:[%s3 + $0x138] sm:$0xff]
    %v3942 = vld [vmem:[%s3 + $0x140] sm:$0xff]
    %v3943 = vld [vmem:[%s3 + $0x148] sm:$0xff]
    %v3944 = vld [vmem:[%s3 + $0x150] sm:$0xff]
    %v3945 = vld [vmem:[%s3 + $0x158] sm:$0xff]
    %v3946 = vld [vmem:[%s3 + $0x160] sm:$0xff]
    %v3947 = vld [vmem:[%s3 + $0x168] sm:$0xff]
    %v3948 = vld [vmem:[%s3 + $0x170] sm:$0xff]
    %v3949 = vld [vmem:[%s3 + $0x178] sm:$0xff]
    %v3950 = vld [vmem:[%s3 + $0x180] sm:$0xff]
    %v3951 = vld [vmem:[%s3 + $0x188] sm:$0xff]
    %v3952 = vld [vmem:[%s3 + $0x190] sm:$0xff]
    %v3953 = vld [vmem:[%s3 + $0x198] sm:$0xff]
    %v3954 = vld [vmem:[%s3 + $0x1a0] sm:$0xff]
    %v3955 = vld [vmem:[%s3 + $0x1a8] sm:$0xff]
    %v3956 = vld [vmem:[%s3 + $0x1b0] sm:$0xff]
    %v3957 = vld [vmem:[%s3 + $0x1b8] sm:$0xff]
    %v3958 = vld [vmem:[%s3 + $0x1c0] sm:$0xff]
    %v3959 = vld [vmem:[%s3 + $0x1c8] sm:$0xff]
    %v3960 = vld [vmem:[%s3 + $0x1d0] sm:$0xff]
    %v3961 = vld [vmem:[%s3 + $0x1d8] sm:$0xff]
    %v3962 = vld [vmem:[%s3 + $0x1e0] sm:$0xff]
    %v3963 = vld [vmem:[%s3 + $0x1e8] sm:$0xff]
    %v3964 = vld [vmem:[%s3 + $0x1f0] sm:$0xff]
    %v3965 = vld [vmem:[%s3 + $0x1f8] sm:$0xff]
    %v3966 = vld [vmem:[%s3 + $0x200] sm:$0xff]
    %v3967 = vld [vmem:[%s3 + $0x208] sm:$0x77]
    %v4034 = vunpack.c.l.b16 %v3902
    %v4035 = vunpack.c.h.b16 %v3902
    %v4036 = vunpack.c.l.b16 %v3903
    %v4037 = vunpack.c.h.b16 %v3903
    %v4038 = vunpack.c.l.b16 %v3904
    %v4039 = vunpack.c.h.b16 %v3904
    %v4040 = vunpack.c.l.b16 %v3905
    %v4041 = vunpack.c.h.b16 %v3905
    %v4042 = vunpack.c.l.b16 %v3906
    %v4043 = vunpack.c.h.b16 %v3906
    %v4044 = vunpack.c.l.b16 %v3907
    %v4045 = vunpack.c.h.b16 %v3907
    %v4046 = vunpack.c.l.b16 %v3908
    %v4047 = vunpack.c.h.b16 %v3908
    %v4048 = vunpack.c.l.b16 %v3909
    %v4049 = vunpack.c.h.b16 %v3909
    %v4050 = vunpack.c.l.b16 %v3910
    %v4051 = vunpack.c.h.b16 %v3910
    %v4052 = vunpack.c.l.b16 %v3911
    %v4053 = vunpack.c.h.b16 %v3911
    %v4054 = vunpack.c.l.b16 %v3912
    %v4055 = vunpack.c.h.b16 %v3912
    %v4056 = vunpack.c.l.b16 %v3913
    %v4057 = vunpack.c.h.b16 %v3913
    %v4058 = vunpack.c.l.b16 %v3914
    %v4059 = vunpack.c.h.b16 %v3914
    %v4060 = vunpack.c.l.b16 %v3915
    %v4061 = vunpack.c.h.b16 %v3915
    %v4062 = vunpack.c.l.b16 %v3916
    %v4063 = vunpack.c.h.b16 %v3916
    %v4064 = vunpack.c.l.b16 %v3917
    %v4065 = vunpack.c.h.b16 %v3917
    %v4066 = vunpack.c.l.b16 %v3918
    %v4067 = vunpack.c.h.b16 %v3918
    %v4068 = vunpack.c.l.b16 %v3919
    %v4069 = vunpack.c.h.b16 %v3919
    %v4070 = vunpack.c.l.b16 %v3920
    %v4071 = vunpack.c.h.b16 %v3920
    %v4072 = vunpack.c.l.b16 %v3921
    %v4073 = vunpack.c.h.b16 %v3921
    %v4074 = vunpack.c.l.b16 %v3922
    %v4075 = vunpack.c.h.b16 %v3922
    %v4076 = vunpack.c.l.b16 %v3923
    %v4077 = vunpack.c.h.b16 %v3923
    %v4078 = vunpack.c.l.b16 %v3924
    %v4079 = vunpack.c.h.b16 %v3924
    %v4080 = vunpack.c.l.b16 %v3925
    %v4081 = vunpack.c.h.b16 %v3925
    %v4082 = vunpack.c.l.b16 %v3926
    %v4083 = vunpack.c.h.b16 %v3926
    %v4084 = vunpack.c.l.b16 %v3927
    %v4085 = vunpack.c.h.b16 %v3927
    %v4086 = vunpack.c.l.b16 %v3928
    %v4087 = vunpack.c.h.b16 %v3928
    %v4088 = vunpack.c.l.b16 %v3929
    %v4089 = vunpack.c.h.b16 %v3929
    %v4090 = vunpack.c.l.b16 %v3930
    %v4091 = vunpack.c.h.b16 %v3930
    %v4092 = vunpack.c.l.b16 %v3931
    %v4093 = vunpack.c.h.b16 %v3931
    %v4094 = vunpack.c.l.b16 %v3932
    %v4095 = vunpack.c.h.b16 %v3932
    %v4096 = vunpack.c.l.b16 %v3933
    %v4097 = vunpack.c.h.b16 %v3933
    %v4098 = vunpack.c.l.b16 %v3934
    %v4099 = vunpack.c.h.b16 %v3934
    %v4100 = vunpack.c.l.b16 %v3935
    %v4101 = vunpack.c.h.b16 %v3935
    %v4102 = vunpack.c.l.b16 %v3936
    %v4103 = vunpack.c.h.b16 %v3936
    %v4104 = vunpack.c.l.b16 %v3937
    %v4105 = vunpack.c.h.b16 %v3937
    %v4106 = vunpack.c.l.b16 %v3938
    %v4107 = vunpack.c.h.b16 %v3938
    %v4108 = vunpack.c.l.b16 %v3939
    %v4109 = vunpack.c.h.b16 %v3939
    %v4110 = vunpack.c.l.b16 %v3940
    %v4111 = vunpack.c.h.b16 %v3940
    %v4112 = vunpack.c.l.b16 %v3941
    %v4113 = vunpack.c.h.b16 %v3941
    %v4114 = vunpack.c.l.b16 %v3942
    %v4115 = vunpack.c.h.b16 %v3942
    %v4116 = vunpack.c.l.b16 %v3943
    %v4117 = vunpack.c.h.b16 %v3943
    %v4118 = vunpack.c.l.b16 %v3944
    %v4119 = vunpack.c.h.b16 %v3944
    %v4120 = vunpack.c.l.b16 %v3945
    %v4121 = vunpack.c.h.b16 %v3945
    %v4122 = vunpack.c.l.b16 %v3946
    %v4123 = vunpack.c.h.b16 %v3946
    %v4124 = vunpack.c.l.b16 %v3947
    %v4125 = vunpack.c.h.b16 %v3947
    %v4126 = vunpack.c.l.b16 %v3948
    %v4127 = vunpack.c.h.b16 %v3948
    %v4128 = vunpack.c.l.b16 %v3949
    %v4129 = vunpack.c.h.b16 %v3949
    %v4130 = vunpack.c.l.b16 %v3950
    %v4131 = vunpack.c.h.b16 %v3950
    %v4132 = vunpack.c.l.b16 %v3951
    %v4133 = vunpack.c.h.b16 %v3951
    %v4134 = vunpack.c.l.b16 %v3952
    %v4135 = vunpack.c.h.b16 %v3952
    %v4136 = vunpack.c.l.b16 %v3953
    %v4137 = vunpack.c.h.b16 %v3953
    %v4138 = vunpack.c.l.b16 %v3954
    %v4139 = vunpack.c.h.b16 %v3954
    %v4140 = vunpack.c.l.b16 %v3955
    %v4141 = vunpack.c.h.b16 %v3955
    %v4142 = vunpack.c.l.b16 %v3956
    %v4143 = vunpack.c.h.b16 %v3956
    %v4144 = vunpack.c.l.b16 %v3957
    %v4145 = vunpack.c.h.b16 %v3957
    %v4146 = vunpack.c.l.b16 %v3958
    %v4147 = vunpack.c.h.b16 %v3958
    %v4148 = vunpack.c.l.b16 %v3959
    %v4149 = vunpack.c.h.b16 %v3959
    %v4150 = vunpack.c.l.b16 %v3960
    %v4151 = vunpack.c.h.b16 %v3960
    %v4152 = vunpack.c.l.b16 %v3961
    %v4153 = vunpack.c.h.b16 %v3961
    %v4154 = vunpack.c.l.b16 %v3962
    %v4155 = vunpack.c.h.b16 %v3962
    %v4156 = vunpack.c.l.b16 %v3963
    %v4157 = vunpack.c.h.b16 %v3963
    %v4158 = vunpack.c.l.b16 %v3964
    %v4159 = vunpack.c.h.b16 %v3964
    %v4160 = vunpack.c.l.b16 %v3965
    %v4161 = vunpack.c.h.b16 %v3965
    %v4162 = vunpack.c.l.b16 %v3966
    %v4163 = vunpack.c.h.b16 %v3966
    %v4164 = vunpack.c.l.b16 %v3967
    %v4165 = vunpack.c.h.b16 %v3967
    %v4166 = vpack.c.b16 %v4036, %v4034
    %v4167 = vpack.c.b16 %v4037, %v4035
    %v4168 = vpack.c.b16 %v4040, %v4038
    %v4169 = vpack.c.b16 %v4041, %v4039
    %v4170 = vpack.c.b16 %v4044, %v4042
    %v4171 = vpack.c.b16 %v4045, %v4043
    %v4172 = vpack.c.b16 %v4048, %v4046
    %v4173 = vpack.c.b16 %v4049, %v4047
    %v4174 = vpack.c.b16 %v4052, %v4050
    %v4175 = vpack.c.b16 %v4053, %v4051
    %v4176 = vpack.c.b16 %v4056, %v4054
    %v4177 = vpack.c.b16 %v4057, %v4055
    %v4178 = vpack.c.b16 %v4060, %v4058
    %v4179 = vpack.c.b16 %v4061, %v4059
    %v4180 = vpack.c.b16 %v4064, %v4062
    %v4181 = vpack.c.b16 %v4065, %v4063
    %v4182 = vpack.c.b16 %v4068, %v4066
    %v4183 = vpack.c.b16 %v4069, %v4067
    %v4184 = vpack.c.b16 %v4072, %v4070
    %v4185 = vpack.c.b16 %v4073, %v4071
    %v4186 = vpack.c.b16 %v4076, %v4074
    %v4187 = vpack.c.b16 %v4077, %v4075
    %v4188 = vpack.c.b16 %v4080, %v4078
    %v4189 = vpack.c.b16 %v4081, %v4079
    %v4190 = vpack.c.b16 %v4084, %v4082
    %v4191 = vpack.c.b16 %v4085, %v4083
    %v4192 = vpack.c.b16 %v4088, %v4086
    %v4193 = vpack.c.b16 %v4089, %v4087
    %v4194 = vpack.c.b16 %v4092, %v4090
    %v4195 = vpack.c.b16 %v4093, %v4091
    %v4196 = vpack.c.b16 %v4096, %v4094
    %v4197 = vpack.c.b16 %v4097, %v4095
    %v4198 = vpack.c.b16 %v4100, %v4098
    %v4199 = vpack.c.b16 %v4101, %v4099
    %v4200 = vpack.c.b16 %v4104, %v4102
    %v4201 = vpack.c.b16 %v4105, %v4103
    %v4202 = vpack.c.b16 %v4108, %v4106
    %v4203 = vpack.c.b16 %v4109, %v4107
    %v4204 = vpack.c.b16 %v4112, %v4110
    %v4205 = vpack.c.b16 %v4113, %v4111
    %v4206 = vpack.c.b16 %v4116, %v4114
    %v4207 = vpack.c.b16 %v4117, %v4115
    %v4208 = vpack.c.b16 %v4120, %v4118
    %v4209 = vpack.c.b16 %v4121, %v4119
    %v4210 = vpack.c.b16 %v4124, %v4122
    %v4211 = vpack.c.b16 %v4125, %v4123
    %v4212 = vpack.c.b16 %v4128, %v4126
    %v4213 = vpack.c.b16 %v4129, %v4127
    %v4214 = vpack.c.b16 %v4132, %v4130
    %v4215 = vpack.c.b16 %v4133, %v4131
    %v4216 = vpack.c.b16 %v4136, %v4134
    %v4217 = vpack.c.b16 %v4137, %v4135
    %v4218 = vpack.c.b16 %v4140, %v4138
    %v4219 = vpack.c.b16 %v4141, %v4139
    %v4220 = vpack.c.b16 %v4144, %v4142
    %v4221 = vpack.c.b16 %v4145, %v4143
    %v4222 = vpack.c.b16 %v4148, %v4146
    %v4223 = vpack.c.b16 %v4149, %v4147
    %v4224 = vpack.c.b16 %v4152, %v4150
    %v4225 = vpack.c.b16 %v4153, %v4151
    %v4226 = vpack.c.b16 %v4156, %v4154
    %v4227 = vpack.c.b16 %v4157, %v4155
    %v4228 = vpack.c.b16 %v4160, %v4158
    %v4229 = vpack.c.b16 %v4161, %v4159
    %v4230 = vpack.c.b16 %v4164, %v4162
    %v4231 = vpack.c.b16 %v4165, %v4163
    %vm4296 = vcmask 113664
    %v4298 = vsel %vm4296, %v3861, 0
    %v4301 = vsel %vm4296, %v3866, 0
    %v4304 = vsel %vm4296, %v3871, 0
    %v4307 = vsel %vm4296, %v3876, 0
    %v4310 = vsel %vm4296, %v3881, 0
    %v4313 = vsel %vm4296, %v3886, 0
    %v4316 = vsel %vm4296, %v3891, 0
    %v4319 = vsel %vm4296, %v3896, 0
    %v4322 = vsel %vm4296, %v3901, 0
    %vm4324 = vcmask 1046528
    %v4326 = vsel %vm4324, %v4230, 0
    %v4329 = vsel %vm4324, %v4231, 0
    %4331 = vmatpush.bf16.msra.mxu0 %v4180
    %4332 = vmatpush.bf16.msra.mxu0 %v4178
    %4333 = vmatpush.bf16.msra.mxu0 %v4176
    %4334 = vmatpush.bf16.msra.mxu0 %v4174
    %4335 = vmatpush.bf16.msra.mxu0 %v4172
    %4336 = vmatpush.bf16.msra.mxu0 %v4170
    %4337 = vmatpush.bf16.msra.mxu0 %v4168
    %4338 = vmatpush.bf16.msra.mxu0 %v4166
    %4339 = vmatmul.bf16.gmra.mxu0 %v3857
    %v4340 = vpop.f32.mrf.mxu0
    %v4341 = vadd.f32 0.0, %v4340
    %v4342 = vpop.f32.mrf.mxu0
    %v4343 = vadd.f32 0.0, %v4342
    %4344 = vmatmul.bf16.gmra.mxu0 %v3862
    %v4345 = vpop.f32.mrf.mxu0
    %v4346 = vadd.f32 0.0, %v4345
    %v4347 = vpop.f32.mrf.mxu0
    %v4348 = vadd.f32 0.0, %v4347
    %4349 = vmatmul.bf16.gmra.mxu0 %v3867
    %v4350 = vpop.f32.mrf.mxu0
    %v4351 = vadd.f32 0.0, %v4350
    %v4352 = vpop.f32.mrf.mxu0
    %v4353 = vadd.f32 0.0, %v4352
    %4354 = vmatmul.bf16.gmra.mxu0 %v3872
    %v4355 = vpop.f32.mrf.mxu0
    %v4356 = vadd.f32 0.0, %v4355
    %v4357 = vpop.f32.mrf.mxu0
    %v4358 = vadd.f32 0.0, %v4357
    %4359 = vmatmul.bf16.gmra.mxu0 %v3877
    %v4360 = vpop.f32.mrf.mxu0
    %v4361 = vadd.f32 0.0, %v4360
    %v4362 = vpop.f32.mrf.mxu0
    %v4363 = vadd.f32 0.0, %v4362
    %4364 = vmatmul.bf16.gmra.mxu0 %v3882
    %v4365 = vpop.f32.mrf.mxu0
    %v4366 = vadd.f32 0.0, %v4365
    %v4367 = vpop.f32.mrf.mxu0
    %v4368 = vadd.f32 0.0, %v4367
    %4369 = vmatmul.bf16.gmra.mxu0 %v3887
    %v4370 = vpop.f32.mrf.mxu0
    %v4371 = vadd.f32 0.0, %v4370
    %v4372 = vpop.f32.mrf.mxu0
    %v4373 = vadd.f32 0.0, %v4372
    %4374 = vmatmul.bf16.gmra.mxu0 %v3892
    %v4375 = vpop.f32.mrf.mxu0
    %v4376 = vadd.f32 0.0, %v4375
    %v4377 = vpop.f32.mrf.mxu0
    %v4378 = vadd.f32 0.0, %v4377
    %4379 = vmatmul.bf16.gmra.mxu0 %v3897
    %v4380 = vpop.f32.mrf.mxu0
    %v4381 = vadd.f32 0.0, %v4380
    %v4382 = vpop.f32.mrf.mxu0
    %4383 = vdwg.mxu0
    %4384 = vmatpush.bf16.msra.mxu0 %v4196
    %4385 = vmatpush.bf16.msra.mxu0 %v4194
    %4386 = vmatpush.bf16.msra.mxu0 %v4192
    %4387 = vmatpush.bf16.msra.mxu0 %v4190
    %4388 = vmatpush.bf16.msra.mxu0 %v4188
    %4389 = vmatpush.bf16.msra.mxu0 %v4186
    %4390 = vmatpush.bf16.msra.mxu0 %v4184
    %4391 = vmatpush.bf16.msra.mxu0 %v4182
    %4392 = vmatmul.bf16.gmra.mxu0 %v3858
    %v4393 = vpop.f32.mrf.mxu0
    %v4394 = vadd.f32 %v4341, %v4393
    %v4395 = vpop.f32.mrf.mxu0
    %v4396 = vadd.f32 %v4343, %v4395
    %4397 = vmatmul.bf16.gmra.mxu0 %v3863
    %v4398 = vpop.f32.mrf.mxu0
    %v4399 = vadd.f32 %v4346, %v4398
    %v4400 = vpop.f32.mrf.mxu0
    %v4401 = vadd.f32 %v4348, %v4400
    %4402 = vmatmul.bf16.gmra.mxu0 %v3868
    %v4403 = vpop.f32.mrf.mxu0
    %v4404 = vadd.f32 %v4351, %v4403
    %v4405 = vpop.f32.mrf.mxu0
    %v4406 = vadd.f32 %v4353, %v4405
    %4407 = vmatmul.bf16.gmra.mxu0 %v3873
    %v4408 = vpop.f32.mrf.mxu0
    %v4409 = vadd.f32 %v4356, %v4408
    %v4410 = vpop.f32.mrf.mxu0
    %v4411 = vadd.f32 %v4358, %v4410
    %4412 = vmatmul.bf16.gmra.mxu0 %v3878
    %v4413 = vpop.f32.mrf.mxu0
    %v4414 = vadd.f32 %v4361, %v4413
    %v4415 = vpop.f32.mrf.mxu0
    %v4416 = vadd.f32 %v4363, %v4415
    %4417 = vmatmul.bf16.gmra.mxu0 %v3883
    %v4418 = vpop.f32.mrf.mxu0
    %v4419 = vadd.f32 %v4366, %v4418
    %v4420 = vpop.f32.mrf.mxu0
    %v4421 = vadd.f32 %v4368, %v4420
    %4422 = vmatmul.bf16.gmra.mxu0 %v3888
    %v4423 = vpop.f32.mrf.mxu0
    %v4424 = vadd.f32 %v4371, %v4423
    %v4425 = vpop.f32.mrf.mxu0
    %v4426 = vadd.f32 %v4373, %v4425
    %4427 = vmatmul.bf16.gmra.mxu0 %v3893
    %v4428 = vpop.f32.mrf.mxu0
    %v4429 = vadd.f32 %v4376, %v4428
    %v4430 = vpop.f32.mrf.mxu0
    %v4431 = vadd.f32 %v4378, %v4430
    %4432 = vmatmul.bf16.gmra.mxu0 %v3898
    %v4433 = vpop.f32.mrf.mxu0
    %v4434 = vadd.f32 %v4381, %v4433
    %v4435 = vpop.f32.mrf.mxu0
    %4436 = vdwg.mxu0
    %4437 = vmatpush.bf16.msra.mxu0 %v4212
    %4438 = vmatpush.bf16.msra.mxu0 %v4210
    %4439 = vmatpush.bf16.msra.mxu0 %v4208
    %4440 = vmatpush.bf16.msra.mxu0 %v4206
    %4441 = vmatpush.bf16.msra.mxu0 %v4204
    %4442 = vmatpush.bf16.msra.mxu0 %v4202
    %4443 = vmatpush.bf16.msra.mxu0 %v4200
    %4444 = vmatpush.bf16.msra.mxu0 %v4198
    %4445 = vmatmul.bf16.gmra.mxu0 %v3859
    %v4446 = vpop.f32.mrf.mxu0
    %v4447 = vadd.f32 %v4394, %v4446
    %v4448 = vpop.f32.mrf.mxu0
    %v4449 = vadd.f32 %v4396, %v4448
    %4450 = vmatmul.bf16.gmra.mxu0 %v3864
    %v4451 = vpop.f32.mrf.mxu0
    %v4452 = vadd.f32 %v4399, %v4451
    %v4453 = vpop.f32.mrf.mxu0
    %v4454 = vadd.f32 %v4401, %v4453
    %4455 = vmatmul.bf16.gmra.mxu0 %v3869
    %v4456 = vpop.f32.mrf.mxu0
    %v4457 = vadd.f32 %v4404, %v4456
    %v4458 = vpop.f32.mrf.mxu0
    %v4459 = vadd.f32 %v4406, %v4458
    %4460 = vmatmul.bf16.gmra.mxu0 %v3874
    %v4461 = vpop.f32.mrf.mxu0
    %v4462 = vadd.f32 %v4409, %v4461
    %v4463 = vpop.f32.mrf.mxu0
    %v4464 = vadd.f32 %v4411, %v4463
    %4465 = vmatmul.bf16.gmra.mxu0 %v3879
    %v4466 = vpop.f32.mrf.mxu0
    %v4467 = vadd.f32 %v4414, %v4466
    %v4468 = vpop.f32.mrf.mxu0
    %v4469 = vadd.f32 %v4416, %v4468
    %4470 = vmatmul.bf16.gmra.mxu0 %v3884
    %v4471 = vpop.f32.mrf.mxu0
    %v4472 = vadd.f32 %v4419, %v4471
    %v4473 = vpop.f32.mrf.mxu0
    %v4474 = vadd.f32 %v4421, %v4473
    %4475 = vmatmul.bf16.gmra.mxu0 %v3889
    %v4476 = vpop.f32.mrf.mxu0
    %v4477 = vadd.f32 %v4424, %v4476
    %v4478 = vpop.f32.mrf.mxu0
    %v4479 = vadd.f32 %v4426, %v4478
    %4480 = vmatmul.bf16.gmra.mxu0 %v3894
    %v4481 = vpop.f32.mrf.mxu0
    %v4482 = vadd.f32 %v4429, %v4481
    %v4483 = vpop.f32.mrf.mxu0
    %v4484 = vadd.f32 %v4431, %v4483
    %4485 = vmatmul.bf16.gmra.mxu0 %v3899
    %v4486 = vpop.f32.mrf.mxu0
    %v4487 = vadd.f32 %v4434, %v4486
    %v4488 = vpop.f32.mrf.mxu0
    %4489 = vdwg.mxu0
    %4490 = vmatpush.bf16.msra.mxu0 %v4228
    %4491 = vmatpush.bf16.msra.mxu0 %v4226
    %4492 = vmatpush.bf16.msra.mxu0 %v4224
    %4493 = vmatpush.bf16.msra.mxu0 %v4222
    %4494 = vmatpush.bf16.msra.mxu0 %v4220
    %4495 = vmatpush.bf16.msra.mxu0 %v4218
    %4496 = vmatpush.bf16.msra.mxu0 %v4216
    %4497 = vmatpush.bf16.msra.mxu0 %v4214
    %4498 = vmatmul.bf16.gmra.mxu0 %v3860
    %v4499 = vpop.f32.mrf.mxu0
    %v4500 = vadd.f32 %v4447, %v4499
    %v4501 = vpop.f32.mrf.mxu0
    %v4502 = vadd.f32 %v4449, %v4501
    %4503 = vmatmul.bf16.gmra.mxu0 %v3865
    %v4504 = vpop.f32.mrf.mxu0
    %v4505 = vadd.f32 %v4452, %v4504
    %v4506 = vpop.f32.mrf.mxu0
    %v4507 = vadd.f32 %v4454, %v4506
    %4508 = vmatmul.bf16.gmra.mxu0 %v3870
    %v4509 = vpop.f32.mrf.mxu0
    %v4510 = vadd.f32 %v4457, %v4509
    %v4511 = vpop.f32.mrf.mxu0
    %v4512 = vadd.f32 %v4459, %v4511
    %4513 = vmatmul.bf16.gmra.mxu0 %v3875
    %v4514 = vpop.f32.mrf.mxu0
    %v4515 = vadd.f32 %v4462, %v4514
    %v4516 = vpop.f32.mrf.mxu0
    %v4517 = vadd.f32 %v4464, %v4516
    %4518 = vmatmul.bf16.gmra.mxu0 %v3880
    %v4519 = vpop.f32.mrf.mxu0
    %v4520 = vadd.f32 %v4467, %v4519
    %v4521 = vpop.f32.mrf.mxu0
    %v4522 = vadd.f32 %v4469, %v4521
    %4523 = vmatmul.bf16.gmra.mxu0 %v3885
    %v4524 = vpop.f32.mrf.mxu0
    %v4525 = vadd.f32 %v4472, %v4524
    %v4526 = vpop.f32.mrf.mxu0
    %v4527 = vadd.f32 %v4474, %v4526
    %4528 = vmatmul.bf16.gmra.mxu0 %v3890
    %v4529 = vpop.f32.mrf.mxu0
    %v4530 = vadd.f32 %v4477, %v4529
    %v4531 = vpop.f32.mrf.mxu0
    %v4532 = vadd.f32 %v4479, %v4531
    %4533 = vmatmul.bf16.gmra.mxu0 %v3895
    %v4534 = vpop.f32.mrf.mxu0
    %v4535 = vadd.f32 %v4482, %v4534
    %v4536 = vpop.f32.mrf.mxu0
    %v4537 = vadd.f32 %v4484, %v4536
    %4538 = vmatmul.bf16.gmra.mxu0 %v3900
    %v4539 = vpop.f32.mrf.mxu0
    %v4540 = vadd.f32 %v4487, %v4539
    %v4541 = vpop.f32.mrf.mxu0
    %4542 = vdwg.mxu0
    %4543 = vmatpush.bf16.msra.mxu0 0
    %4544 = vmatpush.bf16.msra.mxu0 0
    %4545 = vmatpush.bf16.msra.mxu0 0
    %4546 = vmatpush.bf16.msra.mxu0 0
    %4547 = vmatpush.bf16.msra.mxu0 0
    %4548 = vmatpush.bf16.msra.mxu0 0
    %4549 = vmatpush.bf16.msra.mxu0 0
    %4550 = vmatpush.bf16.msra.mxu0 %v4326
    %4551 = vmatmul.bf16.gmra.mxu0 %v4298
    %v4552 = vpop.f32.mrf.mxu0
    %v4553 = vadd.f32 %v4500, %v4552
    %v4554 = vpop.f32.mrf.mxu0
    %v4555 = vadd.f32 %v4502, %v4554
    %4556 = vmatmul.bf16.gmra.mxu0 %v4301
    %v4557 = vpop.f32.mrf.mxu0
    %v4558 = vadd.f32 %v4505, %v4557
    %v4559 = vpop.f32.mrf.mxu0
    %v4560 = vadd.f32 %v4507, %v4559
    %4561 = vmatmul.bf16.gmra.mxu0 %v4304
    %v4562 = vpop.f32.mrf.mxu0
    %v4563 = vadd.f32 %v4510, %v4562
    %v4564 = vpop.f32.mrf.mxu0
    %v4565 = vadd.f32 %v4512, %v4564
    %4566 = vmatmul.bf16.gmra.mxu0 %v4307
    %v4567 = vpop.f32.mrf.mxu0
    %v4568 = vadd.f32 %v4515, %v4567
    %v4569 = vpop.f32.mrf.mxu0
    %v4570 = vadd.f32 %v4517, %v4569
    %4571 = vmatmul.bf16.gmra.mxu0 %v4310
    %v4572 = vpop.f32.mrf.mxu0
    %v4573 = vadd.f32 %v4520, %v4572
    %v4574 = vpop.f32.mrf.mxu0
    %v4575 = vadd.f32 %v4522, %v4574
    %4576 = vmatmul.bf16.gmra.mxu0 %v4313
    %v4577 = vpop.f32.mrf.mxu0
    %v4578 = vadd.f32 %v4525, %v4577
    %v4579 = vpop.f32.mrf.mxu0
    %v4580 = vadd.f32 %v4527, %v4579
    %4581 = vmatmul.bf16.gmra.mxu0 %v4316
    %v4582 = vpop.f32.mrf.mxu0
    %v4583 = vadd.f32 %v4530, %v4582
    %v4584 = vpop.f32.mrf.mxu0
    %v4585 = vadd.f32 %v4532, %v4584
    %4586 = vmatmul.bf16.gmra.mxu0 %v4319
    %v4587 = vpop.f32.mrf.mxu0
    %v4588 = vadd.f32 %v4535, %v4587
    %v4589 = vpop.f32.mrf.mxu0
    %v4590 = vadd.f32 %v4537, %v4589
    %4591 = vmatmul.bf16.gmra.mxu0 %v4322
    %v4592 = vpop.f32.mrf.mxu0
    %v4593 = vadd.f32 %v4540, %v4592
    %v4594 = vpop.f32.mrf.mxu0
    %4595 = vdwg.mxu0
    %4596 = vmatpush.bf16.msra.mxu0 %v4181
    %4597 = vmatpush.bf16.msra.mxu0 %v4179
    %4598 = vmatpush.bf16.msra.mxu0 %v4177
    %4599 = vmatpush.bf16.msra.mxu0 %v4175
    %4600 = vmatpush.bf16.msra.mxu0 %v4173
    %4601 = vmatpush.bf16.msra.mxu0 %v4171
    %4602 = vmatpush.bf16.msra.mxu0 %v4169
    %4603 = vmatpush.bf16.msra.mxu0 %v4167
    %4604 = vmatmul.bf16.gmra.mxu0 %v3857
    %v4605 = vpop.f32.mrf.mxu0
    %v4606 = vadd.f32 0.0, %v4605
    %v4607 = vpop.f32.mrf.mxu0
    %v4608 = vadd.f32 0.0, %v4607
    %4609 = vmatmul.bf16.gmra.mxu0 %v3862
    %v4610 = vpop.f32.mrf.mxu0
    %v4611 = vadd.f32 0.0, %v4610
    %v4612 = vpop.f32.mrf.mxu0
    %v4613 = vadd.f32 0.0, %v4612
    %4614 = vmatmul.bf16.gmra.mxu0 %v3867
    %v4615 = vpop.f32.mrf.mxu0
    %v4616 = vadd.f32 0.0, %v4615
    %v4617 = vpop.f32.mrf.mxu0
    %v4618 = vadd.f32 0.0, %v4617
    %4619 = vmatmul.bf16.gmra.mxu0 %v3872
    %v4620 = vpop.f32.mrf.mxu0
    %v4621 = vadd.f32 0.0, %v4620
    %v4622 = vpop.f32.mrf.mxu0
    %v4623 = vadd.f32 0.0, %v4622
    %4624 = vmatmul.bf16.gmra.mxu0 %v3877
    %v4625 = vpop.f32.mrf.mxu0
    %v4626 = vadd.f32 0.0, %v4625
    %v4627 = vpop.f32.mrf.mxu0
    %v4628 = vadd.f32 0.0, %v4627
    %4629 = vmatmul.bf16.gmra.mxu0 %v3882
    %v4630 = vpop.f32.mrf.mxu0
    %v4631 = vadd.f32 0.0, %v4630
    %v4632 = vpop.f32.mrf.mxu0
    %v4633 = vadd.f32 0.0, %v4632
    %4634 = vmatmul.bf16.gmra.mxu0 %v3887
    %v4635 = vpop.f32.mrf.mxu0
    %v4636 = vadd.f32 0.0, %v4635
    %v4637 = vpop.f32.mrf.mxu0
    %v4638 = vadd.f32 0.0, %v4637
    %4639 = vmatmul.bf16.gmra.mxu0 %v3892
    %v4640 = vpop.f32.mrf.mxu0
    %v4641 = vadd.f32 0.0, %v4640
    %v4642 = vpop.f32.mrf.mxu0
    %v4643 = vadd.f32 0.0, %v4642
    %4644 = vmatmul.bf16.gmra.mxu0 %v3897
    %v4645 = vpop.f32.mrf.mxu0
    %v4646 = vadd.f32 0.0, %v4645
    %v4647 = vpop.f32.mrf.mxu0
    %4648 = vdwg.mxu0
    %4649 = vmatpush.bf16.msra.mxu0 %v4197
    %4650 = vmatpush.bf16.msra.mxu0 %v4195
    %4651 = vmatpush.bf16.msra.mxu0 %v4193
    %4652 = vmatpush.bf16.msra.mxu0 %v4191
    %4653 = vmatpush.bf16.msra.mxu0 %v4189
    %4654 = vmatpush.bf16.msra.mxu0 %v4187
    %4655 = vmatpush.bf16.msra.mxu0 %v4185
    %4656 = vmatpush.bf16.msra.mxu0 %v4183
    %4657 = vmatmul.bf16.gmra.mxu0 %v3858
    %v4658 = vpop.f32.mrf.mxu0
    %v4659 = vadd.f32 %v4606, %v4658
    %v4660 = vpop.f32.mrf.mxu0
    %v4661 = vadd.f32 %v4608, %v4660
    %4662 = vmatmul.bf16.gmra.mxu0 %v3863
    %v4663 = vpop.f32.mrf.mxu0
    %v4664 = vadd.f32 %v4611, %v4663
    %v4665 = vpop.f32.mrf.mxu0
    %v4666 = vadd.f32 %v4613, %v4665
    %4667 = vmatmul.bf16.gmra.mxu0 %v3868
    %v4668 = vpop.f32.mrf.mxu0
    %v4669 = vadd.f32 %v4616, %v4668
    %v4670 = vpop.f32.mrf.mxu0
    %v4671 = vadd.f32 %v4618, %v4670
    %4672 = vmatmul.bf16.gmra.mxu0 %v3873
    %v4673 = vpop.f32.mrf.mxu0
    %v4674 = vadd.f32 %v4621, %v4673
    %v4675 = vpop.f32.mrf.mxu0
    %v4676 = vadd.f32 %v4623, %v4675
    %4677 = vmatmul.bf16.gmra.mxu0 %v3878
    %v4678 = vpop.f32.mrf.mxu0
    %v4679 = vadd.f32 %v4626, %v4678
    %v4680 = vpop.f32.mrf.mxu0
    %v4681 = vadd.f32 %v4628, %v4680
    %4682 = vmatmul.bf16.gmra.mxu0 %v3883
    %v4683 = vpop.f32.mrf.mxu0
    %v4684 = vadd.f32 %v4631, %v4683
    %v4685 = vpop.f32.mrf.mxu0
    %v4686 = vadd.f32 %v4633, %v4685
    %4687 = vmatmul.bf16.gmra.mxu0 %v3888
    %v4688 = vpop.f32.mrf.mxu0
    %v4689 = vadd.f32 %v4636, %v4688
    %v4690 = vpop.f32.mrf.mxu0
    %v4691 = vadd.f32 %v4638, %v4690
    %4692 = vmatmul.bf16.gmra.mxu0 %v3893
    %v4693 = vpop.f32.mrf.mxu0
    %v4694 = vadd.f32 %v4641, %v4693
    %v4695 = vpop.f32.mrf.mxu0
    %v4696 = vadd.f32 %v4643, %v4695
    %4697 = vmatmul.bf16.gmra.mxu0 %v3898
    %v4698 = vpop.f32.mrf.mxu0
    %v4699 = vadd.f32 %v4646, %v4698
    %v4700 = vpop.f32.mrf.mxu0
    %4701 = vdwg.mxu0
    %4702 = vmatpush.bf16.msra.mxu0 %v4213
    %4703 = vmatpush.bf16.msra.mxu0 %v4211
    %4704 = vmatpush.bf16.msra.mxu0 %v4209
    %4705 = vmatpush.bf16.msra.mxu0 %v4207
    %4706 = vmatpush.bf16.msra.mxu0 %v4205
    %4707 = vmatpush.bf16.msra.mxu0 %v4203
    %4708 = vmatpush.bf16.msra.mxu0 %v4201
    %4709 = vmatpush.bf16.msra.mxu0 %v4199
    %4710 = vmatmul.bf16.gmra.mxu0 %v3859
    %v4711 = vpop.f32.mrf.mxu0
    %v4712 = vadd.f32 %v4659, %v4711
    %v4713 = vpop.f32.mrf.mxu0
    %v4714 = vadd.f32 %v4661, %v4713
    %4715 = vmatmul.bf16.gmra.mxu0 %v3864
    %v4716 = vpop.f32.mrf.mxu0
    %v4717 = vadd.f32 %v4664, %v4716
    %v4718 = vpop.f32.mrf.mxu0
    %v4719 = vadd.f32 %v4666, %v4718
    %4720 = vmatmul.bf16.gmra.mxu0 %v3869
    %v4721 = vpop.f32.mrf.mxu0
    %v4722 = vadd.f32 %v4669, %v4721
    %v4723 = vpop.f32.mrf.mxu0
    %v4724 = vadd.f32 %v4671, %v4723
    %4725 = vmatmul.bf16.gmra.mxu0 %v3874
    %v4726 = vpop.f32.mrf.mxu0
    %v4727 = vadd.f32 %v4674, %v4726
    %v4728 = vpop.f32.mrf.mxu0
    %v4729 = vadd.f32 %v4676, %v4728
    %4730 = vmatmul.bf16.gmra.mxu0 %v3879
    %v4731 = vpop.f32.mrf.mxu0
    %v4732 = vadd.f32 %v4679, %v4731
    %v4733 = vpop.f32.mrf.mxu0
    %v4734 = vadd.f32 %v4681, %v4733
    %4735 = vmatmul.bf16.gmra.mxu0 %v3884
    %v4736 = vpop.f32.mrf.mxu0
    %v4737 = vadd.f32 %v4684, %v4736
    %v4738 = vpop.f32.mrf.mxu0
    %v4739 = vadd.f32 %v4686, %v4738
    %4740 = vmatmul.bf16.gmra.mxu0 %v3889
    %v4741 = vpop.f32.mrf.mxu0
    %v4742 = vadd.f32 %v4689, %v4741
    %v4743 = vpop.f32.mrf.mxu0
    %v4744 = vadd.f32 %v4691, %v4743
    %4745 = vmatmul.bf16.gmra.mxu0 %v3894
    %v4746 = vpop.f32.mrf.mxu0
    %v4747 = vadd.f32 %v4694, %v4746
    %v4748 = vpop.f32.mrf.mxu0
    %v4749 = vadd.f32 %v4696, %v4748
    %4750 = vmatmul.bf16.gmra.mxu0 %v3899
    %v4751 = vpop.f32.mrf.mxu0
    %v4752 = vadd.f32 %v4699, %v4751
    %v4753 = vpop.f32.mrf.mxu0
    %4754 = vdwg.mxu0
    %4755 = vmatpush.bf16.msra.mxu0 %v4229
    %4756 = vmatpush.bf16.msra.mxu0 %v4227
    %4757 = vmatpush.bf16.msra.mxu0 %v4225
    %4758 = vmatpush.bf16.msra.mxu0 %v4223
    %4759 = vmatpush.bf16.msra.mxu0 %v4221
    %4760 = vmatpush.bf16.msra.mxu0 %v4219
    %4761 = vmatpush.bf16.msra.mxu0 %v4217
    %4762 = vmatpush.bf16.msra.mxu0 %v4215
    %4763 = vmatmul.bf16.gmra.mxu0 %v3860
    %v4764 = vpop.f32.mrf.mxu0
    %v4765 = vadd.f32 %v4712, %v4764
    %v4766 = vpop.f32.mrf.mxu0
    %v4767 = vadd.f32 %v4714, %v4766
    %4768 = vmatmul.bf16.gmra.mxu0 %v3865
    %v4769 = vpop.f32.mrf.mxu0
    %v4770 = vadd.f32 %v4717, %v4769
    %v4771 = vpop.f32.mrf.mxu0
    %v4772 = vadd.f32 %v4719, %v4771
    %4773 = vmatmul.bf16.gmra.mxu0 %v3870
    %v4774 = vpop.f32.mrf.mxu0
    %v4775 = vadd.f32 %v4722, %v4774
    %v4776 = vpop.f32.mrf.mxu0
    %v4777 = vadd.f32 %v4724, %v4776
    %4778 = vmatmul.bf16.gmra.mxu0 %v3875
    %v4779 = vpop.f32.mrf.mxu0
    %v4780 = vadd.f32 %v4727, %v4779
    %v4781 = vpop.f32.mrf.mxu0
    %v4782 = vadd.f32 %v4729, %v4781
    %4783 = vmatmul.bf16.gmra.mxu0 %v3880
    %v4784 = vpop.f32.mrf.mxu0
    %v4785 = vadd.f32 %v4732, %v4784
    %v4786 = vpop.f32.mrf.mxu0
    %v4787 = vadd.f32 %v4734, %v4786
    %4788 = vmatmul.bf16.gmra.mxu0 %v3885
    %v4789 = vpop.f32.mrf.mxu0
    %v4790 = vadd.f32 %v4737, %v4789
    %v4791 = vpop.f32.mrf.mxu0
    %v4792 = vadd.f32 %v4739, %v4791
    %4793 = vmatmul.bf16.gmra.mxu0 %v3890
    %v4794 = vpop.f32.mrf.mxu0
    %v4795 = vadd.f32 %v4742, %v4794
    %v4796 = vpop.f32.mrf.mxu0
    %v4797 = vadd.f32 %v4744, %v4796
    %4798 = vmatmul.bf16.gmra.mxu0 %v3895
    %v4799 = vpop.f32.mrf.mxu0
    %v4800 = vadd.f32 %v4747, %v4799
    %v4801 = vpop.f32.mrf.mxu0
    %v4802 = vadd.f32 %v4749, %v4801
    %4803 = vmatmul.bf16.gmra.mxu0 %v3900
    %v4804 = vpop.f32.mrf.mxu0
    %v4805 = vadd.f32 %v4752, %v4804
    %v4806 = vpop.f32.mrf.mxu0
    %4807 = vdwg.mxu0
    %4808 = vmatpush.bf16.msra.mxu0 0
    %4809 = vmatpush.bf16.msra.mxu0 0
    %4810 = vmatpush.bf16.msra.mxu0 0
    %4811 = vmatpush.bf16.msra.mxu0 0
    %4812 = vmatpush.bf16.msra.mxu0 0
    %4813 = vmatpush.bf16.msra.mxu0 0
    %4814 = vmatpush.bf16.msra.mxu0 0
    %4815 = vmatpush.bf16.msra.mxu0 %v4329
    %4816 = vmatmul.bf16.gmra.mxu0 %v4298
    %v4817 = vpop.f32.mrf.mxu0
    %v4818 = vadd.f32 %v4765, %v4817
    %v4819 = vpop.f32.mrf.mxu0
    %v4820 = vadd.f32 %v4767, %v4819
    %4821 = vmatmul.bf16.gmra.mxu0 %v4301
    %v4822 = vpop.f32.mrf.mxu0
    %v4823 = vadd.f32 %v4770, %v4822
    %v4824 = vpop.f32.mrf.mxu0
    %v4825 = vadd.f32 %v4772, %v4824
    %4826 = vmatmul.bf16.gmra.mxu0 %v4304
    %v4827 = vpop.f32.mrf.mxu0
    %v4828 = vadd.f32 %v4775, %v4827
    %v4829 = vpop.f32.mrf.mxu0
    %v4830 = vadd.f32 %v4777, %v4829
    %4831 = vmatmul.bf16.gmra.mxu0 %v4307
    %v4832 = vpop.f32.mrf.mxu0
    %v4833 = vadd.f32 %v4780, %v4832
    %v4834 = vpop.f32.mrf.mxu0
    %v4835 = vadd.f32 %v4782, %v4834
    %4836 = vmatmul.bf16.gmra.mxu0 %v4310
    %v4837 = vpop.f32.mrf.mxu0
    %v4838 = vadd.f32 %v4785, %v4837
    %v4839 = vpop.f32.mrf.mxu0
    %v4840 = vadd.f32 %v4787, %v4839
    %4841 = vmatmul.bf16.gmra.mxu0 %v4313
    %v4842 = vpop.f32.mrf.mxu0
    %v4843 = vadd.f32 %v4790, %v4842
    %v4844 = vpop.f32.mrf.mxu0
    %v4845 = vadd.f32 %v4792, %v4844
    %4846 = vmatmul.bf16.gmra.mxu0 %v4316
    %v4847 = vpop.f32.mrf.mxu0
    %v4848 = vadd.f32 %v4795, %v4847
    %v4849 = vpop.f32.mrf.mxu0
    %v4850 = vadd.f32 %v4797, %v4849
    %4851 = vmatmul.bf16.gmra.mxu0 %v4319
    %v4852 = vpop.f32.mrf.mxu0
    %v4853 = vadd.f32 %v4800, %v4852
    %v4854 = vpop.f32.mrf.mxu0
    %v4855 = vadd.f32 %v4802, %v4854
    %4856 = vmatmul.bf16.gmra.mxu0 %v4322
    %v4857 = vpop.f32.mrf.mxu0
    %v4858 = vadd.f32 %v4805, %v4857
    %v4859 = vpop.f32.mrf.mxu0
    %4860 = vdwg.mxu0
    %v4895 = vrot.slane %v4553, 1
    %v4896 = vrot.slane %v4555, 1
    %v4897 = vsel %vm4324, %v4895, %v4896
    %v4898 = vrot.slane %v4818, 1
    %v4899 = vrot.slane %v4820, 1
    %v4900 = vsel %vm4324, %v4898, %v4899
    %v4901 = vrot.slane %v4558, 1
    %v4902 = vsel %vm4324, %v4896, %v4901
    %v4903 = vrot.slane %v4823, 1
    %v4904 = vsel %vm4324, %v4899, %v4903
    %v4905 = vrot.slane %v4560, 1
    %v4906 = vsel %vm4324, %v4901, %v4905
    %v4907 = vrot.slane %v4825, 1
    %v4908 = vsel %vm4324, %v4903, %v4907
    %v4909 = vrot.slane %v4563, 1
    %v4910 = vsel %vm4324, %v4905, %v4909
    %v4911 = vrot.slane %v4828, 1
    %v4912 = vsel %vm4324, %v4907, %v4911
    %v4913 = vrot.slane %v4565, 1
    %v4914 = vsel %vm4324, %v4909, %v4913
    %v4915 = vrot.slane %v4830, 1
    %v4916 = vsel %vm4324, %v4911, %v4915
    %v4917 = vrot.slane %v4568, 1
    %v4918 = vsel %vm4324, %v4913, %v4917
    %v4919 = vrot.slane %v4833, 1
    %v4920 = vsel %vm4324, %v4915, %v4919
    %v4921 = vrot.slane %v4570, 1
    %v4922 = vsel %vm4324, %v4917, %v4921
    %v4923 = vrot.slane %v4835, 1
    %v4924 = vsel %vm4324, %v4919, %v4923
    %v4925 = vrot.slane %v4573, 1
    %v4926 = vsel %vm4324, %v4921, %v4925
    %v4927 = vrot.slane %v4838, 1
    %v4928 = vsel %vm4324, %v4923, %v4927
    %v4929 = vrot.slane %v4575, 1
    %v4930 = vsel %vm4324, %v4925, %v4929
    %v4931 = vrot.slane %v4840, 1
    %v4932 = vsel %vm4324, %v4927, %v4931
    %v4933 = vrot.slane %v4578, 1
    %v4934 = vsel %vm4324, %v4929, %v4933
    %v4935 = vrot.slane %v4843, 1
    %v4936 = vsel %vm4324, %v4931, %v4935
    %v4937 = vrot.slane %v4580, 1
    %v4938 = vsel %vm4324, %v4933, %v4937
    %v4939 = vrot.slane %v4845, 1
    %v4940 = vsel %vm4324, %v4935, %v4939
    %v4941 = vrot.slane %v4583, 1
    %v4942 = vsel %vm4324, %v4937, %v4941
    %v4943 = vrot.slane %v4848, 1
    %v4944 = vsel %vm4324, %v4939, %v4943
    %v4945 = vrot.slane %v4585, 1
    %v4946 = vsel %vm4324, %v4941, %v4945
    %v4947 = vrot.slane %v4850, 1
    %v4948 = vsel %vm4324, %v4943, %v4947
    %v4949 = vrot.slane %v4588, 1
    %v4950 = vsel %vm4324, %v4945, %v4949
    %v4951 = vrot.slane %v4853, 1
    %v4952 = vsel %vm4324, %v4947, %v4951
    %v4953 = vrot.slane %v4590, 1
    %v4954 = vsel %vm4324, %v4949, %v4953
    %v4955 = vrot.slane %v4855, 1
    %v4956 = vsel %vm4324, %v4951, %v4955
    %v4957 = vrot.slane %v4593, 1
    %v4958 = vsel %vm4324, %v4953, %v4957
    %v4959 = vrot.slane %v4858, 1
    %v4960 = vsel %vm4324, %v4955, %v4959
    %v4995 = vmax.f32 %v4553, %v4897
    %v4996 = vmax.f32 %v4818, %v4900
    %v4997 = vmax.f32 %v4555, %v4902
    %v4998 = vmax.f32 %v4820, %v4904
    %v4999 = vmax.f32 %v4558, %v4906
    %v5000 = vmax.f32 %v4823, %v4908
    %v5001 = vmax.f32 %v4560, %v4910
    %v5002 = vmax.f32 %v4825, %v4912
    %v5003 = vmax.f32 %v4563, %v4914
    %v5004 = vmax.f32 %v4828, %v4916
    %v5005 = vmax.f32 %v4565, %v4918
    %v5006 = vmax.f32 %v4830, %v4920
    %v5007 = vmax.f32 %v4568, %v4922
    %v5008 = vmax.f32 %v4833, %v4924
    %v5009 = vmax.f32 %v4570, %v4926
    %v5010 = vmax.f32 %v4835, %v4928
    %v5011 = vmax.f32 %v4573, %v4930
    %v5012 = vmax.f32 %v4838, %v4932
    %v5013 = vmax.f32 %v4575, %v4934
    %v5014 = vmax.f32 %v4840, %v4936
    %v5015 = vmax.f32 %v4578, %v4938
    %v5016 = vmax.f32 %v4843, %v4940
    %v5017 = vmax.f32 %v4580, %v4942
    %v5018 = vmax.f32 %v4845, %v4944
    %v5019 = vmax.f32 %v4583, %v4946
    %v5020 = vmax.f32 %v4848, %v4948
    %v5021 = vmax.f32 %v4585, %v4950
    %v5022 = vmax.f32 %v4850, %v4952
    %v5023 = vmax.f32 %v4588, %v4954
    %v5024 = vmax.f32 %v4853, %v4956
    %v5025 = vmax.f32 %v4590, %v4958
    %v5026 = vmax.f32 %v4855, %v4960
    %v5027 = vmax.f32 %v4593, %v4957
    %v5028 = vmax.f32 %v4858, %v4959
    %vm5029 = vcmask 1045504
    %v5030 = vrot.slane %v4553, 2
    %v5031 = vrot.slane %v4555, 2
    %v5032 = vsel %vm5029, %v5030, %v5031
    %v5033 = vrot.slane %v4818, 2
    %v5034 = vrot.slane %v4820, 2
    %v5035 = vsel %vm5029, %v5033, %v5034
    %v5036 = vrot.slane %v4558, 2
    %v5037 = vsel %vm5029, %v5031, %v5036
    %v5038 = vrot.slane %v4823, 2
    %v5039 = vsel %vm5029, %v5034, %v5038
    %v5040 = vrot.slane %v4560, 2
    %v5041 = vsel %vm5029, %v5036, %v5040
    %v5042 = vrot.slane %v4825, 2
    %v5043 = vsel %vm5029, %v5038, %v5042
    %v5044 = vrot.slane %v4563, 2
    %v5045 = vsel %vm5029, %v5040, %v5044
    %v5046 = vrot.slane %v4828, 2
    %v5047 = vsel %vm5029, %v5042, %v5046
    %v5048 = vrot.slane %v4565, 2
    %v5049 = vsel %vm5029, %v5044, %v5048
    %v5050 = vrot.slane %v4830, 2
    %v5051 = vsel %vm5029, %v5046, %v5050
    %v5052 = vrot.slane %v4568, 2
    %v5053 = vsel %vm5029, %v5048, %v5052
    %v5054 = vrot.slane %v4833, 2
    %v5055 = vsel %vm5029, %v5050, %v5054
    %v5056 = vrot.slane %v4570, 2
    %v5057 = vsel %vm5029, %v5052, %v5056
    %v5058 = vrot.slane %v4835, 2
    %v5059 = vsel %vm5029, %v5054, %v5058
    %v5060 = vrot.slane %v4573, 2
    %v5061 = vsel %vm5029, %v5056, %v5060
    %v5062 = vrot.slane %v4838, 2
    %v5063 = vsel %vm5029, %v5058, %v5062
    %v5064 = vrot.slane %v4575, 2
    %v5065 = vsel %vm5029, %v5060, %v5064
    %v5066 = vrot.slane %v4840, 2
    %v5067 = vsel %vm5029, %v5062, %v5066
    %v5068 = vrot.slane %v4578, 2
    %v5069 = vsel %vm5029, %v5064, %v5068
    %v5070 = vrot.slane %v4843, 2
    %v5071 = vsel %vm5029, %v5066, %v5070
    %v5072 = vrot.slane %v4580, 2
    %v5073 = vsel %vm5029, %v5068, %v5072
    %v5074 = vrot.slane %v4845, 2
    %v5075 = vsel %vm5029, %v5070, %v5074
    %v5076 = vrot.slane %v4583, 2
    %v5077 = vsel %vm5029, %v5072, %v5076
    %v5078 = vrot.slane %v4848, 2
    %v5079 = vsel %vm5029, %v5074, %v5078
    %v5080 = vrot.slane %v4585, 2
    %v5081 = vsel %vm5029, %v5076, %v5080
    %v5082 = vrot.slane %v4850, 2
    %v5083 = vsel %vm5029, %v5078, %v5082
    %v5084 = vrot.slane %v4588, 2
    %v5085 = vsel %vm5029, %v5080, %v5084
    %v5086 = vrot.slane %v4853, 2
    %v5087 = vsel %vm5029, %v5082, %v5086
    %v5088 = vrot.slane %v4590, 2
    %v5089 = vsel %vm5029, %v5084, %v5088
    %v5090 = vrot.slane %v4855, 2
    %v5091 = vsel %vm5029, %v5086, %v5090
    %v5092 = vrot.slane %v4593, 2
    %v5093 = vsel %vm5029, %v5088, %v5092
    %v5094 = vrot.slane %v4858, 2
    %v5095 = vsel %vm5029, %v5090, %v5094
    %v5130 = vmax.f32 %v4995, %v5032
    %v5131 = vmax.f32 %v4996, %v5035
    %v5132 = vmax.f32 %v4997, %v5037
    %v5133 = vmax.f32 %v4998, %v5039
    %v5134 = vmax.f32 %v4999, %v5041
    %v5135 = vmax.f32 %v5000, %v5043
    %v5136 = vmax.f32 %v5001, %v5045
    %v5137 = vmax.f32 %v5002, %v5047
    %v5138 = vmax.f32 %v5003, %v5049
    %v5139 = vmax.f32 %v5004, %v5051
    %v5140 = vmax.f32 %v5005, %v5053
    %v5141 = vmax.f32 %v5006, %v5055
    %v5142 = vmax.f32 %v5007, %v5057
    %v5143 = vmax.f32 %v5008, %v5059
    %v5144 = vmax.f32 %v5009, %v5061
    %v5145 = vmax.f32 %v5010, %v5063
    %v5146 = vmax.f32 %v5011, %v5065
    %v5147 = vmax.f32 %v5012, %v5067
    %v5148 = vmax.f32 %v5013, %v5069
    %v5149 = vmax.f32 %v5014, %v5071
    %v5150 = vmax.f32 %v5015, %v5073
    %v5151 = vmax.f32 %v5016, %v5075
    %v5152 = vmax.f32 %v5017, %v5077
    %v5153 = vmax.f32 %v5018, %v5079
    %v5154 = vmax.f32 %v5019, %v5081
    %v5155 = vmax.f32 %v5020, %v5083
    %v5156 = vmax.f32 %v5021, %v5085
    %v5157 = vmax.f32 %v5022, %v5087
    %v5158 = vmax.f32 %v5023, %v5089
    %v5159 = vmax.f32 %v5024, %v5091
    %v5160 = vmax.f32 %v5025, %v5093
    %v5161 = vmax.f32 %v5026, %v5095
    %v5162 = vmax.f32 %v5027, %v5092
    %v5163 = vmax.f32 %v5028, %v5094
    %v5164 = vld [vmem:[%s4] sm:$0xff]
    %v5165 = vld [vmem:[%s4 + $0x8] sm:$0xff]
    %v5166 = vld [vmem:[%s4 + $0x10] sm:$0xff]
    %v5167 = vld [vmem:[%s4 + $0x18] sm:$0xff]
    %v5168 = vld [vmem:[%s4 + $0x20] sm:$0xff]
    %v5169 = vld [vmem:[%s4 + $0x28] sm:$0x33]
    %v5170 = vpack.c.bf16 %v5132, %v5130
    %v5171 = vpack.c.bf16 %v5133, %v5131
    %v5172 = vpack.c.bf16 %v5136, %v5134
    %v5173 = vpack.c.bf16 %v5137, %v5135
    %v5174 = vpack.c.bf16 %v5140, %v5138
    %v5175 = vpack.c.bf16 %v5141, %v5139
    %v5176 = vpack.c.bf16 %v5144, %v5142
    %v5177 = vpack.c.bf16 %v5145, %v5143
    %v5178 = vpack.c.bf16 %v5148, %v5146
    %v5179 = vpack.c.bf16 %v5149, %v5147
    %v5180 = vpack.c.bf16 %v5152, %v5150
    %v5181 = vpack.c.bf16 %v5153, %v5151
    %v5182 = vpack.c.bf16 %v5156, %v5154
    %v5183 = vpack.c.bf16 %v5157, %v5155
    %v5184 = vpack.c.bf16 %v5160, %v5158
    %v5185 = vpack.c.bf16 %v5161, %v5159
    %v5186 = vpack.c.bf16 %v5162, %v5162
    %v5187 = vpack.c.bf16 %v5163, %v5163
    %v5194 = vunpack.c.l.b16 %v5164
    %v5195 = vunpack.c.h.b16 %v5164
    %v5196 = vunpack.c.l.b16 %v5165
    %v5197 = vunpack.c.h.b16 %v5165
    %v5198 = vunpack.c.l.b16 %v5166
    %v5199 = vunpack.c.h.b16 %v5166
    %v5200 = vunpack.c.l.b16 %v5167
    %v5201 = vunpack.c.h.b16 %v5167
    %v5202 = vunpack.c.l.b16 %v5168
    %v5203 = vunpack.c.h.b16 %v5168
    %v5204 = vunpack.c.l.b16 %v5169
    %v5205 = vunpack.c.h.b16 %v5169
    %v5206 = vpack.c.b16 %v5196, %v5194
    %v5207 = vpack.c.b16 %v5197, %v5195
    %v5208 = vpack.c.b16 %v5200, %v5198
    %v5209 = vpack.c.b16 %v5201, %v5199
    %v5210 = vpack.c.b16 %v5204, %v5202
    %v5211 = vpack.c.b16 %v5205, %v5203
    %vm5215 = vcmask 48128
    %v5217 = vsel %vm5215, %v5207, 0
    %v5220 = vsel %vm5215, %v5209, 0
    %v5223 = vsel %vm5215, %v5211, 0
    %v5226 = vsel %vm383, %v5186, 0
    %v5229 = vsel %vm383, %v5187, 0
    %5231 = vmatpush.bf16.msra.mxu0 %v5184
    %5232 = vmatpush.bf16.msra.mxu0 %v5182
    %5233 = vmatpush.bf16.msra.mxu0 %v5180
    %5234 = vmatpush.bf16.msra.mxu0 %v5178
    %5235 = vmatpush.bf16.msra.mxu0 %v5176
    %5236 = vmatpush.bf16.msra.mxu0 %v5174
    %5237 = vmatpush.bf16.msra.mxu0 %v5172
    %5238 = vmatpush.bf16.msra.mxu0 %v5170
    %5239 = vmatmul.bf16.gmra.mxu0 %v5206
    %v5240 = vpop.f32.mrf.mxu0
    %v5241 = vadd.f32 0.0, %v5240
    %v5242 = vpop.f32.mrf.mxu0
    %v5243 = vadd.f32 0.0, %v5242
    %5244 = vmatmul.bf16.gmra.mxu0 %v5208
    %v5245 = vpop.f32.mrf.mxu0
    %v5246 = vadd.f32 0.0, %v5245
    %v5247 = vpop.f32.mrf.mxu0
    %v5248 = vadd.f32 0.0, %v5247
    %5249 = vmatmul.bf16.gmra.mxu0 %v5210
    %v5250 = vpop.f32.mrf.mxu0
    %v5251 = vadd.f32 0.0, %v5250
    %v5252 = vpop.f32.mrf.mxu0
    %v5253 = vadd.f32 0.0, %v5252
    %5254 = vdwg.mxu0
    %5255 = vmatpush.bf16.msra.mxu0 0
    %5256 = vmatpush.bf16.msra.mxu0 0
    %5257 = vmatpush.bf16.msra.mxu0 0
    %5258 = vmatpush.bf16.msra.mxu0 0
    %5259 = vmatpush.bf16.msra.mxu0 0
    %5260 = vmatpush.bf16.msra.mxu0 0
    %5261 = vmatpush.bf16.msra.mxu0 0
    %5262 = vmatpush.bf16.msra.mxu0 %v5226
    %5263 = vmatmul.bf16.gmra.mxu0 %v5217
    %v5264 = vpop.f32.mrf.mxu0
    %v5265 = vadd.f32 %v5241, %v5264
    %v5266 = vpop.f32.mrf.mxu0
    %v5267 = vadd.f32 %v5243, %v5266
    %5268 = vmatmul.bf16.gmra.mxu0 %v5220
    %v5269 = vpop.f32.mrf.mxu0
    %v5270 = vadd.f32 %v5246, %v5269
    %v5271 = vpop.f32.mrf.mxu0
    %v5272 = vadd.f32 %v5248, %v5271
    %5273 = vmatmul.bf16.gmra.mxu0 %v5223
    %v5274 = vpop.f32.mrf.mxu0
    %v5275 = vadd.f32 %v5251, %v5274
    %v5276 = vpop.f32.mrf.mxu0
    %v5277 = vadd.f32 %v5253, %v5276
    %5278 = vdwg.mxu0
    %5279 = vmatpush.bf16.msra.mxu0 %v5185
    %5280 = vmatpush.bf16.msra.mxu0 %v5183
    %5281 = vmatpush.bf16.msra.mxu0 %v5181
    %5282 = vmatpush.bf16.msra.mxu0 %v5179
    %5283 = vmatpush.bf16.msra.mxu0 %v5177
    %5284 = vmatpush.bf16.msra.mxu0 %v5175
    %5285 = vmatpush.bf16.msra.mxu0 %v5173
    %5286 = vmatpush.bf16.msra.mxu0 %v5171
    %5287 = vmatmul.bf16.gmra.mxu0 %v5206
    %v5288 = vpop.f32.mrf.mxu0
    %v5289 = vadd.f32 0.0, %v5288
    %v5290 = vpop.f32.mrf.mxu0
    %v5291 = vadd.f32 0.0, %v5290
    %5292 = vmatmul.bf16.gmra.mxu0 %v5208
    %v5293 = vpop.f32.mrf.mxu0
    %v5294 = vadd.f32 0.0, %v5293
    %v5295 = vpop.f32.mrf.mxu0
    %v5296 = vadd.f32 0.0, %v5295
    %5297 = vmatmul.bf16.gmra.mxu0 %v5210
    %v5298 = vpop.f32.mrf.mxu0
    %v5299 = vadd.f32 0.0, %v5298
    %v5300 = vpop.f32.mrf.mxu0
    %v5301 = vadd.f32 0.0, %v5300
    %5302 = vdwg.mxu0
    %5303 = vmatpush.bf16.msra.mxu0 0
    %5304 = vmatpush.bf16.msra.mxu0 0
    %5305 = vmatpush.bf16.msra.mxu0 0
    %5306 = vmatpush.bf16.msra.mxu0 0
    %5307 = vmatpush.bf16.msra.mxu0 0
    %5308 = vmatpush.bf16.msra.mxu0 0
    %5309 = vmatpush.bf16.msra.mxu0 0
    %5310 = vmatpush.bf16.msra.mxu0 %v5229
    %5311 = vmatmul.bf16.gmra.mxu0 %v5217
    %v5312 = vpop.f32.mrf.mxu0
    %v5313 = vadd.f32 %v5289, %v5312
    %v5314 = vpop.f32.mrf.mxu0
    %v5315 = vadd.f32 %v5291, %v5314
    %5316 = vmatmul.bf16.gmra.mxu0 %v5220
    %v5317 = vpop.f32.mrf.mxu0
    %v5318 = vadd.f32 %v5294, %v5317
    %v5319 = vpop.f32.mrf.mxu0
    %v5320 = vadd.f32 %v5296, %v5319
    %5321 = vmatmul.bf16.gmra.mxu0 %v5223
    %v5322 = vpop.f32.mrf.mxu0
    %v5323 = vadd.f32 %v5299, %v5322
    %v5324 = vpop.f32.mrf.mxu0
    %v5325 = vadd.f32 %v5301, %v5324
    %5326 = vdwg.mxu0
    %v5327 = vpack.c.bf16 %v5267, %v5265
    %v5328 = vpack.c.bf16 %v5315, %v5313
    %v5329 = vpack.c.bf16 %v5272, %v5270
    %v5330 = vpack.c.bf16 %v5320, %v5318
    %v5331 = vpack.c.bf16 %v5277, %v5275
    %v5332 = vpack.c.bf16 %v5325, %v5323
    %v5333 = vld [vmem:[#allocation4] sm:$0xff]
    %v5334 = vld [vmem:[#allocation4 + $0x8] sm:$0xf]
    %v5335 = vld [vmem:[#allocation4 + $0xc] sm:$0xff]
    %v5336 = vld [vmem:[#allocation4 + $0x14] sm:$0xf]
    %v5337 = vld [vmem:[#allocation4 + $0x18] sm:$0xff]
    %v5338 = vld [vmem:[#allocation4 + $0x20] sm:$0xf]
    %v5339 = vld [vmem:[#allocation4 + $0x24] sm:$0xff]
    %v5340 = vld [vmem:[#allocation4 + $0x2c] sm:$0xf]
    %v5341 = vld [vmem:[#allocation4 + $0x30] sm:$0xff]
    %v5342 = vld [vmem:[#allocation4 + $0x38] sm:$0xf]
    %v5343 = vld [vmem:[#allocation4 + $0x3c] sm:$0xff]
    %v5344 = vld [vmem:[#allocation4 + $0x44] sm:$0xf]
    %v5345 = vld [vmem:[#allocation4 + $0x48] sm:$0xff]
    %v5346 = vld [vmem:[#allocation4 + $0x50] sm:$0xf]
    %v5347 = vld [vmem:[#allocation4 + $0x54] sm:$0xff]
    %v5348 = vld [vmem:[#allocation4 + $0x5c] sm:$0xf]
    %v5349 = vld [vmem:[#allocation4 + $0x60] sm:$0xff]
    %v5350 = vld [vmem:[#allocation4 + $0x68] sm:$0xf]
    %v5351 = vld [vmem:[#allocation4 + $0x6c] sm:$0xff]
    %v5352 = vld [vmem:[#allocation4 + $0x74] sm:$0xf]
    %v5353 = vld [vmem:[#allocation4 + $0x78] sm:$0xff]
    %v5354 = vld [vmem:[#allocation4 + $0x80] sm:$0xf]
    %v5355 = vld [vmem:[#allocation4 + $0x84] sm:$0xff]
    %v5356 = vld [vmem:[#allocation4 + $0x8c] sm:$0xf]
    %v5357 = vld [vmem:[#allocation4 + $0x90] sm:$0xff]
    %v5358 = vld [vmem:[#allocation4 + $0x98] sm:$0xf]
    %v5359 = vld [vmem:[#allocation4 + $0x9c] sm:$0xff]
    %v5360 = vld [vmem:[#allocation4 + $0xa4] sm:$0xf]
    %v5361 = vld [vmem:[#allocation4 + $0xa8] sm:$0xff]
    %v5362 = vld [vmem:[#allocation4 + $0xb0] sm:$0xf]
    %v5363 = vld [vmem:[#allocation4 + $0xb4] sm:$0xff]
    %v5364 = vld [vmem:[#allocation4 + $0xbc] sm:$0xf]
    %v5365 = vld [vmem:[#allocation4 + $0xc0] sm:$0xff]
    %v5366 = vld [vmem:[#allocation4 + $0xc8] sm:$0xf]
    %v5367 = vld [vmem:[#allocation4 + $0xcc] sm:$0xff]
    %v5368 = vld [vmem:[#allocation4 + $0xd4] sm:$0xf]
    %v5369 = vld [vmem:[#allocation4 + $0xd8] sm:$0xff]
    %v5370 = vld [vmem:[#allocation4 + $0xe0] sm:$0xf]
    %v5371 = vld [vmem:[#allocation4 + $0xe4] sm:$0xff]
    %v5372 = vld [vmem:[#allocation4 + $0xec] sm:$0xf]
    %v5373 = vld [vmem:[#allocation4 + $0xf0] sm:$0xff]
    %v5374 = vld [vmem:[#allocation4 + $0xf8] sm:$0xf]
    %v5375 = vld [vmem:[#allocation4 + $0xfc] sm:$0xff]
    %v5376 = vld [vmem:[#allocation4 + $0x104] sm:$0xf]
    %s5377 = scalar_lea.vmem [#allocation4], 264
    %v5378 = vld [vmem:[%s5377] sm:$0xff]
    %v5379 = vld [vmem:[%s5377 + $0x8] sm:$0xf]
    %v5380 = vld [vmem:[%s5377 + $0xc] sm:$0xff]
    %v5381 = vld [vmem:[%s5377 + $0x14] sm:$0xf]
    %v5382 = vld [vmem:[%s5377 + $0x18] sm:$0xff]
    %v5383 = vld [vmem:[%s5377 + $0x20] sm:$0xf]
    %v5384 = vld [vmem:[%s5377 + $0x24] sm:$0xff]
    %v5385 = vld [vmem:[%s5377 + $0x2c] sm:$0xf]
    %v5386 = vld [vmem:[%s5377 + $0x30] sm:$0xff]
    %v5387 = vld [vmem:[%s5377 + $0x38] sm:$0xf]
    %v5388 = vld [vmem:[%s5377 + $0x3c] sm:$0xff]
    %v5389 = vld [vmem:[%s5377 + $0x44] sm:$0xf]
    %v5390 = vld [vmem:[%s5377 + $0x48] sm:$0xff]
    %v5391 = vld [vmem:[%s5377 + $0x50] sm:$0xf]
    %v5392 = vld [vmem:[%s5377 + $0x54] sm:$0xff]
    %v5393 = vld [vmem:[%s5377 + $0x5c] sm:$0xf]
    %v5394 = vld [vmem:[%s5377 + $0x60] sm:$0xff]
    %v5395 = vld [vmem:[%s5377 + $0x68] sm:$0xf]
    %v5396 = vld [vmem:[%s5377 + $0x6c] sm:$0xff]
    %v5397 = vld [vmem:[%s5377 + $0x74] sm:$0xf]
    %v5398 = vld [vmem:[%s5377 + $0x78] sm:$0xff]
    %v5399 = vld [vmem:[%s5377 + $0x80] sm:$0xf]
    %v5400 = vld [vmem:[%s5377 + $0x84] sm:$0xff]
    %v5401 = vld [vmem:[%s5377 + $0x8c] sm:$0xf]
    %v5402 = vld [vmem:[%s5377 + $0x90] sm:$0xff]
    %v5403 = vld [vmem:[%s5377 + $0x98] sm:$0xf]
    %v5404 = vld [vmem:[%s5377 + $0x9c] sm:$0xff]
    %v5405 = vld [vmem:[%s5377 + $0xa4] sm:$0xf]
    %v5406 = vld [vmem:[%s5377 + $0xa8] sm:$0xff]
    %v5407 = vld [vmem:[%s5377 + $0xb0] sm:$0xf]
    %v5408 = vld [vmem:[%s5377 + $0xb4] sm:$0xff]
    %v5409 = vld [vmem:[%s5377 + $0xbc] sm:$0xf]
    %v5410 = vld [vmem:[%s5377 + $0xc0] sm:$0xff]
    %v5411 = vld [vmem:[%s5377 + $0xc8] sm:$0xf]
    %v5412 = vld [vmem:[%s5377 + $0xcc] sm:$0xff]
    %v5413 = vld [vmem:[%s5377 + $0xd4] sm:$0xf]
    %v5414 = vld [vmem:[%s5377 + $0xd8] sm:$0xff]
    %v5415 = vld [vmem:[%s5377 + $0xe0] sm:$0xf]
    %v5416 = vld [vmem:[%s5377 + $0xe4] sm:$0xff]
    %v5417 = vld [vmem:[%s5377 + $0xec] sm:$0xf]
    %v5418 = vld [vmem:[%s5377 + $0xf0] sm:$0xff]
    %v5419 = vld [vmem:[%s5377 + $0xf8] sm:$0xf]
    %v5420 = vld [vmem:[%s5377 + $0xfc] sm:$0xff]
    %v5421 = vld [vmem:[%s5377 + $0x104] sm:$0xf]
    %v5423 = vshrl.u32 %v5327, 16
    %v5425 = vshll.u32 %v5327, 16
    %v5427 = vrot.slane %v5425, 1
    %v5428 = vor.u32 %v5423, %v5427
    %v5430 = vshll.u32 %v5329, 16
    %v5432 = vrot.slane %v5430, 1
    %v5433 = vsel %vm166, %v5428, %v5432
    %v5435 = vshrl.u32 %v5328, 16
    %v5437 = vshll.u32 %v5328, 16
    %v5439 = vrot.slane %v5437, 1
    %v5440 = vor.u32 %v5435, %v5439
    %v5442 = vshll.u32 %v5330, 16
    %v5444 = vrot.slane %v5442, 1
    %v5445 = vsel %vm166, %v5440, %v5444
    %v5446 = vshrl.u32 %v5329, 16
    %v5448 = vor.u32 %v5446, %v5432
    %v5450 = vshll.u32 %v5331, 16
    %v5452 = vrot.slane %v5450, 1
    %v5453 = vsel %vm166, %v5448, %v5452
    %v5454 = vshrl.u32 %v5330, 16
    %v5456 = vor.u32 %v5454, %v5444
    %v5458 = vshll.u32 %v5332, 16
    %v5460 = vrot.slane %v5458, 1
    %v5461 = vsel %vm166, %v5456, %v5460
    %v5462 = vshrl.u32 %v5331, 16
    %v5464 = vor.u32 %v5462, %v5452
    %v5465 = vshrl.u32 %v5332, 16
    %v5467 = vor.u32 %v5465, %v5460
    %v5515 = vunpack.c.l.b16 %v5378
    %v5516 = vunpack.c.h.b16 %v5378
    %v5517 = vunpack.c.l.b16 %v5379
    %v5518 = vunpack.c.l.b16 %v5380
    %v5519 = vunpack.c.h.b16 %v5380
    %v5520 = vunpack.c.l.b16 %v5381
    %v5521 = vunpack.c.l.b16 %v5382
    %v5522 = vunpack.c.h.b16 %v5382
    %v5523 = vunpack.c.l.b16 %v5383
    %v5524 = vunpack.c.l.b16 %v5384
    %v5525 = vunpack.c.h.b16 %v5384
    %v5526 = vunpack.c.l.b16 %v5385
    %v5527 = vunpack.c.l.b16 %v5386
    %v5528 = vunpack.c.h.b16 %v5386
    %v5529 = vunpack.c.l.b16 %v5387
    %v5530 = vunpack.c.l.b16 %v5388
    %v5531 = vunpack.c.h.b16 %v5388
    %v5532 = vunpack.c.l.b16 %v5389
    %v5533 = vunpack.c.l.b16 %v5390
    %v5534 = vunpack.c.h.b16 %v5390
    %v5535 = vunpack.c.l.b16 %v5391
    %v5536 = vunpack.c.l.b16 %v5392
    %v5537 = vunpack.c.h.b16 %v5392
    %v5538 = vunpack.c.l.b16 %v5393
    %v5539 = vunpack.c.l.b16 %v5394
    %v5540 = vunpack.c.h.b16 %v5394
    %v5541 = vunpack.c.l.b16 %v5395
    %v5542 = vunpack.c.l.b16 %v5396
    %v5543 = vunpack.c.h.b16 %v5396
    %v5544 = vunpack.c.l.b16 %v5397
    %v5545 = vunpack.c.l.b16 %v5398
    %v5546 = vunpack.c.h.b16 %v5398
    %v5547 = vunpack.c.l.b16 %v5399
    %v5548 = vunpack.c.l.b16 %v5400
    %v5549 = vunpack.c.h.b16 %v5400
    %v5550 = vunpack.c.l.b16 %v5401
    %v5551 = vunpack.c.l.b16 %v5402
    %v5552 = vunpack.c.h.b16 %v5402
    %v5553 = vunpack.c.l.b16 %v5403
    %v5554 = vunpack.c.l.b16 %v5404
    %v5555 = vunpack.c.h.b16 %v5404
    %v5556 = vunpack.c.l.b16 %v5405
    %v5557 = vunpack.c.l.b16 %v5406
    %v5558 = vunpack.c.h.b16 %v5406
    %v5559 = vunpack.c.l.b16 %v5407
    %v5560 = vunpack.c.l.b16 %v5408
    %v5561 = vunpack.c.h.b16 %v5408
    %v5562 = vunpack.c.l.b16 %v5409
    %v5563 = vunpack.c.l.b16 %v5410
    %v5564 = vunpack.c.h.b16 %v5410
    %v5565 = vunpack.c.l.b16 %v5411
    %v5566 = vunpack.c.l.b16 %v5412
    %v5567 = vunpack.c.h.b16 %v5412
    %v5568 = vunpack.c.l.b16 %v5413
    %v5569 = vunpack.c.l.b16 %v5414
    %v5570 = vunpack.c.h.b16 %v5414
    %v5571 = vunpack.c.l.b16 %v5415
    %v5572 = vunpack.c.l.b16 %v5416
    %v5573 = vunpack.c.h.b16 %v5416
    %v5574 = vunpack.c.l.b16 %v5417
    %v5575 = vunpack.c.l.b16 %v5418
    %v5576 = vunpack.c.h.b16 %v5418
    %v5577 = vunpack.c.l.b16 %v5419
    %v5578 = vunpack.c.l.b16 %v5420
    %v5579 = vunpack.c.h.b16 %v5420
    %v5580 = vunpack.c.l.b16 %v5421
    %v5581 = vpack.c.b16 %v5518, %v5515
    %v5582 = vpack.c.b16 %v5519, %v5516
    %v5583 = vpack.c.b16 %v5520, %v5517
    %v5584 = vpack.c.b16 %v5524, %v5521
    %v5585 = vpack.c.b16 %v5525, %v5522
    %v5586 = vpack.c.b16 %v5526, %v5523
    %v5587 = vpack.c.b16 %v5530, %v5527
    %v5588 = vpack.c.b16 %v5531, %v5528
    %v5589 = vpack.c.b16 %v5532, %v5529
    %v5590 = vpack.c.b16 %v5536, %v5533
    %v5591 = vpack.c.b16 %v5537, %v5534
    %v5592 = vpack.c.b16 %v5538, %v5535
    %v5593 = vpack.c.b16 %v5542, %v5539
    %v5594 = vpack.c.b16 %v5543, %v5540
    %v5595 = vpack.c.b16 %v5544, %v5541
    %v5596 = vpack.c.b16 %v5548, %v5545
    %v5597 = vpack.c.b16 %v5549, %v5546
    %v5598 = vpack.c.b16 %v5550, %v5547
    %v5599 = vpack.c.b16 %v5554, %v5551
    %v5600 = vpack.c.b16 %v5555, %v5552
    %v5601 = vpack.c.b16 %v5556, %v5553
    %v5602 = vpack.c.b16 %v5560, %v5557
    %v5603 = vpack.c.b16 %v5561, %v5558
    %v5604 = vpack.c.b16 %v5562, %v5559
    %v5605 = vpack.c.b16 %v5566, %v5563
    %v5606 = vpack.c.b16 %v5567, %v5564
    %v5607 = vpack.c.b16 %v5568, %v5565
    %v5608 = vpack.c.b16 %v5572, %v5569
    %v5609 = vpack.c.b16 %v5573, %v5570
    %v5610 = vpack.c.b16 %v5574, %v5571
    %v5611 = vpack.c.b16 %v5578, %v5575
    %v5612 = vpack.c.b16 %v5579, %v5576
    %v5613 = vpack.c.b16 %v5580, %v5577
    %vm5647 = vcmask 392192
    %v5649 = vsel %vm5647, %v5445, 0
    %v5652 = vsel %vm5647, %v5461, 0
    %v5655 = vsel %vm5647, %v5467, 0
    %5657 = vmatpush.bf16.msra.mxu0 %v5602
    %5658 = vmatpush.bf16.msra.mxu0 %v5599
    %5659 = vmatpush.bf16.msra.mxu0 %v5596
    %5660 = vmatpush.bf16.msra.mxu0 %v5593
    %5661 = vmatpush.bf16.msra.mxu0 %v5590
    %5662 = vmatpush.bf16.msra.mxu0 %v5587
    %5663 = vmatpush.bf16.msra.mxu0 %v5584
    %5664 = vmatpush.bf16.msra.mxu0 %v5581
    %5665 = vmatmul.bf16.gmra.mxu0 %v5433
    %v5666 = vpop.f32.mrf.mxu0
    %v5667 = vadd.f32 0.0, %v5666
    %v5668 = vpop.f32.mrf.mxu0
    %v5669 = vadd.f32 0.0, %v5668
    %5670 = vmatmul.bf16.gmra.mxu0 %v5453
    %v5671 = vpop.f32.mrf.mxu0
    %v5672 = vadd.f32 0.0, %v5671
    %v5673 = vpop.f32.mrf.mxu0
    %v5674 = vadd.f32 0.0, %v5673
    %5675 = vmatmul.bf16.gmra.mxu0 %v5464
    %v5676 = vpop.f32.mrf.mxu0
    %v5677 = vadd.f32 0.0, %v5676
    %v5678 = vpop.f32.mrf.mxu0
    %v5679 = vadd.f32 0.0, %v5678
    %5680 = vdwg.mxu0
    %5681 = vmatpush.bf16.msra.mxu0 0
    %5682 = vmatpush.bf16.msra.mxu0 0
    %5683 = vmatpush.bf16.msra.mxu0 0
    %5684 = vmatpush.bf16.msra.mxu0 0
    %5685 = vmatpush.bf16.msra.mxu0 0
    %5686 = vmatpush.bf16.msra.mxu0 %v5611
    %5687 = vmatpush.bf16.msra.mxu0 %v5608
    %5688 = vmatpush.bf16.msra.mxu0 %v5605
    %5689 = vmatmul.bf16.gmra.mxu0 %v5649
    %v5690 = vpop.f32.mrf.mxu0
    %v5691 = vadd.f32 %v5667, %v5690
    %v5692 = vpop.f32.mrf.mxu0
    %v5693 = vadd.f32 %v5669, %v5692
    %5694 = vmatmul.bf16.gmra.mxu0 %v5652
    %v5695 = vpop.f32.mrf.mxu0
    %v5696 = vadd.f32 %v5672, %v5695
    %v5697 = vpop.f32.mrf.mxu0
    %v5698 = vadd.f32 %v5674, %v5697
    %5699 = vmatmul.bf16.gmra.mxu0 %v5655
    %v5700 = vpop.f32.mrf.mxu0
    %v5701 = vadd.f32 %v5677, %v5700
    %v5702 = vpop.f32.mrf.mxu0
    %v5703 = vadd.f32 %v5679, %v5702
    %5704 = vdwg.mxu0
    %5705 = vmatpush.bf16.msra.mxu0 %v5603
    %5706 = vmatpush.bf16.msra.mxu0 %v5600
    %5707 = vmatpush.bf16.msra.mxu0 %v5597
    %5708 = vmatpush.bf16.msra.mxu0 %v5594
    %5709 = vmatpush.bf16.msra.mxu0 %v5591
    %5710 = vmatpush.bf16.msra.mxu0 %v5588
    %5711 = vmatpush.bf16.msra.mxu0 %v5585
    %5712 = vmatpush.bf16.msra.mxu0 %v5582
    %5713 = vmatmul.bf16.gmra.mxu0 %v5433
    %v5714 = vpop.f32.mrf.mxu0
    %v5715 = vadd.f32 0.0, %v5714
    %v5716 = vpop.f32.mrf.mxu0
    %v5717 = vadd.f32 0.0, %v5716
    %5718 = vmatmul.bf16.gmra.mxu0 %v5453
    %v5719 = vpop.f32.mrf.mxu0
    %v5720 = vadd.f32 0.0, %v5719
    %v5721 = vpop.f32.mrf.mxu0
    %v5722 = vadd.f32 0.0, %v5721
    %5723 = vmatmul.bf16.gmra.mxu0 %v5464
    %v5724 = vpop.f32.mrf.mxu0
    %v5725 = vadd.f32 0.0, %v5724
    %v5726 = vpop.f32.mrf.mxu0
    %v5727 = vadd.f32 0.0, %v5726
    %5728 = vdwg.mxu0
    %5729 = vmatpush.bf16.msra.mxu0 0
    %5730 = vmatpush.bf16.msra.mxu0 0
    %5731 = vmatpush.bf16.msra.mxu0 0
    %5732 = vmatpush.bf16.msra.mxu0 0
    %5733 = vmatpush.bf16.msra.mxu0 0
    %5734 = vmatpush.bf16.msra.mxu0 %v5612
    %5735 = vmatpush.bf16.msra.mxu0 %v5609
    %5736 = vmatpush.bf16.msra.mxu0 %v5606
    %5737 = vmatmul.bf16.gmra.mxu0 %v5649
    %v5738 = vpop.f32.mrf.mxu0
    %v5739 = vadd.f32 %v5715, %v5738
    %v5740 = vpop.f32.mrf.mxu0
    %v5741 = vadd.f32 %v5717, %v5740
    %5742 = vmatmul.bf16.gmra.mxu0 %v5652
    %v5743 = vpop.f32.mrf.mxu0
    %v5744 = vadd.f32 %v5720, %v5743
    %v5745 = vpop.f32.mrf.mxu0
    %v5746 = vadd.f32 %v5722, %v5745
    %5747 = vmatmul.bf16.gmra.mxu0 %v5655
    %v5748 = vpop.f32.mrf.mxu0
    %v5749 = vadd.f32 %v5725, %v5748
    %v5750 = vpop.f32.mrf.mxu0
    %v5751 = vadd.f32 %v5727, %v5750
    %5752 = vdwg.mxu0
    %5753 = vmatpush.bf16.msra.mxu0 %v5604
    %5754 = vmatpush.bf16.msra.mxu0 %v5601
    %5755 = vmatpush.bf16.msra.mxu0 %v5598
    %5756 = vmatpush.bf16.msra.mxu0 %v5595
    %5757 = vmatpush.bf16.msra.mxu0 %v5592
    %5758 = vmatpush.bf16.msra.mxu0 %v5589
    %5759 = vmatpush.bf16.msra.mxu0 %v5586
    %5760 = vmatpush.bf16.msra.mxu0 %v5583
    %5761 = vmatmul.bf16.gmra.mxu0 %v5433
    %v5762 = vpop.f32.mrf.mxu0
    %v5763 = vadd.f32 0.0, %v5762
    %v5764 = vpop.f32.mrf.mxu0
    %v5765 = vadd.f32 0.0, %v5764
    %5766 = vmatmul.bf16.gmra.mxu0 %v5453
    %v5767 = vpop.f32.mrf.mxu0
    %v5768 = vadd.f32 0.0, %v5767
    %v5769 = vpop.f32.mrf.mxu0
    %v5770 = vadd.f32 0.0, %v5769
    %5771 = vmatmul.bf16.gmra.mxu0 %v5464
    %v5772 = vpop.f32.mrf.mxu0
    %v5773 = vadd.f32 0.0, %v5772
    %v5774 = vpop.f32.mrf.mxu0
    %v5775 = vadd.f32 0.0, %v5774
    %5776 = vdwg.mxu0
    %5777 = vmatpush.bf16.msra.mxu0 0
    %5778 = vmatpush.bf16.msra.mxu0 0
    %5779 = vmatpush.bf16.msra.mxu0 0
    %5780 = vmatpush.bf16.msra.mxu0 0
    %5781 = vmatpush.bf16.msra.mxu0 0
    %5782 = vmatpush.bf16.msra.mxu0 %v5613
    %5783 = vmatpush.bf16.msra.mxu0 %v5610
    %5784 = vmatpush.bf16.msra.mxu0 %v5607
    %5785 = vmatmul.bf16.gmra.mxu0 %v5649
    %v5786 = vpop.f32.mrf.mxu0
    %v5787 = vadd.f32 %v5763, %v5786
    %v5788 = vpop.f32.mrf.mxu0
    %v5789 = vadd.f32 %v5765, %v5788
    %5790 = vmatmul.bf16.gmra.mxu0 %v5652
    %v5791 = vpop.f32.mrf.mxu0
    %v5792 = vadd.f32 %v5768, %v5791
    %v5793 = vpop.f32.mrf.mxu0
    %v5794 = vadd.f32 %v5770, %v5793
    %5795 = vmatmul.bf16.gmra.mxu0 %v5655
    %v5796 = vpop.f32.mrf.mxu0
    %v5797 = vadd.f32 %v5773, %v5796
    %v5798 = vpop.f32.mrf.mxu0
    %v5799 = vadd.f32 %v5775, %v5798
    %5800 = vdwg.mxu0
    %v5845 = vunpack.c.l.b16 %v5333
    %v5846 = vunpack.c.h.b16 %v5333
    %v5847 = vunpack.c.l.b16 %v5334
    %v5848 = vunpack.c.l.b16 %v5335
    %v5849 = vunpack.c.h.b16 %v5335
    %v5850 = vunpack.c.l.b16 %v5336
    %v5851 = vunpack.c.l.b16 %v5337
    %v5852 = vunpack.c.h.b16 %v5337
    %v5853 = vunpack.c.l.b16 %v5338
    %v5854 = vunpack.c.l.b16 %v5339
    %v5855 = vunpack.c.h.b16 %v5339
    %v5856 = vunpack.c.l.b16 %v5340
    %v5857 = vunpack.c.l.b16 %v5341
    %v5858 = vunpack.c.h.b16 %v5341
    %v5859 = vunpack.c.l.b16 %v5342
    %v5860 = vunpack.c.l.b16 %v5343
    %v5861 = vunpack.c.h.b16 %v5343
    %v5862 = vunpack.c.l.b16 %v5344
    %v5863 = vunpack.c.l.b16 %v5345
    %v5864 = vunpack.c.h.b16 %v5345
    %v5865 = vunpack.c.l.b16 %v5346
    %v5866 = vunpack.c.l.b16 %v5347
    %v5867 = vunpack.c.h.b16 %v5347
    %v5868 = vunpack.c.l.b16 %v5348
    %v5869 = vunpack.c.l.b16 %v5349
    %v5870 = vunpack.c.h.b16 %v5349
    %v5871 = vunpack.c.l.b16 %v5350
    %v5872 = vunpack.c.l.b16 %v5351
    %v5873 = vunpack.c.h.b16 %v5351
    %v5874 = vunpack.c.l.b16 %v5352
    %v5875 = vunpack.c.l.b16 %v5353
    %v5876 = vunpack.c.h.b16 %v5353
    %v5877 = vunpack.c.l.b16 %v5354
    %v5878 = vunpack.c.l.b16 %v5355
    %v5879 = vunpack.c.h.b16 %v5355
    %v5880 = vunpack.c.l.b16 %v5356
    %v5881 = vunpack.c.l.b16 %v5357
    %v5882 = vunpack.c.h.b16 %v5357
    %v5883 = vunpack.c.l.b16 %v5358
    %v5884 = vunpack.c.l.b16 %v5359
    %v5885 = vunpack.c.h.b16 %v5359
    %v5886 = vunpack.c.l.b16 %v5360
    %v5887 = vunpack.c.l.b16 %v5361
    %v5888 = vunpack.c.h.b16 %v5361
    %v5889 = vunpack.c.l.b16 %v5362
    %v5890 = vunpack.c.l.b16 %v5363
    %v5891 = vunpack.c.h.b16 %v5363
    %v5892 = vunpack.c.l.b16 %v5364
    %v5893 = vunpack.c.l.b16 %v5365
    %v5894 = vunpack.c.h.b16 %v5365
    %v5895 = vunpack.c.l.b16 %v5366
    %v5896 = vunpack.c.l.b16 %v5367
    %v5897 = vunpack.c.h.b16 %v5367
    %v5898 = vunpack.c.l.b16 %v5368
    %v5899 = vunpack.c.l.b16 %v5369
    %v5900 = vunpack.c.h.b16 %v5369
    %v5901 = vunpack.c.l.b16 %v5370
    %v5902 = vunpack.c.l.b16 %v5371
    %v5903 = vunpack.c.h.b16 %v5371
    %v5904 = vunpack.c.l.b16 %v5372
    %v5905 = vunpack.c.l.b16 %v5373
    %v5906 = vunpack.c.h.b16 %v5373
    %v5907 = vunpack.c.l.b16 %v5374
    %v5908 = vunpack.c.l.b16 %v5375
    %v5909 = vunpack.c.h.b16 %v5375
    %v5910 = vunpack.c.l.b16 %v5376
    %v5911 = vpack.c.b16 %v5848, %v5845
    %v5912 = vpack.c.b16 %v5849, %v5846
    %v5913 = vpack.c.b16 %v5850, %v5847
    %v5914 = vpack.c.b16 %v5854, %v5851
    %v5915 = vpack.c.b16 %v5855, %v5852
    %v5916 = vpack.c.b16 %v5856, %v5853
    %v5917 = vpack.c.b16 %v5860, %v5857
    %v5918 = vpack.c.b16 %v5861, %v5858
    %v5919 = vpack.c.b16 %v5862, %v5859
    %v5920 = vpack.c.b16 %v5866, %v5863
    %v5921 = vpack.c.b16 %v5867, %v5864
    %v5922 = vpack.c.b16 %v5868, %v5865
    %v5923 = vpack.c.b16 %v5872, %v5869
    %v5924 = vpack.c.b16 %v5873, %v5870
    %v5925 = vpack.c.b16 %v5874, %v5871
    %v5926 = vpack.c.b16 %v5878, %v5875
    %v5927 = vpack.c.b16 %v5879, %v5876
    %v5928 = vpack.c.b16 %v5880, %v5877
    %v5929 = vpack.c.b16 %v5884, %v5881
    %v5930 = vpack.c.b16 %v5885, %v5882
    %v5931 = vpack.c.b16 %v5886, %v5883
    %v5932 = vpack.c.b16 %v5890, %v5887
    %v5933 = vpack.c.b16 %v5891, %v5888
    %v5934 = vpack.c.b16 %v5892, %v5889
    %v5935 = vpack.c.b16 %v5896, %v5893
    %v5936 = vpack.c.b16 %v5897, %v5894
    %v5937 = vpack.c.b16 %v5898, %v5895
    %v5938 = vpack.c.b16 %v5902, %v5899
    %v5939 = vpack.c.b16 %v5903, %v5900
    %v5940 = vpack.c.b16 %v5904, %v5901
    %v5941 = vpack.c.b16 %v5908, %v5905
    %v5942 = vpack.c.b16 %v5909, %v5906
    %v5943 = vpack.c.b16 %v5910, %v5907
    %v5977 = vsel %vm5647, %v5328, 0
    %v5979 = vsel %vm5647, %v5330, 0
    %v5981 = vsel %vm5647, %v5332, 0
    %5983 = vmatpush.bf16.msra.mxu0 %v5932
    %5984 = vmatpush.bf16.msra.mxu0 %v5929
    %5985 = vmatpush.bf16.msra.mxu0 %v5926
    %5986 = vmatpush.bf16.msra.mxu0 %v5923
    %5987 = vmatpush.bf16.msra.mxu0 %v5920
    %5988 = vmatpush.bf16.msra.mxu0 %v5917
    %5989 = vmatpush.bf16.msra.mxu0 %v5914
    %5990 = vmatpush.bf16.msra.mxu0 %v5911
    %5991 = vmatmul.bf16.gmra.mxu0 %v5327
    %v5992 = vpop.f32.mrf.mxu0
    %v5993 = vadd.f32 %v5691, %v5992
    %v5994 = vpop.f32.mrf.mxu0
    %v5995 = vadd.f32 %v5693, %v5994
    %5996 = vmatmul.bf16.gmra.mxu0 %v5329
    %v5997 = vpop.f32.mrf.mxu0
    %v5998 = vadd.f32 %v5696, %v5997
    %v5999 = vpop.f32.mrf.mxu0
    %v6000 = vadd.f32 %v5698, %v5999
    %6001 = vmatmul.bf16.gmra.mxu0 %v5331
    %v6002 = vpop.f32.mrf.mxu0
    %v6003 = vadd.f32 %v5701, %v6002
    %v6004 = vpop.f32.mrf.mxu0
    %v6005 = vadd.f32 %v5703, %v6004
    %6006 = vdwg.mxu0
    %6007 = vmatpush.bf16.msra.mxu0 0
    %6008 = vmatpush.bf16.msra.mxu0 0
    %6009 = vmatpush.bf16.msra.mxu0 0
    %6010 = vmatpush.bf16.msra.mxu0 0
    %6011 = vmatpush.bf16.msra.mxu0 0
    %6012 = vmatpush.bf16.msra.mxu0 %v5941
    %6013 = vmatpush.bf16.msra.mxu0 %v5938
    %6014 = vmatpush.bf16.msra.mxu0 %v5935
    %6015 = vmatmul.bf16.gmra.mxu0 %v5977
    %v6016 = vpop.f32.mrf.mxu0
    %v6017 = vadd.f32 %v5993, %v6016
    %v6018 = vpop.f32.mrf.mxu0
    %v6019 = vadd.f32 %v5995, %v6018
    %6020 = vmatmul.bf16.gmra.mxu0 %v5979
    %v6021 = vpop.f32.mrf.mxu0
    %v6022 = vadd.f32 %v5998, %v6021
    %v6023 = vpop.f32.mrf.mxu0
    %v6024 = vadd.f32 %v6000, %v6023
    %6025 = vmatmul.bf16.gmra.mxu0 %v5981
    %v6026 = vpop.f32.mrf.mxu0
    %v6027 = vadd.f32 %v6003, %v6026
    %v6028 = vpop.f32.mrf.mxu0
    %v6029 = vadd.f32 %v6005, %v6028
    %6030 = vdwg.mxu0
    %6031 = vmatpush.bf16.msra.mxu0 %v5933
    %6032 = vmatpush.bf16.msra.mxu0 %v5930
    %6033 = vmatpush.bf16.msra.mxu0 %v5927
    %6034 = vmatpush.bf16.msra.mxu0 %v5924
    %6035 = vmatpush.bf16.msra.mxu0 %v5921
    %6036 = vmatpush.bf16.msra.mxu0 %v5918
    %6037 = vmatpush.bf16.msra.mxu0 %v5915
    %6038 = vmatpush.bf16.msra.mxu0 %v5912
    %6039 = vmatmul.bf16.gmra.mxu0 %v5327
    %v6040 = vpop.f32.mrf.mxu0
    %v6041 = vadd.f32 %v5739, %v6040
    %v6042 = vpop.f32.mrf.mxu0
    %v6043 = vadd.f32 %v5741, %v6042
    %6044 = vmatmul.bf16.gmra.mxu0 %v5329
    %v6045 = vpop.f32.mrf.mxu0
    %v6046 = vadd.f32 %v5744, %v6045
    %v6047 = vpop.f32.mrf.mxu0
    %v6048 = vadd.f32 %v5746, %v6047
    %6049 = vmatmul.bf16.gmra.mxu0 %v5331
    %v6050 = vpop.f32.mrf.mxu0
    %v6051 = vadd.f32 %v5749, %v6050
    %v6052 = vpop.f32.mrf.mxu0
    %v6053 = vadd.f32 %v5751, %v6052
    %6054 = vdwg.mxu0
    %6055 = vmatpush.bf16.msra.mxu0 0
    %6056 = vmatpush.bf16.msra.mxu0 0
    %6057 = vmatpush.bf16.msra.mxu0 0
    %6058 = vmatpush.bf16.msra.mxu0 0
    %6059 = vmatpush.bf16.msra.mxu0 0
    %6060 = vmatpush.bf16.msra.mxu0 %v5942
    %6061 = vmatpush.bf16.msra.mxu0 %v5939
    %6062 = vmatpush.bf16.msra.mxu0 %v5936
    %6063 = vmatmul.bf16.gmra.mxu0 %v5977
    %v6064 = vpop.f32.mrf.mxu0
    %v6065 = vadd.f32 %v6041, %v6064
    %v6066 = vpop.f32.mrf.mxu0
    %v6067 = vadd.f32 %v6043, %v6066
    %6068 = vmatmul.bf16.gmra.mxu0 %v5979
    %v6069 = vpop.f32.mrf.mxu0
    %v6070 = vadd.f32 %v6046, %v6069
    %v6071 = vpop.f32.mrf.mxu0
    %v6072 = vadd.f32 %v6048, %v6071
    %6073 = vmatmul.bf16.gmra.mxu0 %v5981
    %v6074 = vpop.f32.mrf.mxu0
    %v6075 = vadd.f32 %v6051, %v6074
    %v6076 = vpop.f32.mrf.mxu0
    %v6077 = vadd.f32 %v6053, %v6076
    %6078 = vdwg.mxu0
    %6079 = vmatpush.bf16.msra.mxu0 %v5934
    %6080 = vmatpush.bf16.msra.mxu0 %v5931
    %6081 = vmatpush.bf16.msra.mxu0 %v5928
    %6082 = vmatpush.bf16.msra.mxu0 %v5925
    %6083 = vmatpush.bf16.msra.mxu0 %v5922
    %6084 = vmatpush.bf16.msra.mxu0 %v5919
    %6085 = vmatpush.bf16.msra.mxu0 %v5916
    %6086 = vmatpush.bf16.msra.mxu0 %v5913
    %6087 = vmatmul.bf16.gmra.mxu0 %v5327
    %v6088 = vpop.f32.mrf.mxu0
    %v6089 = vadd.f32 %v5787, %v6088
    %v6090 = vpop.f32.mrf.mxu0
    %v6091 = vadd.f32 %v5789, %v6090
    %6092 = vmatmul.bf16.gmra.mxu0 %v5329
    %v6093 = vpop.f32.mrf.mxu0
    %v6094 = vadd.f32 %v5792, %v6093
    %v6095 = vpop.f32.mrf.mxu0
    %v6096 = vadd.f32 %v5794, %v6095
    %6097 = vmatmul.bf16.gmra.mxu0 %v5331
    %v6098 = vpop.f32.mrf.mxu0
    %v6099 = vadd.f32 %v5797, %v6098
    %v6100 = vpop.f32.mrf.mxu0
    %v6101 = vadd.f32 %v5799, %v6100
    %6102 = vdwg.mxu0
    %6103 = vmatpush.bf16.msra.mxu0 0
    %6104 = vmatpush.bf16.msra.mxu0 0
    %6105 = vmatpush.bf16.msra.mxu0 0
    %6106 = vmatpush.bf16.msra.mxu0 0
    %6107 = vmatpush.bf16.msra.mxu0 0
    %6108 = vmatpush.bf16.msra.mxu0 %v5943
    %6109 = vmatpush.bf16.msra.mxu0 %v5940
    %6110 = vmatpush.bf16.msra.mxu0 %v5937
    %6111 = vmatmul.bf16.gmra.mxu0 %v5977
    %v6112 = vpop.f32.mrf.mxu0
    %v6113 = vadd.f32 %v6089, %v6112
    %v6114 = vpop.f32.mrf.mxu0
    %v6115 = vadd.f32 %v6091, %v6114
    %6116 = vmatmul.bf16.gmra.mxu0 %v5979
    %v6117 = vpop.f32.mrf.mxu0
    %v6118 = vadd.f32 %v6094, %v6117
    %v6119 = vpop.f32.mrf.mxu0
    %v6120 = vadd.f32 %v6096, %v6119
    %6121 = vmatmul.bf16.gmra.mxu0 %v5981
    %v6122 = vpop.f32.mrf.mxu0
    %v6123 = vadd.f32 %v6099, %v6122
    %v6124 = vpop.f32.mrf.mxu0
    %v6125 = vadd.f32 %v6101, %v6124
    %6126 = vdwg.mxu0
    %s6127 = scalar_lea.vmem [#allocation4], 528
    %v6128 = vld [vmem:[%s6127] sm:$0xff]
    %v6129 = vld [vmem:[%s6127 + $0x8] sm:$0xf]
    %v6130 = vld [vmem:[%s6127 + $0xc] sm:$0xff]
    %v6131 = vld [vmem:[%s6127 + $0x14] sm:$0xf]
    %v6132 = vld [vmem:[%s6127 + $0x18] sm:$0xff]
    %v6133 = vld [vmem:[%s6127 + $0x20] sm:$0xf]
    %v6134 = vld [vmem:[%s6127 + $0x24] sm:$0xff]
    %v6135 = vld [vmem:[%s6127 + $0x2c] sm:$0xf]
    %v6136 = vld [vmem:[%s6127 + $0x30] sm:$0xff]
    %v6137 = vld [vmem:[%s6127 + $0x38] sm:$0xf]
    %v6138 = vld [vmem:[%s6127 + $0x3c] sm:$0xff]
    %v6139 = vld [vmem:[%s6127 + $0x44] sm:$0xf]
    %v6140 = vld [vmem:[%s6127 + $0x48] sm:$0xff]
    %v6141 = vld [vmem:[%s6127 + $0x50] sm:$0xf]
    %v6142 = vld [vmem:[%s6127 + $0x54] sm:$0xff]
    %v6143 = vld [vmem:[%s6127 + $0x5c] sm:$0xf]
    %v6144 = vld [vmem:[%s6127 + $0x60] sm:$0xff]
    %v6145 = vld [vmem:[%s6127 + $0x68] sm:$0xf]
    %v6146 = vld [vmem:[%s6127 + $0x6c] sm:$0xff]
    %v6147 = vld [vmem:[%s6127 + $0x74] sm:$0xf]
    %v6148 = vld [vmem:[%s6127 + $0x78] sm:$0xff]
    %v6149 = vld [vmem:[%s6127 + $0x80] sm:$0xf]
    %v6150 = vld [vmem:[%s6127 + $0x84] sm:$0xff]
    %v6151 = vld [vmem:[%s6127 + $0x8c] sm:$0xf]
    %v6152 = vld [vmem:[%s6127 + $0x90] sm:$0xff]
    %v6153 = vld [vmem:[%s6127 + $0x98] sm:$0xf]
    %v6154 = vld [vmem:[%s6127 + $0x9c] sm:$0xff]
    %v6155 = vld [vmem:[%s6127 + $0xa4] sm:$0xf]
    %v6156 = vld [vmem:[%s6127 + $0xa8] sm:$0xff]
    %v6157 = vld [vmem:[%s6127 + $0xb0] sm:$0xf]
    %v6158 = vld [vmem:[%s6127 + $0xb4] sm:$0xff]
    %v6159 = vld [vmem:[%s6127 + $0xbc] sm:$0xf]
    %v6160 = vld [vmem:[%s6127 + $0xc0] sm:$0xff]
    %v6161 = vld [vmem:[%s6127 + $0xc8] sm:$0xf]
    %v6162 = vld [vmem:[%s6127 + $0xcc] sm:$0xff]
    %v6163 = vld [vmem:[%s6127 + $0xd4] sm:$0xf]
    %v6164 = vld [vmem:[%s6127 + $0xd8] sm:$0xff]
    %v6165 = vld [vmem:[%s6127 + $0xe0] sm:$0xf]
    %v6166 = vld [vmem:[%s6127 + $0xe4] sm:$0xff]
    %v6167 = vld [vmem:[%s6127 + $0xec] sm:$0xf]
    %v6168 = vld [vmem:[%s6127 + $0xf0] sm:$0xff]
    %v6169 = vld [vmem:[%s6127 + $0xf8] sm:$0xf]
    %v6170 = vld [vmem:[%s6127 + $0xfc] sm:$0xff]
    %v6171 = vld [vmem:[%s6127 + $0x104] sm:$0xf]
    %v6178 = vrot.slane %v5327, 1
    %v6179 = vrot.slane %v5329, 1
    %v6180 = vsel %vm1117, %v6178, %v6179
    %v6181 = vrot.slane %v5328, 1
    %v6182 = vrot.slane %v5330, 1
    %v6183 = vsel %vm1117, %v6181, %v6182
    %v6184 = vrot.slane %v5331, 1
    %v6185 = vsel %vm1117, %v6179, %v6184
    %v6186 = vrot.slane %v5332, 1
    %v6187 = vsel %vm1117, %v6182, %v6186
    %v6235 = vunpack.c.l.b16 %v6128
    %v6236 = vunpack.c.h.b16 %v6128
    %v6237 = vunpack.c.l.b16 %v6129
    %v6238 = vunpack.c.l.b16 %v6130
    %v6239 = vunpack.c.h.b16 %v6130
    %v6240 = vunpack.c.l.b16 %v6131
    %v6241 = vunpack.c.l.b16 %v6132
    %v6242 = vunpack.c.h.b16 %v6132
    %v6243 = vunpack.c.l.b16 %v6133
    %v6244 = vunpack.c.l.b16 %v6134
    %v6245 = vunpack.c.h.b16 %v6134
    %v6246 = vunpack.c.l.b16 %v6135
    %v6247 = vunpack.c.l.b16 %v6136
    %v6248 = vunpack.c.h.b16 %v6136
    %v6249 = vunpack.c.l.b16 %v6137
    %v6250 = vunpack.c.l.b16 %v6138
    %v6251 = vunpack.c.h.b16 %v6138
    %v6252 = vunpack.c.l.b16 %v6139
    %v6253 = vunpack.c.l.b16 %v6140
    %v6254 = vunpack.c.h.b16 %v6140
    %v6255 = vunpack.c.l.b16 %v6141
    %v6256 = vunpack.c.l.b16 %v6142
    %v6257 = vunpack.c.h.b16 %v6142
    %v6258 = vunpack.c.l.b16 %v6143
    %v6259 = vunpack.c.l.b16 %v6144
    %v6260 = vunpack.c.h.b16 %v6144
    %v6261 = vunpack.c.l.b16 %v6145
    %v6262 = vunpack.c.l.b16 %v6146
    %v6263 = vunpack.c.h.b16 %v6146
    %v6264 = vunpack.c.l.b16 %v6147
    %v6265 = vunpack.c.l.b16 %v6148
    %v6266 = vunpack.c.h.b16 %v6148
    %v6267 = vunpack.c.l.b16 %v6149
    %v6268 = vunpack.c.l.b16 %v6150
    %v6269 = vunpack.c.h.b16 %v6150
    %v6270 = vunpack.c.l.b16 %v6151
    %v6271 = vunpack.c.l.b16 %v6152
    %v6272 = vunpack.c.h.b16 %v6152
    %v6273 = vunpack.c.l.b16 %v6153
    %v6274 = vunpack.c.l.b16 %v6154
    %v6275 = vunpack.c.h.b16 %v6154
    %v6276 = vunpack.c.l.b16 %v6155
    %v6277 = vunpack.c.l.b16 %v6156
    %v6278 = vunpack.c.h.b16 %v6156
    %v6279 = vunpack.c.l.b16 %v6157
    %v6280 = vunpack.c.l.b16 %v6158
    %v6281 = vunpack.c.h.b16 %v6158
    %v6282 = vunpack.c.l.b16 %v6159
    %v6283 = vunpack.c.l.b16 %v6160
    %v6284 = vunpack.c.h.b16 %v6160
    %v6285 = vunpack.c.l.b16 %v6161
    %v6286 = vunpack.c.l.b16 %v6162
    %v6287 = vunpack.c.h.b16 %v6162
    %v6288 = vunpack.c.l.b16 %v6163
    %v6289 = vunpack.c.l.b16 %v6164
    %v6290 = vunpack.c.h.b16 %v6164
    %v6291 = vunpack.c.l.b16 %v6165
    %v6292 = vunpack.c.l.b16 %v6166
    %v6293 = vunpack.c.h.b16 %v6166
    %v6294 = vunpack.c.l.b16 %v6167
    %v6295 = vunpack.c.l.b16 %v6168
    %v6296 = vunpack.c.h.b16 %v6168
    %v6297 = vunpack.c.l.b16 %v6169
    %v6298 = vunpack.c.l.b16 %v6170
    %v6299 = vunpack.c.h.b16 %v6170
    %v6300 = vunpack.c.l.b16 %v6171
    %v6301 = vpack.c.b16 %v6238, %v6235
    %v6302 = vpack.c.b16 %v6239, %v6236
    %v6303 = vpack.c.b16 %v6240, %v6237
    %v6304 = vpack.c.b16 %v6244, %v6241
    %v6305 = vpack.c.b16 %v6245, %v6242
    %v6306 = vpack.c.b16 %v6246, %v6243
    %v6307 = vpack.c.b16 %v6250, %v6247
    %v6308 = vpack.c.b16 %v6251, %v6248
    %v6309 = vpack.c.b16 %v6252, %v6249
    %v6310 = vpack.c.b16 %v6256, %v6253
    %v6311 = vpack.c.b16 %v6257, %v6254
    %v6312 = vpack.c.b16 %v6258, %v6255
    %v6313 = vpack.c.b16 %v6262, %v6259
    %v6314 = vpack.c.b16 %v6263, %v6260
    %v6315 = vpack.c.b16 %v6264, %v6261
    %v6316 = vpack.c.b16 %v6268, %v6265
    %v6317 = vpack.c.b16 %v6269, %v6266
    %v6318 = vpack.c.b16 %v6270, %v6267
    %v6319 = vpack.c.b16 %v6274, %v6271
    %v6320 = vpack.c.b16 %v6275, %v6272
    %v6321 = vpack.c.b16 %v6276, %v6273
    %v6322 = vpack.c.b16 %v6280, %v6277
    %v6323 = vpack.c.b16 %v6281, %v6278
    %v6324 = vpack.c.b16 %v6282, %v6279
    %v6325 = vpack.c.b16 %v6286, %v6283
    %v6326 = vpack.c.b16 %v6287, %v6284
    %v6327 = vpack.c.b16 %v6288, %v6285
    %v6328 = vpack.c.b16 %v6292, %v6289
    %v6329 = vpack.c.b16 %v6293, %v6290
    %v6330 = vpack.c.b16 %v6294, %v6291
    %v6331 = vpack.c.b16 %v6298, %v6295
    %v6332 = vpack.c.b16 %v6299, %v6296
    %v6333 = vpack.c.b16 %v6300, %v6297
    %v6368 = vsel %vm5647, %v6183, 0
    %v6371 = vsel %vm5647, %v6187, 0
    %v6374 = vsel %vm5647, %v6186, 0
    %6376 = vmatpush.bf16.msra.mxu0 %v6322
    %6377 = vmatpush.bf16.msra.mxu0 %v6319
    %6378 = vmatpush.bf16.msra.mxu0 %v6316
    %6379 = vmatpush.bf16.msra.mxu0 %v6313
    %6380 = vmatpush.bf16.msra.mxu0 %v6310
    %6381 = vmatpush.bf16.msra.mxu0 %v6307
    %6382 = vmatpush.bf16.msra.mxu0 %v6304
    %6383 = vmatpush.bf16.msra.mxu0 %v6301
    %6384 = vmatmul.bf16.gmra.mxu0 %v6180
    %v6385 = vpop.f32.mrf.mxu0
    %v6386 = vadd.f32 0.0, %v6385
    %v6387 = vpop.f32.mrf.mxu0
    %v6388 = vadd.f32 0.0, %v6387
    %6389 = vmatmul.bf16.gmra.mxu0 %v6185
    %v6390 = vpop.f32.mrf.mxu0
    %v6391 = vadd.f32 0.0, %v6390
    %v6392 = vpop.f32.mrf.mxu0
    %v6393 = vadd.f32 0.0, %v6392
    %6394 = vmatmul.bf16.gmra.mxu0 %v6184
    %v6395 = vpop.f32.mrf.mxu0
    %v6396 = vadd.f32 0.0, %v6395
    %v6397 = vpop.f32.mrf.mxu0
    %v6398 = vadd.f32 0.0, %v6397
    %6399 = vdwg.mxu0
    %6400 = vmatpush.bf16.msra.mxu0 0
    %6401 = vmatpush.bf16.msra.mxu0 0
    %6402 = vmatpush.bf16.msra.mxu0 0
    %6403 = vmatpush.bf16.msra.mxu0 0
    %6404 = vmatpush.bf16.msra.mxu0 0
    %6405 = vmatpush.bf16.msra.mxu0 %v6331
    %6406 = vmatpush.bf16.msra.mxu0 %v6328
    %6407 = vmatpush.bf16.msra.mxu0 %v6325
    %6408 = vmatmul.bf16.gmra.mxu0 %v6368
    %v6409 = vpop.f32.mrf.mxu0
    %v6410 = vadd.f32 %v6386, %v6409
    %v6411 = vpop.f32.mrf.mxu0
    %v6412 = vadd.f32 %v6388, %v6411
    %6413 = vmatmul.bf16.gmra.mxu0 %v6371
    %v6414 = vpop.f32.mrf.mxu0
    %v6415 = vadd.f32 %v6391, %v6414
    %v6416 = vpop.f32.mrf.mxu0
    %v6417 = vadd.f32 %v6393, %v6416
    %6418 = vmatmul.bf16.gmra.mxu0 %v6374
    %v6419 = vpop.f32.mrf.mxu0
    %v6420 = vadd.f32 %v6396, %v6419
    %v6421 = vpop.f32.mrf.mxu0
    %v6422 = vadd.f32 %v6398, %v6421
    %6423 = vdwg.mxu0
    %6424 = vmatpush.bf16.msra.mxu0 %v6323
    %6425 = vmatpush.bf16.msra.mxu0 %v6320
    %6426 = vmatpush.bf16.msra.mxu0 %v6317
    %6427 = vmatpush.bf16.msra.mxu0 %v6314
    %6428 = vmatpush.bf16.msra.mxu0 %v6311
    %6429 = vmatpush.bf16.msra.mxu0 %v6308
    %6430 = vmatpush.bf16.msra.mxu0 %v6305
    %6431 = vmatpush.bf16.msra.mxu0 %v6302
    %6432 = vmatmul.bf16.gmra.mxu0 %v6180
    %v6433 = vpop.f32.mrf.mxu0
    %v6434 = vadd.f32 0.0, %v6433
    %v6435 = vpop.f32.mrf.mxu0
    %v6436 = vadd.f32 0.0, %v6435
    %6437 = vmatmul.bf16.gmra.mxu0 %v6185
    %v6438 = vpop.f32.mrf.mxu0
    %v6439 = vadd.f32 0.0, %v6438
    %v6440 = vpop.f32.mrf.mxu0
    %v6441 = vadd.f32 0.0, %v6440
    %6442 = vmatmul.bf16.gmra.mxu0 %v6184
    %v6443 = vpop.f32.mrf.mxu0
    %v6444 = vadd.f32 0.0, %v6443
    %v6445 = vpop.f32.mrf.mxu0
    %v6446 = vadd.f32 0.0, %v6445
    %6447 = vdwg.mxu0
    %6448 = vmatpush.bf16.msra.mxu0 0
    %6449 = vmatpush.bf16.msra.mxu0 0
    %6450 = vmatpush.bf16.msra.mxu0 0
    %6451 = vmatpush.bf16.msra.mxu0 0
    %6452 = vmatpush.bf16.msra.mxu0 0
    %6453 = vmatpush.bf16.msra.mxu0 %v6332
    %6454 = vmatpush.bf16.msra.mxu0 %v6329
    %6455 = vmatpush.bf16.msra.mxu0 %v6326
    %6456 = vmatmul.bf16.gmra.mxu0 %v6368
    %v6457 = vpop.f32.mrf.mxu0
    %v6458 = vadd.f32 %v6434, %v6457
    %v6459 = vpop.f32.mrf.mxu0
    %v6460 = vadd.f32 %v6436, %v6459
    %6461 = vmatmul.bf16.gmra.mxu0 %v6371
    %v6462 = vpop.f32.mrf.mxu0
    %v6463 = vadd.f32 %v6439, %v6462
    %v6464 = vpop.f32.mrf.mxu0
    %v6465 = vadd.f32 %v6441, %v6464
    %6466 = vmatmul.bf16.gmra.mxu0 %v6374
    %v6467 = vpop.f32.mrf.mxu0
    %v6468 = vadd.f32 %v6444, %v6467
    %v6469 = vpop.f32.mrf.mxu0
    %v6470 = vadd.f32 %v6446, %v6469
    %6471 = vdwg.mxu0
    %6472 = vmatpush.bf16.msra.mxu0 %v6324
    %6473 = vmatpush.bf16.msra.mxu0 %v6321
    %6474 = vmatpush.bf16.msra.mxu0 %v6318
    %6475 = vmatpush.bf16.msra.mxu0 %v6315
    %6476 = vmatpush.bf16.msra.mxu0 %v6312
    %6477 = vmatpush.bf16.msra.mxu0 %v6309
    %6478 = vmatpush.bf16.msra.mxu0 %v6306
    %6479 = vmatpush.bf16.msra.mxu0 %v6303
    %6480 = vmatmul.bf16.gmra.mxu0 %v6180
    %v6481 = vpop.f32.mrf.mxu0
    %v6482 = vadd.f32 0.0, %v6481
    %v6483 = vpop.f32.mrf.mxu0
    %v6484 = vadd.f32 0.0, %v6483
    %6485 = vmatmul.bf16.gmra.mxu0 %v6185
    %v6486 = vpop.f32.mrf.mxu0
    %v6487 = vadd.f32 0.0, %v6486
    %v6488 = vpop.f32.mrf.mxu0
    %v6489 = vadd.f32 0.0, %v6488
    %6490 = vmatmul.bf16.gmra.mxu0 %v6184
    %v6491 = vpop.f32.mrf.mxu0
    %v6492 = vadd.f32 0.0, %v6491
    %v6493 = vpop.f32.mrf.mxu0
    %v6494 = vadd.f32 0.0, %v6493
    %6495 = vdwg.mxu0
    %6496 = vmatpush.bf16.msra.mxu0 0
    %6497 = vmatpush.bf16.msra.mxu0 0
    %6498 = vmatpush.bf16.msra.mxu0 0
    %6499 = vmatpush.bf16.msra.mxu0 0
    %6500 = vmatpush.bf16.msra.mxu0 0
    %6501 = vmatpush.bf16.msra.mxu0 %v6333
    %6502 = vmatpush.bf16.msra.mxu0 %v6330
    %6503 = vmatpush.bf16.msra.mxu0 %v6327
    %6504 = vmatmul.bf16.gmra.mxu0 %v6368
    %v6505 = vpop.f32.mrf.mxu0
    %v6506 = vadd.f32 %v6482, %v6505
    %v6507 = vpop.f32.mrf.mxu0
    %v6508 = vadd.f32 %v6484, %v6507
    %6509 = vmatmul.bf16.gmra.mxu0 %v6371
    %v6510 = vpop.f32.mrf.mxu0
    %v6511 = vadd.f32 %v6487, %v6510
    %v6512 = vpop.f32.mrf.mxu0
    %v6513 = vadd.f32 %v6489, %v6512
    %6514 = vmatmul.bf16.gmra.mxu0 %v6374
    %v6515 = vpop.f32.mrf.mxu0
    %v6516 = vadd.f32 %v6492, %v6515
    %v6517 = vpop.f32.mrf.mxu0
    %v6518 = vadd.f32 %v6494, %v6517
    %6519 = vdwg.mxu0
    %v6520 = vadd.f32 %v6017, %v6410
    %v6521 = vadd.f32 %v6065, %v6458
    %v6522 = vadd.f32 %v6113, %v6506
    %v6523 = vadd.f32 %v6019, %v6412
    %v6524 = vadd.f32 %v6067, %v6460
    %v6525 = vadd.f32 %v6115, %v6508
    %v6526 = vadd.f32 %v6022, %v6415
    %v6527 = vadd.f32 %v6070, %v6463
    %v6528 = vadd.f32 %v6118, %v6511
    %v6529 = vadd.f32 %v6024, %v6417
    %v6530 = vadd.f32 %v6072, %v6465
    %v6531 = vadd.f32 %v6120, %v6513
    %v6532 = vadd.f32 %v6027, %v6420
    %v6533 = vadd.f32 %v6075, %v6468
    %v6534 = vadd.f32 %v6123, %v6516
    %v6535 = vadd.f32 %v6029, %v6422
    %v6536 = vadd.f32 %v6077, %v6470
    %v6537 = vadd.f32 %v6125, %v6518
    %v6538 = vld [vmem:[%s6] sm:$0x7]
    %v6540 = vperm.slane %v6538, 0
    %v6541 = vperm.slane %v6538, 1
    %v6542 = vperm.slane %v6538, 2
    %v6546 = vadd.f32 %v6520, %v6540
    %v6547 = vadd.f32 %v6521, %v6541
    %v6548 = vadd.f32 %v6522, %v6542
    %v6549 = vadd.f32 %v6523, %v6540
    %v6550 = vadd.f32 %v6524, %v6541
    %v6551 = vadd.f32 %v6525, %v6542
    %v6552 = vadd.f32 %v6526, %v6540
    %v6553 = vadd.f32 %v6527, %v6541
    %v6554 = vadd.f32 %v6528, %v6542
    %v6555 = vadd.f32 %v6529, %v6540
    %v6556 = vadd.f32 %v6530, %v6541
    %v6557 = vadd.f32 %v6531, %v6542
    %v6558 = vadd.f32 %v6532, %v6540
    %v6559 = vadd.f32 %v6533, %v6541
    %v6560 = vadd.f32 %v6534, %v6542
    %v6561 = vadd.f32 %v6535, %v6540
    %v6562 = vadd.f32 %v6536, %v6541
    %v6563 = vadd.f32 %v6537, %v6542
    %v6564 = vmax.f32 %v6546, 0.0
    %v6565 = vmax.f32 %v6547, 0.0
    %v6566 = vmax.f32 %v6548, 0.0
    %v6567 = vmax.f32 %v6549, 0.0
    %v6568 = vmax.f32 %v6550, 0.0
    %v6569 = vmax.f32 %v6551, 0.0
    %v6570 = vmax.f32 %v6552, 0.0
    %v6571 = vmax.f32 %v6553, 0.0
    %v6572 = vmax.f32 %v6554, 0.0
    %v6573 = vmax.f32 %v6555, 0.0
    %v6574 = vmax.f32 %v6556, 0.0
    %v6575 = vmax.f32 %v6557, 0.0
    %v6576 = vmax.f32 %v6558, 0.0
    %v6577 = vmax.f32 %v6559, 0.0
    %v6578 = vmax.f32 %v6560, 0.0
    %v6579 = vmax.f32 %v6561, 0.0
    %v6580 = vmax.f32 %v6562, 0.0
    %v6581 = vmax.f32 %v6563, 0.0
    %6600 = vrot.lane.b32.xlu0 %v6564, 127
    %v6601 = vpop.permute.xlu0 %6600
    %6602 = vrot.lane.b32.xlu0 %v6565, 127
    %v6603 = vpop.permute.xlu0 %6602
    %6604 = vrot.lane.b32.xlu0 %v6566, 127
    %v6605 = vpop.permute.xlu0 %6604
    %6606 = vrot.lane.b32.xlu0 %v6567, 127
    %v6607 = vpop.permute.xlu0 %6606
    %6608 = vrot.lane.b32.xlu0 %v6568, 127
    %v6609 = vpop.permute.xlu0 %6608
    %6610 = vrot.lane.b32.xlu0 %v6569, 127
    %v6611 = vpop.permute.xlu0 %6610
    %6612 = vrot.lane.b32.xlu0 %v6570, 127
    %v6613 = vpop.permute.xlu0 %6612
    %6614 = vrot.lane.b32.xlu0 %v6571, 127
    %v6615 = vpop.permute.xlu0 %6614
    %6616 = vrot.lane.b32.xlu0 %v6572, 127
    %v6617 = vpop.permute.xlu0 %6616
    %6618 = vrot.lane.b32.xlu0 %v6573, 127
    %v6619 = vpop.permute.xlu0 %6618
    %6620 = vrot.lane.b32.xlu0 %v6574, 127
    %v6621 = vpop.permute.xlu0 %6620
    %6622 = vrot.lane.b32.xlu0 %v6575, 127
    %v6623 = vpop.permute.xlu0 %6622
    %6624 = vrot.lane.b32.xlu0 %v6576, 127
    %v6625 = vpop.permute.xlu0 %6624
    %6626 = vrot.lane.b32.xlu0 %v6577, 127
    %v6627 = vpop.permute.xlu0 %6626
    %6628 = vrot.lane.b32.xlu0 %v6578, 127
    %v6629 = vpop.permute.xlu0 %6628
    %6630 = vrot.lane.b32.xlu0 %v6579, 127
    %v6631 = vpop.permute.xlu0 %6630
    %6632 = vrot.lane.b32.xlu0 %v6580, 127
    %v6633 = vpop.permute.xlu0 %6632
    %6634 = vrot.lane.b32.xlu0 %v6581, 127
    %v6635 = vpop.permute.xlu0 %6634
    %v6636 = vsel %vm3209, %v6601, %v6603
    %v6637 = vsel %vm3209, %v6603, %v6605
    %v6638 = vsel %vm3209, %v6607, %v6609
    %v6639 = vsel %vm3209, %v6609, %v6611
    %v6640 = vsel %vm3209, %v6613, %v6615
    %v6641 = vsel %vm3209, %v6615, %v6617
    %v6642 = vsel %vm3209, %v6619, %v6621
    %v6643 = vsel %vm3209, %v6621, %v6623
    %v6644 = vsel %vm3209, %v6625, %v6627
    %v6645 = vsel %vm3209, %v6627, %v6629
    %v6646 = vsel %vm3209, %v6631, %v6633
    %v6647 = vsel %vm3209, %v6633, %v6635
    %v6666 = vmax.f32 %v6564, %v6636
    %v6667 = vmax.f32 %v6565, %v6637
    %v6668 = vmax.f32 %v6566, %v6605
    %v6669 = vmax.f32 %v6567, %v6638
    %v6670 = vmax.f32 %v6568, %v6639
    %v6671 = vmax.f32 %v6569, %v6611
    %v6672 = vmax.f32 %v6570, %v6640
    %v6673 = vmax.f32 %v6571, %v6641
    %v6674 = vmax.f32 %v6572, %v6617
    %v6675 = vmax.f32 %v6573, %v6642
    %v6676 = vmax.f32 %v6574, %v6643
    %v6677 = vmax.f32 %v6575, %v6623
    %v6678 = vmax.f32 %v6576, %v6644
    %v6679 = vmax.f32 %v6577, %v6645
    %v6680 = vmax.f32 %v6578, %v6629
    %v6681 = vmax.f32 %v6579, %v6646
    %v6682 = vmax.f32 %v6580, %v6647
    %v6683 = vmax.f32 %v6581, %v6635
    %v6684 = vpack.c.bf16 %v6669, %v6666
    %v6685 = vpack.c.bf16 %v6670, %v6667
    %v6686 = vpack.c.bf16 %v6671, %v6668
    %v6687 = vpack.c.bf16 %v6675, %v6672
    %v6688 = vpack.c.bf16 %v6676, %v6673
    %v6689 = vpack.c.bf16 %v6677, %v6674
    %v6690 = vpack.c.bf16 %v6681, %v6678
    %v6691 = vpack.c.bf16 %v6682, %v6679
    %v6692 = vpack.c.bf16 %v6683, %v6680
    %v6693 = vld [vmem:[%s7] sm:$0xff]
    %v6694 = vld [vmem:[%s7 + $0x8] sm:$0xff]
    %v6695 = vld [vmem:[%s7 + $0x10] sm:$0xff]
    %v6696 = vld [vmem:[%s7 + $0x18] sm:$0xff]
    %v6697 = vld [vmem:[%s7 + $0x20] sm:$0xff]
    %v6698 = vld [vmem:[%s7 + $0x28] sm:$0xff]
    %v6699 = vld [vmem:[%s7 + $0x30] sm:$0xff]
    %v6700 = vld [vmem:[%s7 + $0x38] sm:$0xff]
    %v6701 = vld [vmem:[%s7 + $0x40] sm:$0xff]
    %v6702 = vld [vmem:[%s7 + $0x48] sm:$0xff]
    %v6703 = vld [vmem:[%s7 + $0x50] sm:$0xff]
    %v6704 = vld [vmem:[%s7 + $0x58] sm:$0xff]
    %v6705 = vld [vmem:[%s7 + $0x60] sm:$0xff]
    %v6706 = vld [vmem:[%s7 + $0x68] sm:$0xff]
    %v6707 = vld [vmem:[%s7 + $0x70] sm:$0xff]
    %v6708 = vld [vmem:[%s7 + $0x78] sm:$0xff]
    %v6709 = vld [vmem:[%s7 + $0x80] sm:$0xff]
    %v6710 = vld [vmem:[%s7 + $0x88] sm:$0xff]
    %v6711 = vld [vmem:[%s7 + $0x90] sm:$0xff]
    %v6712 = vld [vmem:[%s7 + $0x98] sm:$0xff]
    %v6713 = vld [vmem:[%s7 + $0xa0] sm:$0xff]
    %v6714 = vld [vmem:[%s7 + $0xa8] sm:$0xff]
    %v6715 = vld [vmem:[%s7 + $0xb0] sm:$0xff]
    %v6716 = vld [vmem:[%s7 + $0xb8] sm:$0xff]
    %v6717 = vld [vmem:[%s7 + $0xc0] sm:$0xff]
    %v6718 = vld [vmem:[%s7 + $0xc8] sm:$0xff]
    %v6719 = vld [vmem:[%s7 + $0xd0] sm:$0xff]
    %v6720 = vld [vmem:[%s7 + $0xd8] sm:$0xff]
    %v6721 = vld [vmem:[%s7 + $0xe0] sm:$0xff]
    %v6722 = vld [vmem:[%s7 + $0xe8] sm:$0xff]
    %v6723 = vld [vmem:[%s7 + $0xf0] sm:$0xff]
    %v6724 = vld [vmem:[%s7 + $0xf8] sm:$0xff]
    %v6725 = vld [vmem:[%s7 + $0x100] sm:$0xff]
    %v6726 = vld [vmem:[%s7 + $0x108] sm:$0xff]
    %v6727 = vld [vmem:[%s7 + $0x110] sm:$0xff]
    %v6728 = vld [vmem:[%s7 + $0x118] sm:$0xff]
    %v6729 = vld [vmem:[%s7 + $0x120] sm:$0xff]
    %v6730 = vld [vmem:[%s7 + $0x128] sm:$0xff]
    %v6731 = vld [vmem:[%s7 + $0x130] sm:$0xff]
    %v6732 = vld [vmem:[%s7 + $0x138] sm:$0xff]
    %v6773 = vunpack.c.l.b16 %v6693
    %v6774 = vunpack.c.h.b16 %v6693
    %v6775 = vunpack.c.l.b16 %v6694
    %v6776 = vunpack.c.h.b16 %v6694
    %v6777 = vunpack.c.l.b16 %v6695
    %v6778 = vunpack.c.h.b16 %v6695
    %v6779 = vunpack.c.l.b16 %v6696
    %v6780 = vunpack.c.h.b16 %v6696
    %v6781 = vunpack.c.l.b16 %v6697
    %v6782 = vunpack.c.h.b16 %v6697
    %v6783 = vunpack.c.l.b16 %v6698
    %v6784 = vunpack.c.h.b16 %v6698
    %v6785 = vunpack.c.l.b16 %v6699
    %v6786 = vunpack.c.h.b16 %v6699
    %v6787 = vunpack.c.l.b16 %v6700
    %v6788 = vunpack.c.h.b16 %v6700
    %v6789 = vunpack.c.l.b16 %v6701
    %v6790 = vunpack.c.h.b16 %v6701
    %v6791 = vunpack.c.l.b16 %v6702
    %v6792 = vunpack.c.h.b16 %v6702
    %v6793 = vunpack.c.l.b16 %v6703
    %v6794 = vunpack.c.h.b16 %v6703
    %v6795 = vunpack.c.l.b16 %v6704
    %v6796 = vunpack.c.h.b16 %v6704
    %v6797 = vunpack.c.l.b16 %v6705
    %v6798 = vunpack.c.h.b16 %v6705
    %v6799 = vunpack.c.l.b16 %v6706
    %v6800 = vunpack.c.h.b16 %v6706
    %v6801 = vunpack.c.l.b16 %v6707
    %v6802 = vunpack.c.h.b16 %v6707
    %v6803 = vunpack.c.l.b16 %v6708
    %v6804 = vunpack.c.h.b16 %v6708
    %v6805 = vunpack.c.l.b16 %v6709
    %v6806 = vunpack.c.h.b16 %v6709
    %v6807 = vunpack.c.l.b16 %v6710
    %v6808 = vunpack.c.h.b16 %v6710
    %v6809 = vunpack.c.l.b16 %v6711
    %v6810 = vunpack.c.h.b16 %v6711
    %v6811 = vunpack.c.l.b16 %v6712
    %v6812 = vunpack.c.h.b16 %v6712
    %v6813 = vunpack.c.l.b16 %v6713
    %v6814 = vunpack.c.h.b16 %v6713
    %v6815 = vunpack.c.l.b16 %v6714
    %v6816 = vunpack.c.h.b16 %v6714
    %v6817 = vunpack.c.l.b16 %v6715
    %v6818 = vunpack.c.h.b16 %v6715
    %v6819 = vunpack.c.l.b16 %v6716
    %v6820 = vunpack.c.h.b16 %v6716
    %v6821 = vunpack.c.l.b16 %v6717
    %v6822 = vunpack.c.h.b16 %v6717
    %v6823 = vunpack.c.l.b16 %v6718
    %v6824 = vunpack.c.h.b16 %v6718
    %v6825 = vunpack.c.l.b16 %v6719
    %v6826 = vunpack.c.h.b16 %v6719
    %v6827 = vunpack.c.l.b16 %v6720
    %v6828 = vunpack.c.h.b16 %v6720
    %v6829 = vunpack.c.l.b16 %v6721
    %v6830 = vunpack.c.h.b16 %v6721
    %v6831 = vunpack.c.l.b16 %v6722
    %v6832 = vunpack.c.h.b16 %v6722
    %v6833 = vunpack.c.l.b16 %v6723
    %v6834 = vunpack.c.h.b16 %v6723
    %v6835 = vunpack.c.l.b16 %v6724
    %v6836 = vunpack.c.h.b16 %v6724
    %v6837 = vunpack.c.l.b16 %v6725
    %v6838 = vunpack.c.h.b16 %v6725
    %v6839 = vunpack.c.l.b16 %v6726
    %v6840 = vunpack.c.h.b16 %v6726
    %v6841 = vunpack.c.l.b16 %v6727
    %v6842 = vunpack.c.h.b16 %v6727
    %v6843 = vunpack.c.l.b16 %v6728
    %v6844 = vunpack.c.h.b16 %v6728
    %v6845 = vunpack.c.l.b16 %v6729
    %v6846 = vunpack.c.h.b16 %v6729
    %v6847 = vunpack.c.l.b16 %v6730
    %v6848 = vunpack.c.h.b16 %v6730
    %v6849 = vunpack.c.l.b16 %v6731
    %v6850 = vunpack.c.h.b16 %v6731
    %v6851 = vunpack.c.l.b16 %v6732
    %v6852 = vunpack.c.h.b16 %v6732
    %v6853 = vpack.c.b16 %v6775, %v6773
    %v6854 = vpack.c.b16 %v6776, %v6774
    %v6855 = vpack.c.b16 %v6779, %v6777
    %v6856 = vpack.c.b16 %v6780, %v6778
    %v6857 = vpack.c.b16 %v6783, %v6781
    %v6858 = vpack.c.b16 %v6784, %v6782
    %v6859 = vpack.c.b16 %v6787, %v6785
    %v6860 = vpack.c.b16 %v6788, %v6786
    %v6861 = vpack.c.b16 %v6791, %v6789
    %v6862 = vpack.c.b16 %v6792, %v6790
    %v6863 = vpack.c.b16 %v6795, %v6793
    %v6864 = vpack.c.b16 %v6796, %v6794
    %v6865 = vpack.c.b16 %v6799, %v6797
    %v6866 = vpack.c.b16 %v6800, %v6798
    %v6867 = vpack.c.b16 %v6803, %v6801
    %v6868 = vpack.c.b16 %v6804, %v6802
    %v6869 = vpack.c.b16 %v6807, %v6805
    %v6870 = vpack.c.b16 %v6808, %v6806
    %v6871 = vpack.c.b16 %v6811, %v6809
    %v6872 = vpack.c.b16 %v6812, %v6810
    %v6873 = vpack.c.b16 %v6815, %v6813
    %v6874 = vpack.c.b16 %v6816, %v6814
    %v6875 = vpack.c.b16 %v6819, %v6817
    %v6876 = vpack.c.b16 %v6820, %v6818
    %v6877 = vpack.c.b16 %v6823, %v6821
    %v6878 = vpack.c.b16 %v6824, %v6822
    %v6879 = vpack.c.b16 %v6827, %v6825
    %v6880 = vpack.c.b16 %v6828, %v6826
    %v6881 = vpack.c.b16 %v6831, %v6829
    %v6882 = vpack.c.b16 %v6832, %v6830
    %v6883 = vpack.c.b16 %v6835, %v6833
    %v6884 = vpack.c.b16 %v6836, %v6834
    %v6885 = vpack.c.b16 %v6839, %v6837
    %v6886 = vpack.c.b16 %v6840, %v6838
    %v6887 = vpack.c.b16 %v6843, %v6841
    %v6888 = vpack.c.b16 %v6844, %v6842
    %v6889 = vpack.c.b16 %v6847, %v6845
    %v6890 = vpack.c.b16 %v6848, %v6846
    %v6891 = vpack.c.b16 %v6851, %v6849
    %v6892 = vpack.c.b16 %v6852, %v6850
    %vm6931 = vcmask 515072
    %v6933 = vsel %vm6931, %v6686, 0
    %v6936 = vsel %vm6931, %v6689, 0
    %v6939 = vsel %vm6931, %v6692, 0
    %vm6941 = vcmask 1047552
    %v6942 = vsel %vm4324, 4294967295, 65535
    %v6943 = vsel %vm6941, %v6942, 0
    %v6945 = vand.u32 %v6891, %v6943
    %v6948 = vand.u32 %v6892, %v6943
    %6950 = vmatpush.bf16.msra.mxu0 %v6867
    %6951 = vmatpush.bf16.msra.mxu0 %v6865
    %6952 = vmatpush.bf16.msra.mxu0 %v6863
    %6953 = vmatpush.bf16.msra.mxu0 %v6861
    %6954 = vmatpush.bf16.msra.mxu0 %v6859
    %6955 = vmatpush.bf16.msra.mxu0 %v6857
    %6956 = vmatpush.bf16.msra.mxu0 %v6855
    %6957 = vmatpush.bf16.msra.mxu0 %v6853
    %6958 = vmatmul.bf16.gmra.mxu0 %v6684
    %v6959 = vpop.f32.mrf.mxu0
    %v6960 = vadd.f32 0.0, %v6959
    %v6961 = vpop.f32.mrf.mxu0
    %v6962 = vadd.f32 0.0, %v6961
    %6963 = vmatmul.bf16.gmra.mxu0 %v6687
    %v6964 = vpop.f32.mrf.mxu0
    %v6965 = vadd.f32 0.0, %v6964
    %v6966 = vpop.f32.mrf.mxu0
    %v6967 = vadd.f32 0.0, %v6966
    %6968 = vmatmul.bf16.gmra.mxu0 %v6690
    %v6969 = vpop.f32.mrf.mxu0
    %v6970 = vadd.f32 0.0, %v6969
    %v6971 = vpop.f32.mrf.mxu0
    %v6972 = vadd.f32 0.0, %v6971
    %6973 = vdwg.mxu0
    %6974 = vmatpush.bf16.msra.mxu0 %v6883
    %6975 = vmatpush.bf16.msra.mxu0 %v6881
    %6976 = vmatpush.bf16.msra.mxu0 %v6879
    %6977 = vmatpush.bf16.msra.mxu0 %v6877
    %6978 = vmatpush.bf16.msra.mxu0 %v6875
    %6979 = vmatpush.bf16.msra.mxu0 %v6873
    %6980 = vmatpush.bf16.msra.mxu0 %v6871
    %6981 = vmatpush.bf16.msra.mxu0 %v6869
    %6982 = vmatmul.bf16.gmra.mxu0 %v6685
    %v6983 = vpop.f32.mrf.mxu0
    %v6984 = vadd.f32 %v6960, %v6983
    %v6985 = vpop.f32.mrf.mxu0
    %v6986 = vadd.f32 %v6962, %v6985
    %6987 = vmatmul.bf16.gmra.mxu0 %v6688
    %v6988 = vpop.f32.mrf.mxu0
    %v6989 = vadd.f32 %v6965, %v6988
    %v6990 = vpop.f32.mrf.mxu0
    %v6991 = vadd.f32 %v6967, %v6990
    %6992 = vmatmul.bf16.gmra.mxu0 %v6691
    %v6993 = vpop.f32.mrf.mxu0
    %v6994 = vadd.f32 %v6970, %v6993
    %v6995 = vpop.f32.mrf.mxu0
    %v6996 = vadd.f32 %v6972, %v6995
    %6997 = vdwg.mxu0
    %6998 = vmatpush.bf16.msra.mxu0 0
    %6999 = vmatpush.bf16.msra.mxu0 0
    %7000 = vmatpush.bf16.msra.mxu0 0
    %7001 = vmatpush.bf16.msra.mxu0 0
    %7002 = vmatpush.bf16.msra.mxu0 %v6945
    %7003 = vmatpush.bf16.msra.mxu0 %v6889
    %7004 = vmatpush.bf16.msra.mxu0 %v6887
    %7005 = vmatpush.bf16.msra.mxu0 %v6885
    %7006 = vmatmul.bf16.gmra.mxu0 %v6933
    %v7007 = vpop.f32.mrf.mxu0
    %v7008 = vadd.f32 %v6984, %v7007
    %v7009 = vpop.f32.mrf.mxu0
    %v7010 = vadd.f32 %v6986, %v7009
    %7011 = vmatmul.bf16.gmra.mxu0 %v6936
    %v7012 = vpop.f32.mrf.mxu0
    %v7013 = vadd.f32 %v6989, %v7012
    %v7014 = vpop.f32.mrf.mxu0
    %v7015 = vadd.f32 %v6991, %v7014
    %7016 = vmatmul.bf16.gmra.mxu0 %v6939
    %v7017 = vpop.f32.mrf.mxu0
    %v7018 = vadd.f32 %v6994, %v7017
    %v7019 = vpop.f32.mrf.mxu0
    %v7020 = vadd.f32 %v6996, %v7019
    %7021 = vdwg.mxu0
    %7022 = vmatpush.bf16.msra.mxu0 %v6868
    %7023 = vmatpush.bf16.msra.mxu0 %v6866
    %7024 = vmatpush.bf16.msra.mxu0 %v6864
    %7025 = vmatpush.bf16.msra.mxu0 %v6862
    %7026 = vmatpush.bf16.msra.mxu0 %v6860
    %7027 = vmatpush.bf16.msra.mxu0 %v6858
    %7028 = vmatpush.bf16.msra.mxu0 %v6856
    %7029 = vmatpush.bf16.msra.mxu0 %v6854
    %7030 = vmatmul.bf16.gmra.mxu0 %v6684
    %v7031 = vpop.f32.mrf.mxu0
    %v7032 = vadd.f32 0.0, %v7031
    %v7033 = vpop.f32.mrf.mxu0
    %v7034 = vadd.f32 0.0, %v7033
    %7035 = vmatmul.bf16.gmra.mxu0 %v6687
    %v7036 = vpop.f32.mrf.mxu0
    %v7037 = vadd.f32 0.0, %v7036
    %v7038 = vpop.f32.mrf.mxu0
    %v7039 = vadd.f32 0.0, %v7038
    %7040 = vmatmul.bf16.gmra.mxu0 %v6690
    %v7041 = vpop.f32.mrf.mxu0
    %v7042 = vadd.f32 0.0, %v7041
    %v7043 = vpop.f32.mrf.mxu0
    %v7044 = vadd.f32 0.0, %v7043
    %7045 = vdwg.mxu0
    %7046 = vmatpush.bf16.msra.mxu0 %v6884
    %7047 = vmatpush.bf16.msra.mxu0 %v6882
    %7048 = vmatpush.bf16.msra.mxu0 %v6880
    %7049 = vmatpush.bf16.msra.mxu0 %v6878
    %7050 = vmatpush.bf16.msra.mxu0 %v6876
    %7051 = vmatpush.bf16.msra.mxu0 %v6874
    %7052 = vmatpush.bf16.msra.mxu0 %v6872
    %7053 = vmatpush.bf16.msra.mxu0 %v6870
    %7054 = vmatmul.bf16.gmra.mxu0 %v6685
    %v7055 = vpop.f32.mrf.mxu0
    %v7056 = vadd.f32 %v7032, %v7055
    %v7057 = vpop.f32.mrf.mxu0
    %v7058 = vadd.f32 %v7034, %v7057
    %7059 = vmatmul.bf16.gmra.mxu0 %v6688
    %v7060 = vpop.f32.mrf.mxu0
    %v7061 = vadd.f32 %v7037, %v7060
    %v7062 = vpop.f32.mrf.mxu0
    %v7063 = vadd.f32 %v7039, %v7062
    %7064 = vmatmul.bf16.gmra.mxu0 %v6691
    %v7065 = vpop.f32.mrf.mxu0
    %v7066 = vadd.f32 %v7042, %v7065
    %v7067 = vpop.f32.mrf.mxu0
    %v7068 = vadd.f32 %v7044, %v7067
    %7069 = vdwg.mxu0
    %7070 = vmatpush.bf16.msra.mxu0 0
    %7071 = vmatpush.bf16.msra.mxu0 0
    %7072 = vmatpush.bf16.msra.mxu0 0
    %7073 = vmatpush.bf16.msra.mxu0 0
    %7074 = vmatpush.bf16.msra.mxu0 %v6948
    %7075 = vmatpush.bf16.msra.mxu0 %v6890
    %7076 = vmatpush.bf16.msra.mxu0 %v6888
    %7077 = vmatpush.bf16.msra.mxu0 %v6886
    %7078 = vmatmul.bf16.gmra.mxu0 %v6933
    %v7079 = vpop.f32.mrf.mxu0
    %v7080 = vadd.f32 %v7056, %v7079
    %v7081 = vpop.f32.mrf.mxu0
    %v7082 = vadd.f32 %v7058, %v7081
    %7083 = vmatmul.bf16.gmra.mxu0 %v6936
    %v7084 = vpop.f32.mrf.mxu0
    %v7085 = vadd.f32 %v7061, %v7084
    %v7086 = vpop.f32.mrf.mxu0
    %v7087 = vadd.f32 %v7063, %v7086
    %7088 = vmatmul.bf16.gmra.mxu0 %v6939
    %v7089 = vpop.f32.mrf.mxu0
    %v7090 = vadd.f32 %v7066, %v7089
    %v7091 = vpop.f32.mrf.mxu0
    %v7092 = vadd.f32 %v7068, %v7091
    %7093 = vdwg.mxu0
    %v7106 = vrot.slane %v7008, 1
    %v7107 = vrot.slane %v7010, 1
    %v7108 = vsel %vm4324, %v7106, %v7107
    %v7109 = vrot.slane %v7080, 1
    %v7110 = vrot.slane %v7082, 1
    %v7111 = vsel %vm4324, %v7109, %v7110
    %v7112 = vrot.slane %v7013, 1
    %v7113 = vsel %vm4324, %v7107, %v7112
    %v7114 = vrot.slane %v7085, 1
    %v7115 = vsel %vm4324, %v7110, %v7114
    %v7116 = vrot.slane %v7015, 1
    %v7117 = vsel %vm4324, %v7112, %v7116
    %v7118 = vrot.slane %v7087, 1
    %v7119 = vsel %vm4324, %v7114, %v7118
    %v7120 = vrot.slane %v7018, 1
    %v7121 = vsel %vm4324, %v7116, %v7120
    %v7122 = vrot.slane %v7090, 1
    %v7123 = vsel %vm4324, %v7118, %v7122
    %v7124 = vrot.slane %v7020, 1
    %v7125 = vsel %vm4324, %v7120, %v7124
    %v7126 = vrot.slane %v7092, 1
    %v7127 = vsel %vm4324, %v7122, %v7126
    %v7140 = vmax.f32 %v7008, %v7108
    %v7141 = vmax.f32 %v7080, %v7111
    %v7142 = vmax.f32 %v7010, %v7113
    %v7143 = vmax.f32 %v7082, %v7115
    %v7144 = vmax.f32 %v7013, %v7117
    %v7145 = vmax.f32 %v7085, %v7119
    %v7146 = vmax.f32 %v7015, %v7121
    %v7147 = vmax.f32 %v7087, %v7123
    %v7148 = vmax.f32 %v7018, %v7125
    %v7149 = vmax.f32 %v7090, %v7127
    %v7150 = vmax.f32 %v7020, %v7124
    %v7151 = vmax.f32 %v7092, %v7126
    %v7152 = vld [vmem:[%s8] sm:$0xf]
    %v7153 = vld [vmem:[%s8 + $0x4] sm:$0xf]
    %v7154 = vld [vmem:[%s8 + $0x8] sm:$0x3]
    %v7155 = vpack.c.bf16 %v7142, %v7140
    %v7156 = vpack.c.bf16 %v7143, %v7141
    %v7157 = vpack.c.bf16 %v7146, %v7144
    %v7158 = vpack.c.bf16 %v7147, %v7145
    %v7159 = vpack.c.bf16 %v7150, %v7148
    %v7160 = vpack.c.bf16 %v7151, %v7149
    %v7164 = vunpack.c.l.b16 %v7152
    %v7165 = vunpack.c.l.b16 %v7153
    %v7166 = vunpack.c.l.b16 %v7154
    %v7167 = vpack.c.b16 %v7165, %v7164
    %v7168 = vpack.c.b16 %v7166, %v7166
    %vm7169 = vcmask 334848
    %v7171 = vsel %vm7169, %v7167, 0
    %v7174 = vsel %vm7169, %v7168, 0
    %vm7176 = vcmask 1043456
    %vm7177 = vcmask 1044480
    %v7178 = vsel %vm7176, 4294967295, 65535
    %v7179 = vsel %vm7177, %v7178, 0
    %v7181 = vand.u32 %v7159, %v7179
    %v7184 = vand.u32 %v7160, %v7179
    %7186 = vmatpush.bf16.msra.mxu0 0
    %7187 = vmatpush.bf16.msra.mxu0 0
    %7188 = vmatpush.bf16.msra.mxu0 0
    %7189 = vmatpush.bf16.msra.mxu0 0
    %7190 = vmatpush.bf16.msra.mxu0 0
    %7191 = vmatpush.bf16.msra.mxu0 %v7181
    %7192 = vmatpush.bf16.msra.mxu0 %v7157
    %7193 = vmatpush.bf16.msra.mxu0 %v7155
    %7194 = vmatmul.bf16.gmra.mxu0 %v7171
    %v7195 = vpop.f32.mrf.mxu0
    %v7196 = vadd.f32 0.0, %v7195
    %v7197 = vpop.f32.mrf.mxu0
    %v7198 = vadd.f32 0.0, %v7197
    %7199 = vmatmul.bf16.gmra.mxu0 %v7174
    %v7200 = vpop.f32.mrf.mxu0
    %v7201 = vadd.f32 0.0, %v7200
    %v7202 = vpop.f32.mrf.mxu0
    %7203 = vdwg.mxu0
    %7204 = vmatpush.bf16.msra.mxu0 0
    %7205 = vmatpush.bf16.msra.mxu0 0
    %7206 = vmatpush.bf16.msra.mxu0 0
    %7207 = vmatpush.bf16.msra.mxu0 0
    %7208 = vmatpush.bf16.msra.mxu0 0
    %7209 = vmatpush.bf16.msra.mxu0 %v7184
    %7210 = vmatpush.bf16.msra.mxu0 %v7158
    %7211 = vmatpush.bf16.msra.mxu0 %v7156
    %7212 = vmatmul.bf16.gmra.mxu0 %v7171
    %v7213 = vpop.f32.mrf.mxu0
    %v7214 = vadd.f32 0.0, %v7213
    %v7215 = vpop.f32.mrf.mxu0
    %v7216 = vadd.f32 0.0, %v7215
    %7217 = vmatmul.bf16.gmra.mxu0 %v7174
    %v7218 = vpop.f32.mrf.mxu0
    %v7219 = vadd.f32 0.0, %v7218
    %v7220 = vpop.f32.mrf.mxu0
    %7221 = vdwg.mxu0
    %v7222 = vpack.c.bf16 %v7214, %v7196
    %v7223 = vpack.c.bf16 %v7216, %v7198
    %v7224 = vpack.c.bf16 %v7219, %v7201
    %vm7225 = vcmask 261124
    %vm7226 = vmor %vm7225, %vm7176
    %7227 = vst.msk [vmem:[%s9] sm:$0xff] %vm7226, %v7222
    %7228 = vst.msk [vmem:[%s9 + $0x8] sm:$0xff] %vm7226, %v7223
    %vm7229 = vcmask 1041408
    %vm7230 = vcmask 259076
    %vm7231 = vmor %vm7230, %vm7229
    %7232 = vst.msk [vmem:[%s9 + $0x10] sm:$0x33] %vm7231, %v7224
    // Predicated region
    $region46: #{topological_nn_forward.5} parent=1 // pred_check
      _
    $region47: #{topological_nn_forward.5} parent=1 // pred_check_branch
      %7234 = sbr.rel (0) target = $region49
    $region48: #{topological_nn_forward.5} parent=1 // pred_region
      _
    $region49: #{topological_nn_forward.5} parent=1 // pred_fallthru
      _
    // Predicated region
    $region50: #{topological_nn_forward.5} parent=1 // pred_check
      _
    $region51: #{topological_nn_forward.5} parent=1 // pred_check_branch
      %7236 = sbr.rel (0) target = $region53
    $region52: #{topological_nn_forward.5} parent=1 // pred_region
      _
    $region53: #{topological_nn_forward.5} parent=1 // pred_fallthru
      _
    %7237 = vsyncpa [#allocation3], 1
    %7238 = vsyncpa [#allocation5], 1

</llo_original>
